<compile_context>
chip_gen: v7x
topology: tpu7x:2x2x1
jax: 0.10.0
libtpu: 0.0.40
codegen_flags: <defaults>
</compile_context>

<pallas_src>
import functools

import jax
import jax.numpy as jnp
from jax.experimental import pallas as pl
from jax.experimental.pallas import tpu as pltpu

K = 3              # all kernels are 3x3
BN_EPS = 1e-5
LANE = 128         # TPU lane width
KD_PAD_MAX_INFLATE = 4.0 / 3.0   # pad Kd to a 128-multiple only if <=33% more bytes


def _round_up(x, m):
    return (x + m - 1) // m * m


def _cdiv(a, b):
    return (a + b - 1) // b


# ----------------------------------------------------------------------------
# Per-generation tuning (row tile size, VMEM limit, minimum grid length)
# ----------------------------------------------------------------------------
@functools.lru_cache(maxsize=None)
def _tpu_tuning():
    try:
        kind = jax.devices()[0].device_kind.lower()
    except Exception:   # non-TPU fallback (e.g. interpret mode)
        kind = ""
    if "v7" in kind or "7x" in kind:
        # v7x: 64 MiB VMEM, 2 TensorCores -> prefer grid >= 2 over huge tiles.
        return {"max_tm": 1024, "vmem": 48 * 1024 * 1024, "min_grid": 2}
    if "v5" in kind or "v6" in kind:
        # v5e/v6e: 128 MiB VMEM, single TC -> big tiles amortize grid overhead.
        return {"max_tm": 2048, "vmem": 64 * 1024 * 1024, "min_grid": 1}
    return {"max_tm": 512, "vmem": 32 * 1024 * 1024, "min_grid": 1}


def _pick_row_tiling(M):
    cfg = _tpu_tuning()
    max_tm = cfg["max_tm"]
    if cfg["min_grid"] > 1 and M > 256:
        # v7x: keep at least `min_grid` row tiles so both TensorCores get work.
        max_tm = min(max_tm, _round_up(_cdiv(M, cfg["min_grid"]), 16))
    if M <= max_tm:
        tm = _round_up(max(M, 16), 16)
        mp = tm
    else:
        tm = max_tm
        mp = _round_up(M, tm)
    return tm, mp, cfg["vmem"]


# ----------------------------------------------------------------------------
# Pallas kernel: fused (im2col-matmul) + per-channel bias + activation
# (BatchNorm scale is pre-folded into the weight columns.)
# ----------------------------------------------------------------------------
def _fused_matmul_kernel(p_ref, w_ref, b_ref, o_ref, *, activation):
    # bf16 x bf16 -> f32 on the MXU
    acc = jnp.dot(p_ref[...], w_ref[...], preferred_element_type=jnp.float32)
    acc = acc + b_ref[...]                       # folded BN bias (+ conv bias)
    if activation == "relu":
        acc = jnp.maximum(acc, 0.0)
    elif activation == "sigmoid":
        # numerically stable sigmoid; tanh runs on the EUP slot.
        acc = 0.5 * (jnp.tanh(0.5 * acc) + 1.0)
    o_ref[...] = acc.astype(o_ref.dtype)


def _fused_matmul(patches, w_mat, scale, bias, activation, out_dtype):
    """act(patches @ (w_mat * scale) + bias), tiled over rows.

    patches: (M, Kd); w_mat: (Kd, Cout); scale/bias: (Cout,).
    Returns (M, Cout) in out_dtype.
    """
    M, Kd = patches.shape
    Cout = w_mat.shape[1]

    # Lane-dense output: pad Cout up to a multiple of 128 (unmasked stores).
    Coutp = max(LANE, _round_up(Cout, LANE))

    # Align the reduction (lane) dim of the patch matrix when cheap.
    Kdp = _round_up(Kd, LANE)
    if Kdp != Kd and Kdp > Kd * KD_PAD_MAX_INFLATE:
        Kdp = Kd    # padding would inflate patch HBM bytes too much; keep ragged

    TM, Mp, vmem_limit = _pick_row_tiling(M)

    # Fold the BN scale into the weight columns in f32, then cast to bf16.
    w = (w_mat.astype(jnp.float32) * scale.astype(jnp.float32)[None, :])
    w = w.astype(jnp.bfloat16)
    b = bias.astype(jnp.float32).reshape(1, Cout)

    p = patches.astype(jnp.bfloat16)
    if Mp != M or Kdp != Kd:
        p = jnp.pad(p, ((0, Mp - M), (0, Kdp - Kd)))
    if Kdp != Kd:
        w = jnp.pad(w, ((0, Kdp - Kd), (0, 0)))
    if Coutp != Cout:
        w = jnp.pad(w, ((0, 0), (0, Coutp - Cout)))
        b = jnp.pad(b, ((0, 0), (0, Coutp - Cout)))

    kernel = functools.partial(_fused_matmul_kernel, activation=activation)
    out = pl.pallas_call(
        kernel,
        out_shape=jax.ShapeDtypeStruct((Mp, Coutp), out_dtype),
        grid=(Mp // TM,),
        in_specs=[
            pl.BlockSpec((TM, Kdp), lambda i: (i, 0)),      # patch row tile
            pl.BlockSpec((Kdp, Coutp), lambda i: (0, 0)),   # scaled weights, resident
            pl.BlockSpec((1, Coutp), lambda i: (0, 0)),     # bn/conv bias
        ],
        out_specs=pl.BlockSpec((TM, Coutp), lambda i: (i, 0)),
        compiler_params=pltpu.CompilerParams(
            dimension_semantics=("parallel",),              # shard M over TCs
            vmem_limit_bytes=vmem_limit,
        ),
    )(p, w, b)
    # Slice padded rows / channels back BEFORE anything downstream sees them.
    return out[:M, :Cout]


# ----------------------------------------------------------------------------
# Plain-JAX glue: im2col patch extraction (gather/reshape only, bf16)
# ----------------------------------------------------------------------------
def _im2col(xp, stride):
    """xp: already-padded NHWC input. Returns (N*OH*OW, K*K*C), OH, OW."""
    N, Hp, Wp, C = xp.shape
    OH = (Hp - K) // stride + 1
    OW = (Wp - K) // stride + 1
    cols = []
    for kh in range(K):
        for kw in range(K):
            cols.append(
                xp[:, kh:kh + stride * OH:stride, kw:kw + stride * OW:stride, :]
            )
    p = jnp.stack(cols, axis=3)                  # (N, OH, OW, K*K, C)
    return p.reshape(N * OH * OW, K * K * C), OH, OW


# ----------------------------------------------------------------------------
# Layer wrappers (NHWC in / NHWC out)
# ----------------------------------------------------------------------------
def conv_bn_act(x, w, scale, bias, activation):
    """Conv2d(k=3, stride=2, pad=1) + folded BN + activation.
    w: (Cout, Cin, K, K) (PyTorch layout)."""
    N = x.shape[0]
    Cout, Cin = w.shape[0], w.shape[1]
    xp = jnp.pad(x, ((0, 0), (1, 1), (1, 1), (0, 0)))
    patches, OH, OW = _im2col(xp, stride=2)
    w_mat = jnp.transpose(w, (2, 3, 1, 0)).reshape(K * K * Cin, Cout)
    out_dtype = jnp.float32 if activation == "sigmoid" else jnp.bfloat16
    out = _fused_matmul(patches, w_mat, scale, bias, activation, out_dtype)
    return out.reshape(N, OH, OW, Cout)


def deconv_bn_act(x, wt, scale, bias, activation):
    """ConvTranspose2d(k=3, stride=2, pad=1, output_padding=1) + BN + act.

    Polyphase decomposition: output phase (py, px) at position (2i+py, 2j+px)
        out = sum_{dh,dw in {0,1}} x[i+dh, j+dw] . wt[:, :, 1+py-2dh, 1+px-2dw]
    (terms with kernel index outside [0, 2] are zero).  All four phases are
    packed into one matmul: reduction 4*Cin, output columns 4*Cout, then the
    phases are interleaved back to (N, 2H, 2W, Cout).  No zero-dilated input,
    no MXU work on structural zeros.  wt: (Cin, Cout, K, K) (PyTorch layout)."""
    N, H, W, Cin = x.shape
    Cout = wt.shape[1]

    # 2x2-tap im2col over the input padded by 1 on the high side only.
    xh = jnp.pad(x, ((0, 0), (0, 1), (0, 1), (0, 0)))
    taps = []
    for dh in range(2):
        for dw in range(2):
            taps.append(xh[:, dh:dh + H, dw:dw + W, :])
    patches = jnp.stack(taps, axis=3).reshape(N * H * W, 4 * Cin)

    # Packed weight: rows = tap (dh,dw) x Cin, cols = phase (py,px) x Cout.
    w_blocks = []
    for dh in range(2):
        for dw in range(2):
            row = []
            for py in range(2):
                for px in range(2):
                    kh = 1 + py - 2 * dh
                    kw = 1 + px - 2 * dw
                    if 0 <= kh < K and 0 <= kw < K:
                        row.append(wt[:, :, kh, kw])                 # (Cin, Cout)
                    else:
                        row.append(jnp.zeros((Cin, Cout), wt.dtype))
            w_blocks.append(jnp.concatenate(row, axis=1))            # (Cin, 4*Cout)
    w_packed = jnp.concatenate(w_blocks, axis=0)                     # (4*Cin, 4*Cout)

    scale4 = jnp.tile(scale, 4)
    bias4 = jnp.tile(bias, 4)

    out_dtype = jnp.float32 if activation == "sigmoid" else jnp.bfloat16
    out = _fused_matmul(patches, w_packed, scale4, bias4, activation, out_dtype)
    # Phase de-interleave (bf16 for all ReLU layers, f32 only for the last one).
    # TODO(synk): fold this de-interleave into the kernel's output index_map.
    out = out.reshape(N, H, W, 2, 2, Cout)
    out = jnp.transpose(out, (0, 1, 3, 2, 4, 5)).reshape(N, 2 * H, 2 * W, Cout)
    return out


# ----------------------------------------------------------------------------
# Parameter construction (deterministic, synthetic)
# ----------------------------------------------------------------------------
_CONV_SPECS = [(6, 16), (16, 32), (32, 64), (64, 128), (128, 256)]
_DECONV_SPECS = [(256, 128), (128, 64), (64, 32), (32, 16), (16, 3)]


def _fold_bn(conv_bias, gamma, beta, mean, var):
    scale = gamma / jnp.sqrt(var + BN_EPS)
    bias = (conv_bias - mean) * scale + beta
    return scale, bias


def init_params(key):
    params = []
    keys = jax.random.split(key, 64)
    ki = 0

    def nxt():
        nonlocal ki
        k = keys[ki]
        ki += 1
        return k

    # encoder conv layers (Conv2d + BN + ReLU)
    for cin, cout in _CONV_SPECS:
        fan_in = cin * K * K
        w = jax.random.normal(nxt(), (cout, cin, K, K), jnp.float32) * (1.0 / jnp.sqrt(fan_in))
        b = jax.random.normal(nxt(), (cout,), jnp.float32) * 0.05
        gamma = 1.0 + 0.1 * jax.random.normal(nxt(), (cout,), jnp.float32)
        beta = 0.1 * jax.random.normal(nxt(), (cout,), jnp.float32)
        mean = 0.1 * jax.random.normal(nxt(), (cout,), jnp.float32)
        var = jax.random.uniform(nxt(), (cout,), jnp.float32, 0.5, 1.5)
        scale, bias = _fold_bn(b, gamma, beta, mean, var)
        params.append(("conv", w, scale, bias, "relu"))

    # decoder layers (ConvTranspose2d + BN + ReLU), last one is Sigmoid, no BN
    for idx, (cin, cout) in enumerate(_DECONV_SPECS):
        fan_in = cin * K * K
        wt = jax.random.normal(nxt(), (cin, cout, K, K), jnp.float32) * (1.0 / jnp.sqrt(fan_in))
        b = jax.random.normal(nxt(), (cout,), jnp.float32) * 0.05
        if idx < len(_DECONV_SPECS) - 1:
            gamma = 1.0 + 0.1 * jax.random.normal(nxt(), (cout,), jnp.float32)
            beta = 0.1 * jax.random.normal(nxt(), (cout,), jnp.float32)
            mean = 0.1 * jax.random.normal(nxt(), (cout,), jnp.float32)
            var = jax.random.uniform(nxt(), (cout,), jnp.float32, 0.5, 1.5)
            scale, bias = _fold_bn(b, gamma, beta, mean, var)
            params.append(("deconv", wt, scale, bias, "relu"))
        else:
            params.append(("deconv", wt, jnp.ones((cout,), jnp.float32), b, "sigmoid"))
    return params


# ----------------------------------------------------------------------------
# Full forward pass (NCHW in -> NCHW out, matching the PyTorch module)
# ----------------------------------------------------------------------------
def hiding_net(params, x_nchw):
    # NCHW -> NHWC; activations live in bf16 between layers (final layer emits f32).
    x = jnp.transpose(x_nchw, (0, 2, 3, 1)).astype(jnp.bfloat16)
    for kind, w, scale, bias, act in params:
        if kind == "conv":
            x = conv_bn_act(x, w, scale, bias, act)
        else:
            x = deconv_bn_act(x, w, scale, bias, act)
    return jnp.transpose(x, (0, 3, 1, 2)).astype(jnp.float32)       # NHWC -> NCHW


if __name__ == "__main__":
    root = jax.random.PRNGKey(0)
    k_params, k_x = jax.random.split(root)
    params = init_params(k_params)

    # input: N=2, C=6 (cover+secret stacked), 32x32 spatial (divisible by 2^5)
    x = jax.random.normal(k_x, (2, 6, 32, 32), jnp.float32)

    y = jax.jit(lambda xx: hiding_net(params, xx))(x)
    y = jax.block_until_ready(y)

    assert y.shape == (2, 3, 32, 32), y.shape
    assert bool(jnp.all(jnp.isfinite(y)))
    assert bool(jnp.all((y >= 0.0) & (y <= 1.0)))   # sigmoid output range
    print("KERNEL_OK")
</pallas_src>

<mosaic_0001>
module attributes {stable_mosaic.version = 11 : i64} {
  func.func @_fused_matmul_kernel(%arg0: i32, %arg1: memref<512x54xbf16, #tpu.memory_space<vmem>>, %arg2: memref<54x128xbf16, #tpu.memory_space<vmem>>, %arg3: memref<1x128xf32, #tpu.memory_space<vmem>>, %arg4: memref<512x128xbf16, #tpu.memory_space<vmem>>) attributes {dimension_semantics = [#tpu.dimension_semantics<parallel>], iteration_bounds = array<i64: 1>, scalar_prefetch = 0 : i64, scratch_operands = 0 : i64, tpu.core_type = #tpu.core_type<tc>, window_params = [{transform_indices = @transform_0, window_bounds = array<i64: 512, 54>}, {pipeline_mode = #tpu.pipeline_mode<synchronous>, transform_indices = @transform_1, window_bounds = array<i64: 54, 128>}, {pipeline_mode = #tpu.pipeline_mode<synchronous>, transform_indices = @transform_2, window_bounds = array<i64: 1, 128>}, {transform_indices = @transform_3, window_bounds = array<i64: 512, 128>}]} {
    %c0 = arith.constant 0 : index
    %c0_0 = arith.constant 0 : index
    %0 = vector.load %arg1[%c0, %c0_0] : memref<512x54xbf16, #tpu.memory_space<vmem>>, vector<512x54xbf16>
    %c0_1 = arith.constant 0 : index
    %c0_2 = arith.constant 0 : index
    %1 = vector.load %arg2[%c0_1, %c0_2] : memref<54x128xbf16, #tpu.memory_space<vmem>>, vector<54x128xbf16>
    %cst = arith.constant dense<0.000000e+00> : vector<512x128xf32>
    %2 = tpu.matmul %0, %1, %cst {dimension_numbers = #tpu.dot_dimension_numbers<[1], [0], [0], [1], [0, 0, 1, 1], [], []>} : vector<512x54xbf16>, vector<54x128xbf16>, vector<512x128xf32> -> vector<512x128xf32>
    %c0_3 = arith.constant 0 : index
    %c0_4 = arith.constant 0 : index
    %3 = vector.load %arg3[%c0_3, %c0_4] : memref<1x128xf32, #tpu.memory_space<vmem>>, vector<1x128xf32>
    %4 = vector.broadcast %3 : vector<1x128xf32> to vector<512x128xf32>
    %5 = arith.addf %2, %4 : vector<512x128xf32>
    %cst_5 = arith.constant 0.000000e+00 : f32
    %6 = vector.broadcast %cst_5 : f32 to vector<512x128xf32>
    %7 = arith.maximumf %5, %6 : vector<512x128xf32>
    %8 = arith.truncf %7 : vector<512x128xf32> to vector<512x128xbf16>
    %c0_6 = arith.constant 0 : index
    %c0_7 = arith.constant 0 : index
    %9 = vector.load %arg4[%c0_6, %c0_7] : memref<512x128xbf16, #tpu.memory_space<vmem>>, vector<512x128xbf16>
    tpu.vector_store %arg4[%c0_6, %c0_7], %8 {strides = array<i32>} : memref<512x128xbf16, #tpu.memory_space<vmem>>, vector<512x128xbf16>,
    return
  }
  func.func @transform_0(%arg0: i32) -> (i32, i32) {
    %c0_i32 = arith.constant 0 : i32
    %c0_i32_0 = arith.constant 0 : i32
    return %arg0, %c0_i32 : i32, i32
  }
  func.func @transform_1(%arg0: i32) -> (i32, i32) {
    %c0_i32 = arith.constant 0 : i32
    %c0_i32_0 = arith.constant 0 : i32
    %c0_i32_1 = arith.constant 0 : i32
    return %c0_i32, %c0_i32_0 : i32, i32
  }
  func.func @transform_2(%arg0: i32) -> (i32, i32) {
    %c0_i32 = arith.constant 0 : i32
    %c0_i32_0 = arith.constant 0 : i32
    %c0_i32_1 = arith.constant 0 : i32
    return %c0_i32, %c0_i32_0 : i32, i32
  }
  func.func @transform_3(%arg0: i32) -> (i32, i32) {
    %c0_i32 = arith.constant 0 : i32
    %c0_i32_0 = arith.constant 0 : i32
    return %arg0, %c0_i32 : i32, i32
  }
}

module attributes {stable_mosaic.version = 11 : i64} {
  func.func @_fused_matmul_kernel(%arg0: i32, %arg1: memref<128x144xbf16, #tpu.memory_space<vmem>>, %arg2: memref<144x128xbf16, #tpu.memory_space<vmem>>, %arg3: memref<1x128xf32, #tpu.memory_space<vmem>>, %arg4: memref<128x128xbf16, #tpu.memory_space<vmem>>) attributes {dimension_semantics = [#tpu.dimension_semantics<parallel>], iteration_bounds = array<i64: 1>, scalar_prefetch = 0 : i64, scratch_operands = 0 : i64, tpu.core_type = #tpu.core_type<tc>, window_params = [{transform_indices = @transform_0, window_bounds = array<i64: 128, 144>}, {pipeline_mode = #tpu.pipeline_mode<synchronous>, transform_indices = @transform_1, window_bounds = array<i64: 144, 128>}, {pipeline_mode = #tpu.pipeline_mode<synchronous>, transform_indices = @transform_2, window_bounds = array<i64: 1, 128>}, {transform_indices = @transform_3, window_bounds = array<i64: 128, 128>}]} {
    %c0 = arith.constant 0 : index
    %c0_0 = arith.constant 0 : index
    %0 = vector.load %arg1[%c0, %c0_0] : memref<128x144xbf16, #tpu.memory_space<vmem>>, vector<128x144xbf16>
    %c0_1 = arith.constant 0 : index
    %c0_2 = arith.constant 0 : index
    %1 = vector.load %arg2[%c0_1, %c0_2] : memref<144x128xbf16, #tpu.memory_space<vmem>>, vector<144x128xbf16>
    %cst = arith.constant dense<0.000000e+00> : vector<128x128xf32>
    %2 = tpu.matmul %0, %1, %cst {dimension_numbers = #tpu.dot_dimension_numbers<[1], [0], [0], [1], [0, 0, 1, 1], [], []>} : vector<128x144xbf16>, vector<144x128xbf16>, vector<128x128xf32> -> vector<128x128xf32>
    %c0_3 = arith.constant 0 : index
    %c0_4 = arith.constant 0 : index
    %3 = vector.load %arg3[%c0_3, %c0_4] : memref<1x128xf32, #tpu.memory_space<vmem>>, vector<1x128xf32>
    %4 = vector.broadcast %3 : vector<1x128xf32> to vector<128x128xf32>
    %5 = arith.addf %2, %4 : vector<128x128xf32>
    %cst_5 = arith.constant 0.000000e+00 : f32
    %6 = vector.broadcast %cst_5 : f32 to vector<128x128xf32>
    %7 = arith.maximumf %5, %6 : vector<128x128xf32>
    %8 = arith.truncf %7 : vector<128x128xf32> to vector<128x128xbf16>
    %c0_6 = arith.constant 0 : index
    %c0_7 = arith.constant 0 : index
    %9 = vector.load %arg4[%c0_6, %c0_7] : memref<128x128xbf16, #tpu.memory_space<vmem>>, vector<128x128xbf16>
    tpu.vector_store %arg4[%c0_6, %c0_7], %8 {strides = array<i32>} : memref<128x128xbf16, #tpu.memory_space<vmem>>, vector<128x128xbf16>,
    return
  }
  func.func @transform_0(%arg0: i32) -> (i32, i32) {
    %c0_i32 = arith.constant 0 : i32
    %c0_i32_0 = arith.constant 0 : i32
    return %arg0, %c0_i32 : i32, i32
  }
  func.func @transform_1(%arg0: i32) -> (i32, i32) {
    %c0_i32 = arith.constant 0 : i32
    %c0_i32_0 = arith.constant 0 : i32
    %c0_i32_1 = arith.constant 0 : i32
    return %c0_i32, %c0_i32_0 : i32, i32
  }
  func.func @transform_2(%arg0: i32) -> (i32, i32) {
    %c0_i32 = arith.constant 0 : i32
    %c0_i32_0 = arith.constant 0 : i32
    %c0_i32_1 = arith.constant 0 : i32
    return %c0_i32, %c0_i32_0 : i32, i32
  }
  func.func @transform_3(%arg0: i32) -> (i32, i32) {
    %c0_i32 = arith.constant 0 : i32
    %c0_i32_0 = arith.constant 0 : i32
    return %arg0, %c0_i32 : i32, i32
  }
}

module attributes {stable_mosaic.version = 11 : i64} {
  func.func @_fused_matmul_kernel(%arg0: i32, %arg1: memref<32x384xbf16, #tpu.memory_space<vmem>>, %arg2: memref<384x128xbf16, #tpu.memory_space<vmem>>, %arg3: memref<1x128xf32, #tpu.memory_space<vmem>>, %arg4: memref<32x128xbf16, #tpu.memory_space<vmem>>) attributes {dimension_semantics = [#tpu.dimension_semantics<parallel>], iteration_bounds = array<i64: 1>, scalar_prefetch = 0 : i64, scratch_operands = 0 : i64, tpu.core_type = #tpu.core_type<tc>, window_params = [{transform_indices = @transform_0, window_bounds = array<i64: 32, 384>}, {pipeline_mode = #tpu.pipeline_mode<synchronous>, transform_indices = @transform_1, window_bounds = array<i64: 384, 128>}, {pipeline_mode = #tpu.pipeline_mode<synchronous>, transform_indices = @transform_2, window_bounds = array<i64: 1, 128>}, {transform_indices = @transform_3, window_bounds = array<i64: 32, 128>}]} {
    %c0 = arith.constant 0 : index
    %c0_0 = arith.constant 0 : index
    %0 = vector.load %arg1[%c0, %c0_0] : memref<32x384xbf16, #tpu.memory_space<vmem>>, vector<32x384xbf16>
    %c0_1 = arith.constant 0 : index
    %c0_2 = arith.constant 0 : index
    %1 = vector.load %arg2[%c0_1, %c0_2] : memref<384x128xbf16, #tpu.memory_space<vmem>>, vector<384x128xbf16>
    %cst = arith.constant dense<0.000000e+00> : vector<32x128xf32>
    %2 = tpu.matmul %0, %1, %cst {dimension_numbers = #tpu.dot_dimension_numbers<[1], [0], [0], [1], [0, 0, 1, 1], [], []>} : vector<32x384xbf16>, vector<384x128xbf16>, vector<32x128xf32> -> vector<32x128xf32>
    %c0_3 = arith.constant 0 : index
    %c0_4 = arith.constant 0 : index
    %3 = vector.load %arg3[%c0_3, %c0_4] : memref<1x128xf32, #tpu.memory_space<vmem>>, vector<1x128xf32>
    %4 = vector.broadcast %3 : vector<1x128xf32> to vector<32x128xf32>
    %5 = arith.addf %2, %4 : vector<32x128xf32>
    %cst_5 = arith.constant 0.000000e+00 : f32
    %6 = vector.broadcast %cst_5 : f32 to vector<32x128xf32>
    %7 = arith.maximumf %5, %6 : vector<32x128xf32>
    %8 = arith.truncf %7 : vector<32x128xf32> to vector<32x128xbf16>
    %c0_6 = arith.constant 0 : index
    %c0_7 = arith.constant 0 : index
    %9 = vector.load %arg4[%c0_6, %c0_7] : memref<32x128xbf16, #tpu.memory_space<vmem>>, vector<32x128xbf16>
    tpu.vector_store %arg4[%c0_6, %c0_7], %8 {strides = array<i32>} : memref<32x128xbf16, #tpu.memory_space<vmem>>, vector<32x128xbf16>,
    return
  }
  func.func @transform_0(%arg0: i32) -> (i32, i32) {
    %c0_i32 = arith.constant 0 : i32
    %c0_i32_0 = arith.constant 0 : i32
    return %arg0, %c0_i32 : i32, i32
  }
  func.func @transform_1(%arg0: i32) -> (i32, i32) {
    %c0_i32 = arith.constant 0 : i32
    %c0_i32_0 = arith.constant 0 : i32
    %c0_i32_1 = arith.constant 0 : i32
    return %c0_i32, %c0_i32_0 : i32, i32
  }
  func.func @transform_2(%arg0: i32) -> (i32, i32) {
    %c0_i32 = arith.constant 0 : i32
    %c0_i32_0 = arith.constant 0 : i32
    %c0_i32_1 = arith.constant 0 : i32
    return %c0_i32, %c0_i32_0 : i32, i32
  }
  func.func @transform_3(%arg0: i32) -> (i32, i32) {
    %c0_i32 = arith.constant 0 : i32
    %c0_i32_0 = arith.constant 0 : i32
    return %arg0, %c0_i32 : i32, i32
  }
}

module attributes {stable_mosaic.version = 11 : i64} {
  func.func @_fused_matmul_kernel(%arg0: i32, %arg1: memref<16x640xbf16, #tpu.memory_space<vmem>>, %arg2: memref<640x128xbf16, #tpu.memory_space<vmem>>, %arg3: memref<1x128xf32, #tpu.memory_space<vmem>>, %arg4: memref<16x128xbf16, #tpu.memory_space<vmem>>) attributes {dimension_semantics = [#tpu.dimension_semantics<parallel>], iteration_bounds = array<i64: 1>, scalar_prefetch = 0 : i64, scratch_operands = 0 : i64, tpu.core_type = #tpu.core_type<tc>, window_params = [{transform_indices = @transform_0, window_bounds = array<i64: 16, 640>}, {pipeline_mode = #tpu.pipeline_mode<synchronous>, transform_indices = @transform_1, window_bounds = array<i64: 640, 128>}, {pipeline_mode = #tpu.pipeline_mode<synchronous>, transform_indices = @transform_2, window_bounds = array<i64: 1, 128>}, {transform_indices = @transform_3, window_bounds = array<i64: 16, 128>}]} {
    %c0 = arith.constant 0 : index
    %c0_0 = arith.constant 0 : index
    %0 = vector.load %arg1[%c0, %c0_0] : memref<16x640xbf16, #tpu.memory_space<vmem>>, vector<16x640xbf16>
    %c0_1 = arith.constant 0 : index
    %c0_2 = arith.constant 0 : index
    %1 = vector.load %arg2[%c0_1, %c0_2] : memref<640x128xbf16, #tpu.memory_space<vmem>>, vector<640x128xbf16>
    %cst = arith.constant dense<0.000000e+00> : vector<16x128xf32>
    %2 = tpu.matmul %0, %1, %cst {dimension_numbers = #tpu.dot_dimension_numbers<[1], [0], [0], [1], [0, 0, 1, 1], [], []>} : vector<16x640xbf16>, vector<640x128xbf16>, vector<16x128xf32> -> vector<16x128xf32>
    %c0_3 = arith.constant 0 : index
    %c0_4 = arith.constant 0 : index
    %3 = vector.load %arg3[%c0_3, %c0_4] : memref<1x128xf32, #tpu.memory_space<vmem>>, vector<1x128xf32>
    %4 = vector.broadcast %3 : vector<1x128xf32> to vector<16x128xf32>
    %5 = arith.addf %2, %4 : vector<16x128xf32>
    %cst_5 = arith.constant 0.000000e+00 : f32
    %6 = vector.broadcast %cst_5 : f32 to vector<16x128xf32>
    %7 = arith.maximumf %5, %6 : vector<16x128xf32>
    %8 = arith.truncf %7 : vector<16x128xf32> to vector<16x128xbf16>
    %c0_6 = arith.constant 0 : index
    %c0_7 = arith.constant 0 : index
    %9 = vector.load %arg4[%c0_6, %c0_7] : memref<16x128xbf16, #tpu.memory_space<vmem>>, vector<16x128xbf16>
    tpu.vector_store %arg4[%c0_6, %c0_7], %8 {strides = array<i32>} : memref<16x128xbf16, #tpu.memory_space<vmem>>, vector<16x128xbf16>,
    return
  }
  func.func @transform_0(%arg0: i32) -> (i32, i32) {
    %c0_i32 = arith.constant 0 : i32
    %c0_i32_0 = arith.constant 0 : i32
    return %arg0, %c0_i32 : i32, i32
  }
  func.func @transform_1(%arg0: i32) -> (i32, i32) {
    %c0_i32 = arith.constant 0 : i32
    %c0_i32_0 = arith.constant 0 : i32
    %c0_i32_1 = arith.constant 0 : i32
    return %c0_i32, %c0_i32_0 : i32, i32
  }
  func.func @transform_2(%arg0: i32) -> (i32, i32) {
    %c0_i32 = arith.constant 0 : i32
    %c0_i32_0 = arith.constant 0 : i32
    %c0_i32_1 = arith.constant 0 : i32
    return %c0_i32, %c0_i32_0 : i32, i32
  }
  func.func @transform_3(%arg0: i32) -> (i32, i32) {
    %c0_i32 = arith.constant 0 : i32
    %c0_i32_0 = arith.constant 0 : i32
    return %arg0, %c0_i32 : i32, i32
  }
}

module attributes {stable_mosaic.version = 11 : i64} {
  func.func @_fused_matmul_kernel(%arg0: i32, %arg1: memref<16x1152xbf16, #tpu.memory_space<vmem>>, %arg2: memref<1152x256xbf16, #tpu.memory_space<vmem>>, %arg3: memref<1x256xf32, #tpu.memory_space<vmem>>, %arg4: memref<16x256xbf16, #tpu.memory_space<vmem>>) attributes {dimension_semantics = [#tpu.dimension_semantics<parallel>], iteration_bounds = array<i64: 1>, scalar_prefetch = 0 : i64, scratch_operands = 0 : i64, tpu.core_type = #tpu.core_type<tc>, window_params = [{transform_indices = @transform_0, window_bounds = array<i64: 16, 1152>}, {pipeline_mode = #tpu.pipeline_mode<synchronous>, transform_indices = @transform_1, window_bounds = array<i64: 1152, 256>}, {pipeline_mode = #tpu.pipeline_mode<synchronous>, transform_indices = @transform_2, window_bounds = array<i64: 1, 256>}, {transform_indices = @transform_3, window_bounds = array<i64: 16, 256>}]} {
    %c0 = arith.constant 0 : index
    %c0_0 = arith.constant 0 : index
    %0 = vector.load %arg1[%c0, %c0_0] : memref<16x1152xbf16, #tpu.memory_space<vmem>>, vector<16x1152xbf16>
    %c0_1 = arith.constant 0 : index
    %c0_2 = arith.constant 0 : index
    %1 = vector.load %arg2[%c0_1, %c0_2] : memref<1152x256xbf16, #tpu.memory_space<vmem>>, vector<1152x256xbf16>
    %cst = arith.constant dense<0.000000e+00> : vector<16x256xf32>
    %2 = tpu.matmul %0, %1, %cst {dimension_numbers = #tpu.dot_dimension_numbers<[1], [0], [0], [1], [0, 0, 1, 1], [], []>} : vector<16x1152xbf16>, vector<1152x256xbf16>, vector<16x256xf32> -> vector<16x256xf32>
    %c0_3 = arith.constant 0 : index
    %c0_4 = arith.constant 0 : index
    %3 = vector.load %arg3[%c0_3, %c0_4] : memref<1x256xf32, #tpu.memory_space<vmem>>, vector<1x256xf32>
    %4 = vector.broadcast %3 : vector<1x256xf32> to vector<16x256xf32>
    %5 = arith.addf %2, %4 : vector<16x256xf32>
    %cst_5 = arith.constant 0.000000e+00 : f32
    %6 = vector.broadcast %cst_5 : f32 to vector<16x256xf32>
    %7 = arith.maximumf %5, %6 : vector<16x256xf32>
    %8 = arith.truncf %7 : vector<16x256xf32> to vector<16x256xbf16>
    %c0_6 = arith.constant 0 : index
    %c0_7 = arith.constant 0 : index
    %9 = vector.load %arg4[%c0_6, %c0_7] : memref<16x256xbf16, #tpu.memory_space<vmem>>, vector<16x256xbf16>
    tpu.vector_store %arg4[%c0_6, %c0_7], %8 {strides = array<i32>} : memref<16x256xbf16, #tpu.memory_space<vmem>>, vector<16x256xbf16>,
    return
  }
  func.func @transform_0(%arg0: i32) -> (i32, i32) {
    %c0_i32 = arith.constant 0 : i32
    %c0_i32_0 = arith.constant 0 : i32
    return %arg0, %c0_i32 : i32, i32
  }
  func.func @transform_1(%arg0: i32) -> (i32, i32) {
    %c0_i32 = arith.constant 0 : i32
    %c0_i32_0 = arith.constant 0 : i32
    %c0_i32_1 = arith.constant 0 : i32
    return %c0_i32, %c0_i32_0 : i32, i32
  }
  func.func @transform_2(%arg0: i32) -> (i32, i32) {
    %c0_i32 = arith.constant 0 : i32
    %c0_i32_0 = arith.constant 0 : i32
    %c0_i32_1 = arith.constant 0 : i32
    return %c0_i32, %c0_i32_0 : i32, i32
  }
  func.func @transform_3(%arg0: i32) -> (i32, i32) {
    %c0_i32 = arith.constant 0 : i32
    %c0_i32_0 = arith.constant 0 : i32
    return %arg0, %c0_i32 : i32, i32
  }
}

module attributes {stable_mosaic.version = 11 : i64} {
  func.func @_fused_matmul_kernel(%arg0: i32, %arg1: memref<16x1024xbf16, #tpu.memory_space<vmem>>, %arg2: memref<1024x512xbf16, #tpu.memory_space<vmem>>, %arg3: memref<1x512xf32, #tpu.memory_space<vmem>>, %arg4: memref<16x512xbf16, #tpu.memory_space<vmem>>) attributes {dimension_semantics = [#tpu.dimension_semantics<parallel>], iteration_bounds = array<i64: 1>, scalar_prefetch = 0 : i64, scratch_operands = 0 : i64, tpu.core_type = #tpu.core_type<tc>, window_params = [{transform_indices = @transform_0, window_bounds = array<i64: 16, 1024>}, {pipeline_mode = #tpu.pipeline_mode<synchronous>, transform_indices = @transform_1, window_bounds = array<i64: 1024, 512>}, {pipeline_mode = #tpu.pipeline_mode<synchronous>, transform_indices = @transform_2, window_bounds = array<i64: 1, 512>}, {transform_indices = @transform_3, window_bounds = array<i64: 16, 512>}]} {
    %c0 = arith.constant 0 : index
    %c0_0 = arith.constant 0 : index
    %0 = vector.load %arg1[%c0, %c0_0] : memref<16x1024xbf16, #tpu.memory_space<vmem>>, vector<16x1024xbf16>
    %c0_1 = arith.constant 0 : index
    %c0_2 = arith.constant 0 : index
    %1 = vector.load %arg2[%c0_1, %c0_2] : memref<1024x512xbf16, #tpu.memory_space<vmem>>, vector<1024x512xbf16>
    %cst = arith.constant dense<0.000000e+00> : vector<16x512xf32>
    %2 = tpu.matmul %0, %1, %cst {dimension_numbers = #tpu.dot_dimension_numbers<[1], [0], [0], [1], [0, 0, 1, 1], [], []>} : vector<16x1024xbf16>, vector<1024x512xbf16>, vector<16x512xf32> -> vector<16x512xf32>
    %c0_3 = arith.constant 0 : index
    %c0_4 = arith.constant 0 : index
    %3 = vector.load %arg3[%c0_3, %c0_4] : memref<1x512xf32, #tpu.memory_space<vmem>>, vector<1x512xf32>
    %4 = vector.broadcast %3 : vector<1x512xf32> to vector<16x512xf32>
    %5 = arith.addf %2, %4 : vector<16x512xf32>
    %cst_5 = arith.constant 0.000000e+00 : f32
    %6 = vector.broadcast %cst_5 : f32 to vector<16x512xf32>
    %7 = arith.maximumf %5, %6 : vector<16x512xf32>
    %8 = arith.truncf %7 : vector<16x512xf32> to vector<16x512xbf16>
    %c0_6 = arith.constant 0 : index
    %c0_7 = arith.constant 0 : index
    %9 = vector.load %arg4[%c0_6, %c0_7] : memref<16x512xbf16, #tpu.memory_space<vmem>>, vector<16x512xbf16>
    tpu.vector_store %arg4[%c0_6, %c0_7], %8 {strides = array<i32>} : memref<16x512xbf16, #tpu.memory_space<vmem>>, vector<16x512xbf16>,
    return
  }
  func.func @transform_0(%arg0: i32) -> (i32, i32) {
    %c0_i32 = arith.constant 0 : i32
    %c0_i32_0 = arith.constant 0 : i32
    return %arg0, %c0_i32 : i32, i32
  }
  func.func @transform_1(%arg0: i32) -> (i32, i32) {
    %c0_i32 = arith.constant 0 : i32
    %c0_i32_0 = arith.constant 0 : i32
    %c0_i32_1 = arith.constant 0 : i32
    return %c0_i32, %c0_i32_0 : i32, i32
  }
  func.func @transform_2(%arg0: i32) -> (i32, i32) {
    %c0_i32 = arith.constant 0 : i32
    %c0_i32_0 = arith.constant 0 : i32
    %c0_i32_1 = arith.constant 0 : i32
    return %c0_i32, %c0_i32_0 : i32, i32
  }
  func.func @transform_3(%arg0: i32) -> (i32, i32) {
    %c0_i32 = arith.constant 0 : i32
    %c0_i32_0 = arith.constant 0 : i32
    return %arg0, %c0_i32 : i32, i32
  }
}

module attributes {stable_mosaic.version = 11 : i64} {
  func.func @_fused_matmul_kernel(%arg0: i32, %arg1: memref<16x512xbf16, #tpu.memory_space<vmem>>, %arg2: memref<512x256xbf16, #tpu.memory_space<vmem>>, %arg3: memref<1x256xf32, #tpu.memory_space<vmem>>, %arg4: memref<16x256xbf16, #tpu.memory_space<vmem>>) attributes {dimension_semantics = [#tpu.dimension_semantics<parallel>], iteration_bounds = array<i64: 1>, scalar_prefetch = 0 : i64, scratch_operands = 0 : i64, tpu.core_type = #tpu.core_type<tc>, window_params = [{transform_indices = @transform_0, window_bounds = array<i64: 16, 512>}, {pipeline_mode = #tpu.pipeline_mode<synchronous>, transform_indices = @transform_1, window_bounds = array<i64: 512, 256>}, {pipeline_mode = #tpu.pipeline_mode<synchronous>, transform_indices = @transform_2, window_bounds = array<i64: 1, 256>}, {transform_indices = @transform_3, window_bounds = array<i64: 16, 256>}]} {
    %c0 = arith.constant 0 : index
    %c0_0 = arith.constant 0 : index
    %0 = vector.load %arg1[%c0, %c0_0] : memref<16x512xbf16, #tpu.memory_space<vmem>>, vector<16x512xbf16>
    %c0_1 = arith.constant 0 : index
    %c0_2 = arith.constant 0 : index
    %1 = vector.load %arg2[%c0_1, %c0_2] : memref<512x256xbf16, #tpu.memory_space<vmem>>, vector<512x256xbf16>
    %cst = arith.constant dense<0.000000e+00> : vector<16x256xf32>
    %2 = tpu.matmul %0, %1, %cst {dimension_numbers = #tpu.dot_dimension_numbers<[1], [0], [0], [1], [0, 0, 1, 1], [], []>} : vector<16x512xbf16>, vector<512x256xbf16>, vector<16x256xf32> -> vector<16x256xf32>
    %c0_3 = arith.constant 0 : index
    %c0_4 = arith.constant 0 : index
    %3 = vector.load %arg3[%c0_3, %c0_4] : memref<1x256xf32, #tpu.memory_space<vmem>>, vector<1x256xf32>
    %4 = vector.broadcast %3 : vector<1x256xf32> to vector<16x256xf32>
    %5 = arith.addf %2, %4 : vector<16x256xf32>
    %cst_5 = arith.constant 0.000000e+00 : f32
    %6 = vector.broadcast %cst_5 : f32 to vector<16x256xf32>
    %7 = arith.maximumf %5, %6 : vector<16x256xf32>
    %8 = arith.truncf %7 : vector<16x256xf32> to vector<16x256xbf16>
    %c0_6 = arith.constant 0 : index
    %c0_7 = arith.constant 0 : index
    %9 = vector.load %arg4[%c0_6, %c0_7] : memref<16x256xbf16, #tpu.memory_space<vmem>>, vector<16x256xbf16>
    tpu.vector_store %arg4[%c0_6, %c0_7], %8 {strides = array<i32>} : memref<16x256xbf16, #tpu.memory_space<vmem>>, vector<16x256xbf16>,
    return
  }
  func.func @transform_0(%arg0: i32) -> (i32, i32) {
    %c0_i32 = arith.constant 0 : i32
    %c0_i32_0 = arith.constant 0 : i32
    return %arg0, %c0_i32 : i32, i32
  }
  func.func @transform_1(%arg0: i32) -> (i32, i32) {
    %c0_i32 = arith.constant 0 : i32
    %c0_i32_0 = arith.constant 0 : i32
    %c0_i32_1 = arith.constant 0 : i32
    return %c0_i32, %c0_i32_0 : i32, i32
  }
  func.func @transform_2(%arg0: i32) -> (i32, i32) {
    %c0_i32 = arith.constant 0 : i32
    %c0_i32_0 = arith.constant 0 : i32
    %c0_i32_1 = arith.constant 0 : i32
    return %c0_i32, %c0_i32_0 : i32, i32
  }
  func.func @transform_3(%arg0: i32) -> (i32, i32) {
    %c0_i32 = arith.constant 0 : i32
    %c0_i32_0 = arith.constant 0 : i32
    return %arg0, %c0_i32 : i32, i32
  }
}

module attributes {stable_mosaic.version = 11 : i64} {
  func.func @_fused_matmul_kernel(%arg0: i32, %arg1: memref<32x256xbf16, #tpu.memory_space<vmem>>, %arg2: memref<256x128xbf16, #tpu.memory_space<vmem>>, %arg3: memref<1x128xf32, #tpu.memory_space<vmem>>, %arg4: memref<32x128xbf16, #tpu.memory_space<vmem>>) attributes {dimension_semantics = [#tpu.dimension_semantics<parallel>], iteration_bounds = array<i64: 1>, scalar_prefetch = 0 : i64, scratch_operands = 0 : i64, tpu.core_type = #tpu.core_type<tc>, window_params = [{transform_indices = @transform_0, window_bounds = array<i64: 32, 256>}, {pipeline_mode = #tpu.pipeline_mode<synchronous>, transform_indices = @transform_1, window_bounds = array<i64: 256, 128>}, {pipeline_mode = #tpu.pipeline_mode<synchronous>, transform_indices = @transform_2, window_bounds = array<i64: 1, 128>}, {transform_indices = @transform_3, window_bounds = array<i64: 32, 128>}]} {
    %c0 = arith.constant 0 : index
    %c0_0 = arith.constant 0 : index
    %0 = vector.load %arg1[%c0, %c0_0] : memref<32x256xbf16, #tpu.memory_space<vmem>>, vector<32x256xbf16>
    %c0_1 = arith.constant 0 : index
    %c0_2 = arith.constant 0 : index
    %1 = vector.load %arg2[%c0_1, %c0_2] : memref<256x128xbf16, #tpu.memory_space<vmem>>, vector<256x128xbf16>
    %cst = arith.constant dense<0.000000e+00> : vector<32x128xf32>
    %2 = tpu.matmul %0, %1, %cst {dimension_numbers = #tpu.dot_dimension_numbers<[1], [0], [0], [1], [0, 0, 1, 1], [], []>} : vector<32x256xbf16>, vector<256x128xbf16>, vector<32x128xf32> -> vector<32x128xf32>
    %c0_3 = arith.constant 0 : index
    %c0_4 = arith.constant 0 : index
    %3 = vector.load %arg3[%c0_3, %c0_4] : memref<1x128xf32, #tpu.memory_space<vmem>>, vector<1x128xf32>
    %4 = vector.broadcast %3 : vector<1x128xf32> to vector<32x128xf32>
    %5 = arith.addf %2, %4 : vector<32x128xf32>
    %cst_5 = arith.constant 0.000000e+00 : f32
    %6 = vector.broadcast %cst_5 : f32 to vector<32x128xf32>
    %7 = arith.maximumf %5, %6 : vector<32x128xf32>
    %8 = arith.truncf %7 : vector<32x128xf32> to vector<32x128xbf16>
    %c0_6 = arith.constant 0 : index
    %c0_7 = arith.constant 0 : index
    %9 = vector.load %arg4[%c0_6, %c0_7] : memref<32x128xbf16, #tpu.memory_space<vmem>>, vector<32x128xbf16>
    tpu.vector_store %arg4[%c0_6, %c0_7], %8 {strides = array<i32>} : memref<32x128xbf16, #tpu.memory_space<vmem>>, vector<32x128xbf16>,
    return
  }
  func.func @transform_0(%arg0: i32) -> (i32, i32) {
    %c0_i32 = arith.constant 0 : i32
    %c0_i32_0 = arith.constant 0 : i32
    return %arg0, %c0_i32 : i32, i32
  }
  func.func @transform_1(%arg0: i32) -> (i32, i32) {
    %c0_i32 = arith.constant 0 : i32
    %c0_i32_0 = arith.constant 0 : i32
    %c0_i32_1 = arith.constant 0 : i32
    return %c0_i32, %c0_i32_0 : i32, i32
  }
  func.func @transform_2(%arg0: i32) -> (i32, i32) {
    %c0_i32 = arith.constant 0 : i32
    %c0_i32_0 = arith.constant 0 : i32
    %c0_i32_1 = arith.constant 0 : i32
    return %c0_i32, %c0_i32_0 : i32, i32
  }
  func.func @transform_3(%arg0: i32) -> (i32, i32) {
    %c0_i32 = arith.constant 0 : i32
    %c0_i32_0 = arith.constant 0 : i32
    return %arg0, %c0_i32 : i32, i32
  }
}

module attributes {stable_mosaic.version = 11 : i64} {
  func.func @_fused_matmul_kernel(%arg0: i32, %arg1: memref<128x128xbf16, #tpu.memory_space<vmem>>, %arg2: memref<128x128xbf16, #tpu.memory_space<vmem>>, %arg3: memref<1x128xf32, #tpu.memory_space<vmem>>, %arg4: memref<128x128xbf16, #tpu.memory_space<vmem>>) attributes {dimension_semantics = [#tpu.dimension_semantics<parallel>], iteration_bounds = array<i64: 1>, scalar_prefetch = 0 : i64, scratch_operands = 0 : i64, tpu.core_type = #tpu.core_type<tc>, window_params = [{transform_indices = @transform_0, window_bounds = array<i64: 128, 128>}, {pipeline_mode = #tpu.pipeline_mode<synchronous>, transform_indices = @transform_1, window_bounds = array<i64: 128, 128>}, {pipeline_mode = #tpu.pipeline_mode<synchronous>, transform_indices = @transform_2, window_bounds = array<i64: 1, 128>}, {transform_indices = @transform_3, window_bounds = array<i64: 128, 128>}]} {
    %c0 = arith.constant 0 : index
    %c0_0 = arith.constant 0 : index
    %0 = vector.load %arg1[%c0, %c0_0] : memref<128x128xbf16, #tpu.memory_space<vmem>>, vector<128x128xbf16>
    %c0_1 = arith.constant 0 : index
    %c0_2 = arith.constant 0 : index
    %1 = vector.load %arg2[%c0_1, %c0_2] : memref<128x128xbf16, #tpu.memory_space<vmem>>, vector<128x128xbf16>
    %cst = arith.constant dense<0.000000e+00> : vector<128x128xf32>
    %2 = tpu.matmul %0, %1, %cst {dimension_numbers = #tpu.dot_dimension_numbers<[1], [0], [0], [1], [0, 0, 1, 1], [], []>} : vector<128x128xbf16>, vector<128x128xbf16>, vector<128x128xf32> -> vector<128x128xf32>
    %c0_3 = arith.constant 0 : index
    %c0_4 = arith.constant 0 : index
    %3 = vector.load %arg3[%c0_3, %c0_4] : memref<1x128xf32, #tpu.memory_space<vmem>>, vector<1x128xf32>
    %4 = vector.broadcast %3 : vector<1x128xf32> to vector<128x128xf32>
    %5 = arith.addf %2, %4 : vector<128x128xf32>
    %cst_5 = arith.constant 0.000000e+00 : f32
    %6 = vector.broadcast %cst_5 : f32 to vector<128x128xf32>
    %7 = arith.maximumf %5, %6 : vector<128x128xf32>
    %8 = arith.truncf %7 : vector<128x128xf32> to vector<128x128xbf16>
    %c0_6 = arith.constant 0 : index
    %c0_7 = arith.constant 0 : index
    %9 = vector.load %arg4[%c0_6, %c0_7] : memref<128x128xbf16, #tpu.memory_space<vmem>>, vector<128x128xbf16>
    tpu.vector_store %arg4[%c0_6, %c0_7], %8 {strides = array<i32>} : memref<128x128xbf16, #tpu.memory_space<vmem>>, vector<128x128xbf16>,
    return
  }
  func.func @transform_0(%arg0: i32) -> (i32, i32) {
    %c0_i32 = arith.constant 0 : i32
    %c0_i32_0 = arith.constant 0 : i32
    return %arg0, %c0_i32 : i32, i32
  }
  func.func @transform_1(%arg0: i32) -> (i32, i32) {
    %c0_i32 = arith.constant 0 : i32
    %c0_i32_0 = arith.constant 0 : i32
    %c0_i32_1 = arith.constant 0 : i32
    return %c0_i32, %c0_i32_0 : i32, i32
  }
  func.func @transform_2(%arg0: i32) -> (i32, i32) {
    %c0_i32 = arith.constant 0 : i32
    %c0_i32_0 = arith.constant 0 : i32
    %c0_i32_1 = arith.constant 0 : i32
    return %c0_i32, %c0_i32_0 : i32, i32
  }
  func.func @transform_3(%arg0: i32) -> (i32, i32) {
    %c0_i32 = arith.constant 0 : i32
    %c0_i32_0 = arith.constant 0 : i32
    return %arg0, %c0_i32 : i32, i32
  }
}

module attributes {stable_mosaic.version = 11 : i64} {
  func.func @_fused_matmul_kernel(%arg0: i32, %arg1: memref<512x64xbf16, #tpu.memory_space<vmem>>, %arg2: memref<64x128xbf16, #tpu.memory_space<vmem>>, %arg3: memref<1x128xf32, #tpu.memory_space<vmem>>, %arg4: memref<512x128xf32, #tpu.memory_space<vmem>>) attributes {dimension_semantics = [#tpu.dimension_semantics<parallel>], iteration_bounds = array<i64: 1>, scalar_prefetch = 0 : i64, scratch_operands = 0 : i64, tpu.core_type = #tpu.core_type<tc>, window_params = [{transform_indices = @transform_0, window_bounds = array<i64: 512, 64>}, {pipeline_mode = #tpu.pipeline_mode<synchronous>, transform_indices = @transform_1, window_bounds = array<i64: 64, 128>}, {pipeline_mode = #tpu.pipeline_mode<synchronous>, transform_indices = @transform_2, window_bounds = array<i64: 1, 128>}, {transform_indices = @transform_3, window_bounds = array<i64: 512, 128>}]} {
    %c0 = arith.constant 0 : index
    %c0_0 = arith.constant 0 : index
    %0 = vector.load %arg1[%c0, %c0_0] : memref<512x64xbf16, #tpu.memory_space<vmem>>, vector<512x64xbf16>
    %c0_1 = arith.constant 0 : index
    %c0_2 = arith.constant 0 : index
    %1 = vector.load %arg2[%c0_1, %c0_2] : memref<64x128xbf16, #tpu.memory_space<vmem>>, vector<64x128xbf16>
    %cst = arith.constant dense<0.000000e+00> : vector<512x128xf32>
    %2 = tpu.matmul %0, %1, %cst {dimension_numbers = #tpu.dot_dimension_numbers<[1], [0], [0], [1], [0, 0, 1, 1], [], []>} : vector<512x64xbf16>, vector<64x128xbf16>, vector<512x128xf32> -> vector<512x128xf32>
    %c0_3 = arith.constant 0 : index
    %c0_4 = arith.constant 0 : index
    %3 = vector.load %arg3[%c0_3, %c0_4] : memref<1x128xf32, #tpu.memory_space<vmem>>, vector<1x128xf32>
    %4 = vector.broadcast %3 : vector<1x128xf32> to vector<512x128xf32>
    %5 = arith.addf %2, %4 : vector<512x128xf32>
    %cst_5 = arith.constant 5.000000e-01 : f32
    %6 = vector.broadcast %cst_5 : f32 to vector<512x128xf32>
    %7 = arith.mulf %6, %5 : vector<512x128xf32>
    %8 = math.tanh %7 : vector<512x128xf32>
    %cst_6 = arith.constant 1.000000e+00 : f32
    %9 = vector.broadcast %cst_6 : f32 to vector<512x128xf32>
    %10 = arith.addf %8, %9 : vector<512x128xf32>
    %cst_7 = arith.constant 5.000000e-01 : f32
    %11 = vector.broadcast %cst_7 : f32 to vector<512x128xf32>
    %12 = arith.mulf %11, %10 : vector<512x128xf32>
    %c0_8 = arith.constant 0 : index
    %c0_9 = arith.constant 0 : index
    %13 = vector.load %arg4[%c0_8, %c0_9] : memref<512x128xf32, #tpu.memory_space<vmem>>, vector<512x128xf32>
    tpu.vector_store %arg4[%c0_8, %c0_9], %12 {strides = array<i32>} : memref<512x128xf32, #tpu.memory_space<vmem>>, vector<512x128xf32>,
    return
  }
  func.func @transform_0(%arg0: i32) -> (i32, i32) {
    %c0_i32 = arith.constant 0 : i32
    %c0_i32_0 = arith.constant 0 : i32
    return %arg0, %c0_i32 : i32, i32
  }
  func.func @transform_1(%arg0: i32) -> (i32, i32) {
    %c0_i32 = arith.constant 0 : i32
    %c0_i32_0 = arith.constant 0 : i32
    %c0_i32_1 = arith.constant 0 : i32
    return %c0_i32, %c0_i32_0 : i32, i32
  }
  func.func @transform_2(%arg0: i32) -> (i32, i32) {
    %c0_i32 = arith.constant 0 : i32
    %c0_i32_0 = arith.constant 0 : i32
    %c0_i32_1 = arith.constant 0 : i32
    return %c0_i32, %c0_i32_0 : i32, i32
  }
  func.func @transform_3(%arg0: i32) -> (i32, i32) {
    %c0_i32 = arith.constant 0 : i32
    %c0_i32_0 = arith.constant 0 : i32
    return %arg0, %c0_i32 : i32, i32
  }
}

</mosaic_0001>

<llo_original>
// kernel: mul.49
$region0: #{mul.49}
  %s0 = inlined_call_operand.vmem [shape: f32[4,64], index: 0, kind: input, shape index: {}]
  %s1 = inlined_call_operand.vmem [shape: f32[256], index: 1, kind: output, shape index: {}]
  $region1: #{mul.49} parent=0
    #allocation0 [shape = 'u8[4096]{0}', space=vmem, size = 0x1000, scoped, tag = 'scoped mem for output reshape']
    #allocation1 [shape = 'u8[4096]{0}', space=vmem, size = 0x1000, scoped, tag = 'scoped mem for input reshape']
    %s3 = sshllo.u32 0, 4
    %v4 = vld [vmem:[%s0] sm:%s3]
    %5 = vst [vmem:[#allocation1] sm:%s3] %v4
    %s6 = smov 3
    %v7 = vld [vmem:[#allocation1] ss:$2 sm:%s6]
    %vm8 = vcmask 523264
    %9 = vst.msk [vmem:[#allocation0] sm:$0x3] %vm8, %v7
    %s10 = scalar_lea.vmem [#allocation1], 1
    %s11 = smov 3
    %v12 = vld [vmem:[%s10] ss:$2 sm:%s11]
    %13 = vrot.lane.b32.xlu0 %v12, 64
    %v14 = vpop.permute.xlu0 %13
    %vm15 = vcmask 1048064
    %16 = vst.msk [vmem:[#allocation0] sm:$0x3] %vm15, %v14
    %s18 = sshllo.u32 0, 2
    %v20 = vld [vmem:[#allocation0] sm:%s18]
    %s21 = sshllo.u32 0, 2
    %22 = vst [vmem:[%s1] sm:%s21] %v20

// kernel: tile.41
$region0: #{tile.41}
  #allocation2 [shape = 's32[1]{0}', space=sflag, size = 0x4, scoped, tag = 'scoped memory for tile.41']
  %s0 = inlined_call_operand.hbm [shape: f32[128], index: 0, kind: input, shape index: {}]
  %s1 = inlined_call_operand.vmem [shape: f32[4,128], index: 1, kind: output, shape index: {}]
  $region1: #{tile.41} parent=0
    #allocation0 [shape = 'u8[512]{0}', space=vmem, size = 0x400, scoped, tag = 'operand span for operand 0']
    #allocation1 [shape = 's32[1]{0}', space=sflag, size = 0x4, scoped, tag = 'scoped memory for tile.41']
    %2 = vsyncpa [#allocation1], 0
    // Predicated region
    $region2: #{tile.41} parent=1 // pred_check
      _
    $region3: #{tile.41} parent=1 // pred_check_branch
      %4 = sbr.rel (0) target = $region5
    $region4: #{tile.41} parent=1 // pred_region
      %s6 = ssub.s32 16, 16
      %7 = vsyncadd [#allocation1], %s6
      %s9 = sshll.u32 [#allocation0], 4
      %s10 = int_to_ptr.vmem [resolvable:$true] %s9
      %12 = dma.hbm_to_vmem [thread:$0]  %s0, 16, %s10, [#allocation1]
    $region5: #{tile.41} parent=1 // pred_fallthru
      _
    // Predicated region
    $region6: #{tile.41} parent=1 // pred_check
      _
    $region7: #{tile.41} parent=1 // pred_check_branch
      %14 = sbr.rel (0) target = $region9
    $region8: #{tile.41} parent=1 // pred_region
      %15 = dma.done [#allocation1], 16
    $region9: #{tile.41} parent=1 // pred_fallthru
      _
    %v16 = vld [vmem:[#allocation0] ss:$0 sm:$0xff]
    %17 = vst [vmem:[%s1] sm:$0xf] %v16
    %18 = vsyncpa [#allocation1], 1

// kernel: tile.46
$region0: #{tile.46}
  #allocation2 [shape = 's32[1]{0}', space=sflag, size = 0x4, scoped, tag = 'scoped memory for tile.46']
  %s0 = inlined_call_operand.hbm [shape: f32[64], index: 0, kind: input, shape index: {}]
  %s1 = inlined_call_operand.vmem [shape: f32[4,64], index: 1, kind: output, shape index: {}]
  $region1: #{tile.46} parent=0
    #allocation0 [shape = 'u8[512]{0}', space=vmem, size = 0x400, scoped, tag = 'operand span for operand 0']
    #allocation1 [shape = 's32[1]{0}', space=sflag, size = 0x4, scoped, tag = 'scoped memory for tile.46']
    %2 = vsyncpa [#allocation1], 0
    // Predicated region
    $region2: #{tile.46} parent=1 // pred_check
      _
    $region3: #{tile.46} parent=1 // pred_check_branch
      %4 = sbr.rel (0) target = $region5
    $region4: #{tile.46} parent=1 // pred_region
      %s6 = ssub.s32 16, 16
      %7 = vsyncadd [#allocation1], %s6
      %s9 = sshll.u32 [#allocation0], 4
      %s10 = int_to_ptr.vmem [resolvable:$true] %s9
      %12 = dma.hbm_to_vmem [thread:$0]  %s0, 16, %s10, [#allocation1]
    $region5: #{tile.46} parent=1 // pred_fallthru
      _
    // Predicated region
    $region6: #{tile.46} parent=1 // pred_check
      _
    $region7: #{tile.46} parent=1 // pred_check_branch
      %14 = sbr.rel (0) target = $region9
    $region8: #{tile.46} parent=1 // pred_region
      %15 = dma.done [#allocation1], 16
    $region9: #{tile.46} parent=1 // pred_fallthru
      _
    %v16 = vld [vmem:[#allocation0] ss:$0 sm:$0xff]
    %17 = vst [vmem:[%s1] sm:$0xf] %v16
    %18 = vsyncpa [#allocation1], 1

// kernel: mul.53
$region0: #{mul.53}
  %s0 = inlined_call_operand.vmem [shape: f32[4,32], index: 0, kind: input, shape index: {}]
  %s1 = inlined_call_operand.vmem [shape: f32[128], index: 1, kind: output, shape index: {}]
  $region1: #{mul.53} parent=0
    #allocation0 [shape = 'u8[4096]{0}', space=vmem, size = 0x1000, scoped, tag = 'scoped mem for output reshape']
    #allocation1 [shape = 'u8[4096]{0}', space=vmem, size = 0x1000, scoped, tag = 'scoped mem for input reshape']
    %s3 = sshllo.u32 0, 4
    %v4 = vld [vmem:[%s0] sm:%s3]
    %5 = vst [vmem:[#allocation1] sm:%s3] %v4
    %v6 = vld [vmem:[#allocation1] sm:$0x1]
    %vm7 = vcmask 261120
    %8 = vst.msk [vmem:[#allocation0] sm:$0x1] %vm7, %v6
    %s9 = scalar_lea.vmem [#allocation1], 3
    %v10 = vld [vmem:[%s9] sm:$0x1]
    %11 = vrot.lane.b32.xlu0 %v10, 96
    %v12 = vpop.permute.xlu0 %11
    %vm13 = vcmask 1048320
    %14 = vst.msk [vmem:[#allocation0] sm:$0x1] %vm13, %v12
    %s15 = scalar_lea.vmem [#allocation1], 2
    %v16 = vld [vmem:[%s15] sm:$0x1]
    %17 = vrot.lane.b32.xlu0 %v16, 64
    %v18 = vpop.permute.xlu0 %17
    %vm19 = vcmask 785920
    %20 = vst.msk [vmem:[#allocation0] sm:$0x1] %vm19, %v18
    %s21 = scalar_lea.vmem [#allocation1], 1
    %v22 = vld [vmem:[%s21] sm:$0x1]
    %23 = vrot.lane.b32.xlu0 %v22, 32
    %v24 = vpop.permute.xlu0 %23
    %vm25 = vcmask 523520
    %26 = vst.msk [vmem:[#allocation0] sm:$0x1] %vm25, %v24
    %s28 = sshllo.u32 0, 1
    %v30 = vld [vmem:[#allocation0] sm:%s28]
    %s31 = sshllo.u32 0, 1
    %32 = vst [vmem:[%s1] sm:%s31] %v30

// kernel: tile.54
$region0: #{tile.54}
  #allocation2 [shape = 's32[1]{0}', space=sflag, size = 0x4, scoped, tag = 'scoped memory for tile.54']
  %s0 = inlined_call_operand.hbm [shape: f32[32], index: 0, kind: input, shape index: {}]
  %s1 = inlined_call_operand.vmem [shape: f32[4,32], index: 1, kind: output, shape index: {}]
  $region1: #{tile.54} parent=0
    #allocation0 [shape = 'u8[512]{0}', space=vmem, size = 0x400, scoped, tag = 'operand span for operand 0']
    #allocation1 [shape = 's32[1]{0}', space=sflag, size = 0x4, scoped, tag = 'scoped memory for tile.54']
    %2 = vsyncpa [#allocation1], 0
    // Predicated region
    $region2: #{tile.54} parent=1 // pred_check
      _
    $region3: #{tile.54} parent=1 // pred_check_branch
      %4 = sbr.rel (0) target = $region5
    $region4: #{tile.54} parent=1 // pred_region
      %s6 = ssub.s32 16, 16
      %7 = vsyncadd [#allocation1], %s6
      %s9 = sshll.u32 [#allocation0], 4
      %s10 = int_to_ptr.vmem [resolvable:$true] %s9
      %12 = dma.hbm_to_vmem [thread:$0]  %s0, 16, %s10, [#allocation1]
    $region5: #{tile.54} parent=1 // pred_fallthru
      _
    // Predicated region
    $region6: #{tile.54} parent=1 // pred_check
      _
    $region7: #{tile.54} parent=1 // pred_check_branch
      %14 = sbr.rel (0) target = $region9
    $region8: #{tile.54} parent=1 // pred_region
      %15 = dma.done [#allocation1], 16
    $region9: #{tile.54} parent=1 // pred_fallthru
      _
    %v16 = vld [vmem:[#allocation0] ss:$0 sm:$0xff]
    %17 = vst [vmem:[%s1] sm:$0xf] %v16
    %18 = vsyncpa [#allocation1], 1

// kernel: tile.51
$region0: #{tile.51}
  %s0 = inlined_call_operand.vmem [shape: f32[4,64], index: 0, kind: input, shape index: {}]
  %s1 = inlined_call_operand.vmem [shape: f32[1,256], index: 1, kind: output, shape index: {}]
  $region1: #{tile.51} parent=0
    #allocation0 [shape = 'u8[8192]{0}', space=vmem, size = 0x2000, scoped, tag = 'scoped mem for output reshape']
    #allocation1 [shape = 'u8[4096]{0}', space=vmem, size = 0x1000, scoped, tag = 'scoped mem for input reshape']
    %s3 = sshllo.u32 0, 4
    %v4 = vld [vmem:[%s0] sm:%s3]
    %5 = vst [vmem:[#allocation1] sm:%s3] %v4
    %s6 = smov 3
    %v7 = vld [vmem:[#allocation1] ss:$2 sm:%s6]
    %vm8 = vcmask 523264
    %9 = vst.msk [vmem:[#allocation0] ss:$8 sm:$0x3] %vm8, %v7
    %s10 = scalar_lea.vmem [#allocation1], 1
    %s11 = smov 3
    %v12 = vld [vmem:[%s10] ss:$2 sm:%s11]
    %13 = vrot.lane.b32.xlu0 %v12, 64
    %v14 = vpop.permute.xlu0 %13
    %vm15 = vcmask 1048064
    %16 = vst.msk [vmem:[#allocation0] ss:$8 sm:$0x3] %vm15, %v14
    %s18 = sshllo.u32 0, 1
    %v20 = vld [vmem:[#allocation0] sm:%s18]
    %s21 = sshllo.u32 0, 1
    %22 = vst [vmem:[%s1] sm:%s21] %v20
    %s23 = scalar_lea.vmem [#allocation0], 8
    %v24 = vld [vmem:[%s23] sm:%s18]
    %s25 = sshllo.u32 0, 1
    %s26 = scalar_lea.vmem %s1, 1
    %27 = vst [vmem:[%s26] sm:%s25] %v24

// kernel: tile.59
$region0: #{tile.59}
  %s0 = inlined_call_operand.vmem [shape: f32[4,32], index: 0, kind: input, shape index: {}]
  %s1 = inlined_call_operand.vmem [shape: f32[1,128], index: 1, kind: output, shape index: {}]
  $region1: #{tile.59} parent=0
    #allocation0 [shape = 'u8[4096]{0}', space=vmem, size = 0x1000, scoped, tag = 'scoped mem for output reshape']
    #allocation1 [shape = 'u8[4096]{0}', space=vmem, size = 0x1000, scoped, tag = 'scoped mem for input reshape']
    %s3 = sshllo.u32 0, 4
    %v4 = vld [vmem:[%s0] sm:%s3]
    %5 = vst [vmem:[#allocation1] sm:%s3] %v4
    %v6 = vld [vmem:[#allocation1] sm:$0x1]
    %vm7 = vcmask 261120
    %8 = vst.msk [vmem:[#allocation0] sm:$0x1] %vm7, %v6
    %s9 = scalar_lea.vmem [#allocation1], 3
    %v10 = vld [vmem:[%s9] sm:$0x1]
    %11 = vrot.lane.b32.xlu0 %v10, 96
    %v12 = vpop.permute.xlu0 %11
    %vm13 = vcmask 1048320
    %14 = vst.msk [vmem:[#allocation0] sm:$0x1] %vm13, %v12
    %s15 = scalar_lea.vmem [#allocation1], 2
    %v16 = vld [vmem:[%s15] sm:$0x1]
    %17 = vrot.lane.b32.xlu0 %v16, 64
    %v18 = vpop.permute.xlu0 %17
    %vm19 = vcmask 785920
    %20 = vst.msk [vmem:[#allocation0] sm:$0x1] %vm19, %v18
    %s21 = scalar_lea.vmem [#allocation1], 1
    %v22 = vld [vmem:[%s21] sm:$0x1]
    %23 = vrot.lane.b32.xlu0 %v22, 32
    %v24 = vpop.permute.xlu0 %23
    %vm25 = vcmask 523520
    %26 = vst.msk [vmem:[#allocation0] sm:$0x1] %vm25, %v24
    %s28 = sshllo.u32 0, 1
    %v30 = vld [vmem:[#allocation0] sm:%s28]
    %s31 = sshllo.u32 0, 1
    %32 = vst [vmem:[%s1] sm:%s31] %v30

// kernel: tile.62
$region0: #{tile.62}
  #allocation2 [shape = 's32[1]{0}', space=sflag, size = 0x4, scoped, tag = 'scoped memory for tile.62']
  %s0 = inlined_call_operand.hbm [shape: f32[16], index: 0, kind: input, shape index: {}]
  %s1 = inlined_call_operand.vmem [shape: f32[4,16], index: 1, kind: output, shape index: {}]
  $region1: #{tile.62} parent=0
    #allocation0 [shape = 'u8[512]{0}', space=vmem, size = 0x400, scoped, tag = 'operand span for operand 0']
    #allocation1 [shape = 's32[1]{0}', space=sflag, size = 0x4, scoped, tag = 'scoped memory for tile.62']
    %2 = vsyncpa [#allocation1], 0
    // Predicated region
    $region2: #{tile.62} parent=1 // pred_check
      _
    $region3: #{tile.62} parent=1 // pred_check_branch
      %4 = sbr.rel (0) target = $region5
    $region4: #{tile.62} parent=1 // pred_region
      %s6 = ssub.s32 16, 16
      %7 = vsyncadd [#allocation1], %s6
      %s9 = sshll.u32 [#allocation0], 4
      %s10 = int_to_ptr.vmem [resolvable:$true] %s9
      %12 = dma.hbm_to_vmem [thread:$0]  %s0, 16, %s10, [#allocation1]
    $region5: #{tile.62} parent=1 // pred_fallthru
      _
    // Predicated region
    $region6: #{tile.62} parent=1 // pred_check
      _
    $region7: #{tile.62} parent=1 // pred_check_branch
      %14 = sbr.rel (0) target = $region9
    $region8: #{tile.62} parent=1 // pred_region
      %15 = dma.done [#allocation1], 16
    $region9: #{tile.62} parent=1 // pred_fallthru
      _
    %v16 = vld [vmem:[#allocation0] ss:$0 sm:$0xff]
    %17 = vst [vmem:[%s1] sm:$0xf] %v16
    %18 = vsyncpa [#allocation1], 1

// kernel: mul.56
$region0: #{mul.56}
  %s0 = inlined_call_operand.vmem [shape: f32[4,16], index: 0, kind: input, shape index: {}]
  %s1 = inlined_call_operand.vmem [shape: f32[64], index: 1, kind: output, shape index: {}]
  $region1: #{mul.56} parent=0
    #allocation0 [shape = 'u8[4096]{0}', space=vmem, size = 0x1000, scoped, tag = 'scoped mem for output reshape']
    #allocation1 [shape = 'u8[4096]{0}', space=vmem, size = 0x1000, scoped, tag = 'scoped mem for input reshape']
    %s3 = sshllo.u32 0, 4
    %v4 = vld [vmem:[%s0] sm:%s3]
    %5 = vst [vmem:[#allocation1] sm:%s3] %v4
    %v6 = vld [vmem:[#allocation1] sm:$0x1]
    %vm7 = vcmask 130048
    %8 = vst.msk [vmem:[#allocation0] sm:$0x1] %vm7, %v6
    %s9 = scalar_lea.vmem [#allocation1], 3
    %v10 = vld [vmem:[%s9] sm:$0x1]
    %11 = vrot.lane.b32.xlu0 %v10, 48
    %v12 = vpop.permute.xlu0 %11
    %vm13 = vcmask 523648
    %14 = vst.msk [vmem:[#allocation0] sm:$0x1] %vm13, %v12
    %s15 = scalar_lea.vmem [#allocation1], 2
    %v16 = vld [vmem:[%s15] sm:$0x1]
    %17 = vrot.lane.b32.xlu0 %v16, 32
    %v18 = vpop.permute.xlu0 %17
    %vm19 = vcmask 392448
    %20 = vst.msk [vmem:[#allocation0] sm:$0x1] %vm19, %v18
    %s21 = scalar_lea.vmem [#allocation1], 1
    %v22 = vld [vmem:[%s21] sm:$0x1]
    %23 = vrot.lane.b32.xlu0 %v22, 16
    %v24 = vpop.permute.xlu0 %23
    %vm25 = vcmask 261248
    %26 = vst.msk [vmem:[#allocation0] sm:$0x1] %vm25, %v24
    %s28 = sshllo.u32 0, 1
    %v30 = vld [vmem:[#allocation0] sm:%s28]
    %s31 = sshllo.u32 0, 1
    %32 = vst [vmem:[%s1] sm:%s31] %v30

// kernel: tile.67
$region0: #{tile.67}
  %s0 = inlined_call_operand.vmem [shape: f32[4,16], index: 0, kind: input, shape index: {}]
  %s1 = inlined_call_operand.vmem [shape: f32[1,64], index: 1, kind: output, shape index: {}]
  $region1: #{tile.67} parent=0
    #allocation0 [shape = 'u8[4096]{0}', space=vmem, size = 0x1000, scoped, tag = 'scoped mem for output reshape']
    #allocation1 [shape = 'u8[4096]{0}', space=vmem, size = 0x1000, scoped, tag = 'scoped mem for input reshape']
    %s3 = sshllo.u32 0, 4
    %v4 = vld [vmem:[%s0] sm:%s3]
    %5 = vst [vmem:[#allocation1] sm:%s3] %v4
    %v6 = vld [vmem:[#allocation1] sm:$0x1]
    %vm7 = vcmask 130048
    %8 = vst.msk [vmem:[#allocation0] sm:$0x1] %vm7, %v6
    %s9 = scalar_lea.vmem [#allocation1], 3
    %v10 = vld [vmem:[%s9] sm:$0x1]
    %11 = vrot.lane.b32.xlu0 %v10, 48
    %v12 = vpop.permute.xlu0 %11
    %vm13 = vcmask 523648
    %14 = vst.msk [vmem:[#allocation0] sm:$0x1] %vm13, %v12
    %s15 = scalar_lea.vmem [#allocation1], 2
    %v16 = vld [vmem:[%s15] sm:$0x1]
    %17 = vrot.lane.b32.xlu0 %v16, 32
    %v18 = vpop.permute.xlu0 %17
    %vm19 = vcmask 392448
    %20 = vst.msk [vmem:[#allocation0] sm:$0x1] %vm19, %v18
    %s21 = scalar_lea.vmem [#allocation1], 1
    %v22 = vld [vmem:[%s21] sm:$0x1]
    %23 = vrot.lane.b32.xlu0 %v22, 16
    %v24 = vpop.permute.xlu0 %23
    %vm25 = vcmask 261248
    %26 = vst.msk [vmem:[#allocation0] sm:$0x1] %vm25, %v24
    %s28 = sshllo.u32 0, 1
    %v30 = vld [vmem:[#allocation0] sm:%s28]
    %s31 = sshllo.u32 0, 1
    %32 = vst [vmem:[%s1] sm:%s31] %v30

// kernel: tile.70
$region0: #{tile.70}
  #allocation2 [shape = 's32[1]{0}', space=sflag, size = 0x4, scoped, tag = 'scoped memory for tile.70']
  %s0 = inlined_call_operand.hbm [shape: f32[3], index: 0, kind: input, shape index: {}]
  %s1 = inlined_call_operand.vmem [shape: f32[4,3], index: 1, kind: output, shape index: {}]
  $region1: #{tile.70} parent=0
    #allocation0 [shape = 'u8[512]{0}', space=vmem, size = 0x400, scoped, tag = 'operand span for operand 0']
    #allocation1 [shape = 's32[1]{0}', space=sflag, size = 0x4, scoped, tag = 'scoped memory for tile.70']
    %2 = vsyncpa [#allocation1], 0
    // Predicated region
    $region2: #{tile.70} parent=1 // pred_check
      _
    $region3: #{tile.70} parent=1 // pred_check_branch
      %4 = sbr.rel (0) target = $region5
    $region4: #{tile.70} parent=1 // pred_region
      %s6 = ssub.s32 16, 16
      %7 = vsyncadd [#allocation1], %s6
      %s9 = sshll.u32 [#allocation0], 4
      %s10 = int_to_ptr.vmem [resolvable:$true] %s9
      %12 = dma.hbm_to_vmem [thread:$0]  %s0, 16, %s10, [#allocation1]
    $region5: #{tile.70} parent=1 // pred_fallthru
      _
    // Predicated region
    $region6: #{tile.70} parent=1 // pred_check
      _
    $region7: #{tile.70} parent=1 // pred_check_branch
      %14 = sbr.rel (0) target = $region9
    $region8: #{tile.70} parent=1 // pred_region
      %15 = dma.done [#allocation1], 16
    $region9: #{tile.70} parent=1 // pred_fallthru
      _
    %v16 = vld [vmem:[#allocation0] ss:$0 sm:$0xff]
    %17 = vst [vmem:[%s1] sm:$0xf] %v16
    %18 = vsyncpa [#allocation1], 1

// kernel: tile.71
$region0: #{tile.71}
  %s0 = inlined_call_operand.vmem [shape: f32[4,3], index: 0, kind: input, shape index: {}]
  %s1 = inlined_call_operand.vmem [shape: f32[1,12], index: 1, kind: output, shape index: {}]
  $region1: #{tile.71} parent=0
    #allocation0 [shape = 'u8[4096]{0}', space=vmem, size = 0x1000, scoped, tag = 'scoped mem for output reshape']
    #allocation1 [shape = 'u8[4096]{0}', space=vmem, size = 0x1000, scoped, tag = 'scoped mem for input reshape']
    %s3 = sshllo.u32 0, 4
    %v4 = vld [vmem:[%s0] sm:%s3]
    %5 = vst [vmem:[#allocation1] sm:%s3] %v4
    %v6 = vld [vmem:[#allocation1] sm:$0x1]
    %vm7 = vcmask 23552
    %8 = vst.msk [vmem:[#allocation0] sm:$0x1] %vm7, %v6
    %s9 = scalar_lea.vmem [#allocation1], 3
    %v10 = vld [vmem:[%s9] sm:$0x1]
    %11 = vrot.lane.b32.xlu0 %v10, 9
    %v12 = vpop.permute.xlu0 %11
    %vm13 = vcmask 97352
    %14 = vst.msk [vmem:[#allocation0] sm:$0x1] %vm13, %v12
    %s15 = scalar_lea.vmem [#allocation1], 2
    %v16 = vld [vmem:[%s15] sm:$0x1]
    %17 = vrot.lane.b32.xlu0 %v16, 6
    %v18 = vpop.permute.xlu0 %17
    %vm19 = vcmask 72752
    %20 = vst.msk [vmem:[#allocation0] sm:$0x1] %vm19, %v18
    %s21 = scalar_lea.vmem [#allocation1], 1
    %v22 = vld [vmem:[%s21] sm:$0x1]
    %23 = vrot.lane.b32.xlu0 %v22, 3
    %v24 = vpop.permute.xlu0 %23
    %vm25 = vcmask 48152
    %26 = vst.msk [vmem:[#allocation0] sm:$0x1] %vm25, %v24
    %s28 = sshllo.u32 0, 1
    %v30 = vld [vmem:[#allocation0] sm:%s28]
    %s31 = sshllo.u32 0, 1
    %32 = vst [vmem:[%s1] sm:%s31] %v30

// kernel: _lambda_.10
$region0: #{_lambda_.10}
  #allocation0 [shape = 'u32[]', space=smem, size = 0x4, offset = 0x4, fixed_abs, tag = 'smem constant byte address 0x4 - core index']
  #allocation1 [shape = 'u32[144,128]{1,0:T(1,128)}', space=vmem, size = 0x12000, scoped, tag = 'internal scratch']
  %s0 = inlined_call_operand.vmem [shape: bf16[512,54], index: 0, kind: input, shape index: {}]
  %s1 = inlined_call_operand.vmem [shape: bf16[54,128], index: 1, kind: input, shape index: {}]
  %s2 = inlined_call_operand.vmem [shape: f32[1,128], index: 2, kind: input, shape index: {}]
  %s3 = inlined_call_operand.vmem [shape: bf16[512,128], index: 3, kind: output, shape index: {}]
  %s4 = sld [smem:[#allocation0]]
  $region22: #{_lambda_.10} parent=0
    _
  %s6 = ssub.s32 1, %s4
  %s7 = scalar_select 0, %s6, %s4
  // Predicated region
  $region2: #{_lambda_.10} parent=0 // pred_check
    _
  $region3: #{_lambda_.10} parent=0 // pred_check_branch
    %9 = sbr.rel (0) target = $region5
  $region4: #{_lambda_.10} parent=0 // pred_region
    _
  $region5: #{_lambda_.10} parent=0 // pred_fallthru
    _
  // Predicated region
  $region6: #{_lambda_.10} parent=0 // pred_check
    _
  $region7: #{_lambda_.10} parent=0 // pred_check_branch
    %11 = sbr.rel (0) target = $region9
  $region8: #{_lambda_.10} parent=0 // pred_region
    _
  $region9: #{_lambda_.10} parent=0 // pred_fallthru
    _
  // Predicated region
  $region10: #{_lambda_.10} parent=0 // pred_check
    _
  $region11: #{_lambda_.10} parent=0 // pred_check_branch
    %13 = sbr.rel (0) target = $region13
  $region12: #{_lambda_.10} parent=0 // pred_region
    _
  $region13: #{_lambda_.10} parent=0 // pred_fallthru
    _
  %v15 = vld [vmem:[%s0] sm:$0xf]
  %v16 = vld [vmem:[%s0 + $0x4] sm:$0xf]
  %v17 = vld [vmem:[%s0 + $0x8] sm:$0xf]
  %v18 = vld [vmem:[%s0 + $0xc] sm:$0xf]
  %v19 = vld [vmem:[%s0 + $0x10] sm:$0xf]
  %v20 = vld [vmem:[%s0 + $0x14] sm:$0xf]
  %v21 = vld [vmem:[%s0 + $0x18] sm:$0xf]
  %v22 = vld [vmem:[%s0 + $0x1c] sm:$0xf]
  %v23 = vld [vmem:[%s0 + $0x20] sm:$0xf]
  %v24 = vld [vmem:[%s0 + $0x24] sm:$0xf]
  %v25 = vld [vmem:[%s0 + $0x28] sm:$0xf]
  %v26 = vld [vmem:[%s0 + $0x2c] sm:$0xf]
  %v27 = vld [vmem:[%s0 + $0x30] sm:$0xf]
  %v28 = vld [vmem:[%s0 + $0x34] sm:$0xf]
  %v29 = vld [vmem:[%s0 + $0x38] sm:$0xf]
  %v30 = vld [vmem:[%s0 + $0x3c] sm:$0xf]
  %v31 = vld [vmem:[%s0 + $0x40] sm:$0xf]
  %v32 = vld [vmem:[%s0 + $0x44] sm:$0xf]
  %v33 = vld [vmem:[%s0 + $0x48] sm:$0xf]
  %v34 = vld [vmem:[%s0 + $0x4c] sm:$0xf]
  %v35 = vld [vmem:[%s0 + $0x50] sm:$0xf]
  %v36 = vld [vmem:[%s0 + $0x54] sm:$0xf]
  %v37 = vld [vmem:[%s0 + $0x58] sm:$0xf]
  %v38 = vld [vmem:[%s0 + $0x5c] sm:$0xf]
  %v39 = vld [vmem:[%s0 + $0x60] sm:$0xf]
  %v40 = vld [vmem:[%s0 + $0x64] sm:$0xf]
  %v41 = vld [vmem:[%s0 + $0x68] sm:$0xf]
  %v42 = vld [vmem:[%s0 + $0x6c] sm:$0xf]
  %v43 = vld [vmem:[%s0 + $0x70] sm:$0xf]
  %v44 = vld [vmem:[%s0 + $0x74] sm:$0xf]
  %v45 = vld [vmem:[%s0 + $0x78] sm:$0xf]
  %v46 = vld [vmem:[%s0 + $0x7c] sm:$0xf]
  %v47 = vld [vmem:[%s0 + $0x80] sm:$0xf]
  %v48 = vld [vmem:[%s0 + $0x84] sm:$0xf]
  %v49 = vld [vmem:[%s0 + $0x88] sm:$0xf]
  %v50 = vld [vmem:[%s0 + $0x8c] sm:$0xf]
  %v51 = vld [vmem:[%s0 + $0x90] sm:$0xf]
  %v52 = vld [vmem:[%s0 + $0x94] sm:$0xf]
  %v53 = vld [vmem:[%s0 + $0x98] sm:$0xf]
  %v54 = vld [vmem:[%s0 + $0x9c] sm:$0xf]
  %v55 = vld [vmem:[%s0 + $0xa0] sm:$0xf]
  %v56 = vld [vmem:[%s0 + $0xa4] sm:$0xf]
  %v57 = vld [vmem:[%s0 + $0xa8] sm:$0xf]
  %v58 = vld [vmem:[%s0 + $0xac] sm:$0xf]
  %v59 = vld [vmem:[%s0 + $0xb0] sm:$0xf]
  %v60 = vld [vmem:[%s0 + $0xb4] sm:$0xf]
  %v61 = vld [vmem:[%s0 + $0xb8] sm:$0xf]
  %v62 = vld [vmem:[%s0 + $0xbc] sm:$0xf]
  %v63 = vld [vmem:[%s0 + $0xc0] sm:$0xf]
  %v64 = vld [vmem:[%s0 + $0xc4] sm:$0xf]
  %v65 = vld [vmem:[%s0 + $0xc8] sm:$0xf]
  %v66 = vld [vmem:[%s0 + $0xcc] sm:$0xf]
  %v67 = vld [vmem:[%s0 + $0xd0] sm:$0xf]
  %v68 = vld [vmem:[%s0 + $0xd4] sm:$0xf]
  %v69 = vld [vmem:[%s0 + $0xd8] sm:$0xf]
  %v70 = vld [vmem:[%s0 + $0xdc] sm:$0xf]
  %v71 = vld [vmem:[%s0 + $0xe0] sm:$0xf]
  %v72 = vld [vmem:[%s0 + $0xe4] sm:$0xf]
  %v73 = vld [vmem:[%s0 + $0xe8] sm:$0xf]
  %v74 = vld [vmem:[%s0 + $0xec] sm:$0xf]
  %v75 = vld [vmem:[%s0 + $0xf0] sm:$0xf]
  %v76 = vld [vmem:[%s0 + $0xf4] sm:$0xf]
  %v77 = vld [vmem:[%s0 + $0xf8] sm:$0xf]
  %v78 = vld [vmem:[%s0 + $0xfc] sm:$0xf]
  %v79 = vld [vmem:[%s1] sm:$0xf]
  %v80 = vld [vmem:[%s1 + $0x4] sm:$0xf]
  %v81 = vld [vmem:[%s1 + $0x8] sm:$0xf]
  %v82 = vld [vmem:[%s1 + $0xc] sm:$0xf]
  %v83 = vld [vmem:[%s1 + $0x10] sm:$0xf]
  %v84 = vld [vmem:[%s1 + $0x14] sm:$0xf]
  %v85 = vld [vmem:[%s1 + $0x18] sm:$0x7]
  %v86 = vld [vmem:[%s2] sm:$0x1]
  %v88 = vlaneseq
  %v89 = vshrl.u32 %v88, 7
  %v90 = vsub.s32 0, %v89
  %v91 = vrot.slane %v86, %v90
  %v157 = vunpack.c.l.b16 %v15
  %v158 = vunpack.c.l.b16 %v16
  %v159 = vunpack.c.l.b16 %v17
  %v160 = vunpack.c.l.b16 %v18
  %v161 = vunpack.c.l.b16 %v19
  %v162 = vunpack.c.l.b16 %v20
  %v163 = vunpack.c.l.b16 %v21
  %v164 = vunpack.c.l.b16 %v22
  %v165 = vunpack.c.l.b16 %v23
  %v166 = vunpack.c.l.b16 %v24
  %v167 = vunpack.c.l.b16 %v25
  %v168 = vunpack.c.l.b16 %v26
  %v169 = vunpack.c.l.b16 %v27
  %v170 = vunpack.c.l.b16 %v28
  %v171 = vunpack.c.l.b16 %v29
  %v172 = vunpack.c.l.b16 %v30
  %v173 = vunpack.c.l.b16 %v31
  %v174 = vunpack.c.l.b16 %v32
  %v175 = vunpack.c.l.b16 %v33
  %v176 = vunpack.c.l.b16 %v34
  %v177 = vunpack.c.l.b16 %v35
  %v178 = vunpack.c.l.b16 %v36
  %v179 = vunpack.c.l.b16 %v37
  %v180 = vunpack.c.l.b16 %v38
  %v181 = vunpack.c.l.b16 %v39
  %v182 = vunpack.c.l.b16 %v40
  %v183 = vunpack.c.l.b16 %v41
  %v184 = vunpack.c.l.b16 %v42
  %v185 = vunpack.c.l.b16 %v43
  %v186 = vunpack.c.l.b16 %v44
  %v187 = vunpack.c.l.b16 %v45
  %v188 = vunpack.c.l.b16 %v46
  %v189 = vunpack.c.l.b16 %v47
  %v190 = vunpack.c.l.b16 %v48
  %v191 = vunpack.c.l.b16 %v49
  %v192 = vunpack.c.l.b16 %v50
  %v193 = vunpack.c.l.b16 %v51
  %v194 = vunpack.c.l.b16 %v52
  %v195 = vunpack.c.l.b16 %v53
  %v196 = vunpack.c.l.b16 %v54
  %v197 = vunpack.c.l.b16 %v55
  %v198 = vunpack.c.l.b16 %v56
  %v199 = vunpack.c.l.b16 %v57
  %v200 = vunpack.c.l.b16 %v58
  %v201 = vunpack.c.l.b16 %v59
  %v202 = vunpack.c.l.b16 %v60
  %v203 = vunpack.c.l.b16 %v61
  %v204 = vunpack.c.l.b16 %v62
  %v205 = vunpack.c.l.b16 %v63
  %v206 = vunpack.c.l.b16 %v64
  %v207 = vunpack.c.l.b16 %v65
  %v208 = vunpack.c.l.b16 %v66
  %v209 = vunpack.c.l.b16 %v67
  %v210 = vunpack.c.l.b16 %v68
  %v211 = vunpack.c.l.b16 %v69
  %v212 = vunpack.c.l.b16 %v70
  %v213 = vunpack.c.l.b16 %v71
  %v214 = vunpack.c.l.b16 %v72
  %v215 = vunpack.c.l.b16 %v73
  %v216 = vunpack.c.l.b16 %v74
  %v217 = vunpack.c.l.b16 %v75
  %v218 = vunpack.c.l.b16 %v76
  %v219 = vunpack.c.l.b16 %v77
  %v220 = vunpack.c.l.b16 %v78
  %v221 = vpack.c.b16 %v158, %v157
  %v222 = vpack.c.b16 %v160, %v159
  %v223 = vpack.c.b16 %v162, %v161
  %v224 = vpack.c.b16 %v164, %v163
  %v225 = vpack.c.b16 %v166, %v165
  %v226 = vpack.c.b16 %v168, %v167
  %v227 = vpack.c.b16 %v170, %v169
  %v228 = vpack.c.b16 %v172, %v171
  %v229 = vpack.c.b16 %v174, %v173
  %v230 = vpack.c.b16 %v176, %v175
  %v231 = vpack.c.b16 %v178, %v177
  %v232 = vpack.c.b16 %v180, %v179
  %v233 = vpack.c.b16 %v182, %v181
  %v234 = vpack.c.b16 %v184, %v183
  %v235 = vpack.c.b16 %v186, %v185
  %v236 = vpack.c.b16 %v188, %v187
  %v237 = vpack.c.b16 %v190, %v189
  %v238 = vpack.c.b16 %v192, %v191
  %v239 = vpack.c.b16 %v194, %v193
  %v240 = vpack.c.b16 %v196, %v195
  %v241 = vpack.c.b16 %v198, %v197
  %v242 = vpack.c.b16 %v200, %v199
  %v243 = vpack.c.b16 %v202, %v201
  %v244 = vpack.c.b16 %v204, %v203
  %v245 = vpack.c.b16 %v206, %v205
  %v246 = vpack.c.b16 %v208, %v207
  %v247 = vpack.c.b16 %v210, %v209
  %v248 = vpack.c.b16 %v212, %v211
  %v249 = vpack.c.b16 %v214, %v213
  %v250 = vpack.c.b16 %v216, %v215
  %v251 = vpack.c.b16 %v218, %v217
  %v252 = vpack.c.b16 %v220, %v219
  %v260 = vunpack.c.l.b16 %v79
  %v261 = vunpack.c.l.b16 %v80
  %v262 = vunpack.c.l.b16 %v81
  %v263 = vunpack.c.l.b16 %v82
  %v264 = vunpack.c.l.b16 %v83
  %v265 = vunpack.c.l.b16 %v84
  %v266 = vunpack.c.l.b16 %v85
  %v267 = vpack.c.b16 %v261, %v260
  %v268 = vpack.c.b16 %v263, %v262
  %v269 = vpack.c.b16 %v265, %v264
  %v270 = vpack.c.b16 %v266, %v266
  %vm274 = vcmask 441344
  %v276 = vsel %vm274, %v221, 0
  %v279 = vsel %vm274, %v222, 0
  %v282 = vsel %vm274, %v223, 0
  %v285 = vsel %vm274, %v224, 0
  %v288 = vsel %vm274, %v225, 0
  %v291 = vsel %vm274, %v226, 0
  %v294 = vsel %vm274, %v227, 0
  %v297 = vsel %vm274, %v228, 0
  %v300 = vsel %vm274, %v229, 0
  %v303 = vsel %vm274, %v230, 0
  %v306 = vsel %vm274, %v231, 0
  %v309 = vsel %vm274, %v232, 0
  %v312 = vsel %vm274, %v233, 0
  %v315 = vsel %vm274, %v234, 0
  %v318 = vsel %vm274, %v235, 0
  %v321 = vsel %vm274, %v236, 0
  %v324 = vsel %vm274, %v237, 0
  %v327 = vsel %vm274, %v238, 0
  %v330 = vsel %vm274, %v239, 0
  %v333 = vsel %vm274, %v240, 0
  %v336 = vsel %vm274, %v241, 0
  %v339 = vsel %vm274, %v242, 0
  %v342 = vsel %vm274, %v243, 0
  %v345 = vsel %vm274, %v244, 0
  %v348 = vsel %vm274, %v245, 0
  %v351 = vsel %vm274, %v246, 0
  %v354 = vsel %vm274, %v247, 0
  %v357 = vsel %vm274, %v248, 0
  %v360 = vsel %vm274, %v249, 0
  %v363 = vsel %vm274, %v250, 0
  %v366 = vsel %vm274, %v251, 0
  %v369 = vsel %vm274, %v252, 0
  %vm371 = vcmask 1042432
  %v373 = vsel %vm371, %v270, 0
  %375 = vmatprep.subr.bf16.mxu0 0
  %376 = vmatpush1.bf16.msra.mxu0 %v267
  %377 = vmatprep.subr.bf16.mxu0 0
  %378 = vmatpush1.bf16.msra.mxu0 %v268
  %379 = vmatprep.subr.bf16.mxu0 0
  %380 = vmatpush1.bf16.msra.mxu0 %v269
  %381 = vmatprep.subr.bf16.mxu0 0
  %382 = vmatpush1.bf16.msra.mxu0 %v373
  %383 = vmatprep.subr.bf16.mxu0 0
  %384 = vmatpush1.bf16.msra.mxu0 0
  %385 = vmatprep.subr.bf16.mxu0 0
  %386 = vmatpush1.bf16.msra.mxu0 0
  %387 = vmatprep.subr.bf16.mxu0 0
  %388 = vmatpush1.bf16.msra.mxu0 0
  %389 = vmatprep.subr.bf16.mxu0 0
  %390 = vmatpush1.bf16.msra.mxu0 0
  %391 = vmatprep.subr.bf16.mxu0 0
  %392 = vmatpush1.bf16.msra.mxu0 0
  %393 = vmatprep.subr.bf16.mxu0 0
  %394 = vmatpush1.bf16.msra.mxu0 0
  %395 = vmatprep.subr.bf16.mxu0 0
  %396 = vmatpush1.bf16.msra.mxu0 0
  %397 = vmatprep.subr.bf16.mxu0 0
  %398 = vmatpush1.bf16.msra.mxu0 0
  %399 = vmatprep.subr.bf16.mxu0 0
  %400 = vmatpush1.bf16.msra.mxu0 0
  %401 = vmatprep.subr.bf16.mxu0 0
  %402 = vmatpush1.bf16.msra.mxu0 0
  %403 = vmatprep.subr.bf16.mxu0 0
  %404 = vmatpush1.bf16.msra.mxu0 0
  %405 = vmatprep.subr.bf16.mxu0 0
  %406 = vmatpush1.bf16.msra.mxu0 0
  %407 = vmatprep.mubr.bf16.mxu0 0
  %408 = vmatmul.mubr.bf16.gmra.mrb[0].mxu0 %v276
  %v409 = vpop.f32.mrb[0].mxu0
  %v410 = vadd.f32 %v91, %v409
  %v411 = vpop.f32.mrb[0].mxu0
  %v412 = vpop.f32.mrb[0].mxu0
  %v413 = vadd.f32 %v91, %v412
  %v414 = vpop.f32.mrb[0].mxu0
  %415 = vmatprep.mubr.bf16.mxu0 0
  %416 = vmatmul.mubr.bf16.gmra.mrb[0].mxu0 %v279
  %v417 = vpop.f32.mrb[0].mxu0
  %v418 = vadd.f32 %v91, %v417
  %v419 = vpop.f32.mrb[0].mxu0
  %v420 = vpop.f32.mrb[0].mxu0
  %v421 = vadd.f32 %v91, %v420
  %v422 = vpop.f32.mrb[0].mxu0
  %423 = vmatprep.mubr.bf16.mxu0 0
  %424 = vmatmul.mubr.bf16.gmra.mrb[0].mxu0 %v282
  %v425 = vpop.f32.mrb[0].mxu0
  %v426 = vadd.f32 %v91, %v425
  %v427 = vpop.f32.mrb[0].mxu0
  %v428 = vpop.f32.mrb[0].mxu0
  %v429 = vadd.f32 %v91, %v428
  %v430 = vpop.f32.mrb[0].mxu0
  %431 = vmatprep.mubr.bf16.mxu0 0
  %432 = vmatmul.mubr.bf16.gmra.mrb[0].mxu0 %v285
  %v433 = vpop.f32.mrb[0].mxu0
  %v434 = vadd.f32 %v91, %v433
  %v435 = vpop.f32.mrb[0].mxu0
  %v436 = vpop.f32.mrb[0].mxu0
  %v437 = vadd.f32 %v91, %v436
  %v438 = vpop.f32.mrb[0].mxu0
  %439 = vmatprep.mubr.bf16.mxu0 0
  %440 = vmatmul.mubr.bf16.gmra.mrb[0].mxu0 %v288
  %v441 = vpop.f32.mrb[0].mxu0
  %v442 = vadd.f32 %v91, %v441
  %v443 = vpop.f32.mrb[0].mxu0
  %v444 = vpop.f32.mrb[0].mxu0
  %v445 = vadd.f32 %v91, %v444
  %v446 = vpop.f32.mrb[0].mxu0
  %447 = vmatprep.mubr.bf16.mxu0 0
  %448 = vmatmul.mubr.bf16.gmra.mrb[0].mxu0 %v291
  %v449 = vpop.f32.mrb[0].mxu0
  %v450 = vadd.f32 %v91, %v449
  %v451 = vpop.f32.mrb[0].mxu0
  %v452 = vpop.f32.mrb[0].mxu0
  %v453 = vadd.f32 %v91, %v452
  %v454 = vpop.f32.mrb[0].mxu0
  %455 = vmatprep.mubr.bf16.mxu0 0
  %456 = vmatmul.mubr.bf16.gmra.mrb[0].mxu0 %v294
  %v457 = vpop.f32.mrb[0].mxu0
  %v458 = vadd.f32 %v91, %v457
  %v459 = vpop.f32.mrb[0].mxu0
  %v460 = vpop.f32.mrb[0].mxu0
  %v461 = vadd.f32 %v91, %v460
  %v462 = vpop.f32.mrb[0].mxu0
  %463 = vmatprep.mubr.bf16.mxu0 0
  %464 = vmatmul.mubr.bf16.gmra.mrb[0].mxu0 %v297
  %v465 = vpop.f32.mrb[0].mxu0
  %v466 = vadd.f32 %v91, %v465
  %v467 = vpop.f32.mrb[0].mxu0
  %v468 = vpop.f32.mrb[0].mxu0
  %v469 = vadd.f32 %v91, %v468
  %v470 = vpop.f32.mrb[0].mxu0
  %471 = vmatprep.mubr.bf16.mxu0 0
  %472 = vmatmul.mubr.bf16.gmra.mrb[0].mxu0 %v300
  %v473 = vpop.f32.mrb[0].mxu0
  %v474 = vadd.f32 %v91, %v473
  %v475 = vpop.f32.mrb[0].mxu0
  %v476 = vpop.f32.mrb[0].mxu0
  %v477 = vadd.f32 %v91, %v476
  %v478 = vpop.f32.mrb[0].mxu0
  %479 = vmatprep.mubr.bf16.mxu0 0
  %480 = vmatmul.mubr.bf16.gmra.mrb[0].mxu0 %v303
  %v481 = vpop.f32.mrb[0].mxu0
  %v482 = vadd.f32 %v91, %v481
  %v483 = vpop.f32.mrb[0].mxu0
  %v484 = vpop.f32.mrb[0].mxu0
  %v485 = vadd.f32 %v91, %v484
  %v486 = vpop.f32.mrb[0].mxu0
  %487 = vmatprep.mubr.bf16.mxu0 0
  %488 = vmatmul.mubr.bf16.gmra.mrb[0].mxu0 %v306
  %v489 = vpop.f32.mrb[0].mxu0
  %v490 = vadd.f32 %v91, %v489
  %v491 = vpop.f32.mrb[0].mxu0
  %v492 = vpop.f32.mrb[0].mxu0
  %v493 = vadd.f32 %v91, %v492
  %v494 = vpop.f32.mrb[0].mxu0
  %495 = vmatprep.mubr.bf16.mxu0 0
  %496 = vmatmul.mubr.bf16.gmra.mrb[0].mxu0 %v309
  %v497 = vpop.f32.mrb[0].mxu0
  %v498 = vadd.f32 %v91, %v497
  %v499 = vpop.f32.mrb[0].mxu0
  %v500 = vpop.f32.mrb[0].mxu0
  %v501 = vadd.f32 %v91, %v500
  %v502 = vpop.f32.mrb[0].mxu0
  %503 = vmatprep.mubr.bf16.mxu0 0
  %504 = vmatmul.mubr.bf16.gmra.mrb[0].mxu0 %v312
  %v505 = vpop.f32.mrb[0].mxu0
  %v506 = vadd.f32 %v91, %v505
  %v507 = vpop.f32.mrb[0].mxu0
  %v508 = vpop.f32.mrb[0].mxu0
  %v509 = vadd.f32 %v91, %v508
  %v510 = vpop.f32.mrb[0].mxu0
  %511 = vmatprep.mubr.bf16.mxu0 0
  %512 = vmatmul.mubr.bf16.gmra.mrb[0].mxu0 %v315
  %v513 = vpop.f32.mrb[0].mxu0
  %v514 = vadd.f32 %v91, %v513
  %v515 = vpop.f32.mrb[0].mxu0
  %v516 = vpop.f32.mrb[0].mxu0
  %v517 = vadd.f32 %v91, %v516
  %v518 = vpop.f32.mrb[0].mxu0
  %519 = vmatprep.mubr.bf16.mxu0 0
  %520 = vmatmul.mubr.bf16.gmra.mrb[0].mxu0 %v318
  %v521 = vpop.f32.mrb[0].mxu0
  %v522 = vadd.f32 %v91, %v521
  %v523 = vpop.f32.mrb[0].mxu0
  %v524 = vpop.f32.mrb[0].mxu0
  %v525 = vadd.f32 %v91, %v524
  %v526 = vpop.f32.mrb[0].mxu0
  %527 = vmatprep.mubr.bf16.mxu0 0
  %528 = vmatmul.mubr.bf16.gmra.mrb[0].mxu0 %v321
  %v529 = vpop.f32.mrb[0].mxu0
  %v530 = vadd.f32 %v91, %v529
  %v531 = vpop.f32.mrb[0].mxu0
  %v532 = vpop.f32.mrb[0].mxu0
  %v533 = vadd.f32 %v91, %v532
  %v534 = vpop.f32.mrb[0].mxu0
  %535 = vmatprep.mubr.bf16.mxu0 0
  %536 = vmatmul.mubr.bf16.gmra.mrb[0].mxu0 %v324
  %v537 = vpop.f32.mrb[0].mxu0
  %v538 = vadd.f32 %v91, %v537
  %v539 = vpop.f32.mrb[0].mxu0
  %v540 = vpop.f32.mrb[0].mxu0
  %v541 = vadd.f32 %v91, %v540
  %v542 = vpop.f32.mrb[0].mxu0
  %543 = vmatprep.mubr.bf16.mxu0 0
  %544 = vmatmul.mubr.bf16.gmra.mrb[0].mxu0 %v327
  %v545 = vpop.f32.mrb[0].mxu0
  %v546 = vadd.f32 %v91, %v545
  %v547 = vpop.f32.mrb[0].mxu0
  %v548 = vpop.f32.mrb[0].mxu0
  %v549 = vadd.f32 %v91, %v548
  %v550 = vpop.f32.mrb[0].mxu0
  %551 = vmatprep.mubr.bf16.mxu0 0
  %552 = vmatmul.mubr.bf16.gmra.mrb[0].mxu0 %v330
  %v553 = vpop.f32.mrb[0].mxu0
  %v554 = vadd.f32 %v91, %v553
  %v555 = vpop.f32.mrb[0].mxu0
  %v556 = vpop.f32.mrb[0].mxu0
  %v557 = vadd.f32 %v91, %v556
  %v558 = vpop.f32.mrb[0].mxu0
  %559 = vmatprep.mubr.bf16.mxu0 0
  %560 = vmatmul.mubr.bf16.gmra.mrb[0].mxu0 %v333
  %v561 = vpop.f32.mrb[0].mxu0
  %v562 = vadd.f32 %v91, %v561
  %v563 = vpop.f32.mrb[0].mxu0
  %v564 = vpop.f32.mrb[0].mxu0
  %v565 = vadd.f32 %v91, %v564
  %v566 = vpop.f32.mrb[0].mxu0
  %567 = vmatprep.mubr.bf16.mxu0 0
  %568 = vmatmul.mubr.bf16.gmra.mrb[0].mxu0 %v336
  %v569 = vpop.f32.mrb[0].mxu0
  %v570 = vadd.f32 %v91, %v569
  %v571 = vpop.f32.mrb[0].mxu0
  %v572 = vpop.f32.mrb[0].mxu0
  %v573 = vadd.f32 %v91, %v572
  %v574 = vpop.f32.mrb[0].mxu0
  %575 = vmatprep.mubr.bf16.mxu0 0
  %576 = vmatmul.mubr.bf16.gmra.mrb[0].mxu0 %v339
  %v577 = vpop.f32.mrb[0].mxu0
  %v578 = vadd.f32 %v91, %v577
  %v579 = vpop.f32.mrb[0].mxu0
  %v580 = vpop.f32.mrb[0].mxu0
  %v581 = vadd.f32 %v91, %v580
  %v582 = vpop.f32.mrb[0].mxu0
  %583 = vmatprep.mubr.bf16.mxu0 0
  %584 = vmatmul.mubr.bf16.gmra.mrb[0].mxu0 %v342
  %v585 = vpop.f32.mrb[0].mxu0
  %v586 = vadd.f32 %v91, %v585
  %v587 = vpop.f32.mrb[0].mxu0
  %v588 = vpop.f32.mrb[0].mxu0
  %v589 = vadd.f32 %v91, %v588
  %v590 = vpop.f32.mrb[0].mxu0
  %591 = vmatprep.mubr.bf16.mxu0 0
  %592 = vmatmul.mubr.bf16.gmra.mrb[0].mxu0 %v345
  %v593 = vpop.f32.mrb[0].mxu0
  %v594 = vadd.f32 %v91, %v593
  %v595 = vpop.f32.mrb[0].mxu0
  %v596 = vpop.f32.mrb[0].mxu0
  %v597 = vadd.f32 %v91, %v596
  %v598 = vpop.f32.mrb[0].mxu0
  %599 = vmatprep.mubr.bf16.mxu0 0
  %600 = vmatmul.mubr.bf16.gmra.mrb[0].mxu0 %v348
  %v601 = vpop.f32.mrb[0].mxu0
  %v602 = vadd.f32 %v91, %v601
  %v603 = vpop.f32.mrb[0].mxu0
  %v604 = vpop.f32.mrb[0].mxu0
  %v605 = vadd.f32 %v91, %v604
  %v606 = vpop.f32.mrb[0].mxu0
  %607 = vmatprep.mubr.bf16.mxu0 0
  %608 = vmatmul.mubr.bf16.gmra.mrb[0].mxu0 %v351
  %v609 = vpop.f32.mrb[0].mxu0
  %v610 = vadd.f32 %v91, %v609
  %v611 = vpop.f32.mrb[0].mxu0
  %v612 = vpop.f32.mrb[0].mxu0
  %v613 = vadd.f32 %v91, %v612
  %v614 = vpop.f32.mrb[0].mxu0
  %615 = vmatprep.mubr.bf16.mxu0 0
  %616 = vmatmul.mubr.bf16.gmra.mrb[0].mxu0 %v354
  %v617 = vpop.f32.mrb[0].mxu0
  %v618 = vadd.f32 %v91, %v617
  %v619 = vpop.f32.mrb[0].mxu0
  %v620 = vpop.f32.mrb[0].mxu0
  %v621 = vadd.f32 %v91, %v620
  %v622 = vpop.f32.mrb[0].mxu0
  %623 = vmatprep.mubr.bf16.mxu0 0
  %624 = vmatmul.mubr.bf16.gmra.mrb[0].mxu0 %v357
  %v625 = vpop.f32.mrb[0].mxu0
  %v626 = vadd.f32 %v91, %v625
  %v627 = vpop.f32.mrb[0].mxu0
  %v628 = vpop.f32.mrb[0].mxu0
  %v629 = vadd.f32 %v91, %v628
  %v630 = vpop.f32.mrb[0].mxu0
  %631 = vmatprep.mubr.bf16.mxu0 0
  %632 = vmatmul.mubr.bf16.gmra.mrb[0].mxu0 %v360
  %v633 = vpop.f32.mrb[0].mxu0
  %v634 = vadd.f32 %v91, %v633
  %v635 = vpop.f32.mrb[0].mxu0
  %v636 = vpop.f32.mrb[0].mxu0
  %v637 = vadd.f32 %v91, %v636
  %v638 = vpop.f32.mrb[0].mxu0
  %639 = vmatprep.mubr.bf16.mxu0 0
  %640 = vmatmul.mubr.bf16.gmra.mrb[0].mxu0 %v363
  %v641 = vpop.f32.mrb[0].mxu0
  %v642 = vadd.f32 %v91, %v641
  %v643 = vpop.f32.mrb[0].mxu0
  %v644 = vpop.f32.mrb[0].mxu0
  %v645 = vadd.f32 %v91, %v644
  %v646 = vpop.f32.mrb[0].mxu0
  %647 = vmatprep.mubr.bf16.mxu0 0
  %648 = vmatmul.mubr.bf16.gmra.mrb[0].mxu0 %v366
  %v649 = vpop.f32.mrb[0].mxu0
  %v650 = vadd.f32 %v91, %v649
  %v651 = vpop.f32.mrb[0].mxu0
  %v652 = vpop.f32.mrb[0].mxu0
  %v653 = vadd.f32 %v91, %v652
  %v654 = vpop.f32.mrb[0].mxu0
  %655 = vmatprep.mubr.bf16.mxu0 0
  %656 = vmatmul.mubr.bf16.gmra.mrb[0].mxu0 %v369
  %v657 = vpop.f32.mrb[0].mxu0
  %v658 = vadd.f32 %v91, %v657
  %v659 = vpop.f32.mrb[0].mxu0
  %v660 = vpop.f32.mrb[0].mxu0
  %v661 = vadd.f32 %v91, %v660
  %v662 = vpop.f32.mrb[0].mxu0
  %663 = vdwg.mxu0
  %v664 = vmax.f32 %v410, 0.0
  %v665 = vmax.f32 %v413, 0.0
  %v666 = vmax.f32 %v418, 0.0
  %v667 = vmax.f32 %v421, 0.0
  %v668 = vmax.f32 %v426, 0.0
  %v669 = vmax.f32 %v429, 0.0
  %v670 = vmax.f32 %v434, 0.0
  %v671 = vmax.f32 %v437, 0.0
  %v672 = vmax.f32 %v442, 0.0
  %v673 = vmax.f32 %v445, 0.0
  %v674 = vmax.f32 %v450, 0.0
  %v675 = vmax.f32 %v453, 0.0
  %v676 = vmax.f32 %v458, 0.0
  %v677 = vmax.f32 %v461, 0.0
  %v678 = vmax.f32 %v466, 0.0
  %v679 = vmax.f32 %v469, 0.0
  %v680 = vmax.f32 %v474, 0.0
  %v681 = vmax.f32 %v477, 0.0
  %v682 = vmax.f32 %v482, 0.0
  %v683 = vmax.f32 %v485, 0.0
  %v684 = vmax.f32 %v490, 0.0
  %v685 = vmax.f32 %v493, 0.0
  %v686 = vmax.f32 %v498, 0.0
  %v687 = vmax.f32 %v501, 0.0
  %v688 = vmax.f32 %v506, 0.0
  %v689 = vmax.f32 %v509, 0.0
  %v690 = vmax.f32 %v514, 0.0
  %v691 = vmax.f32 %v517, 0.0
  %v692 = vmax.f32 %v522, 0.0
  %v693 = vmax.f32 %v525, 0.0
  %v694 = vmax.f32 %v530, 0.0
  %v695 = vmax.f32 %v533, 0.0
  %v696 = vmax.f32 %v538, 0.0
  %v697 = vmax.f32 %v541, 0.0
  %v698 = vmax.f32 %v546, 0.0
  %v699 = vmax.f32 %v549, 0.0
  %v700 = vmax.f32 %v554, 0.0
  %v701 = vmax.f32 %v557, 0.0
  %v702 = vmax.f32 %v562, 0.0
  %v703 = vmax.f32 %v565, 0.0
  %v704 = vmax.f32 %v570, 0.0
  %v705 = vmax.f32 %v573, 0.0
  %v706 = vmax.f32 %v578, 0.0
  %v707 = vmax.f32 %v581, 0.0
  %v708 = vmax.f32 %v586, 0.0
  %v709 = vmax.f32 %v589, 0.0
  %v710 = vmax.f32 %v594, 0.0
  %v711 = vmax.f32 %v597, 0.0
  %v712 = vmax.f32 %v602, 0.0
  %v713 = vmax.f32 %v605, 0.0
  %v714 = vmax.f32 %v610, 0.0
  %v715 = vmax.f32 %v613, 0.0
  %v716 = vmax.f32 %v618, 0.0
  %v717 = vmax.f32 %v621, 0.0
  %v718 = vmax.f32 %v626, 0.0
  %v719 = vmax.f32 %v629, 0.0
  %v720 = vmax.f32 %v634, 0.0
  %v721 = vmax.f32 %v637, 0.0
  %v722 = vmax.f32 %v642, 0.0
  %v723 = vmax.f32 %v645, 0.0
  %v724 = vmax.f32 %v650, 0.0
  %v725 = vmax.f32 %v653, 0.0
  %v726 = vmax.f32 %v658, 0.0
  %v727 = vmax.f32 %v661, 0.0
  %v728 = vpack.c.bf16 %v665, %v664
  %v729 = vpack.c.bf16 %v667, %v666
  %v730 = vpack.c.bf16 %v669, %v668
  %v731 = vpack.c.bf16 %v671, %v670
  %v732 = vpack.c.bf16 %v673, %v672
  %v733 = vpack.c.bf16 %v675, %v674
  %v734 = vpack.c.bf16 %v677, %v676
  %v735 = vpack.c.bf16 %v679, %v678
  %v736 = vpack.c.bf16 %v681, %v680
  %v737 = vpack.c.bf16 %v683, %v682
  %v738 = vpack.c.bf16 %v685, %v684
  %v739 = vpack.c.bf16 %v687, %v686
  %v740 = vpack.c.bf16 %v689, %v688
  %v741 = vpack.c.bf16 %v691, %v690
  %v742 = vpack.c.bf16 %v693, %v692
  %v743 = vpack.c.bf16 %v695, %v694
  %v744 = vpack.c.bf16 %v697, %v696
  %v745 = vpack.c.bf16 %v699, %v698
  %v746 = vpack.c.bf16 %v701, %v700
  %v747 = vpack.c.bf16 %v703, %v702
  %v748 = vpack.c.bf16 %v705, %v704
  %v749 = vpack.c.bf16 %v707, %v706
  %v750 = vpack.c.bf16 %v709, %v708
  %v751 = vpack.c.bf16 %v711, %v710
  %v752 = vpack.c.bf16 %v713, %v712
  %v753 = vpack.c.bf16 %v715, %v714
  %v754 = vpack.c.bf16 %v717, %v716
  %v755 = vpack.c.bf16 %v719, %v718
  %v756 = vpack.c.bf16 %v721, %v720
  %v757 = vpack.c.bf16 %v723, %v722
  %v758 = vpack.c.bf16 %v725, %v724
  %v759 = vpack.c.bf16 %v727, %v726
  %v792 = vunpack.c.l.b16 %v728
  %v793 = vunpack.c.h.b16 %v728
  %v794 = vunpack.c.l.b16 %v729
  %v795 = vunpack.c.h.b16 %v729
  %v796 = vunpack.c.l.b16 %v730
  %v797 = vunpack.c.h.b16 %v730
  %v798 = vunpack.c.l.b16 %v731
  %v799 = vunpack.c.h.b16 %v731
  %v800 = vunpack.c.l.b16 %v732
  %v801 = vunpack.c.h.b16 %v732
  %v802 = vunpack.c.l.b16 %v733
  %v803 = vunpack.c.h.b16 %v733
  %v804 = vunpack.c.l.b16 %v734
  %v805 = vunpack.c.h.b16 %v734
  %v806 = vunpack.c.l.b16 %v735
  %v807 = vunpack.c.h.b16 %v735
  %v808 = vunpack.c.l.b16 %v736
  %v809 = vunpack.c.h.b16 %v736
  %v810 = vunpack.c.l.b16 %v737
  %v811 = vunpack.c.h.b16 %v737
  %v812 = vunpack.c.l.b16 %v738
  %v813 = vunpack.c.h.b16 %v738
  %v814 = vunpack.c.l.b16 %v739
  %v815 = vunpack.c.h.b16 %v739
  %v816 = vunpack.c.l.b16 %v740
  %v817 = vunpack.c.h.b16 %v740
  %v818 = vunpack.c.l.b16 %v741
  %v819 = vunpack.c.h.b16 %v741
  %v820 = vunpack.c.l.b16 %v742
  %v821 = vunpack.c.h.b16 %v742
  %v822 = vunpack.c.l.b16 %v743
  %v823 = vunpack.c.h.b16 %v743
  %v824 = vunpack.c.l.b16 %v744
  %v825 = vunpack.c.h.b16 %v744
  %v826 = vunpack.c.l.b16 %v745
  %v827 = vunpack.c.h.b16 %v745
  %v828 = vunpack.c.l.b16 %v746
  %v829 = vunpack.c.h.b16 %v746
  %v830 = vunpack.c.l.b16 %v747
  %v831 = vunpack.c.h.b16 %v747
  %v832 = vunpack.c.l.b16 %v748
  %v833 = vunpack.c.h.b16 %v748
  %v834 = vunpack.c.l.b16 %v749
  %v835 = vunpack.c.h.b16 %v749
  %v836 = vunpack.c.l.b16 %v750
  %v837 = vunpack.c.h.b16 %v750
  %v838 = vunpack.c.l.b16 %v751
  %v839 = vunpack.c.h.b16 %v751
  %v840 = vunpack.c.l.b16 %v752
  %v841 = vunpack.c.h.b16 %v752
  %v842 = vunpack.c.l.b16 %v753
  %v843 = vunpack.c.h.b16 %v753
  %v844 = vunpack.c.l.b16 %v754
  %v845 = vunpack.c.h.b16 %v754
  %v846 = vunpack.c.l.b16 %v755
  %v847 = vunpack.c.h.b16 %v755
  %v848 = vunpack.c.l.b16 %v756
  %v849 = vunpack.c.h.b16 %v756
  %v850 = vunpack.c.l.b16 %v757
  %v851 = vunpack.c.h.b16 %v757
  %v852 = vunpack.c.l.b16 %v758
  %v853 = vunpack.c.h.b16 %v758
  %v854 = vunpack.c.l.b16 %v759
  %v855 = vunpack.c.h.b16 %v759
  %v856 = vpack.c.b16 %v792, %v792
  %v857 = vpack.c.b16 %v793, %v793
  %v858 = vpack.c.b16 %v794, %v794
  %v859 = vpack.c.b16 %v795, %v795
  %v860 = vpack.c.b16 %v796, %v796
  %v861 = vpack.c.b16 %v797, %v797
  %v862 = vpack.c.b16 %v798, %v798
  %v863 = vpack.c.b16 %v799, %v799
  %v864 = vpack.c.b16 %v800, %v800
  %v865 = vpack.c.b16 %v801, %v801
  %v866 = vpack.c.b16 %v802, %v802
  %v867 = vpack.c.b16 %v803, %v803
  %v868 = vpack.c.b16 %v804, %v804
  %v869 = vpack.c.b16 %v805, %v805
  %v870 = vpack.c.b16 %v806, %v806
  %v871 = vpack.c.b16 %v807, %v807
  %v872 = vpack.c.b16 %v808, %v808
  %v873 = vpack.c.b16 %v809, %v809
  %v874 = vpack.c.b16 %v810, %v810
  %v875 = vpack.c.b16 %v811, %v811
  %v876 = vpack.c.b16 %v812, %v812
  %v877 = vpack.c.b16 %v813, %v813
  %v878 = vpack.c.b16 %v814, %v814
  %v879 = vpack.c.b16 %v815, %v815
  %v880 = vpack.c.b16 %v816, %v816
  %v881 = vpack.c.b16 %v817, %v817
  %v882 = vpack.c.b16 %v818, %v818
  %v883 = vpack.c.b16 %v819, %v819
  %v884 = vpack.c.b16 %v820, %v820
  %v885 = vpack.c.b16 %v821, %v821
  %v886 = vpack.c.b16 %v822, %v822
  %v887 = vpack.c.b16 %v823, %v823
  %v888 = vpack.c.b16 %v824, %v824
  %v889 = vpack.c.b16 %v825, %v825
  %v890 = vpack.c.b16 %v826, %v826
  %v891 = vpack.c.b16 %v827, %v827
  %v892 = vpack.c.b16 %v828, %v828
  %v893 = vpack.c.b16 %v829, %v829
  %v894 = vpack.c.b16 %v830, %v830
  %v895 = vpack.c.b16 %v831, %v831
  %v896 = vpack.c.b16 %v832, %v832
  %v897 = vpack.c.b16 %v833, %v833
  %v898 = vpack.c.b16 %v834, %v834
  %v899 = vpack.c.b16 %v835, %v835
  %v900 = vpack.c.b16 %v836, %v836
  %v901 = vpack.c.b16 %v837, %v837
  %v902 = vpack.c.b16 %v838, %v838
  %v903 = vpack.c.b16 %v839, %v839
  %v904 = vpack.c.b16 %v840, %v840
  %v905 = vpack.c.b16 %v841, %v841
  %v906 = vpack.c.b16 %v842, %v842
  %v907 = vpack.c.b16 %v843, %v843
  %v908 = vpack.c.b16 %v844, %v844
  %v909 = vpack.c.b16 %v845, %v845
  %v910 = vpack.c.b16 %v846, %v846
  %v911 = vpack.c.b16 %v847, %v847
  %v912 = vpack.c.b16 %v848, %v848
  %v913 = vpack.c.b16 %v849, %v849
  %v914 = vpack.c.b16 %v850, %v850
  %v915 = vpack.c.b16 %v851, %v851
  %v916 = vpack.c.b16 %v852, %v852
  %v917 = vpack.c.b16 %v853, %v853
  %v918 = vpack.c.b16 %v854, %v854
  %v919 = vpack.c.b16 %v855, %v855
  %984 = vst [vmem:[%s3] sm:$0xf] %v856
  %985 = vst [vmem:[%s3 + $0x4] sm:$0xf] %v857
  %986 = vst [vmem:[%s3 + $0x8] sm:$0xf] %v858
  %987 = vst [vmem:[%s3 + $0xc] sm:$0xf] %v859
  %988 = vst [vmem:[%s3 + $0x10] sm:$0xf] %v860
  %989 = vst [vmem:[%s3 + $0x14] sm:$0xf] %v861
  %990 = vst [vmem:[%s3 + $0x18] sm:$0xf] %v862
  %991 = vst [vmem:[%s3 + $0x1c] sm:$0xf] %v863
  %992 = vst [vmem:[%s3 + $0x20] sm:$0xf] %v864
  %993 = vst [vmem:[%s3 + $0x24] sm:$0xf] %v865
  %994 = vst [vmem:[%s3 + $0x28] sm:$0xf] %v866
  %995 = vst [vmem:[%s3 + $0x2c] sm:$0xf] %v867
  %996 = vst [vmem:[%s3 + $0x30] sm:$0xf] %v868
  %997 = vst [vmem:[%s3 + $0x34] sm:$0xf] %v869
  %998 = vst [vmem:[%s3 + $0x38] sm:$0xf] %v870
  %999 = vst [vmem:[%s3 + $0x3c] sm:$0xf] %v871
  %1000 = vst [vmem:[%s3 + $0x40] sm:$0xf] %v872
  %1001 = vst [vmem:[%s3 + $0x44] sm:$0xf] %v873
  %1002 = vst [vmem:[%s3 + $0x48] sm:$0xf] %v874
  %1003 = vst [vmem:[%s3 + $0x4c] sm:$0xf] %v875
  %1004 = vst [vmem:[%s3 + $0x50] sm:$0xf] %v876
  %1005 = vst [vmem:[%s3 + $0x54] sm:$0xf] %v877
  %1006 = vst [vmem:[%s3 + $0x58] sm:$0xf] %v878
  %1007 = vst [vmem:[%s3 + $0x5c] sm:$0xf] %v879
  %1008 = vst [vmem:[%s3 + $0x60] sm:$0xf] %v880
  %1009 = vst [vmem:[%s3 + $0x64] sm:$0xf] %v881
  %1010 = vst [vmem:[%s3 + $0x68] sm:$0xf] %v882
  %1011 = vst [vmem:[%s3 + $0x6c] sm:$0xf] %v883
  %1012 = vst [vmem:[%s3 + $0x70] sm:$0xf] %v884
  %1013 = vst [vmem:[%s3 + $0x74] sm:$0xf] %v885
  %1014 = vst [vmem:[%s3 + $0x78] sm:$0xf] %v886
  %1015 = vst [vmem:[%s3 + $0x7c] sm:$0xf] %v887
  %1016 = vst [vmem:[%s3 + $0x80] sm:$0xf] %v888
  %1017 = vst [vmem:[%s3 + $0x84] sm:$0xf] %v889
  %1018 = vst [vmem:[%s3 + $0x88] sm:$0xf] %v890
  %1019 = vst [vmem:[%s3 + $0x8c] sm:$0xf] %v891
  %1020 = vst [vmem:[%s3 + $0x90] sm:$0xf] %v892
  %1021 = vst [vmem:[%s3 + $0x94] sm:$0xf] %v893
  %1022 = vst [vmem:[%s3 + $0x98] sm:$0xf] %v894
  %1023 = vst [vmem:[%s3 + $0x9c] sm:$0xf] %v895
  %1024 = vst [vmem:[%s3 + $0xa0] sm:$0xf] %v896
  %1025 = vst [vmem:[%s3 + $0xa4] sm:$0xf] %v897
  %1026 = vst [vmem:[%s3 + $0xa8] sm:$0xf] %v898
  %1027 = vst [vmem:[%s3 + $0xac] sm:$0xf] %v899
  %1028 = vst [vmem:[%s3 + $0xb0] sm:$0xf] %v900
  %1029 = vst [vmem:[%s3 + $0xb4] sm:$0xf] %v901
  %1030 = vst [vmem:[%s3 + $0xb8] sm:$0xf] %v902
  %1031 = vst [vmem:[%s3 + $0xbc] sm:$0xf] %v903
  %1032 = vst [vmem:[%s3 + $0xc0] sm:$0xf] %v904
  %1033 = vst [vmem:[%s3 + $0xc4] sm:$0xf] %v905
  %1034 = vst [vmem:[%s3 + $0xc8] sm:$0xf] %v906
  %1035 = vst [vmem:[%s3 + $0xcc] sm:$0xf] %v907
  %1036 = vst [vmem:[%s3 + $0xd0] sm:$0xf] %v908
  %1037 = vst [vmem:[%s3 + $0xd4] sm:$0xf] %v909
  %1038 = vst [vmem:[%s3 + $0xd8] sm:$0xf] %v910
  %1039 = vst [vmem:[%s3 + $0xdc] sm:$0xf] %v911
  %1040 = vst [vmem:[%s3 + $0xe0] sm:$0xf] %v912
  %1041 = vst [vmem:[%s3 + $0xe4] sm:$0xf] %v913
  %1042 = vst [vmem:[%s3 + $0xe8] sm:$0xf] %v914
  %1043 = vst [vmem:[%s3 + $0xec] sm:$0xf] %v915
  %1044 = vst [vmem:[%s3 + $0xf0] sm:$0xf] %v916
  %1045 = vst [vmem:[%s3 + $0xf4] sm:$0xf] %v917
  %1046 = vst [vmem:[%s3 + $0xf8] sm:$0xf] %v918
  %1047 = vst [vmem:[%s3 + $0xfc] sm:$0xf] %v919
  // Predicated region
  $region14: #{_lambda_.10} parent=0 // pred_check
    _
  $region15: #{_lambda_.10} parent=0 // pred_check_branch
    %1049 = sbr.rel (0) target = $region17
  $region16: #{_lambda_.10} parent=0 // pred_region
    _
  $region17: #{_lambda_.10} parent=0 // pred_fallthru
    _
  // Predicated region
  $region18: #{_lambda_.10} parent=0 // pred_check
    _
  $region19: #{_lambda_.10} parent=0 // pred_check_branch
    %1051 = sbr.rel (0) target = $region21
  $region20: #{_lambda_.10} parent=0 // pred_region
    _
  $region21: #{_lambda_.10} parent=0 // pred_fallthru
    _

// kernel: _lambda_.11
$region0: #{_lambda_.11}
  #allocation0 [shape = 'u32[]', space=smem, size = 0x4, offset = 0x4, fixed_abs, tag = 'smem constant byte address 0x4 - core index']
  #allocation1 [shape = 'u32[144,128]{1,0:T(1,128)}', space=vmem, size = 0x12000, scoped, tag = 'internal scratch']
  %s0 = inlined_call_operand.vmem [shape: bf16[128,144], index: 0, kind: input, shape index: {}]
  %s1 = inlined_call_operand.vmem [shape: bf16[144,128], index: 1, kind: input, shape index: {}]
  %s2 = inlined_call_operand.vmem [shape: f32[1,128], index: 2, kind: input, shape index: {}]
  %s3 = inlined_call_operand.vmem [shape: bf16[128,128], index: 3, kind: output, shape index: {}]
  %s4 = sld [smem:[#allocation0]]
  $region22: #{_lambda_.11} parent=0
    _
  %s6 = ssub.s32 1, %s4
  %s7 = scalar_select 0, %s6, %s4
  // Predicated region
  $region2: #{_lambda_.11} parent=0 // pred_check
    _
  $region3: #{_lambda_.11} parent=0 // pred_check_branch
    %9 = sbr.rel (0) target = $region5
  $region4: #{_lambda_.11} parent=0 // pred_region
    _
  $region5: #{_lambda_.11} parent=0 // pred_fallthru
    _
  // Predicated region
  $region6: #{_lambda_.11} parent=0 // pred_check
    _
  $region7: #{_lambda_.11} parent=0 // pred_check_branch
    %11 = sbr.rel (0) target = $region9
  $region8: #{_lambda_.11} parent=0 // pred_region
    _
  $region9: #{_lambda_.11} parent=0 // pred_fallthru
    _
  // Predicated region
  $region10: #{_lambda_.11} parent=0 // pred_check
    _
  $region11: #{_lambda_.11} parent=0 // pred_check_branch
    %13 = sbr.rel (0) target = $region13
  $region12: #{_lambda_.11} parent=0 // pred_region
    _
  $region13: #{_lambda_.11} parent=0 // pred_fallthru
    _
  %v15 = vld [vmem:[%s0] sm:$0xff]
  %v16 = vld [vmem:[%s0 + $0x8] sm:$0xff]
  %v17 = vld [vmem:[%s0 + $0x10] sm:$0xff]
  %v18 = vld [vmem:[%s0 + $0x18] sm:$0xff]
  %v19 = vld [vmem:[%s0 + $0x20] sm:$0xff]
  %v20 = vld [vmem:[%s0 + $0x28] sm:$0xff]
  %v21 = vld [vmem:[%s0 + $0x30] sm:$0xff]
  %v22 = vld [vmem:[%s0 + $0x38] sm:$0xff]
  %v23 = vld [vmem:[%s0 + $0x40] sm:$0xff]
  %v24 = vld [vmem:[%s0 + $0x48] sm:$0xff]
  %v25 = vld [vmem:[%s0 + $0x50] sm:$0xff]
  %v26 = vld [vmem:[%s0 + $0x58] sm:$0xff]
  %v27 = vld [vmem:[%s0 + $0x60] sm:$0xff]
  %v28 = vld [vmem:[%s0 + $0x68] sm:$0xff]
  %v29 = vld [vmem:[%s0 + $0x70] sm:$0xff]
  %v30 = vld [vmem:[%s0 + $0x78] sm:$0xff]
  %v31 = vld [vmem:[%s1] sm:$0xf]
  %v32 = vld [vmem:[%s1 + $0x4] sm:$0xf]
  %v33 = vld [vmem:[%s1 + $0x8] sm:$0xf]
  %v34 = vld [vmem:[%s1 + $0xc] sm:$0xf]
  %v35 = vld [vmem:[%s1 + $0x10] sm:$0xf]
  %v36 = vld [vmem:[%s1 + $0x14] sm:$0xf]
  %v37 = vld [vmem:[%s1 + $0x18] sm:$0xf]
  %v38 = vld [vmem:[%s1 + $0x1c] sm:$0xf]
  %v39 = vld [vmem:[%s1 + $0x20] sm:$0xf]
  %v40 = vld [vmem:[%s1 + $0x24] sm:$0xf]
  %v41 = vld [vmem:[%s1 + $0x28] sm:$0xf]
  %v42 = vld [vmem:[%s1 + $0x2c] sm:$0xf]
  %v43 = vld [vmem:[%s1 + $0x30] sm:$0xf]
  %v44 = vld [vmem:[%s1 + $0x34] sm:$0xf]
  %v45 = vld [vmem:[%s1 + $0x38] sm:$0xf]
  %v46 = vld [vmem:[%s1 + $0x3c] sm:$0xf]
  %v47 = vld [vmem:[%s1 + $0x40] sm:$0xf]
  %v48 = vld [vmem:[%s1 + $0x44] sm:$0xf]
  %v49 = vld [vmem:[%s2] sm:$0x1]
  %v51 = vlaneseq
  %v52 = vshrl.u32 %v51, 7
  %v53 = vsub.s32 0, %v52
  %v54 = vrot.slane %v49, %v53
  %v72 = vunpack.c.l.b16 %v15
  %v73 = vunpack.c.h.b16 %v15
  %v74 = vunpack.c.l.b16 %v16
  %v75 = vunpack.c.h.b16 %v16
  %v76 = vunpack.c.l.b16 %v17
  %v77 = vunpack.c.h.b16 %v17
  %v78 = vunpack.c.l.b16 %v18
  %v79 = vunpack.c.h.b16 %v18
  %v80 = vunpack.c.l.b16 %v19
  %v81 = vunpack.c.h.b16 %v19
  %v82 = vunpack.c.l.b16 %v20
  %v83 = vunpack.c.h.b16 %v20
  %v84 = vunpack.c.l.b16 %v21
  %v85 = vunpack.c.h.b16 %v21
  %v86 = vunpack.c.l.b16 %v22
  %v87 = vunpack.c.h.b16 %v22
  %v88 = vunpack.c.l.b16 %v23
  %v89 = vunpack.c.h.b16 %v23
  %v90 = vunpack.c.l.b16 %v24
  %v91 = vunpack.c.h.b16 %v24
  %v92 = vunpack.c.l.b16 %v25
  %v93 = vunpack.c.h.b16 %v25
  %v94 = vunpack.c.l.b16 %v26
  %v95 = vunpack.c.h.b16 %v26
  %v96 = vunpack.c.l.b16 %v27
  %v97 = vunpack.c.h.b16 %v27
  %v98 = vunpack.c.l.b16 %v28
  %v99 = vunpack.c.h.b16 %v28
  %v100 = vunpack.c.l.b16 %v29
  %v101 = vunpack.c.h.b16 %v29
  %v102 = vunpack.c.l.b16 %v30
  %v103 = vunpack.c.h.b16 %v30
  %v104 = vpack.c.b16 %v74, %v72
  %v105 = vpack.c.b16 %v75, %v73
  %v106 = vpack.c.b16 %v78, %v76
  %v107 = vpack.c.b16 %v79, %v77
  %v108 = vpack.c.b16 %v82, %v80
  %v109 = vpack.c.b16 %v83, %v81
  %v110 = vpack.c.b16 %v86, %v84
  %v111 = vpack.c.b16 %v87, %v85
  %v112 = vpack.c.b16 %v90, %v88
  %v113 = vpack.c.b16 %v91, %v89
  %v114 = vpack.c.b16 %v94, %v92
  %v115 = vpack.c.b16 %v95, %v93
  %v116 = vpack.c.b16 %v98, %v96
  %v117 = vpack.c.b16 %v99, %v97
  %v118 = vpack.c.b16 %v102, %v100
  %v119 = vpack.c.b16 %v103, %v101
  %v146 = vunpack.c.l.b16 %v31
  %v147 = vunpack.c.l.b16 %v32
  %v148 = vunpack.c.l.b16 %v33
  %v149 = vunpack.c.l.b16 %v34
  %v150 = vunpack.c.l.b16 %v35
  %v151 = vunpack.c.l.b16 %v36
  %v152 = vunpack.c.l.b16 %v37
  %v153 = vunpack.c.l.b16 %v38
  %v154 = vunpack.c.l.b16 %v39
  %v155 = vunpack.c.l.b16 %v40
  %v156 = vunpack.c.l.b16 %v41
  %v157 = vunpack.c.l.b16 %v42
  %v158 = vunpack.c.l.b16 %v43
  %v159 = vunpack.c.l.b16 %v44
  %v160 = vunpack.c.l.b16 %v45
  %v161 = vunpack.c.l.b16 %v46
  %v162 = vunpack.c.l.b16 %v47
  %v163 = vunpack.c.l.b16 %v48
  %v164 = vpack.c.b16 %v147, %v146
  %v165 = vpack.c.b16 %v149, %v148
  %v166 = vpack.c.b16 %v151, %v150
  %v167 = vpack.c.b16 %v153, %v152
  %v168 = vpack.c.b16 %v155, %v154
  %v169 = vpack.c.b16 %v157, %v156
  %v170 = vpack.c.b16 %v159, %v158
  %v171 = vpack.c.b16 %v161, %v160
  %v172 = vpack.c.b16 %v163, %v162
  %vm182 = vcmask 130048
  %v184 = vsel %vm182, %v105, 0
  %v187 = vsel %vm182, %v107, 0
  %v190 = vsel %vm182, %v109, 0
  %v193 = vsel %vm182, %v111, 0
  %v196 = vsel %vm182, %v113, 0
  %v199 = vsel %vm182, %v115, 0
  %v202 = vsel %vm182, %v117, 0
  %v205 = vsel %vm182, %v119, 0
  %207 = vmatprep.subr.bf16.mxu0 0
  %208 = vmatpush1.bf16.msra.mxu0 %v164
  %209 = vmatprep.subr.bf16.mxu0 0
  %210 = vmatpush1.bf16.msra.mxu0 %v165
  %211 = vmatprep.subr.bf16.mxu0 0
  %212 = vmatpush1.bf16.msra.mxu0 %v166
  %213 = vmatprep.subr.bf16.mxu0 0
  %214 = vmatpush1.bf16.msra.mxu0 %v167
  %215 = vmatprep.subr.bf16.mxu0 0
  %216 = vmatpush1.bf16.msra.mxu0 %v168
  %217 = vmatprep.subr.bf16.mxu0 0
  %218 = vmatpush1.bf16.msra.mxu0 %v169
  %219 = vmatprep.subr.bf16.mxu0 0
  %220 = vmatpush1.bf16.msra.mxu0 %v170
  %221 = vmatprep.subr.bf16.mxu0 0
  %222 = vmatpush1.bf16.msra.mxu0 %v171
  %223 = vmatprep.subr.bf16.mxu0 0
  %224 = vmatpush1.bf16.msra.mxu0 %v172
  %225 = vmatprep.subr.bf16.mxu0 0
  %226 = vmatpush1.bf16.msra.mxu0 0
  %227 = vmatprep.subr.bf16.mxu0 0
  %228 = vmatpush1.bf16.msra.mxu0 0
  %229 = vmatprep.subr.bf16.mxu0 0
  %230 = vmatpush1.bf16.msra.mxu0 0
  %231 = vmatprep.subr.bf16.mxu0 0
  %232 = vmatpush1.bf16.msra.mxu0 0
  %233 = vmatprep.subr.bf16.mxu0 0
  %234 = vmatpush1.bf16.msra.mxu0 0
  %235 = vmatprep.subr.bf16.mxu0 0
  %236 = vmatpush1.bf16.msra.mxu0 0
  %237 = vmatprep.subr.bf16.mxu0 0
  %238 = vmatpush1.bf16.msra.mxu0 0
  %239 = vmatprep.mubr.bf16.mxu0 %v184
  %240 = vmatmul.mubr.bf16.gmra.mrb[0].mxu0 %v104
  %v241 = vpop.f32.mrb[0].mxu0
  %v242 = vadd.f32 %v54, %v241
  %v243 = vpop.f32.mrb[0].mxu0
  %v244 = vpop.f32.mrb[0].mxu0
  %v245 = vadd.f32 %v54, %v244
  %v246 = vpop.f32.mrb[0].mxu0
  %247 = vmatprep.mubr.bf16.mxu0 %v187
  %248 = vmatmul.mubr.bf16.gmra.mrb[0].mxu0 %v106
  %v249 = vpop.f32.mrb[0].mxu0
  %v250 = vadd.f32 %v54, %v249
  %v251 = vpop.f32.mrb[0].mxu0
  %v252 = vpop.f32.mrb[0].mxu0
  %v253 = vadd.f32 %v54, %v252
  %v254 = vpop.f32.mrb[0].mxu0
  %255 = vmatprep.mubr.bf16.mxu0 %v190
  %256 = vmatmul.mubr.bf16.gmra.mrb[0].mxu0 %v108
  %v257 = vpop.f32.mrb[0].mxu0
  %v258 = vadd.f32 %v54, %v257
  %v259 = vpop.f32.mrb[0].mxu0
  %v260 = vpop.f32.mrb[0].mxu0
  %v261 = vadd.f32 %v54, %v260
  %v262 = vpop.f32.mrb[0].mxu0
  %263 = vmatprep.mubr.bf16.mxu0 %v193
  %264 = vmatmul.mubr.bf16.gmra.mrb[0].mxu0 %v110
  %v265 = vpop.f32.mrb[0].mxu0
  %v266 = vadd.f32 %v54, %v265
  %v267 = vpop.f32.mrb[0].mxu0
  %v268 = vpop.f32.mrb[0].mxu0
  %v269 = vadd.f32 %v54, %v268
  %v270 = vpop.f32.mrb[0].mxu0
  %271 = vmatprep.mubr.bf16.mxu0 %v196
  %272 = vmatmul.mubr.bf16.gmra.mrb[0].mxu0 %v112
  %v273 = vpop.f32.mrb[0].mxu0
  %v274 = vadd.f32 %v54, %v273
  %v275 = vpop.f32.mrb[0].mxu0
  %v276 = vpop.f32.mrb[0].mxu0
  %v277 = vadd.f32 %v54, %v276
  %v278 = vpop.f32.mrb[0].mxu0
  %279 = vmatprep.mubr.bf16.mxu0 %v199
  %280 = vmatmul.mubr.bf16.gmra.mrb[0].mxu0 %v114
  %v281 = vpop.f32.mrb[0].mxu0
  %v282 = vadd.f32 %v54, %v281
  %v283 = vpop.f32.mrb[0].mxu0
  %v284 = vpop.f32.mrb[0].mxu0
  %v285 = vadd.f32 %v54, %v284
  %v286 = vpop.f32.mrb[0].mxu0
  %287 = vmatprep.mubr.bf16.mxu0 %v202
  %288 = vmatmul.mubr.bf16.gmra.mrb[0].mxu0 %v116
  %v289 = vpop.f32.mrb[0].mxu0
  %v290 = vadd.f32 %v54, %v289
  %v291 = vpop.f32.mrb[0].mxu0
  %v292 = vpop.f32.mrb[0].mxu0
  %v293 = vadd.f32 %v54, %v292
  %v294 = vpop.f32.mrb[0].mxu0
  %295 = vmatprep.mubr.bf16.mxu0 %v205
  %296 = vmatmul.mubr.bf16.gmra.mrb[0].mxu0 %v118
  %v297 = vpop.f32.mrb[0].mxu0
  %v298 = vadd.f32 %v54, %v297
  %v299 = vpop.f32.mrb[0].mxu0
  %v300 = vpop.f32.mrb[0].mxu0
  %v301 = vadd.f32 %v54, %v300
  %v302 = vpop.f32.mrb[0].mxu0
  %303 = vdwg.mxu0
  %v304 = vmax.f32 %v242, 0.0
  %v305 = vmax.f32 %v245, 0.0
  %v306 = vmax.f32 %v250, 0.0
  %v307 = vmax.f32 %v253, 0.0
  %v308 = vmax.f32 %v258, 0.0
  %v309 = vmax.f32 %v261, 0.0
  %v310 = vmax.f32 %v266, 0.0
  %v311 = vmax.f32 %v269, 0.0
  %v312 = vmax.f32 %v274, 0.0
  %v313 = vmax.f32 %v277, 0.0
  %v314 = vmax.f32 %v282, 0.0
  %v315 = vmax.f32 %v285, 0.0
  %v316 = vmax.f32 %v290, 0.0
  %v317 = vmax.f32 %v293, 0.0
  %v318 = vmax.f32 %v298, 0.0
  %v319 = vmax.f32 %v301, 0.0
  %v320 = vpack.c.bf16 %v305, %v304
  %v321 = vpack.c.bf16 %v307, %v306
  %v322 = vpack.c.bf16 %v309, %v308
  %v323 = vpack.c.bf16 %v311, %v310
  %v324 = vpack.c.bf16 %v313, %v312
  %v325 = vpack.c.bf16 %v315, %v314
  %v326 = vpack.c.bf16 %v317, %v316
  %v327 = vpack.c.bf16 %v319, %v318
  %v336 = vunpack.c.l.b16 %v320
  %v337 = vunpack.c.h.b16 %v320
  %v338 = vunpack.c.l.b16 %v321
  %v339 = vunpack.c.h.b16 %v321
  %v340 = vunpack.c.l.b16 %v322
  %v341 = vunpack.c.h.b16 %v322
  %v342 = vunpack.c.l.b16 %v323
  %v343 = vunpack.c.h.b16 %v323
  %v344 = vunpack.c.l.b16 %v324
  %v345 = vunpack.c.h.b16 %v324
  %v346 = vunpack.c.l.b16 %v325
  %v347 = vunpack.c.h.b16 %v325
  %v348 = vunpack.c.l.b16 %v326
  %v349 = vunpack.c.h.b16 %v326
  %v350 = vunpack.c.l.b16 %v327
  %v351 = vunpack.c.h.b16 %v327
  %v352 = vpack.c.b16 %v336, %v336
  %v353 = vpack.c.b16 %v337, %v337
  %v354 = vpack.c.b16 %v338, %v338
  %v355 = vpack.c.b16 %v339, %v339
  %v356 = vpack.c.b16 %v340, %v340
  %v357 = vpack.c.b16 %v341, %v341
  %v358 = vpack.c.b16 %v342, %v342
  %v359 = vpack.c.b16 %v343, %v343
  %v360 = vpack.c.b16 %v344, %v344
  %v361 = vpack.c.b16 %v345, %v345
  %v362 = vpack.c.b16 %v346, %v346
  %v363 = vpack.c.b16 %v347, %v347
  %v364 = vpack.c.b16 %v348, %v348
  %v365 = vpack.c.b16 %v349, %v349
  %v366 = vpack.c.b16 %v350, %v350
  %v367 = vpack.c.b16 %v351, %v351
  %384 = vst [vmem:[%s3] sm:$0xf] %v352
  %385 = vst [vmem:[%s3 + $0x4] sm:$0xf] %v353
  %386 = vst [vmem:[%s3 + $0x8] sm:$0xf] %v354
  %387 = vst [vmem:[%s3 + $0xc] sm:$0xf] %v355
  %388 = vst [vmem:[%s3 + $0x10] sm:$0xf] %v356
  %389 = vst [vmem:[%s3 + $0x14] sm:$0xf] %v357
  %390 = vst [vmem:[%s3 + $0x18] sm:$0xf] %v358
  %391 = vst [vmem:[%s3 + $0x1c] sm:$0xf] %v359
  %392 = vst [vmem:[%s3 + $0x20] sm:$0xf] %v360
  %393 = vst [vmem:[%s3 + $0x24] sm:$0xf] %v361
  %394 = vst [vmem:[%s3 + $0x28] sm:$0xf] %v362
  %395 = vst [vmem:[%s3 + $0x2c] sm:$0xf] %v363
  %396 = vst [vmem:[%s3 + $0x30] sm:$0xf] %v364
  %397 = vst [vmem:[%s3 + $0x34] sm:$0xf] %v365
  %398 = vst [vmem:[%s3 + $0x38] sm:$0xf] %v366
  %399 = vst [vmem:[%s3 + $0x3c] sm:$0xf] %v367
  // Predicated region
  $region14: #{_lambda_.11} parent=0 // pred_check
    _
  $region15: #{_lambda_.11} parent=0 // pred_check_branch
    %401 = sbr.rel (0) target = $region17
  $region16: #{_lambda_.11} parent=0 // pred_region
    _
  $region17: #{_lambda_.11} parent=0 // pred_fallthru
    _
  // Predicated region
  $region18: #{_lambda_.11} parent=0 // pred_check
    _
  $region19: #{_lambda_.11} parent=0 // pred_check_branch
    %403 = sbr.rel (0) target = $region21
  $region20: #{_lambda_.11} parent=0 // pred_region
    _
  $region21: #{_lambda_.11} parent=0 // pred_fallthru
    _

// kernel: _lambda_.12
$region0: #{_lambda_.12}
  #allocation0 [shape = 'u32[]', space=smem, size = 0x4, offset = 0x4, fixed_abs, tag = 'smem constant byte address 0x4 - core index']
  #allocation1 [shape = 'u32[144,128]{1,0:T(1,128)}', space=vmem, size = 0x12000, scoped, tag = 'internal scratch']
  %s0 = inlined_call_operand.vmem [shape: bf16[32,384], index: 0, kind: input, shape index: {}]
  %s1 = inlined_call_operand.vmem [shape: bf16[384,128], index: 1, kind: input, shape index: {}]
  %s2 = inlined_call_operand.vmem [shape: f32[1,128], index: 2, kind: input, shape index: {}]
  %s3 = inlined_call_operand.vmem [shape: bf16[32,128], index: 3, kind: output, shape index: {}]
  %s4 = sld [smem:[#allocation0]]
  $region22: #{_lambda_.12} parent=0
    _
  %s6 = ssub.s32 1, %s4
  %s7 = scalar_select 0, %s6, %s4
  // Predicated region
  $region2: #{_lambda_.12} parent=0 // pred_check
    _
  $region3: #{_lambda_.12} parent=0 // pred_check_branch
    %9 = sbr.rel (0) target = $region5
  $region4: #{_lambda_.12} parent=0 // pred_region
    _
  $region5: #{_lambda_.12} parent=0 // pred_fallthru
    _
  // Predicated region
  $region6: #{_lambda_.12} parent=0 // pred_check
    _
  $region7: #{_lambda_.12} parent=0 // pred_check_branch
    %11 = sbr.rel (0) target = $region9
  $region8: #{_lambda_.12} parent=0 // pred_region
    _
  $region9: #{_lambda_.12} parent=0 // pred_fallthru
    _
  // Predicated region
  $region10: #{_lambda_.12} parent=0 // pred_check
    _
  $region11: #{_lambda_.12} parent=0 // pred_check_branch
    %13 = sbr.rel (0) target = $region13
  $region12: #{_lambda_.12} parent=0 // pred_region
    _
  $region13: #{_lambda_.12} parent=0 // pred_fallthru
    _
  %v15 = vld [vmem:[%s0] sm:$0xff]
  %v16 = vld [vmem:[%s0 + $0x8] sm:$0xf]
  %v17 = vld [vmem:[%s0 + $0xc] sm:$0xff]
  %v18 = vld [vmem:[%s0 + $0x14] sm:$0xf]
  %v19 = vld [vmem:[%s0 + $0x18] sm:$0xff]
  %v20 = vld [vmem:[%s0 + $0x20] sm:$0xf]
  %v21 = vld [vmem:[%s0 + $0x24] sm:$0xff]
  %v22 = vld [vmem:[%s0 + $0x2c] sm:$0xf]
  %v23 = vld [vmem:[%s1] sm:$0xf]
  %v24 = vld [vmem:[%s1 + $0x4] sm:$0xf]
  %v25 = vld [vmem:[%s1 + $0x8] sm:$0xf]
  %v26 = vld [vmem:[%s1 + $0xc] sm:$0xf]
  %v27 = vld [vmem:[%s1 + $0x10] sm:$0xf]
  %v28 = vld [vmem:[%s1 + $0x14] sm:$0xf]
  %v29 = vld [vmem:[%s1 + $0x18] sm:$0xf]
  %v30 = vld [vmem:[%s1 + $0x1c] sm:$0xf]
  %v31 = vld [vmem:[%s1 + $0x20] sm:$0xf]
  %v32 = vld [vmem:[%s1 + $0x24] sm:$0xf]
  %v33 = vld [vmem:[%s1 + $0x28] sm:$0xf]
  %v34 = vld [vmem:[%s1 + $0x2c] sm:$0xf]
  %v35 = vld [vmem:[%s1 + $0x30] sm:$0xf]
  %v36 = vld [vmem:[%s1 + $0x34] sm:$0xf]
  %v37 = vld [vmem:[%s1 + $0x38] sm:$0xf]
  %v38 = vld [vmem:[%s1 + $0x3c] sm:$0xf]
  %v39 = vld [vmem:[%s1 + $0x40] sm:$0xf]
  %v40 = vld [vmem:[%s1 + $0x44] sm:$0xf]
  %v41 = vld [vmem:[%s1 + $0x48] sm:$0xf]
  %v42 = vld [vmem:[%s1 + $0x4c] sm:$0xf]
  %v43 = vld [vmem:[%s1 + $0x50] sm:$0xf]
  %v44 = vld [vmem:[%s1 + $0x54] sm:$0xf]
  %v45 = vld [vmem:[%s1 + $0x58] sm:$0xf]
  %v46 = vld [vmem:[%s1 + $0x5c] sm:$0xf]
  %v47 = vld [vmem:[%s1 + $0x60] sm:$0xf]
  %v48 = vld [vmem:[%s1 + $0x64] sm:$0xf]
  %v49 = vld [vmem:[%s1 + $0x68] sm:$0xf]
  %v50 = vld [vmem:[%s1 + $0x6c] sm:$0xf]
  %v51 = vld [vmem:[%s1 + $0x70] sm:$0xf]
  %v52 = vld [vmem:[%s1 + $0x74] sm:$0xf]
  %v53 = vld [vmem:[%s1 + $0x78] sm:$0xf]
  %v54 = vld [vmem:[%s1 + $0x7c] sm:$0xf]
  %v55 = vld [vmem:[%s1 + $0x80] sm:$0xf]
  %v56 = vld [vmem:[%s1 + $0x84] sm:$0xf]
  %v57 = vld [vmem:[%s1 + $0x88] sm:$0xf]
  %v58 = vld [vmem:[%s1 + $0x8c] sm:$0xf]
  %v59 = vld [vmem:[%s1 + $0x90] sm:$0xf]
  %v60 = vld [vmem:[%s1 + $0x94] sm:$0xf]
  %v61 = vld [vmem:[%s1 + $0x98] sm:$0xf]
  %v62 = vld [vmem:[%s1 + $0x9c] sm:$0xf]
  %v63 = vld [vmem:[%s1 + $0xa0] sm:$0xf]
  %v64 = vld [vmem:[%s1 + $0xa4] sm:$0xf]
  %v65 = vld [vmem:[%s1 + $0xa8] sm:$0xf]
  %v66 = vld [vmem:[%s1 + $0xac] sm:$0xf]
  %v67 = vld [vmem:[%s1 + $0xb0] sm:$0xf]
  %v68 = vld [vmem:[%s1 + $0xb4] sm:$0xf]
  %v69 = vld [vmem:[%s1 + $0xb8] sm:$0xf]
  %v70 = vld [vmem:[%s1 + $0xbc] sm:$0xf]
  %v71 = vld [vmem:[%s2] sm:$0x1]
  %v73 = vlaneseq
  %v74 = vshrl.u32 %v73, 7
  %v75 = vsub.s32 0, %v74
  %v76 = vrot.slane %v71, %v75
  %v86 = vunpack.c.l.b16 %v15
  %v87 = vunpack.c.h.b16 %v15
  %v88 = vunpack.c.l.b16 %v16
  %v89 = vunpack.c.l.b16 %v17
  %v90 = vunpack.c.h.b16 %v17
  %v91 = vunpack.c.l.b16 %v18
  %v92 = vunpack.c.l.b16 %v19
  %v93 = vunpack.c.h.b16 %v19
  %v94 = vunpack.c.l.b16 %v20
  %v95 = vunpack.c.l.b16 %v21
  %v96 = vunpack.c.h.b16 %v21
  %v97 = vunpack.c.l.b16 %v22
  %v98 = vpack.c.b16 %v89, %v86
  %v99 = vpack.c.b16 %v90, %v87
  %v100 = vpack.c.b16 %v91, %v88
  %v101 = vpack.c.b16 %v95, %v92
  %v102 = vpack.c.b16 %v96, %v93
  %v103 = vpack.c.b16 %v97, %v94
  %v158 = vunpack.c.l.b16 %v23
  %v159 = vunpack.c.l.b16 %v24
  %v160 = vunpack.c.l.b16 %v25
  %v161 = vunpack.c.l.b16 %v26
  %v162 = vunpack.c.l.b16 %v27
  %v163 = vunpack.c.l.b16 %v28
  %v164 = vunpack.c.l.b16 %v29
  %v165 = vunpack.c.l.b16 %v30
  %v166 = vunpack.c.l.b16 %v31
  %v167 = vunpack.c.l.b16 %v32
  %v168 = vunpack.c.l.b16 %v33
  %v169 = vunpack.c.l.b16 %v34
  %v170 = vunpack.c.l.b16 %v35
  %v171 = vunpack.c.l.b16 %v36
  %v172 = vunpack.c.l.b16 %v37
  %v173 = vunpack.c.l.b16 %v38
  %v174 = vunpack.c.l.b16 %v39
  %v175 = vunpack.c.l.b16 %v40
  %v176 = vunpack.c.l.b16 %v41
  %v177 = vunpack.c.l.b16 %v42
  %v178 = vunpack.c.l.b16 %v43
  %v179 = vunpack.c.l.b16 %v44
  %v180 = vunpack.c.l.b16 %v45
  %v181 = vunpack.c.l.b16 %v46
  %v182 = vunpack.c.l.b16 %v47
  %v183 = vunpack.c.l.b16 %v48
  %v184 = vunpack.c.l.b16 %v49
  %v185 = vunpack.c.l.b16 %v50
  %v186 = vunpack.c.l.b16 %v51
  %v187 = vunpack.c.l.b16 %v52
  %v188 = vunpack.c.l.b16 %v53
  %v189 = vunpack.c.l.b16 %v54
  %v190 = vunpack.c.l.b16 %v55
  %v191 = vunpack.c.l.b16 %v56
  %v192 = vunpack.c.l.b16 %v57
  %v193 = vunpack.c.l.b16 %v58
  %v194 = vunpack.c.l.b16 %v59
  %v195 = vunpack.c.l.b16 %v60
  %v196 = vunpack.c.l.b16 %v61
  %v197 = vunpack.c.l.b16 %v62
  %v198 = vunpack.c.l.b16 %v63
  %v199 = vunpack.c.l.b16 %v64
  %v200 = vunpack.c.l.b16 %v65
  %v201 = vunpack.c.l.b16 %v66
  %v202 = vunpack.c.l.b16 %v67
  %v203 = vunpack.c.l.b16 %v68
  %v204 = vunpack.c.l.b16 %v69
  %v205 = vunpack.c.l.b16 %v70
  %v206 = vpack.c.b16 %v159, %v158
  %v207 = vpack.c.b16 %v161, %v160
  %v208 = vpack.c.b16 %v163, %v162
  %v209 = vpack.c.b16 %v165, %v164
  %v210 = vpack.c.b16 %v167, %v166
  %v211 = vpack.c.b16 %v169, %v168
  %v212 = vpack.c.b16 %v171, %v170
  %v213 = vpack.c.b16 %v173, %v172
  %v214 = vpack.c.b16 %v175, %v174
  %v215 = vpack.c.b16 %v177, %v176
  %v216 = vpack.c.b16 %v179, %v178
  %v217 = vpack.c.b16 %v181, %v180
  %v218 = vpack.c.b16 %v183, %v182
  %v219 = vpack.c.b16 %v185, %v184
  %v220 = vpack.c.b16 %v187, %v186
  %v221 = vpack.c.b16 %v189, %v188
  %v222 = vpack.c.b16 %v191, %v190
  %v223 = vpack.c.b16 %v193, %v192
  %v224 = vpack.c.b16 %v195, %v194
  %v225 = vpack.c.b16 %v197, %v196
  %v226 = vpack.c.b16 %v199, %v198
  %v227 = vpack.c.b16 %v201, %v200
  %v228 = vpack.c.b16 %v203, %v202
  %v229 = vpack.c.b16 %v205, %v204
  %254 = vmatprep.subr.bf16.mxu0 0
  %255 = vmatpush1.bf16.msra.mxu0 %v206
  %256 = vmatprep.subr.bf16.mxu0 0
  %257 = vmatpush1.bf16.msra.mxu0 %v207
  %258 = vmatprep.subr.bf16.mxu0 0
  %259 = vmatpush1.bf16.msra.mxu0 %v208
  %260 = vmatprep.subr.bf16.mxu0 0
  %261 = vmatpush1.bf16.msra.mxu0 %v209
  %262 = vmatprep.subr.bf16.mxu0 0
  %263 = vmatpush1.bf16.msra.mxu0 %v210
  %264 = vmatprep.subr.bf16.mxu0 0
  %265 = vmatpush1.bf16.msra.mxu0 %v211
  %266 = vmatprep.subr.bf16.mxu0 0
  %267 = vmatpush1.bf16.msra.mxu0 %v212
  %268 = vmatprep.subr.bf16.mxu0 0
  %269 = vmatpush1.bf16.msra.mxu0 %v213
  %270 = vmatprep.subr.bf16.mxu0 0
  %271 = vmatpush1.bf16.msra.mxu0 %v214
  %272 = vmatprep.subr.bf16.mxu0 0
  %273 = vmatpush1.bf16.msra.mxu0 %v215
  %274 = vmatprep.subr.bf16.mxu0 0
  %275 = vmatpush1.bf16.msra.mxu0 %v216
  %276 = vmatprep.subr.bf16.mxu0 0
  %277 = vmatpush1.bf16.msra.mxu0 %v217
  %278 = vmatprep.subr.bf16.mxu0 0
  %279 = vmatpush1.bf16.msra.mxu0 %v218
  %280 = vmatprep.subr.bf16.mxu0 0
  %281 = vmatpush1.bf16.msra.mxu0 %v219
  %282 = vmatprep.subr.bf16.mxu0 0
  %283 = vmatpush1.bf16.msra.mxu0 %v220
  %284 = vmatprep.subr.bf16.mxu0 0
  %285 = vmatpush1.bf16.msra.mxu0 %v221
  %286 = vmatprep.mubr.bf16.mxu0 %v99
  %287 = vmatmul.mubr.bf16.gmra.mrb[0].mxu0 %v98
  %v288 = vpop.f32.mrb[0].mxu0
  %v289 = vadd.f32 %v76, %v288
  %v290 = vpop.f32.mrb[0].mxu0
  %v291 = vpop.f32.mrb[0].mxu0
  %v292 = vadd.f32 %v76, %v291
  %v293 = vpop.f32.mrb[0].mxu0
  %294 = vmatprep.mubr.bf16.mxu0 %v102
  %295 = vmatmul.mubr.bf16.gmra.mrb[0].mxu0 %v101
  %v296 = vpop.f32.mrb[0].mxu0
  %v297 = vadd.f32 %v76, %v296
  %v298 = vpop.f32.mrb[0].mxu0
  %v299 = vpop.f32.mrb[0].mxu0
  %v300 = vadd.f32 %v76, %v299
  %v301 = vpop.f32.mrb[0].mxu0
  %302 = vdwg.mxu0
  %303 = vmatprep.subr.bf16.mxu0 0
  %304 = vmatpush1.bf16.msra.mxu0 %v222
  %305 = vmatprep.subr.bf16.mxu0 0
  %306 = vmatpush1.bf16.msra.mxu0 %v223
  %307 = vmatprep.subr.bf16.mxu0 0
  %308 = vmatpush1.bf16.msra.mxu0 %v224
  %309 = vmatprep.subr.bf16.mxu0 0
  %310 = vmatpush1.bf16.msra.mxu0 %v225
  %311 = vmatprep.subr.bf16.mxu0 0
  %312 = vmatpush1.bf16.msra.mxu0 %v226
  %313 = vmatprep.subr.bf16.mxu0 0
  %314 = vmatpush1.bf16.msra.mxu0 %v227
  %315 = vmatprep.subr.bf16.mxu0 0
  %316 = vmatpush1.bf16.msra.mxu0 %v228
  %317 = vmatprep.subr.bf16.mxu0 0
  %318 = vmatpush1.bf16.msra.mxu0 %v229
  %319 = vmatprep.subr.bf16.mxu0 0
  %320 = vmatpush1.bf16.msra.mxu0 0
  %321 = vmatprep.subr.bf16.mxu0 0
  %322 = vmatpush1.bf16.msra.mxu0 0
  %323 = vmatprep.subr.bf16.mxu0 0
  %324 = vmatpush1.bf16.msra.mxu0 0
  %325 = vmatprep.subr.bf16.mxu0 0
  %326 = vmatpush1.bf16.msra.mxu0 0
  %327 = vmatprep.subr.bf16.mxu0 0
  %328 = vmatpush1.bf16.msra.mxu0 0
  %329 = vmatprep.subr.bf16.mxu0 0
  %330 = vmatpush1.bf16.msra.mxu0 0
  %331 = vmatprep.subr.bf16.mxu0 0
  %332 = vmatpush1.bf16.msra.mxu0 0
  %333 = vmatprep.subr.bf16.mxu0 0
  %334 = vmatpush1.bf16.msra.mxu0 0
  %335 = vmatprep.mubr.bf16.mxu0 0
  %336 = vmatmul.mubr.bf16.gmra.mrb[0].mxu0 %v100
  %v337 = vpop.f32.mrb[0].mxu0
  %v338 = vadd.f32 %v289, %v337
  %v339 = vpop.f32.mrb[0].mxu0
  %v340 = vpop.f32.mrb[0].mxu0
  %v341 = vadd.f32 %v292, %v340
  %v342 = vpop.f32.mrb[0].mxu0
  %343 = vmatprep.mubr.bf16.mxu0 0
  %344 = vmatmul.mubr.bf16.gmra.mrb[0].mxu0 %v103
  %v345 = vpop.f32.mrb[0].mxu0
  %v346 = vadd.f32 %v297, %v345
  %v347 = vpop.f32.mrb[0].mxu0
  %v348 = vpop.f32.mrb[0].mxu0
  %v349 = vadd.f32 %v300, %v348
  %v350 = vpop.f32.mrb[0].mxu0
  %351 = vdwg.mxu0
  %v352 = vmax.f32 %v338, 0.0
  %v353 = vmax.f32 %v341, 0.0
  %v354 = vmax.f32 %v346, 0.0
  %v355 = vmax.f32 %v349, 0.0
  %v356 = vpack.c.bf16 %v353, %v352
  %v357 = vpack.c.bf16 %v355, %v354
  %v360 = vunpack.c.l.b16 %v356
  %v361 = vunpack.c.h.b16 %v356
  %v362 = vunpack.c.l.b16 %v357
  %v363 = vunpack.c.h.b16 %v357
  %v364 = vpack.c.b16 %v360, %v360
  %v365 = vpack.c.b16 %v361, %v361
  %v366 = vpack.c.b16 %v362, %v362
  %v367 = vpack.c.b16 %v363, %v363
  %372 = vst [vmem:[%s3] sm:$0xf] %v364
  %373 = vst [vmem:[%s3 + $0x4] sm:$0xf] %v365
  %374 = vst [vmem:[%s3 + $0x8] sm:$0xf] %v366
  %375 = vst [vmem:[%s3 + $0xc] sm:$0xf] %v367
  // Predicated region
  $region14: #{_lambda_.12} parent=0 // pred_check
    _
  $region15: #{_lambda_.12} parent=0 // pred_check_branch
    %377 = sbr.rel (0) target = $region17
  $region16: #{_lambda_.12} parent=0 // pred_region
    _
  $region17: #{_lambda_.12} parent=0 // pred_fallthru
    _
  // Predicated region
  $region18: #{_lambda_.12} parent=0 // pred_check
    _
  $region19: #{_lambda_.12} parent=0 // pred_check_branch
    %379 = sbr.rel (0) target = $region21
  $region20: #{_lambda_.12} parent=0 // pred_region
    _
  $region21: #{_lambda_.12} parent=0 // pred_fallthru
    _

// kernel: _lambda_.13
$region0: #{_lambda_.13}
  #allocation0 [shape = 'u32[]', space=smem, size = 0x4, offset = 0x4, fixed_abs, tag = 'smem constant byte address 0x4 - core index']
  #allocation1 [shape = 'u32[144,128]{1,0:T(1,128)}', space=vmem, size = 0x12000, scoped, tag = 'internal scratch']
  %s0 = inlined_call_operand.vmem [shape: bf16[16,640], index: 0, kind: input, shape index: {}]
  %s1 = inlined_call_operand.vmem [shape: bf16[640,128], index: 1, kind: input, shape index: {}]
  %s2 = inlined_call_operand.vmem [shape: f32[1,128], index: 2, kind: input, shape index: {}]
  %s3 = inlined_call_operand.vmem [shape: bf16[16,128], index: 3, kind: output, shape index: {}]
  %s4 = sld [smem:[#allocation0]]
  $region22: #{_lambda_.13} parent=0
    _
  %s6 = ssub.s32 1, %s4
  %s7 = scalar_select 0, %s6, %s4
  // Predicated region
  $region2: #{_lambda_.13} parent=0 // pred_check
    _
  $region3: #{_lambda_.13} parent=0 // pred_check_branch
    %9 = sbr.rel (0) target = $region5
  $region4: #{_lambda_.13} parent=0 // pred_region
    _
  $region5: #{_lambda_.13} parent=0 // pred_fallthru
    _
  // Predicated region
  $region6: #{_lambda_.13} parent=0 // pred_check
    _
  $region7: #{_lambda_.13} parent=0 // pred_check_branch
    %11 = sbr.rel (0) target = $region9
  $region8: #{_lambda_.13} parent=0 // pred_region
    _
  $region9: #{_lambda_.13} parent=0 // pred_fallthru
    _
  // Predicated region
  $region10: #{_lambda_.13} parent=0 // pred_check
    _
  $region11: #{_lambda_.13} parent=0 // pred_check_branch
    %13 = sbr.rel (0) target = $region13
  $region12: #{_lambda_.13} parent=0 // pred_region
    _
  $region13: #{_lambda_.13} parent=0 // pred_fallthru
    _
  %v15 = vld [vmem:[%s0] sm:$0xff]
  %v16 = vld [vmem:[%s0 + $0x8] sm:$0xff]
  %v17 = vld [vmem:[%s0 + $0x10] sm:$0xf]
  %v18 = vld [vmem:[%s0 + $0x14] sm:$0xff]
  %v19 = vld [vmem:[%s0 + $0x1c] sm:$0xff]
  %v20 = vld [vmem:[%s0 + $0x24] sm:$0xf]
  %v21 = vld [vmem:[%s1] sm:$0xf]
  %v22 = vld [vmem:[%s1 + $0x4] sm:$0xf]
  %v23 = vld [vmem:[%s1 + $0x8] sm:$0xf]
  %v24 = vld [vmem:[%s1 + $0xc] sm:$0xf]
  %v25 = vld [vmem:[%s1 + $0x10] sm:$0xf]
  %v26 = vld [vmem:[%s1 + $0x14] sm:$0xf]
  %v27 = vld [vmem:[%s1 + $0x18] sm:$0xf]
  %v28 = vld [vmem:[%s1 + $0x1c] sm:$0xf]
  %v29 = vld [vmem:[%s1 + $0x20] sm:$0xf]
  %v30 = vld [vmem:[%s1 + $0x24] sm:$0xf]
  %v31 = vld [vmem:[%s1 + $0x28] sm:$0xf]
  %v32 = vld [vmem:[%s1 + $0x2c] sm:$0xf]
  %v33 = vld [vmem:[%s1 + $0x30] sm:$0xf]
  %v34 = vld [vmem:[%s1 + $0x34] sm:$0xf]
  %v35 = vld [vmem:[%s1 + $0x38] sm:$0xf]
  %v36 = vld [vmem:[%s1 + $0x3c] sm:$0xf]
  %v37 = vld [vmem:[%s1 + $0x40] sm:$0xf]
  %v38 = vld [vmem:[%s1 + $0x44] sm:$0xf]
  %v39 = vld [vmem:[%s1 + $0x48] sm:$0xf]
  %v40 = vld [vmem:[%s1 + $0x4c] sm:$0xf]
  %v41 = vld [vmem:[%s1 + $0x50] sm:$0xf]
  %v42 = vld [vmem:[%s1 + $0x54] sm:$0xf]
  %v43 = vld [vmem:[%s1 + $0x58] sm:$0xf]
  %v44 = vld [vmem:[%s1 + $0x5c] sm:$0xf]
  %v45 = vld [vmem:[%s1 + $0x60] sm:$0xf]
  %v46 = vld [vmem:[%s1 + $0x64] sm:$0xf]
  %v47 = vld [vmem:[%s1 + $0x68] sm:$0xf]
  %v48 = vld [vmem:[%s1 + $0x6c] sm:$0xf]
  %v49 = vld [vmem:[%s1 + $0x70] sm:$0xf]
  %v50 = vld [vmem:[%s1 + $0x74] sm:$0xf]
  %v51 = vld [vmem:[%s1 + $0x78] sm:$0xf]
  %v52 = vld [vmem:[%s1 + $0x7c] sm:$0xf]
  %v53 = vld [vmem:[%s1 + $0x80] sm:$0xf]
  %v54 = vld [vmem:[%s1 + $0x84] sm:$0xf]
  %v55 = vld [vmem:[%s1 + $0x88] sm:$0xf]
  %v56 = vld [vmem:[%s1 + $0x8c] sm:$0xf]
  %v57 = vld [vmem:[%s1 + $0x90] sm:$0xf]
  %v58 = vld [vmem:[%s1 + $0x94] sm:$0xf]
  %v59 = vld [vmem:[%s1 + $0x98] sm:$0xf]
  %v60 = vld [vmem:[%s1 + $0x9c] sm:$0xf]
  %v61 = vld [vmem:[%s1 + $0xa0] sm:$0xf]
  %v62 = vld [vmem:[%s1 + $0xa4] sm:$0xf]
  %v63 = vld [vmem:[%s1 + $0xa8] sm:$0xf]
  %v64 = vld [vmem:[%s1 + $0xac] sm:$0xf]
  %v65 = vld [vmem:[%s1 + $0xb0] sm:$0xf]
  %v66 = vld [vmem:[%s1 + $0xb4] sm:$0xf]
  %v67 = vld [vmem:[%s1 + $0xb8] sm:$0xf]
  %v68 = vld [vmem:[%s1 + $0xbc] sm:$0xf]
  %v69 = vld [vmem:[%s1 + $0xc0] sm:$0xf]
  %v70 = vld [vmem:[%s1 + $0xc4] sm:$0xf]
  %v71 = vld [vmem:[%s1 + $0xc8] sm:$0xf]
  %v72 = vld [vmem:[%s1 + $0xcc] sm:$0xf]
  %v73 = vld [vmem:[%s1 + $0xd0] sm:$0xf]
  %v74 = vld [vmem:[%s1 + $0xd4] sm:$0xf]
  %v75 = vld [vmem:[%s1 + $0xd8] sm:$0xf]
  %v76 = vld [vmem:[%s1 + $0xdc] sm:$0xf]
  %v77 = vld [vmem:[%s1 + $0xe0] sm:$0xf]
  %v78 = vld [vmem:[%s1 + $0xe4] sm:$0xf]
  %v79 = vld [vmem:[%s1 + $0xe8] sm:$0xf]
  %v80 = vld [vmem:[%s1 + $0xec] sm:$0xf]
  %v81 = vld [vmem:[%s1 + $0xf0] sm:$0xf]
  %v82 = vld [vmem:[%s1 + $0xf4] sm:$0xf]
  %v83 = vld [vmem:[%s1 + $0xf8] sm:$0xf]
  %v84 = vld [vmem:[%s1 + $0xfc] sm:$0xf]
  %v85 = vld [vmem:[%s1 + $0x100] sm:$0xf]
  %v86 = vld [vmem:[%s1 + $0x104] sm:$0xf]
  %v87 = vld [vmem:[%s1 + $0x108] sm:$0xf]
  %v88 = vld [vmem:[%s1 + $0x10c] sm:$0xf]
  %v89 = vld [vmem:[%s1 + $0x110] sm:$0xf]
  %v90 = vld [vmem:[%s1 + $0x114] sm:$0xf]
  %v91 = vld [vmem:[%s1 + $0x118] sm:$0xf]
  %v92 = vld [vmem:[%s1 + $0x11c] sm:$0xf]
  %v93 = vld [vmem:[%s1 + $0x120] sm:$0xf]
  %v94 = vld [vmem:[%s1 + $0x124] sm:$0xf]
  %v95 = vld [vmem:[%s1 + $0x128] sm:$0xf]
  %v96 = vld [vmem:[%s1 + $0x12c] sm:$0xf]
  %v97 = vld [vmem:[%s1 + $0x130] sm:$0xf]
  %v98 = vld [vmem:[%s1 + $0x134] sm:$0xf]
  %v99 = vld [vmem:[%s1 + $0x138] sm:$0xf]
  %v100 = vld [vmem:[%s1 + $0x13c] sm:$0xf]
  %v101 = vld [vmem:[%s2] sm:$0x1]
  %v103 = vlaneseq
  %v104 = vshrl.u32 %v103, 7
  %v105 = vsub.s32 0, %v104
  %v106 = vrot.slane %v101, %v105
  %v114 = vunpack.c.l.b16 %v15
  %v115 = vunpack.c.h.b16 %v15
  %v116 = vunpack.c.l.b16 %v16
  %v117 = vunpack.c.h.b16 %v16
  %v118 = vunpack.c.l.b16 %v17
  %v119 = vunpack.c.l.b16 %v18
  %v120 = vunpack.c.h.b16 %v18
  %v121 = vunpack.c.l.b16 %v19
  %v122 = vunpack.c.h.b16 %v19
  %v123 = vunpack.c.l.b16 %v20
  %v124 = vpack.c.b16 %v119, %v114
  %v125 = vpack.c.b16 %v120, %v115
  %v126 = vpack.c.b16 %v121, %v116
  %v127 = vpack.c.b16 %v122, %v117
  %v128 = vpack.c.b16 %v123, %v118
  %v214 = vunpack.c.l.b16 %v21
  %v215 = vunpack.c.l.b16 %v22
  %v216 = vunpack.c.l.b16 %v23
  %v217 = vunpack.c.l.b16 %v24
  %v218 = vunpack.c.l.b16 %v25
  %v219 = vunpack.c.l.b16 %v26
  %v220 = vunpack.c.l.b16 %v27
  %v221 = vunpack.c.l.b16 %v28
  %v222 = vunpack.c.l.b16 %v29
  %v223 = vunpack.c.l.b16 %v30
  %v224 = vunpack.c.l.b16 %v31
  %v225 = vunpack.c.l.b16 %v32
  %v226 = vunpack.c.l.b16 %v33
  %v227 = vunpack.c.l.b16 %v34
  %v228 = vunpack.c.l.b16 %v35
  %v229 = vunpack.c.l.b16 %v36
  %v230 = vunpack.c.l.b16 %v37
  %v231 = vunpack.c.l.b16 %v38
  %v232 = vunpack.c.l.b16 %v39
  %v233 = vunpack.c.l.b16 %v40
  %v234 = vunpack.c.l.b16 %v41
  %v235 = vunpack.c.l.b16 %v42
  %v236 = vunpack.c.l.b16 %v43
  %v237 = vunpack.c.l.b16 %v44
  %v238 = vunpack.c.l.b16 %v45
  %v239 = vunpack.c.l.b16 %v46
  %v240 = vunpack.c.l.b16 %v47
  %v241 = vunpack.c.l.b16 %v48
  %v242 = vunpack.c.l.b16 %v49
  %v243 = vunpack.c.l.b16 %v50
  %v244 = vunpack.c.l.b16 %v51
  %v245 = vunpack.c.l.b16 %v52
  %v246 = vunpack.c.l.b16 %v53
  %v247 = vunpack.c.l.b16 %v54
  %v248 = vunpack.c.l.b16 %v55
  %v249 = vunpack.c.l.b16 %v56
  %v250 = vunpack.c.l.b16 %v57
  %v251 = vunpack.c.l.b16 %v58
  %v252 = vunpack.c.l.b16 %v59
  %v253 = vunpack.c.l.b16 %v60
  %v254 = vunpack.c.l.b16 %v61
  %v255 = vunpack.c.l.b16 %v62
  %v256 = vunpack.c.l.b16 %v63
  %v257 = vunpack.c.l.b16 %v64
  %v258 = vunpack.c.l.b16 %v65
  %v259 = vunpack.c.l.b16 %v66
  %v260 = vunpack.c.l.b16 %v67
  %v261 = vunpack.c.l.b16 %v68
  %v262 = vunpack.c.l.b16 %v69
  %v263 = vunpack.c.l.b16 %v70
  %v264 = vunpack.c.l.b16 %v71
  %v265 = vunpack.c.l.b16 %v72
  %v266 = vunpack.c.l.b16 %v73
  %v267 = vunpack.c.l.b16 %v74
  %v268 = vunpack.c.l.b16 %v75
  %v269 = vunpack.c.l.b16 %v76
  %v270 = vunpack.c.l.b16 %v77
  %v271 = vunpack.c.l.b16 %v78
  %v272 = vunpack.c.l.b16 %v79
  %v273 = vunpack.c.l.b16 %v80
  %v274 = vunpack.c.l.b16 %v81
  %v275 = vunpack.c.l.b16 %v82
  %v276 = vunpack.c.l.b16 %v83
  %v277 = vunpack.c.l.b16 %v84
  %v278 = vunpack.c.l.b16 %v85
  %v279 = vunpack.c.l.b16 %v86
  %v280 = vunpack.c.l.b16 %v87
  %v281 = vunpack.c.l.b16 %v88
  %v282 = vunpack.c.l.b16 %v89
  %v283 = vunpack.c.l.b16 %v90
  %v284 = vunpack.c.l.b16 %v91
  %v285 = vunpack.c.l.b16 %v92
  %v286 = vunpack.c.l.b16 %v93
  %v287 = vunpack.c.l.b16 %v94
  %v288 = vunpack.c.l.b16 %v95
  %v289 = vunpack.c.l.b16 %v96
  %v290 = vunpack.c.l.b16 %v97
  %v291 = vunpack.c.l.b16 %v98
  %v292 = vunpack.c.l.b16 %v99
  %v293 = vunpack.c.l.b16 %v100
  %v294 = vpack.c.b16 %v215, %v214
  %v295 = vpack.c.b16 %v217, %v216
  %v296 = vpack.c.b16 %v219, %v218
  %v297 = vpack.c.b16 %v221, %v220
  %v298 = vpack.c.b16 %v223, %v222
  %v299 = vpack.c.b16 %v225, %v224
  %v300 = vpack.c.b16 %v227, %v226
  %v301 = vpack.c.b16 %v229, %v228
  %v302 = vpack.c.b16 %v231, %v230
  %v303 = vpack.c.b16 %v233, %v232
  %v304 = vpack.c.b16 %v235, %v234
  %v305 = vpack.c.b16 %v237, %v236
  %v306 = vpack.c.b16 %v239, %v238
  %v307 = vpack.c.b16 %v241, %v240
  %v308 = vpack.c.b16 %v243, %v242
  %v309 = vpack.c.b16 %v245, %v244
  %v310 = vpack.c.b16 %v247, %v246
  %v311 = vpack.c.b16 %v249, %v248
  %v312 = vpack.c.b16 %v251, %v250
  %v313 = vpack.c.b16 %v253, %v252
  %v314 = vpack.c.b16 %v255, %v254
  %v315 = vpack.c.b16 %v257, %v256
  %v316 = vpack.c.b16 %v259, %v258
  %v317 = vpack.c.b16 %v261, %v260
  %v318 = vpack.c.b16 %v263, %v262
  %v319 = vpack.c.b16 %v265, %v264
  %v320 = vpack.c.b16 %v267, %v266
  %v321 = vpack.c.b16 %v269, %v268
  %v322 = vpack.c.b16 %v271, %v270
  %v323 = vpack.c.b16 %v273, %v272
  %v324 = vpack.c.b16 %v275, %v274
  %v325 = vpack.c.b16 %v277, %v276
  %v326 = vpack.c.b16 %v279, %v278
  %v327 = vpack.c.b16 %v281, %v280
  %v328 = vpack.c.b16 %v283, %v282
  %v329 = vpack.c.b16 %v285, %v284
  %v330 = vpack.c.b16 %v287, %v286
  %v331 = vpack.c.b16 %v289, %v288
  %v332 = vpack.c.b16 %v291, %v290
  %v333 = vpack.c.b16 %v293, %v292
  %374 = vmatprep.subr.bf16.mxu0 0
  %375 = vmatpush1.bf16.msra.mxu0 %v294
  %376 = vmatprep.subr.bf16.mxu0 0
  %377 = vmatpush1.bf16.msra.mxu0 %v295
  %378 = vmatprep.subr.bf16.mxu0 0
  %379 = vmatpush1.bf16.msra.mxu0 %v296
  %380 = vmatprep.subr.bf16.mxu0 0
  %381 = vmatpush1.bf16.msra.mxu0 %v297
  %382 = vmatprep.subr.bf16.mxu0 0
  %383 = vmatpush1.bf16.msra.mxu0 %v298
  %384 = vmatprep.subr.bf16.mxu0 0
  %385 = vmatpush1.bf16.msra.mxu0 %v299
  %386 = vmatprep.subr.bf16.mxu0 0
  %387 = vmatpush1.bf16.msra.mxu0 %v300
  %388 = vmatprep.subr.bf16.mxu0 0
  %389 = vmatpush1.bf16.msra.mxu0 %v301
  %390 = vmatprep.subr.bf16.mxu0 0
  %391 = vmatpush1.bf16.msra.mxu0 %v302
  %392 = vmatprep.subr.bf16.mxu0 0
  %393 = vmatpush1.bf16.msra.mxu0 %v303
  %394 = vmatprep.subr.bf16.mxu0 0
  %395 = vmatpush1.bf16.msra.mxu0 %v304
  %396 = vmatprep.subr.bf16.mxu0 0
  %397 = vmatpush1.bf16.msra.mxu0 %v305
  %398 = vmatprep.subr.bf16.mxu0 0
  %399 = vmatpush1.bf16.msra.mxu0 %v306
  %400 = vmatprep.subr.bf16.mxu0 0
  %401 = vmatpush1.bf16.msra.mxu0 %v307
  %402 = vmatprep.subr.bf16.mxu0 0
  %403 = vmatpush1.bf16.msra.mxu0 %v308
  %404 = vmatprep.subr.bf16.mxu0 0
  %405 = vmatpush1.bf16.msra.mxu0 %v309
  %406 = vmatprep.mubr.bf16.mxu0 %v125
  %407 = vmatmul.mubr.bf16.gmra.mrb[0].mxu0 %v124
  %v408 = vpop.f32.mrb[0].mxu0
  %v409 = vadd.f32 %v106, %v408
  %v410 = vpop.f32.mrb[0].mxu0
  %v411 = vpop.f32.mrb[0].mxu0
  %v412 = vadd.f32 %v106, %v411
  %v413 = vpop.f32.mrb[0].mxu0
  %414 = vdwg.mxu0
  %415 = vmatprep.subr.bf16.mxu0 0
  %416 = vmatpush1.bf16.msra.mxu0 %v310
  %417 = vmatprep.subr.bf16.mxu0 0
  %418 = vmatpush1.bf16.msra.mxu0 %v311
  %419 = vmatprep.subr.bf16.mxu0 0
  %420 = vmatpush1.bf16.msra.mxu0 %v312
  %421 = vmatprep.subr.bf16.mxu0 0
  %422 = vmatpush1.bf16.msra.mxu0 %v313
  %423 = vmatprep.subr.bf16.mxu0 0
  %424 = vmatpush1.bf16.msra.mxu0 %v314
  %425 = vmatprep.subr.bf16.mxu0 0
  %426 = vmatpush1.bf16.msra.mxu0 %v315
  %427 = vmatprep.subr.bf16.mxu0 0
  %428 = vmatpush1.bf16.msra.mxu0 %v316
  %429 = vmatprep.subr.bf16.mxu0 0
  %430 = vmatpush1.bf16.msra.mxu0 %v317
  %431 = vmatprep.subr.bf16.mxu0 0
  %432 = vmatpush1.bf16.msra.mxu0 %v318
  %433 = vmatprep.subr.bf16.mxu0 0
  %434 = vmatpush1.bf16.msra.mxu0 %v319
  %435 = vmatprep.subr.bf16.mxu0 0
  %436 = vmatpush1.bf16.msra.mxu0 %v320
  %437 = vmatprep.subr.bf16.mxu0 0
  %438 = vmatpush1.bf16.msra.mxu0 %v321
  %439 = vmatprep.subr.bf16.mxu0 0
  %440 = vmatpush1.bf16.msra.mxu0 %v322
  %441 = vmatprep.subr.bf16.mxu0 0
  %442 = vmatpush1.bf16.msra.mxu0 %v323
  %443 = vmatprep.subr.bf16.mxu0 0
  %444 = vmatpush1.bf16.msra.mxu0 %v324
  %445 = vmatprep.subr.bf16.mxu0 0
  %446 = vmatpush1.bf16.msra.mxu0 %v325
  %447 = vmatprep.mubr.bf16.mxu0 %v127
  %448 = vmatmul.mubr.bf16.gmra.mrb[0].mxu0 %v126
  %v449 = vpop.f32.mrb[0].mxu0
  %v450 = vadd.f32 %v409, %v449
  %v451 = vpop.f32.mrb[0].mxu0
  %v452 = vpop.f32.mrb[0].mxu0
  %v453 = vadd.f32 %v412, %v452
  %v454 = vpop.f32.mrb[0].mxu0
  %455 = vdwg.mxu0
  %456 = vmatprep.subr.bf16.mxu0 0
  %457 = vmatpush1.bf16.msra.mxu0 %v326
  %458 = vmatprep.subr.bf16.mxu0 0
  %459 = vmatpush1.bf16.msra.mxu0 %v327
  %460 = vmatprep.subr.bf16.mxu0 0
  %461 = vmatpush1.bf16.msra.mxu0 %v328
  %462 = vmatprep.subr.bf16.mxu0 0
  %463 = vmatpush1.bf16.msra.mxu0 %v329
  %464 = vmatprep.subr.bf16.mxu0 0
  %465 = vmatpush1.bf16.msra.mxu0 %v330
  %466 = vmatprep.subr.bf16.mxu0 0
  %467 = vmatpush1.bf16.msra.mxu0 %v331
  %468 = vmatprep.subr.bf16.mxu0 0
  %469 = vmatpush1.bf16.msra.mxu0 %v332
  %470 = vmatprep.subr.bf16.mxu0 0
  %471 = vmatpush1.bf16.msra.mxu0 %v333
  %472 = vmatprep.subr.bf16.mxu0 0
  %473 = vmatpush1.bf16.msra.mxu0 0
  %474 = vmatprep.subr.bf16.mxu0 0
  %475 = vmatpush1.bf16.msra.mxu0 0
  %476 = vmatprep.subr.bf16.mxu0 0
  %477 = vmatpush1.bf16.msra.mxu0 0
  %478 = vmatprep.subr.bf16.mxu0 0
  %479 = vmatpush1.bf16.msra.mxu0 0
  %480 = vmatprep.subr.bf16.mxu0 0
  %481 = vmatpush1.bf16.msra.mxu0 0
  %482 = vmatprep.subr.bf16.mxu0 0
  %483 = vmatpush1.bf16.msra.mxu0 0
  %484 = vmatprep.subr.bf16.mxu0 0
  %485 = vmatpush1.bf16.msra.mxu0 0
  %486 = vmatprep.subr.bf16.mxu0 0
  %487 = vmatpush1.bf16.msra.mxu0 0
  %488 = vmatprep.mubr.bf16.mxu0 0
  %489 = vmatmul.mubr.bf16.gmra.mrb[0].mxu0 %v128
  %v490 = vpop.f32.mrb[0].mxu0
  %v491 = vadd.f32 %v450, %v490
  %v492 = vpop.f32.mrb[0].mxu0
  %v493 = vpop.f32.mrb[0].mxu0
  %v494 = vadd.f32 %v453, %v493
  %v495 = vpop.f32.mrb[0].mxu0
  %496 = vdwg.mxu0
  %v497 = vmax.f32 %v491, 0.0
  %v498 = vmax.f32 %v494, 0.0
  %v499 = vpack.c.bf16 %v498, %v497
  %v501 = vunpack.c.l.b16 %v499
  %v502 = vunpack.c.h.b16 %v499
  %v503 = vpack.c.b16 %v501, %v501
  %v504 = vpack.c.b16 %v502, %v502
  %507 = vst [vmem:[%s3] sm:$0xf] %v503
  %508 = vst [vmem:[%s3 + $0x4] sm:$0xf] %v504
  // Predicated region
  $region14: #{_lambda_.13} parent=0 // pred_check
    _
  $region15: #{_lambda_.13} parent=0 // pred_check_branch
    %510 = sbr.rel (0) target = $region17
  $region16: #{_lambda_.13} parent=0 // pred_region
    _
  $region17: #{_lambda_.13} parent=0 // pred_fallthru
    _
  // Predicated region
  $region18: #{_lambda_.13} parent=0 // pred_check
    _
  $region19: #{_lambda_.13} parent=0 // pred_check_branch
    %512 = sbr.rel (0) target = $region21
  $region20: #{_lambda_.13} parent=0 // pred_region
    _
  $region21: #{_lambda_.13} parent=0 // pred_fallthru
    _

// kernel: _lambda_.14
$region0: #{_lambda_.14}
  #allocation0 [shape = 'u32[]', space=smem, size = 0x4, offset = 0x4, fixed_abs, tag = 'smem constant byte address 0x4 - core index']
  #allocation1 [shape = 'u32[144,128]{1,0:T(1,128)}', space=vmem, size = 0x12000, scoped, tag = 'internal scratch']
  %s0 = inlined_call_operand.vmem [shape: bf16[16,1152], index: 0, kind: input, shape index: {}]
  %s1 = inlined_call_operand.vmem [shape: bf16[1152,256], index: 1, kind: input, shape index: {}]
  %s2 = inlined_call_operand.vmem [shape: f32[1,256], index: 2, kind: input, shape index: {}]
  %s3 = inlined_call_operand.vmem [shape: bf16[16,256], index: 3, kind: output, shape index: {}]
  %s4 = sld [smem:[#allocation0]]
  $region22: #{_lambda_.14} parent=0
    _
  %s6 = ssub.s32 1, %s4
  %s7 = scalar_select 0, %s6, %s4
  // Predicated region
  $region2: #{_lambda_.14} parent=0 // pred_check
    _
  $region3: #{_lambda_.14} parent=0 // pred_check_branch
    %9 = sbr.rel (0) target = $region5
  $region4: #{_lambda_.14} parent=0 // pred_region
    _
  $region5: #{_lambda_.14} parent=0 // pred_fallthru
    _
  // Predicated region
  $region6: #{_lambda_.14} parent=0 // pred_check
    _
  $region7: #{_lambda_.14} parent=0 // pred_check_branch
    %11 = sbr.rel (0) target = $region9
  $region8: #{_lambda_.14} parent=0 // pred_region
    _
  $region9: #{_lambda_.14} parent=0 // pred_fallthru
    _
  // Predicated region
  $region10: #{_lambda_.14} parent=0 // pred_check
    _
  $region11: #{_lambda_.14} parent=0 // pred_check_branch
    %13 = sbr.rel (0) target = $region13
  $region12: #{_lambda_.14} parent=0 // pred_region
    _
  $region13: #{_lambda_.14} parent=0 // pred_fallthru
    _
  %v15 = vld [vmem:[%s0] sm:$0xff]
  %v16 = vld [vmem:[%s0 + $0x8] sm:$0xff]
  %v17 = vld [vmem:[%s0 + $0x10] sm:$0xff]
  %v18 = vld [vmem:[%s0 + $0x18] sm:$0xff]
  %v19 = vld [vmem:[%s0 + $0x20] sm:$0xf]
  %v20 = vld [vmem:[%s0 + $0x24] sm:$0xff]
  %v21 = vld [vmem:[%s0 + $0x2c] sm:$0xff]
  %v22 = vld [vmem:[%s0 + $0x34] sm:$0xff]
  %v23 = vld [vmem:[%s0 + $0x3c] sm:$0xff]
  %v24 = vld [vmem:[%s0 + $0x44] sm:$0xf]
  %v25 = vld [vmem:[%s1] sm:$0xff]
  %v26 = vld [vmem:[%s1 + $0x8] sm:$0xff]
  %v27 = vld [vmem:[%s1 + $0x10] sm:$0xff]
  %v28 = vld [vmem:[%s1 + $0x18] sm:$0xff]
  %v29 = vld [vmem:[%s1 + $0x20] sm:$0xff]
  %v30 = vld [vmem:[%s1 + $0x28] sm:$0xff]
  %v31 = vld [vmem:[%s1 + $0x30] sm:$0xff]
  %v32 = vld [vmem:[%s1 + $0x38] sm:$0xff]
  %v33 = vld [vmem:[%s1 + $0x40] sm:$0xff]
  %v34 = vld [vmem:[%s1 + $0x48] sm:$0xff]
  %v35 = vld [vmem:[%s1 + $0x50] sm:$0xff]
  %v36 = vld [vmem:[%s1 + $0x58] sm:$0xff]
  %v37 = vld [vmem:[%s1 + $0x60] sm:$0xff]
  %v38 = vld [vmem:[%s1 + $0x68] sm:$0xff]
  %v39 = vld [vmem:[%s1 + $0x70] sm:$0xff]
  %v40 = vld [vmem:[%s1 + $0x78] sm:$0xff]
  %v41 = vld [vmem:[%s1 + $0x80] sm:$0xff]
  %v42 = vld [vmem:[%s1 + $0x88] sm:$0xff]
  %v43 = vld [vmem:[%s1 + $0x90] sm:$0xff]
  %v44 = vld [vmem:[%s1 + $0x98] sm:$0xff]
  %v45 = vld [vmem:[%s1 + $0xa0] sm:$0xff]
  %v46 = vld [vmem:[%s1 + $0xa8] sm:$0xff]
  %v47 = vld [vmem:[%s1 + $0xb0] sm:$0xff]
  %v48 = vld [vmem:[%s1 + $0xb8] sm:$0xff]
  %v49 = vld [vmem:[%s1 + $0xc0] sm:$0xff]
  %v50 = vld [vmem:[%s1 + $0xc8] sm:$0xff]
  %v51 = vld [vmem:[%s1 + $0xd0] sm:$0xff]
  %v52 = vld [vmem:[%s1 + $0xd8] sm:$0xff]
  %v53 = vld [vmem:[%s1 + $0xe0] sm:$0xff]
  %v54 = vld [vmem:[%s1 + $0xe8] sm:$0xff]
  %v55 = vld [vmem:[%s1 + $0xf0] sm:$0xff]
  %v56 = vld [vmem:[%s1 + $0xf8] sm:$0xff]
  %v57 = vld [vmem:[%s1 + $0x100] sm:$0xff]
  %v58 = vld [vmem:[%s1 + $0x108] sm:$0xff]
  %v59 = vld [vmem:[%s1 + $0x110] sm:$0xff]
  %v60 = vld [vmem:[%s1 + $0x118] sm:$0xff]
  %v61 = vld [vmem:[%s1 + $0x120] sm:$0xff]
  %v62 = vld [vmem:[%s1 + $0x128] sm:$0xff]
  %v63 = vld [vmem:[%s1 + $0x130] sm:$0xff]
  %v64 = vld [vmem:[%s1 + $0x138] sm:$0xff]
  %v65 = vld [vmem:[%s1 + $0x140] sm:$0xff]
  %v66 = vld [vmem:[%s1 + $0x148] sm:$0xff]
  %v67 = vld [vmem:[%s1 + $0x150] sm:$0xff]
  %v68 = vld [vmem:[%s1 + $0x158] sm:$0xff]
  %v69 = vld [vmem:[%s1 + $0x160] sm:$0xff]
  %v70 = vld [vmem:[%s1 + $0x168] sm:$0xff]
  %v71 = vld [vmem:[%s1 + $0x170] sm:$0xff]
  %v72 = vld [vmem:[%s1 + $0x178] sm:$0xff]
  %v73 = vld [vmem:[%s1 + $0x180] sm:$0xff]
  %v74 = vld [vmem:[%s1 + $0x188] sm:$0xff]
  %v75 = vld [vmem:[%s1 + $0x190] sm:$0xff]
  %v76 = vld [vmem:[%s1 + $0x198] sm:$0xff]
  %v77 = vld [vmem:[%s1 + $0x1a0] sm:$0xff]
  %v78 = vld [vmem:[%s1 + $0x1a8] sm:$0xff]
  %v79 = vld [vmem:[%s1 + $0x1b0] sm:$0xff]
  %v80 = vld [vmem:[%s1 + $0x1b8] sm:$0xff]
  %v81 = vld [vmem:[%s1 + $0x1c0] sm:$0xff]
  %v82 = vld [vmem:[%s1 + $0x1c8] sm:$0xff]
  %v83 = vld [vmem:[%s1 + $0x1d0] sm:$0xff]
  %v84 = vld [vmem:[%s1 + $0x1d8] sm:$0xff]
  %v85 = vld [vmem:[%s1 + $0x1e0] sm:$0xff]
  %v86 = vld [vmem:[%s1 + $0x1e8] sm:$0xff]
  %v87 = vld [vmem:[%s1 + $0x1f0] sm:$0xff]
  %v88 = vld [vmem:[%s1 + $0x1f8] sm:$0xff]
  %v89 = vld [vmem:[%s1 + $0x200] sm:$0xff]
  %v90 = vld [vmem:[%s1 + $0x208] sm:$0xff]
  %v91 = vld [vmem:[%s1 + $0x210] sm:$0xff]
  %v92 = vld [vmem:[%s1 + $0x218] sm:$0xff]
  %v93 = vld [vmem:[%s1 + $0x220] sm:$0xff]
  %v94 = vld [vmem:[%s1 + $0x228] sm:$0xff]
  %v95 = vld [vmem:[%s1 + $0x230] sm:$0xff]
  %v96 = vld [vmem:[%s1 + $0x238] sm:$0xff]
  %v97 = vld [vmem:[%s1 + $0x240] sm:$0xff]
  %v98 = vld [vmem:[%s1 + $0x248] sm:$0xff]
  %v99 = vld [vmem:[%s1 + $0x250] sm:$0xff]
  %v100 = vld [vmem:[%s1 + $0x258] sm:$0xff]
  %v101 = vld [vmem:[%s1 + $0x260] sm:$0xff]
  %v102 = vld [vmem:[%s1 + $0x268] sm:$0xff]
  %v103 = vld [vmem:[%s1 + $0x270] sm:$0xff]
  %v104 = vld [vmem:[%s1 + $0x278] sm:$0xff]
  %v105 = vld [vmem:[%s1 + $0x280] sm:$0xff]
  %v106 = vld [vmem:[%s1 + $0x288] sm:$0xff]
  %v107 = vld [vmem:[%s1 + $0x290] sm:$0xff]
  %v108 = vld [vmem:[%s1 + $0x298] sm:$0xff]
  %v109 = vld [vmem:[%s1 + $0x2a0] sm:$0xff]
  %v110 = vld [vmem:[%s1 + $0x2a8] sm:$0xff]
  %v111 = vld [vmem:[%s1 + $0x2b0] sm:$0xff]
  %v112 = vld [vmem:[%s1 + $0x2b8] sm:$0xff]
  %v113 = vld [vmem:[%s1 + $0x2c0] sm:$0xff]
  %v114 = vld [vmem:[%s1 + $0x2c8] sm:$0xff]
  %v115 = vld [vmem:[%s1 + $0x2d0] sm:$0xff]
  %v116 = vld [vmem:[%s1 + $0x2d8] sm:$0xff]
  %v117 = vld [vmem:[%s1 + $0x2e0] sm:$0xff]
  %v118 = vld [vmem:[%s1 + $0x2e8] sm:$0xff]
  %v119 = vld [vmem:[%s1 + $0x2f0] sm:$0xff]
  %v120 = vld [vmem:[%s1 + $0x2f8] sm:$0xff]
  %v121 = vld [vmem:[%s1 + $0x300] sm:$0xff]
  %v122 = vld [vmem:[%s1 + $0x308] sm:$0xff]
  %v123 = vld [vmem:[%s1 + $0x310] sm:$0xff]
  %v124 = vld [vmem:[%s1 + $0x318] sm:$0xff]
  %v125 = vld [vmem:[%s1 + $0x320] sm:$0xff]
  %v126 = vld [vmem:[%s1 + $0x328] sm:$0xff]
  %v127 = vld [vmem:[%s1 + $0x330] sm:$0xff]
  %v128 = vld [vmem:[%s1 + $0x338] sm:$0xff]
  %v129 = vld [vmem:[%s1 + $0x340] sm:$0xff]
  %v130 = vld [vmem:[%s1 + $0x348] sm:$0xff]
  %v131 = vld [vmem:[%s1 + $0x350] sm:$0xff]
  %v132 = vld [vmem:[%s1 + $0x358] sm:$0xff]
  %v133 = vld [vmem:[%s1 + $0x360] sm:$0xff]
  %v134 = vld [vmem:[%s1 + $0x368] sm:$0xff]
  %v135 = vld [vmem:[%s1 + $0x370] sm:$0xff]
  %v136 = vld [vmem:[%s1 + $0x378] sm:$0xff]
  %v137 = vld [vmem:[%s1 + $0x380] sm:$0xff]
  %v138 = vld [vmem:[%s1 + $0x388] sm:$0xff]
  %v139 = vld [vmem:[%s1 + $0x390] sm:$0xff]
  %v140 = vld [vmem:[%s1 + $0x398] sm:$0xff]
  %v141 = vld [vmem:[%s1 + $0x3a0] sm:$0xff]
  %v142 = vld [vmem:[%s1 + $0x3a8] sm:$0xff]
  %v143 = vld [vmem:[%s1 + $0x3b0] sm:$0xff]
  %v144 = vld [vmem:[%s1 + $0x3b8] sm:$0xff]
  %v145 = vld [vmem:[%s1 + $0x3c0] sm:$0xff]
  %v146 = vld [vmem:[%s1 + $0x3c8] sm:$0xff]
  %v147 = vld [vmem:[%s1 + $0x3d0] sm:$0xff]
  %v148 = vld [vmem:[%s1 + $0x3d8] sm:$0xff]
  %v149 = vld [vmem:[%s1 + $0x3e0] sm:$0xff]
  %v150 = vld [vmem:[%s1 + $0x3e8] sm:$0xff]
  %v151 = vld [vmem:[%s1 + $0x3f0] sm:$0xff]
  %v152 = vld [vmem:[%s1 + $0x3f8] sm:$0xff]
  %v153 = vld [vmem:[%s1 + $0x400] sm:$0xff]
  %v154 = vld [vmem:[%s1 + $0x408] sm:$0xff]
  %v155 = vld [vmem:[%s1 + $0x410] sm:$0xff]
  %v156 = vld [vmem:[%s1 + $0x418] sm:$0xff]
  %v157 = vld [vmem:[%s1 + $0x420] sm:$0xff]
  %v158 = vld [vmem:[%s1 + $0x428] sm:$0xff]
  %v159 = vld [vmem:[%s1 + $0x430] sm:$0xff]
  %v160 = vld [vmem:[%s1 + $0x438] sm:$0xff]
  %v161 = vld [vmem:[%s1 + $0x440] sm:$0xff]
  %v162 = vld [vmem:[%s1 + $0x448] sm:$0xff]
  %v163 = vld [vmem:[%s1 + $0x450] sm:$0xff]
  %v164 = vld [vmem:[%s1 + $0x458] sm:$0xff]
  %v165 = vld [vmem:[%s1 + $0x460] sm:$0xff]
  %v166 = vld [vmem:[%s1 + $0x468] sm:$0xff]
  %v167 = vld [vmem:[%s1 + $0x470] sm:$0xff]
  %v168 = vld [vmem:[%s1 + $0x478] sm:$0xff]
  %v169 = vld [vmem:[%s2] sm:$0x3]
  %v171 = vlaneseq
  %v172 = vshrl.u32 %v171, 7
  %v173 = vsub.s32 0, %v172
  %v174 = vrot.slane %v169, %v173
  %v175 = vlaneseq
  %v176 = vshrl.u32 %v175, 7
  %v177 = vsub.s32 1, %v176
  %v178 = vrot.slane %v169, %v177
  %v191 = vunpack.c.l.b16 %v15
  %v192 = vunpack.c.h.b16 %v15
  %v193 = vunpack.c.l.b16 %v16
  %v194 = vunpack.c.h.b16 %v16
  %v195 = vunpack.c.l.b16 %v17
  %v196 = vunpack.c.h.b16 %v17
  %v197 = vunpack.c.l.b16 %v18
  %v198 = vunpack.c.h.b16 %v18
  %v199 = vunpack.c.l.b16 %v19
  %v200 = vunpack.c.l.b16 %v20
  %v201 = vunpack.c.h.b16 %v20
  %v202 = vunpack.c.l.b16 %v21
  %v203 = vunpack.c.h.b16 %v21
  %v204 = vunpack.c.l.b16 %v22
  %v205 = vunpack.c.h.b16 %v22
  %v206 = vunpack.c.l.b16 %v23
  %v207 = vunpack.c.h.b16 %v23
  %v208 = vunpack.c.l.b16 %v24
  %v209 = vpack.c.b16 %v200, %v191
  %v210 = vpack.c.b16 %v201, %v192
  %v211 = vpack.c.b16 %v202, %v193
  %v212 = vpack.c.b16 %v203, %v194
  %v213 = vpack.c.b16 %v204, %v195
  %v214 = vpack.c.b16 %v205, %v196
  %v215 = vpack.c.b16 %v206, %v197
  %v216 = vpack.c.b16 %v207, %v198
  %v217 = vpack.c.b16 %v208, %v199
  %v371 = vunpack.c.l.b16 %v25
  %v372 = vunpack.c.h.b16 %v25
  %v373 = vunpack.c.l.b16 %v26
  %v374 = vunpack.c.h.b16 %v26
  %v375 = vunpack.c.l.b16 %v27
  %v376 = vunpack.c.h.b16 %v27
  %v377 = vunpack.c.l.b16 %v28
  %v378 = vunpack.c.h.b16 %v28
  %v379 = vunpack.c.l.b16 %v29
  %v380 = vunpack.c.h.b16 %v29
  %v381 = vunpack.c.l.b16 %v30
  %v382 = vunpack.c.h.b16 %v30
  %v383 = vunpack.c.l.b16 %v31
  %v384 = vunpack.c.h.b16 %v31
  %v385 = vunpack.c.l.b16 %v32
  %v386 = vunpack.c.h.b16 %v32
  %v387 = vunpack.c.l.b16 %v33
  %v388 = vunpack.c.h.b16 %v33
  %v389 = vunpack.c.l.b16 %v34
  %v390 = vunpack.c.h.b16 %v34
  %v391 = vunpack.c.l.b16 %v35
  %v392 = vunpack.c.h.b16 %v35
  %v393 = vunpack.c.l.b16 %v36
  %v394 = vunpack.c.h.b16 %v36
  %v395 = vunpack.c.l.b16 %v37
  %v396 = vunpack.c.h.b16 %v37
  %v397 = vunpack.c.l.b16 %v38
  %v398 = vunpack.c.h.b16 %v38
  %v399 = vunpack.c.l.b16 %v39
  %v400 = vunpack.c.h.b16 %v39
  %v401 = vunpack.c.l.b16 %v40
  %v402 = vunpack.c.h.b16 %v40
  %v403 = vunpack.c.l.b16 %v41
  %v404 = vunpack.c.h.b16 %v41
  %v405 = vunpack.c.l.b16 %v42
  %v406 = vunpack.c.h.b16 %v42
  %v407 = vunpack.c.l.b16 %v43
  %v408 = vunpack.c.h.b16 %v43
  %v409 = vunpack.c.l.b16 %v44
  %v410 = vunpack.c.h.b16 %v44
  %v411 = vunpack.c.l.b16 %v45
  %v412 = vunpack.c.h.b16 %v45
  %v413 = vunpack.c.l.b16 %v46
  %v414 = vunpack.c.h.b16 %v46
  %v415 = vunpack.c.l.b16 %v47
  %v416 = vunpack.c.h.b16 %v47
  %v417 = vunpack.c.l.b16 %v48
  %v418 = vunpack.c.h.b16 %v48
  %v419 = vunpack.c.l.b16 %v49
  %v420 = vunpack.c.h.b16 %v49
  %v421 = vunpack.c.l.b16 %v50
  %v422 = vunpack.c.h.b16 %v50
  %v423 = vunpack.c.l.b16 %v51
  %v424 = vunpack.c.h.b16 %v51
  %v425 = vunpack.c.l.b16 %v52
  %v426 = vunpack.c.h.b16 %v52
  %v427 = vunpack.c.l.b16 %v53
  %v428 = vunpack.c.h.b16 %v53
  %v429 = vunpack.c.l.b16 %v54
  %v430 = vunpack.c.h.b16 %v54
  %v431 = vunpack.c.l.b16 %v55
  %v432 = vunpack.c.h.b16 %v55
  %v433 = vunpack.c.l.b16 %v56
  %v434 = vunpack.c.h.b16 %v56
  %v435 = vunpack.c.l.b16 %v57
  %v436 = vunpack.c.h.b16 %v57
  %v437 = vunpack.c.l.b16 %v58
  %v438 = vunpack.c.h.b16 %v58
  %v439 = vunpack.c.l.b16 %v59
  %v440 = vunpack.c.h.b16 %v59
  %v441 = vunpack.c.l.b16 %v60
  %v442 = vunpack.c.h.b16 %v60
  %v443 = vunpack.c.l.b16 %v61
  %v444 = vunpack.c.h.b16 %v61
  %v445 = vunpack.c.l.b16 %v62
  %v446 = vunpack.c.h.b16 %v62
  %v447 = vunpack.c.l.b16 %v63
  %v448 = vunpack.c.h.b16 %v63
  %v449 = vunpack.c.l.b16 %v64
  %v450 = vunpack.c.h.b16 %v64
  %v451 = vunpack.c.l.b16 %v65
  %v452 = vunpack.c.h.b16 %v65
  %v453 = vunpack.c.l.b16 %v66
  %v454 = vunpack.c.h.b16 %v66
  %v455 = vunpack.c.l.b16 %v67
  %v456 = vunpack.c.h.b16 %v67
  %v457 = vunpack.c.l.b16 %v68
  %v458 = vunpack.c.h.b16 %v68
  %v459 = vunpack.c.l.b16 %v69
  %v460 = vunpack.c.h.b16 %v69
  %v461 = vunpack.c.l.b16 %v70
  %v462 = vunpack.c.h.b16 %v70
  %v463 = vunpack.c.l.b16 %v71
  %v464 = vunpack.c.h.b16 %v71
  %v465 = vunpack.c.l.b16 %v72
  %v466 = vunpack.c.h.b16 %v72
  %v467 = vunpack.c.l.b16 %v73
  %v468 = vunpack.c.h.b16 %v73
  %v469 = vunpack.c.l.b16 %v74
  %v470 = vunpack.c.h.b16 %v74
  %v471 = vunpack.c.l.b16 %v75
  %v472 = vunpack.c.h.b16 %v75
  %v473 = vunpack.c.l.b16 %v76
  %v474 = vunpack.c.h.b16 %v76
  %v475 = vunpack.c.l.b16 %v77
  %v476 = vunpack.c.h.b16 %v77
  %v477 = vunpack.c.l.b16 %v78
  %v478 = vunpack.c.h.b16 %v78
  %v479 = vunpack.c.l.b16 %v79
  %v480 = vunpack.c.h.b16 %v79
  %v481 = vunpack.c.l.b16 %v80
  %v482 = vunpack.c.h.b16 %v80
  %v483 = vunpack.c.l.b16 %v81
  %v484 = vunpack.c.h.b16 %v81
  %v485 = vunpack.c.l.b16 %v82
  %v486 = vunpack.c.h.b16 %v82
  %v487 = vunpack.c.l.b16 %v83
  %v488 = vunpack.c.h.b16 %v83
  %v489 = vunpack.c.l.b16 %v84
  %v490 = vunpack.c.h.b16 %v84
  %v491 = vunpack.c.l.b16 %v85
  %v492 = vunpack.c.h.b16 %v85
  %v493 = vunpack.c.l.b16 %v86
  %v494 = vunpack.c.h.b16 %v86
  %v495 = vunpack.c.l.b16 %v87
  %v496 = vunpack.c.h.b16 %v87
  %v497 = vunpack.c.l.b16 %v88
  %v498 = vunpack.c.h.b16 %v88
  %v499 = vunpack.c.l.b16 %v89
  %v500 = vunpack.c.h.b16 %v89
  %v501 = vunpack.c.l.b16 %v90
  %v502 = vunpack.c.h.b16 %v90
  %v503 = vunpack.c.l.b16 %v91
  %v504 = vunpack.c.h.b16 %v91
  %v505 = vunpack.c.l.b16 %v92
  %v506 = vunpack.c.h.b16 %v92
  %v507 = vunpack.c.l.b16 %v93
  %v508 = vunpack.c.h.b16 %v93
  %v509 = vunpack.c.l.b16 %v94
  %v510 = vunpack.c.h.b16 %v94
  %v511 = vunpack.c.l.b16 %v95
  %v512 = vunpack.c.h.b16 %v95
  %v513 = vunpack.c.l.b16 %v96
  %v514 = vunpack.c.h.b16 %v96
  %v515 = vunpack.c.l.b16 %v97
  %v516 = vunpack.c.h.b16 %v97
  %v517 = vunpack.c.l.b16 %v98
  %v518 = vunpack.c.h.b16 %v98
  %v519 = vunpack.c.l.b16 %v99
  %v520 = vunpack.c.h.b16 %v99
  %v521 = vunpack.c.l.b16 %v100
  %v522 = vunpack.c.h.b16 %v100
  %v523 = vunpack.c.l.b16 %v101
  %v524 = vunpack.c.h.b16 %v101
  %v525 = vunpack.c.l.b16 %v102
  %v526 = vunpack.c.h.b16 %v102
  %v527 = vunpack.c.l.b16 %v103
  %v528 = vunpack.c.h.b16 %v103
  %v529 = vunpack.c.l.b16 %v104
  %v530 = vunpack.c.h.b16 %v104
  %v531 = vunpack.c.l.b16 %v105
  %v532 = vunpack.c.h.b16 %v105
  %v533 = vunpack.c.l.b16 %v106
  %v534 = vunpack.c.h.b16 %v106
  %v535 = vunpack.c.l.b16 %v107
  %v536 = vunpack.c.h.b16 %v107
  %v537 = vunpack.c.l.b16 %v108
  %v538 = vunpack.c.h.b16 %v108
  %v539 = vunpack.c.l.b16 %v109
  %v540 = vunpack.c.h.b16 %v109
  %v541 = vunpack.c.l.b16 %v110
  %v542 = vunpack.c.h.b16 %v110
  %v543 = vunpack.c.l.b16 %v111
  %v544 = vunpack.c.h.b16 %v111
  %v545 = vunpack.c.l.b16 %v112
  %v546 = vunpack.c.h.b16 %v112
  %v547 = vunpack.c.l.b16 %v113
  %v548 = vunpack.c.h.b16 %v113
  %v549 = vunpack.c.l.b16 %v114
  %v550 = vunpack.c.h.b16 %v114
  %v551 = vunpack.c.l.b16 %v115
  %v552 = vunpack.c.h.b16 %v115
  %v553 = vunpack.c.l.b16 %v116
  %v554 = vunpack.c.h.b16 %v116
  %v555 = vunpack.c.l.b16 %v117
  %v556 = vunpack.c.h.b16 %v117
  %v557 = vunpack.c.l.b16 %v118
  %v558 = vunpack.c.h.b16 %v118
  %v559 = vunpack.c.l.b16 %v119
  %v560 = vunpack.c.h.b16 %v119
  %v561 = vunpack.c.l.b16 %v120
  %v562 = vunpack.c.h.b16 %v120
  %v563 = vunpack.c.l.b16 %v121
  %v564 = vunpack.c.h.b16 %v121
  %v565 = vunpack.c.l.b16 %v122
  %v566 = vunpack.c.h.b16 %v122
  %v567 = vunpack.c.l.b16 %v123
  %v568 = vunpack.c.h.b16 %v123
  %v569 = vunpack.c.l.b16 %v124
  %v570 = vunpack.c.h.b16 %v124
  %v571 = vunpack.c.l.b16 %v125
  %v572 = vunpack.c.h.b16 %v125
  %v573 = vunpack.c.l.b16 %v126
  %v574 = vunpack.c.h.b16 %v126
  %v575 = vunpack.c.l.b16 %v127
  %v576 = vunpack.c.h.b16 %v127
  %v577 = vunpack.c.l.b16 %v128
  %v578 = vunpack.c.h.b16 %v128
  %v579 = vunpack.c.l.b16 %v129
  %v580 = vunpack.c.h.b16 %v129
  %v581 = vunpack.c.l.b16 %v130
  %v582 = vunpack.c.h.b16 %v130
  %v583 = vunpack.c.l.b16 %v131
  %v584 = vunpack.c.h.b16 %v131
  %v585 = vunpack.c.l.b16 %v132
  %v586 = vunpack.c.h.b16 %v132
  %v587 = vunpack.c.l.b16 %v133
  %v588 = vunpack.c.h.b16 %v133
  %v589 = vunpack.c.l.b16 %v134
  %v590 = vunpack.c.h.b16 %v134
  %v591 = vunpack.c.l.b16 %v135
  %v592 = vunpack.c.h.b16 %v135
  %v593 = vunpack.c.l.b16 %v136
  %v594 = vunpack.c.h.b16 %v136
  %v595 = vunpack.c.l.b16 %v137
  %v596 = vunpack.c.h.b16 %v137
  %v597 = vunpack.c.l.b16 %v138
  %v598 = vunpack.c.h.b16 %v138
  %v599 = vunpack.c.l.b16 %v139
  %v600 = vunpack.c.h.b16 %v139
  %v601 = vunpack.c.l.b16 %v140
  %v602 = vunpack.c.h.b16 %v140
  %v603 = vunpack.c.l.b16 %v141
  %v604 = vunpack.c.h.b16 %v141
  %v605 = vunpack.c.l.b16 %v142
  %v606 = vunpack.c.h.b16 %v142
  %v607 = vunpack.c.l.b16 %v143
  %v608 = vunpack.c.h.b16 %v143
  %v609 = vunpack.c.l.b16 %v144
  %v610 = vunpack.c.h.b16 %v144
  %v611 = vunpack.c.l.b16 %v145
  %v612 = vunpack.c.h.b16 %v145
  %v613 = vunpack.c.l.b16 %v146
  %v614 = vunpack.c.h.b16 %v146
  %v615 = vunpack.c.l.b16 %v147
  %v616 = vunpack.c.h.b16 %v147
  %v617 = vunpack.c.l.b16 %v148
  %v618 = vunpack.c.h.b16 %v148
  %v619 = vunpack.c.l.b16 %v149
  %v620 = vunpack.c.h.b16 %v149
  %v621 = vunpack.c.l.b16 %v150
  %v622 = vunpack.c.h.b16 %v150
  %v623 = vunpack.c.l.b16 %v151
  %v624 = vunpack.c.h.b16 %v151
  %v625 = vunpack.c.l.b16 %v152
  %v626 = vunpack.c.h.b16 %v152
  %v627 = vunpack.c.l.b16 %v153
  %v628 = vunpack.c.h.b16 %v153
  %v629 = vunpack.c.l.b16 %v154
  %v630 = vunpack.c.h.b16 %v154
  %v631 = vunpack.c.l.b16 %v155
  %v632 = vunpack.c.h.b16 %v155
  %v633 = vunpack.c.l.b16 %v156
  %v634 = vunpack.c.h.b16 %v156
  %v635 = vunpack.c.l.b16 %v157
  %v636 = vunpack.c.h.b16 %v157
  %v637 = vunpack.c.l.b16 %v158
  %v638 = vunpack.c.h.b16 %v158
  %v639 = vunpack.c.l.b16 %v159
  %v640 = vunpack.c.h.b16 %v159
  %v641 = vunpack.c.l.b16 %v160
  %v642 = vunpack.c.h.b16 %v160
  %v643 = vunpack.c.l.b16 %v161
  %v644 = vunpack.c.h.b16 %v161
  %v645 = vunpack.c.l.b16 %v162
  %v646 = vunpack.c.h.b16 %v162
  %v647 = vunpack.c.l.b16 %v163
  %v648 = vunpack.c.h.b16 %v163
  %v649 = vunpack.c.l.b16 %v164
  %v650 = vunpack.c.h.b16 %v164
  %v651 = vunpack.c.l.b16 %v165
  %v652 = vunpack.c.h.b16 %v165
  %v653 = vunpack.c.l.b16 %v166
  %v654 = vunpack.c.h.b16 %v166
  %v655 = vunpack.c.l.b16 %v167
  %v656 = vunpack.c.h.b16 %v167
  %v657 = vunpack.c.l.b16 %v168
  %v658 = vunpack.c.h.b16 %v168
  %v659 = vpack.c.b16 %v373, %v371
  %v660 = vpack.c.b16 %v374, %v372
  %v661 = vpack.c.b16 %v377, %v375
  %v662 = vpack.c.b16 %v378, %v376
  %v663 = vpack.c.b16 %v381, %v379
  %v664 = vpack.c.b16 %v382, %v380
  %v665 = vpack.c.b16 %v385, %v383
  %v666 = vpack.c.b16 %v386, %v384
  %v667 = vpack.c.b16 %v389, %v387
  %v668 = vpack.c.b16 %v390, %v388
  %v669 = vpack.c.b16 %v393, %v391
  %v670 = vpack.c.b16 %v394, %v392
  %v671 = vpack.c.b16 %v397, %v395
  %v672 = vpack.c.b16 %v398, %v396
  %v673 = vpack.c.b16 %v401, %v399
  %v674 = vpack.c.b16 %v402, %v400
  %v675 = vpack.c.b16 %v405, %v403
  %v676 = vpack.c.b16 %v406, %v404
  %v677 = vpack.c.b16 %v409, %v407
  %v678 = vpack.c.b16 %v410, %v408
  %v679 = vpack.c.b16 %v413, %v411
  %v680 = vpack.c.b16 %v414, %v412
  %v681 = vpack.c.b16 %v417, %v415
  %v682 = vpack.c.b16 %v418, %v416
  %v683 = vpack.c.b16 %v421, %v419
  %v684 = vpack.c.b16 %v422, %v420
  %v685 = vpack.c.b16 %v425, %v423
  %v686 = vpack.c.b16 %v426, %v424
  %v687 = vpack.c.b16 %v429, %v427
  %v688 = vpack.c.b16 %v430, %v428
  %v689 = vpack.c.b16 %v433, %v431
  %v690 = vpack.c.b16 %v434, %v432
  %v691 = vpack.c.b16 %v437, %v435
  %v692 = vpack.c.b16 %v438, %v436
  %v693 = vpack.c.b16 %v441, %v439
  %v694 = vpack.c.b16 %v442, %v440
  %v695 = vpack.c.b16 %v445, %v443
  %v696 = vpack.c.b16 %v446, %v444
  %v697 = vpack.c.b16 %v449, %v447
  %v698 = vpack.c.b16 %v450, %v448
  %v699 = vpack.c.b16 %v453, %v451
  %v700 = vpack.c.b16 %v454, %v452
  %v701 = vpack.c.b16 %v457, %v455
  %v702 = vpack.c.b16 %v458, %v456
  %v703 = vpack.c.b16 %v461, %v459
  %v704 = vpack.c.b16 %v462, %v460
  %v705 = vpack.c.b16 %v465, %v463
  %v706 = vpack.c.b16 %v466, %v464
  %v707 = vpack.c.b16 %v469, %v467
  %v708 = vpack.c.b16 %v470, %v468
  %v709 = vpack.c.b16 %v473, %v471
  %v710 = vpack.c.b16 %v474, %v472
  %v711 = vpack.c.b16 %v477, %v475
  %v712 = vpack.c.b16 %v478, %v476
  %v713 = vpack.c.b16 %v481, %v479
  %v714 = vpack.c.b16 %v482, %v480
  %v715 = vpack.c.b16 %v485, %v483
  %v716 = vpack.c.b16 %v486, %v484
  %v717 = vpack.c.b16 %v489, %v487
  %v718 = vpack.c.b16 %v490, %v488
  %v719 = vpack.c.b16 %v493, %v491
  %v720 = vpack.c.b16 %v494, %v492
  %v721 = vpack.c.b16 %v497, %v495
  %v722 = vpack.c.b16 %v498, %v496
  %v723 = vpack.c.b16 %v501, %v499
  %v724 = vpack.c.b16 %v502, %v500
  %v725 = vpack.c.b16 %v505, %v503
  %v726 = vpack.c.b16 %v506, %v504
  %v727 = vpack.c.b16 %v509, %v507
  %v728 = vpack.c.b16 %v510, %v508
  %v729 = vpack.c.b16 %v513, %v511
  %v730 = vpack.c.b16 %v514, %v512
  %v731 = vpack.c.b16 %v517, %v515
  %v732 = vpack.c.b16 %v518, %v516
  %v733 = vpack.c.b16 %v521, %v519
  %v734 = vpack.c.b16 %v522, %v520
  %v735 = vpack.c.b16 %v525, %v523
  %v736 = vpack.c.b16 %v526, %v524
  %v737 = vpack.c.b16 %v529, %v527
  %v738 = vpack.c.b16 %v530, %v528
  %v739 = vpack.c.b16 %v533, %v531
  %v740 = vpack.c.b16 %v534, %v532
  %v741 = vpack.c.b16 %v537, %v535
  %v742 = vpack.c.b16 %v538, %v536
  %v743 = vpack.c.b16 %v541, %v539
  %v744 = vpack.c.b16 %v542, %v540
  %v745 = vpack.c.b16 %v545, %v543
  %v746 = vpack.c.b16 %v546, %v544
  %v747 = vpack.c.b16 %v549, %v547
  %v748 = vpack.c.b16 %v550, %v548
  %v749 = vpack.c.b16 %v553, %v551
  %v750 = vpack.c.b16 %v554, %v552
  %v751 = vpack.c.b16 %v557, %v555
  %v752 = vpack.c.b16 %v558, %v556
  %v753 = vpack.c.b16 %v561, %v559
  %v754 = vpack.c.b16 %v562, %v560
  %v755 = vpack.c.b16 %v565, %v563
  %v756 = vpack.c.b16 %v566, %v564
  %v757 = vpack.c.b16 %v569, %v567
  %v758 = vpack.c.b16 %v570, %v568
  %v759 = vpack.c.b16 %v573, %v571
  %v760 = vpack.c.b16 %v574, %v572
  %v761 = vpack.c.b16 %v577, %v575
  %v762 = vpack.c.b16 %v578, %v576
  %v763 = vpack.c.b16 %v581, %v579
  %v764 = vpack.c.b16 %v582, %v580
  %v765 = vpack.c.b16 %v585, %v583
  %v766 = vpack.c.b16 %v586, %v584
  %v767 = vpack.c.b16 %v589, %v587
  %v768 = vpack.c.b16 %v590, %v588
  %v769 = vpack.c.b16 %v593, %v591
  %v770 = vpack.c.b16 %v594, %v592
  %v771 = vpack.c.b16 %v597, %v595
  %v772 = vpack.c.b16 %v598, %v596
  %v773 = vpack.c.b16 %v601, %v599
  %v774 = vpack.c.b16 %v602, %v600
  %v775 = vpack.c.b16 %v605, %v603
  %v776 = vpack.c.b16 %v606, %v604
  %v777 = vpack.c.b16 %v609, %v607
  %v778 = vpack.c.b16 %v610, %v608
  %v779 = vpack.c.b16 %v613, %v611
  %v780 = vpack.c.b16 %v614, %v612
  %v781 = vpack.c.b16 %v617, %v615
  %v782 = vpack.c.b16 %v618, %v616
  %v783 = vpack.c.b16 %v621, %v619
  %v784 = vpack.c.b16 %v622, %v620
  %v785 = vpack.c.b16 %v625, %v623
  %v786 = vpack.c.b16 %v626, %v624
  %v787 = vpack.c.b16 %v629, %v627
  %v788 = vpack.c.b16 %v630, %v628
  %v789 = vpack.c.b16 %v633, %v631
  %v790 = vpack.c.b16 %v634, %v632
  %v791 = vpack.c.b16 %v637, %v635
  %v792 = vpack.c.b16 %v638, %v636
  %v793 = vpack.c.b16 %v641, %v639
  %v794 = vpack.c.b16 %v642, %v640
  %v795 = vpack.c.b16 %v645, %v643
  %v796 = vpack.c.b16 %v646, %v644
  %v797 = vpack.c.b16 %v649, %v647
  %v798 = vpack.c.b16 %v650, %v648
  %v799 = vpack.c.b16 %v653, %v651
  %v800 = vpack.c.b16 %v654, %v652
  %v801 = vpack.c.b16 %v657, %v655
  %v802 = vpack.c.b16 %v658, %v656
  %947 = vmatprep.subr.bf16.mxu0 %v660
  %948 = vmatpush1.bf16.msra.mxu0 %v659
  %949 = vmatprep.subr.bf16.mxu0 %v662
  %950 = vmatpush1.bf16.msra.mxu0 %v661
  %951 = vmatprep.subr.bf16.mxu0 %v664
  %952 = vmatpush1.bf16.msra.mxu0 %v663
  %953 = vmatprep.subr.bf16.mxu0 %v666
  %954 = vmatpush1.bf16.msra.mxu0 %v665
  %955 = vmatprep.subr.bf16.mxu0 %v668
  %956 = vmatpush1.bf16.msra.mxu0 %v667
  %957 = vmatprep.subr.bf16.mxu0 %v670
  %958 = vmatpush1.bf16.msra.mxu0 %v669
  %959 = vmatprep.subr.bf16.mxu0 %v672
  %960 = vmatpush1.bf16.msra.mxu0 %v671
  %961 = vmatprep.subr.bf16.mxu0 %v674
  %962 = vmatpush1.bf16.msra.mxu0 %v673
  %963 = vmatprep.subr.bf16.mxu0 %v676
  %964 = vmatpush1.bf16.msra.mxu0 %v675
  %965 = vmatprep.subr.bf16.mxu0 %v678
  %966 = vmatpush1.bf16.msra.mxu0 %v677
  %967 = vmatprep.subr.bf16.mxu0 %v680
  %968 = vmatpush1.bf16.msra.mxu0 %v679
  %969 = vmatprep.subr.bf16.mxu0 %v682
  %970 = vmatpush1.bf16.msra.mxu0 %v681
  %971 = vmatprep.subr.bf16.mxu0 %v684
  %972 = vmatpush1.bf16.msra.mxu0 %v683
  %973 = vmatprep.subr.bf16.mxu0 %v686
  %974 = vmatpush1.bf16.msra.mxu0 %v685
  %975 = vmatprep.subr.bf16.mxu0 %v688
  %976 = vmatpush1.bf16.msra.mxu0 %v687
  %977 = vmatprep.subr.bf16.mxu0 %v690
  %978 = vmatpush1.bf16.msra.mxu0 %v689
  %979 = vmatprep.mubr.bf16.mxu0 %v210
  %980 = vmatmul.mubr.bf16.gmra.mrb[0].mxu0 %v209
  %v981 = vpop.f32.mrb[0].mxu0
  %v982 = vadd.f32 %v174, %v981
  %v983 = vpop.f32.mrb[0].mxu0
  %v984 = vadd.f32 %v178, %v983
  %v985 = vpop.f32.mrb[0].mxu0
  %v986 = vadd.f32 %v174, %v985
  %v987 = vpop.f32.mrb[0].mxu0
  %v988 = vadd.f32 %v178, %v987
  %989 = vdwg.mxu0
  %990 = vmatprep.subr.bf16.mxu0 %v692
  %991 = vmatpush1.bf16.msra.mxu0 %v691
  %992 = vmatprep.subr.bf16.mxu0 %v694
  %993 = vmatpush1.bf16.msra.mxu0 %v693
  %994 = vmatprep.subr.bf16.mxu0 %v696
  %995 = vmatpush1.bf16.msra.mxu0 %v695
  %996 = vmatprep.subr.bf16.mxu0 %v698
  %997 = vmatpush1.bf16.msra.mxu0 %v697
  %998 = vmatprep.subr.bf16.mxu0 %v700
  %999 = vmatpush1.bf16.msra.mxu0 %v699
  %1000 = vmatprep.subr.bf16.mxu0 %v702
  %1001 = vmatpush1.bf16.msra.mxu0 %v701
  %1002 = vmatprep.subr.bf16.mxu0 %v704
  %1003 = vmatpush1.bf16.msra.mxu0 %v703
  %1004 = vmatprep.subr.bf16.mxu0 %v706
  %1005 = vmatpush1.bf16.msra.mxu0 %v705
  %1006 = vmatprep.subr.bf16.mxu0 %v708
  %1007 = vmatpush1.bf16.msra.mxu0 %v707
  %1008 = vmatprep.subr.bf16.mxu0 %v710
  %1009 = vmatpush1.bf16.msra.mxu0 %v709
  %1010 = vmatprep.subr.bf16.mxu0 %v712
  %1011 = vmatpush1.bf16.msra.mxu0 %v711
  %1012 = vmatprep.subr.bf16.mxu0 %v714
  %1013 = vmatpush1.bf16.msra.mxu0 %v713
  %1014 = vmatprep.subr.bf16.mxu0 %v716
  %1015 = vmatpush1.bf16.msra.mxu0 %v715
  %1016 = vmatprep.subr.bf16.mxu0 %v718
  %1017 = vmatpush1.bf16.msra.mxu0 %v717
  %1018 = vmatprep.subr.bf16.mxu0 %v720
  %1019 = vmatpush1.bf16.msra.mxu0 %v719
  %1020 = vmatprep.subr.bf16.mxu0 %v722
  %1021 = vmatpush1.bf16.msra.mxu0 %v721
  %1022 = vmatprep.mubr.bf16.mxu0 %v212
  %1023 = vmatmul.mubr.bf16.gmra.mrb[0].mxu0 %v211
  %v1024 = vpop.f32.mrb[0].mxu0
  %v1025 = vadd.f32 %v982, %v1024
  %v1026 = vpop.f32.mrb[0].mxu0
  %v1027 = vadd.f32 %v984, %v1026
  %v1028 = vpop.f32.mrb[0].mxu0
  %v1029 = vadd.f32 %v986, %v1028
  %v1030 = vpop.f32.mrb[0].mxu0
  %v1031 = vadd.f32 %v988, %v1030
  %1032 = vdwg.mxu0
  %1033 = vmatprep.subr.bf16.mxu0 %v724
  %1034 = vmatpush1.bf16.msra.mxu0 %v723
  %1035 = vmatprep.subr.bf16.mxu0 %v726
  %1036 = vmatpush1.bf16.msra.mxu0 %v725
  %1037 = vmatprep.subr.bf16.mxu0 %v728
  %1038 = vmatpush1.bf16.msra.mxu0 %v727
  %1039 = vmatprep.subr.bf16.mxu0 %v730
  %1040 = vmatpush1.bf16.msra.mxu0 %v729
  %1041 = vmatprep.subr.bf16.mxu0 %v732
  %1042 = vmatpush1.bf16.msra.mxu0 %v731
  %1043 = vmatprep.subr.bf16.mxu0 %v734
  %1044 = vmatpush1.bf16.msra.mxu0 %v733
  %1045 = vmatprep.subr.bf16.mxu0 %v736
  %1046 = vmatpush1.bf16.msra.mxu0 %v735
  %1047 = vmatprep.subr.bf16.mxu0 %v738
  %1048 = vmatpush1.bf16.msra.mxu0 %v737
  %1049 = vmatprep.subr.bf16.mxu0 %v740
  %1050 = vmatpush1.bf16.msra.mxu0 %v739
  %1051 = vmatprep.subr.bf16.mxu0 %v742
  %1052 = vmatpush1.bf16.msra.mxu0 %v741
  %1053 = vmatprep.subr.bf16.mxu0 %v744
  %1054 = vmatpush1.bf16.msra.mxu0 %v743
  %1055 = vmatprep.subr.bf16.mxu0 %v746
  %1056 = vmatpush1.bf16.msra.mxu0 %v745
  %1057 = vmatprep.subr.bf16.mxu0 %v748
  %1058 = vmatpush1.bf16.msra.mxu0 %v747
  %1059 = vmatprep.subr.bf16.mxu0 %v750
  %1060 = vmatpush1.bf16.msra.mxu0 %v749
  %1061 = vmatprep.subr.bf16.mxu0 %v752
  %1062 = vmatpush1.bf16.msra.mxu0 %v751
  %1063 = vmatprep.subr.bf16.mxu0 %v754
  %1064 = vmatpush1.bf16.msra.mxu0 %v753
  %1065 = vmatprep.mubr.bf16.mxu0 %v214
  %1066 = vmatmul.mubr.bf16.gmra.mrb[0].mxu0 %v213
  %v1067 = vpop.f32.mrb[0].mxu0
  %v1068 = vadd.f32 %v1025, %v1067
  %v1069 = vpop.f32.mrb[0].mxu0
  %v1070 = vadd.f32 %v1027, %v1069
  %v1071 = vpop.f32.mrb[0].mxu0
  %v1072 = vadd.f32 %v1029, %v1071
  %v1073 = vpop.f32.mrb[0].mxu0
  %v1074 = vadd.f32 %v1031, %v1073
  %1075 = vdwg.mxu0
  %1076 = vmatprep.subr.bf16.mxu0 %v756
  %1077 = vmatpush1.bf16.msra.mxu0 %v755
  %1078 = vmatprep.subr.bf16.mxu0 %v758
  %1079 = vmatpush1.bf16.msra.mxu0 %v757
  %1080 = vmatprep.subr.bf16.mxu0 %v760
  %1081 = vmatpush1.bf16.msra.mxu0 %v759
  %1082 = vmatprep.subr.bf16.mxu0 %v762
  %1083 = vmatpush1.bf16.msra.mxu0 %v761
  %1084 = vmatprep.subr.bf16.mxu0 %v764
  %1085 = vmatpush1.bf16.msra.mxu0 %v763
  %1086 = vmatprep.subr.bf16.mxu0 %v766
  %1087 = vmatpush1.bf16.msra.mxu0 %v765
  %1088 = vmatprep.subr.bf16.mxu0 %v768
  %1089 = vmatpush1.bf16.msra.mxu0 %v767
  %1090 = vmatprep.subr.bf16.mxu0 %v770
  %1091 = vmatpush1.bf16.msra.mxu0 %v769
  %1092 = vmatprep.subr.bf16.mxu0 %v772
  %1093 = vmatpush1.bf16.msra.mxu0 %v771
  %1094 = vmatprep.subr.bf16.mxu0 %v774
  %1095 = vmatpush1.bf16.msra.mxu0 %v773
  %1096 = vmatprep.subr.bf16.mxu0 %v776
  %1097 = vmatpush1.bf16.msra.mxu0 %v775
  %1098 = vmatprep.subr.bf16.mxu0 %v778
  %1099 = vmatpush1.bf16.msra.mxu0 %v777
  %1100 = vmatprep.subr.bf16.mxu0 %v780
  %1101 = vmatpush1.bf16.msra.mxu0 %v779
  %1102 = vmatprep.subr.bf16.mxu0 %v782
  %1103 = vmatpush1.bf16.msra.mxu0 %v781
  %1104 = vmatprep.subr.bf16.mxu0 %v784
  %1105 = vmatpush1.bf16.msra.mxu0 %v783
  %1106 = vmatprep.subr.bf16.mxu0 %v786
  %1107 = vmatpush1.bf16.msra.mxu0 %v785
  %1108 = vmatprep.mubr.bf16.mxu0 %v216
  %1109 = vmatmul.mubr.bf16.gmra.mrb[0].mxu0 %v215
  %v1110 = vpop.f32.mrb[0].mxu0
  %v1111 = vadd.f32 %v1068, %v1110
  %v1112 = vpop.f32.mrb[0].mxu0
  %v1113 = vadd.f32 %v1070, %v1112
  %v1114 = vpop.f32.mrb[0].mxu0
  %v1115 = vadd.f32 %v1072, %v1114
  %v1116 = vpop.f32.mrb[0].mxu0
  %v1117 = vadd.f32 %v1074, %v1116
  %1118 = vdwg.mxu0
  %1119 = vmatprep.subr.bf16.mxu0 %v788
  %1120 = vmatpush1.bf16.msra.mxu0 %v787
  %1121 = vmatprep.subr.bf16.mxu0 %v790
  %1122 = vmatpush1.bf16.msra.mxu0 %v789
  %1123 = vmatprep.subr.bf16.mxu0 %v792
  %1124 = vmatpush1.bf16.msra.mxu0 %v791
  %1125 = vmatprep.subr.bf16.mxu0 %v794
  %1126 = vmatpush1.bf16.msra.mxu0 %v793
  %1127 = vmatprep.subr.bf16.mxu0 %v796
  %1128 = vmatpush1.bf16.msra.mxu0 %v795
  %1129 = vmatprep.subr.bf16.mxu0 %v798
  %1130 = vmatpush1.bf16.msra.mxu0 %v797
  %1131 = vmatprep.subr.bf16.mxu0 %v800
  %1132 = vmatpush1.bf16.msra.mxu0 %v799
  %1133 = vmatprep.subr.bf16.mxu0 %v802
  %1134 = vmatpush1.bf16.msra.mxu0 %v801
  %1135 = vmatprep.subr.bf16.mxu0 0
  %1136 = vmatpush1.bf16.msra.mxu0 0
  %1137 = vmatprep.subr.bf16.mxu0 0
  %1138 = vmatpush1.bf16.msra.mxu0 0
  %1139 = vmatprep.subr.bf16.mxu0 0
  %1140 = vmatpush1.bf16.msra.mxu0 0
  %1141 = vmatprep.subr.bf16.mxu0 0
  %1142 = vmatpush1.bf16.msra.mxu0 0
  %1143 = vmatprep.subr.bf16.mxu0 0
  %1144 = vmatpush1.bf16.msra.mxu0 0
  %1145 = vmatprep.subr.bf16.mxu0 0
  %1146 = vmatpush1.bf16.msra.mxu0 0
  %1147 = vmatprep.subr.bf16.mxu0 0
  %1148 = vmatpush1.bf16.msra.mxu0 0
  %1149 = vmatprep.subr.bf16.mxu0 0
  %1150 = vmatpush1.bf16.msra.mxu0 0
  %1151 = vmatprep.mubr.bf16.mxu0 0
  %1152 = vmatmul.mubr.bf16.gmra.mrb[0].mxu0 %v217
  %v1153 = vpop.f32.mrb[0].mxu0
  %v1154 = vadd.f32 %v1111, %v1153
  %v1155 = vpop.f32.mrb[0].mxu0
  %v1156 = vadd.f32 %v1113, %v1155
  %v1157 = vpop.f32.mrb[0].mxu0
  %v1158 = vadd.f32 %v1115, %v1157
  %v1159 = vpop.f32.mrb[0].mxu0
  %v1160 = vadd.f32 %v1117, %v1159
  %1161 = vdwg.mxu0
  %v1162 = vmax.f32 %v1154, 0.0
  %v1163 = vmax.f32 %v1156, 0.0
  %v1164 = vmax.f32 %v1158, 0.0
  %v1165 = vmax.f32 %v1160, 0.0
  %v1166 = vpack.c.bf16 %v1164, %v1162
  %v1167 = vpack.c.bf16 %v1165, %v1163
  %v1170 = vunpack.c.l.b16 %v1166
  %v1171 = vunpack.c.l.b16 %v1167
  %v1172 = vunpack.c.h.b16 %v1166
  %v1173 = vunpack.c.h.b16 %v1167
  %v1174 = vpack.c.b16 %v1171, %v1170
  %v1175 = vpack.c.b16 %v1173, %v1172
  %1178 = vst [vmem:[%s3] sm:$0xff] %v1174
  %1179 = vst [vmem:[%s3 + $0x8] sm:$0xff] %v1175
  // Predicated region
  $region14: #{_lambda_.14} parent=0 // pred_check
    _
  $region15: #{_lambda_.14} parent=0 // pred_check_branch
    %1181 = sbr.rel (0) target = $region17
  $region16: #{_lambda_.14} parent=0 // pred_region
    _
  $region17: #{_lambda_.14} parent=0 // pred_fallthru
    _
  // Predicated region
  $region18: #{_lambda_.14} parent=0 // pred_check
    _
  $region19: #{_lambda_.14} parent=0 // pred_check_branch
    %1183 = sbr.rel (0) target = $region21
  $region20: #{_lambda_.14} parent=0 // pred_region
    _
  $region21: #{_lambda_.14} parent=0 // pred_fallthru
    _

// kernel: _lambda_.16
$region0: #{_lambda_.16}
  #allocation0 [shape = 'u32[]', space=smem, size = 0x4, offset = 0x4, fixed_abs, tag = 'smem constant byte address 0x4 - core index']
  #allocation1 [shape = 'u32[144,128]{1,0:T(1,128)}', space=vmem, size = 0x12000, scoped, tag = 'internal scratch']
  %s0 = inlined_call_operand.vmem [shape: bf16[16,512], index: 0, kind: input, shape index: {}]
  %s1 = inlined_call_operand.vmem [shape: bf16[512,256], index: 1, kind: input, shape index: {}]
  %s2 = inlined_call_operand.vmem [shape: f32[1,256], index: 2, kind: input, shape index: {}]
  %s3 = inlined_call_operand.vmem [shape: bf16[16,256], index: 3, kind: output, shape index: {}]
  %s4 = sld [smem:[#allocation0]]
  $region22: #{_lambda_.16} parent=0
    _
  %s6 = ssub.s32 1, %s4
  %s7 = scalar_select 0, %s6, %s4
  // Predicated region
  $region2: #{_lambda_.16} parent=0 // pred_check
    _
  $region3: #{_lambda_.16} parent=0 // pred_check_branch
    %9 = sbr.rel (0) target = $region5
  $region4: #{_lambda_.16} parent=0 // pred_region
    _
  $region5: #{_lambda_.16} parent=0 // pred_fallthru
    _
  // Predicated region
  $region6: #{_lambda_.16} parent=0 // pred_check
    _
  $region7: #{_lambda_.16} parent=0 // pred_check_branch
    %11 = sbr.rel (0) target = $region9
  $region8: #{_lambda_.16} parent=0 // pred_region
    _
  $region9: #{_lambda_.16} parent=0 // pred_fallthru
    _
  // Predicated region
  $region10: #{_lambda_.16} parent=0 // pred_check
    _
  $region11: #{_lambda_.16} parent=0 // pred_check_branch
    %13 = sbr.rel (0) target = $region13
  $region12: #{_lambda_.16} parent=0 // pred_region
    _
  $region13: #{_lambda_.16} parent=0 // pred_fallthru
    _
  %v14 = vld [vmem:[%s0] sm:$0xff]
  %v15 = vld [vmem:[%s0 + $0x8] sm:$0xff]
  %v16 = vld [vmem:[%s0 + $0x10] sm:$0xff]
  %v17 = vld [vmem:[%s0 + $0x18] sm:$0xff]
  %v18 = vld [vmem:[%s1] sm:$0xff]
  %v19 = vld [vmem:[%s1 + $0x8] sm:$0xff]
  %v20 = vld [vmem:[%s1 + $0x10] sm:$0xff]
  %v21 = vld [vmem:[%s1 + $0x18] sm:$0xff]
  %v22 = vld [vmem:[%s1 + $0x20] sm:$0xff]
  %v23 = vld [vmem:[%s1 + $0x28] sm:$0xff]
  %v24 = vld [vmem:[%s1 + $0x30] sm:$0xff]
  %v25 = vld [vmem:[%s1 + $0x38] sm:$0xff]
  %v26 = vld [vmem:[%s1 + $0x40] sm:$0xff]
  %v27 = vld [vmem:[%s1 + $0x48] sm:$0xff]
  %v28 = vld [vmem:[%s1 + $0x50] sm:$0xff]
  %v29 = vld [vmem:[%s1 + $0x58] sm:$0xff]
  %v30 = vld [vmem:[%s1 + $0x60] sm:$0xff]
  %v31 = vld [vmem:[%s1 + $0x68] sm:$0xff]
  %v32 = vld [vmem:[%s1 + $0x70] sm:$0xff]
  %v33 = vld [vmem:[%s1 + $0x78] sm:$0xff]
  %v34 = vld [vmem:[%s1 + $0x80] sm:$0xff]
  %v35 = vld [vmem:[%s1 + $0x88] sm:$0xff]
  %v36 = vld [vmem:[%s1 + $0x90] sm:$0xff]
  %v37 = vld [vmem:[%s1 + $0x98] sm:$0xff]
  %v38 = vld [vmem:[%s1 + $0xa0] sm:$0xff]
  %v39 = vld [vmem:[%s1 + $0xa8] sm:$0xff]
  %v40 = vld [vmem:[%s1 + $0xb0] sm:$0xff]
  %v41 = vld [vmem:[%s1 + $0xb8] sm:$0xff]
  %v42 = vld [vmem:[%s1 + $0xc0] sm:$0xff]
  %v43 = vld [vmem:[%s1 + $0xc8] sm:$0xff]
  %v44 = vld [vmem:[%s1 + $0xd0] sm:$0xff]
  %v45 = vld [vmem:[%s1 + $0xd8] sm:$0xff]
  %v46 = vld [vmem:[%s1 + $0xe0] sm:$0xff]
  %v47 = vld [vmem:[%s1 + $0xe8] sm:$0xff]
  %v48 = vld [vmem:[%s1 + $0xf0] sm:$0xff]
  %v49 = vld [vmem:[%s1 + $0xf8] sm:$0xff]
  %v50 = vld [vmem:[%s1 + $0x100] sm:$0xff]
  %v51 = vld [vmem:[%s1 + $0x108] sm:$0xff]
  %v52 = vld [vmem:[%s1 + $0x110] sm:$0xff]
  %v53 = vld [vmem:[%s1 + $0x118] sm:$0xff]
  %v54 = vld [vmem:[%s1 + $0x120] sm:$0xff]
  %v55 = vld [vmem:[%s1 + $0x128] sm:$0xff]
  %v56 = vld [vmem:[%s1 + $0x130] sm:$0xff]
  %v57 = vld [vmem:[%s1 + $0x138] sm:$0xff]
  %v58 = vld [vmem:[%s1 + $0x140] sm:$0xff]
  %v59 = vld [vmem:[%s1 + $0x148] sm:$0xff]
  %v60 = vld [vmem:[%s1 + $0x150] sm:$0xff]
  %v61 = vld [vmem:[%s1 + $0x158] sm:$0xff]
  %v62 = vld [vmem:[%s1 + $0x160] sm:$0xff]
  %v63 = vld [vmem:[%s1 + $0x168] sm:$0xff]
  %v64 = vld [vmem:[%s1 + $0x170] sm:$0xff]
  %v65 = vld [vmem:[%s1 + $0x178] sm:$0xff]
  %v66 = vld [vmem:[%s1 + $0x180] sm:$0xff]
  %v67 = vld [vmem:[%s1 + $0x188] sm:$0xff]
  %v68 = vld [vmem:[%s1 + $0x190] sm:$0xff]
  %v69 = vld [vmem:[%s1 + $0x198] sm:$0xff]
  %v70 = vld [vmem:[%s1 + $0x1a0] sm:$0xff]
  %v71 = vld [vmem:[%s1 + $0x1a8] sm:$0xff]
  %v72 = vld [vmem:[%s1 + $0x1b0] sm:$0xff]
  %v73 = vld [vmem:[%s1 + $0x1b8] sm:$0xff]
  %v74 = vld [vmem:[%s1 + $0x1c0] sm:$0xff]
  %v75 = vld [vmem:[%s1 + $0x1c8] sm:$0xff]
  %v76 = vld [vmem:[%s1 + $0x1d0] sm:$0xff]
  %v77 = vld [vmem:[%s1 + $0x1d8] sm:$0xff]
  %v78 = vld [vmem:[%s1 + $0x1e0] sm:$0xff]
  %v79 = vld [vmem:[%s1 + $0x1e8] sm:$0xff]
  %v80 = vld [vmem:[%s1 + $0x1f0] sm:$0xff]
  %v81 = vld [vmem:[%s1 + $0x1f8] sm:$0xff]
  %v82 = vld [vmem:[%s2] sm:$0x3]
  %v84 = vlaneseq
  %v85 = vshrl.u32 %v84, 7
  %v86 = vsub.s32 0, %v85
  %v87 = vrot.slane %v82, %v86
  %v88 = vlaneseq
  %v89 = vshrl.u32 %v88, 7
  %v90 = vsub.s32 1, %v89
  %v91 = vrot.slane %v82, %v90
  %v98 = vunpack.c.l.b16 %v14
  %v99 = vunpack.c.h.b16 %v14
  %v100 = vunpack.c.l.b16 %v15
  %v101 = vunpack.c.h.b16 %v15
  %v102 = vunpack.c.l.b16 %v16
  %v103 = vunpack.c.h.b16 %v16
  %v104 = vunpack.c.l.b16 %v17
  %v105 = vunpack.c.h.b16 %v17
  %v106 = vpack.c.b16 %v102, %v98
  %v107 = vpack.c.b16 %v103, %v99
  %v108 = vpack.c.b16 %v104, %v100
  %v109 = vpack.c.b16 %v105, %v101
  %v178 = vunpack.c.l.b16 %v18
  %v179 = vunpack.c.h.b16 %v18
  %v180 = vunpack.c.l.b16 %v19
  %v181 = vunpack.c.h.b16 %v19
  %v182 = vunpack.c.l.b16 %v20
  %v183 = vunpack.c.h.b16 %v20
  %v184 = vunpack.c.l.b16 %v21
  %v185 = vunpack.c.h.b16 %v21
  %v186 = vunpack.c.l.b16 %v22
  %v187 = vunpack.c.h.b16 %v22
  %v188 = vunpack.c.l.b16 %v23
  %v189 = vunpack.c.h.b16 %v23
  %v190 = vunpack.c.l.b16 %v24
  %v191 = vunpack.c.h.b16 %v24
  %v192 = vunpack.c.l.b16 %v25
  %v193 = vunpack.c.h.b16 %v25
  %v194 = vunpack.c.l.b16 %v26
  %v195 = vunpack.c.h.b16 %v26
  %v196 = vunpack.c.l.b16 %v27
  %v197 = vunpack.c.h.b16 %v27
  %v198 = vunpack.c.l.b16 %v28
  %v199 = vunpack.c.h.b16 %v28
  %v200 = vunpack.c.l.b16 %v29
  %v201 = vunpack.c.h.b16 %v29
  %v202 = vunpack.c.l.b16 %v30
  %v203 = vunpack.c.h.b16 %v30
  %v204 = vunpack.c.l.b16 %v31
  %v205 = vunpack.c.h.b16 %v31
  %v206 = vunpack.c.l.b16 %v32
  %v207 = vunpack.c.h.b16 %v32
  %v208 = vunpack.c.l.b16 %v33
  %v209 = vunpack.c.h.b16 %v33
  %v210 = vunpack.c.l.b16 %v34
  %v211 = vunpack.c.h.b16 %v34
  %v212 = vunpack.c.l.b16 %v35
  %v213 = vunpack.c.h.b16 %v35
  %v214 = vunpack.c.l.b16 %v36
  %v215 = vunpack.c.h.b16 %v36
  %v216 = vunpack.c.l.b16 %v37
  %v217 = vunpack.c.h.b16 %v37
  %v218 = vunpack.c.l.b16 %v38
  %v219 = vunpack.c.h.b16 %v38
  %v220 = vunpack.c.l.b16 %v39
  %v221 = vunpack.c.h.b16 %v39
  %v222 = vunpack.c.l.b16 %v40
  %v223 = vunpack.c.h.b16 %v40
  %v224 = vunpack.c.l.b16 %v41
  %v225 = vunpack.c.h.b16 %v41
  %v226 = vunpack.c.l.b16 %v42
  %v227 = vunpack.c.h.b16 %v42
  %v228 = vunpack.c.l.b16 %v43
  %v229 = vunpack.c.h.b16 %v43
  %v230 = vunpack.c.l.b16 %v44
  %v231 = vunpack.c.h.b16 %v44
  %v232 = vunpack.c.l.b16 %v45
  %v233 = vunpack.c.h.b16 %v45
  %v234 = vunpack.c.l.b16 %v46
  %v235 = vunpack.c.h.b16 %v46
  %v236 = vunpack.c.l.b16 %v47
  %v237 = vunpack.c.h.b16 %v47
  %v238 = vunpack.c.l.b16 %v48
  %v239 = vunpack.c.h.b16 %v48
  %v240 = vunpack.c.l.b16 %v49
  %v241 = vunpack.c.h.b16 %v49
  %v242 = vunpack.c.l.b16 %v50
  %v243 = vunpack.c.h.b16 %v50
  %v244 = vunpack.c.l.b16 %v51
  %v245 = vunpack.c.h.b16 %v51
  %v246 = vunpack.c.l.b16 %v52
  %v247 = vunpack.c.h.b16 %v52
  %v248 = vunpack.c.l.b16 %v53
  %v249 = vunpack.c.h.b16 %v53
  %v250 = vunpack.c.l.b16 %v54
  %v251 = vunpack.c.h.b16 %v54
  %v252 = vunpack.c.l.b16 %v55
  %v253 = vunpack.c.h.b16 %v55
  %v254 = vunpack.c.l.b16 %v56
  %v255 = vunpack.c.h.b16 %v56
  %v256 = vunpack.c.l.b16 %v57
  %v257 = vunpack.c.h.b16 %v57
  %v258 = vunpack.c.l.b16 %v58
  %v259 = vunpack.c.h.b16 %v58
  %v260 = vunpack.c.l.b16 %v59
  %v261 = vunpack.c.h.b16 %v59
  %v262 = vunpack.c.l.b16 %v60
  %v263 = vunpack.c.h.b16 %v60
  %v264 = vunpack.c.l.b16 %v61
  %v265 = vunpack.c.h.b16 %v61
  %v266 = vunpack.c.l.b16 %v62
  %v267 = vunpack.c.h.b16 %v62
  %v268 = vunpack.c.l.b16 %v63
  %v269 = vunpack.c.h.b16 %v63
  %v270 = vunpack.c.l.b16 %v64
  %v271 = vunpack.c.h.b16 %v64
  %v272 = vunpack.c.l.b16 %v65
  %v273 = vunpack.c.h.b16 %v65
  %v274 = vunpack.c.l.b16 %v66
  %v275 = vunpack.c.h.b16 %v66
  %v276 = vunpack.c.l.b16 %v67
  %v277 = vunpack.c.h.b16 %v67
  %v278 = vunpack.c.l.b16 %v68
  %v279 = vunpack.c.h.b16 %v68
  %v280 = vunpack.c.l.b16 %v69
  %v281 = vunpack.c.h.b16 %v69
  %v282 = vunpack.c.l.b16 %v70
  %v283 = vunpack.c.h.b16 %v70
  %v284 = vunpack.c.l.b16 %v71
  %v285 = vunpack.c.h.b16 %v71
  %v286 = vunpack.c.l.b16 %v72
  %v287 = vunpack.c.h.b16 %v72
  %v288 = vunpack.c.l.b16 %v73
  %v289 = vunpack.c.h.b16 %v73
  %v290 = vunpack.c.l.b16 %v74
  %v291 = vunpack.c.h.b16 %v74
  %v292 = vunpack.c.l.b16 %v75
  %v293 = vunpack.c.h.b16 %v75
  %v294 = vunpack.c.l.b16 %v76
  %v295 = vunpack.c.h.b16 %v76
  %v296 = vunpack.c.l.b16 %v77
  %v297 = vunpack.c.h.b16 %v77
  %v298 = vunpack.c.l.b16 %v78
  %v299 = vunpack.c.h.b16 %v78
  %v300 = vunpack.c.l.b16 %v79
  %v301 = vunpack.c.h.b16 %v79
  %v302 = vunpack.c.l.b16 %v80
  %v303 = vunpack.c.h.b16 %v80
  %v304 = vunpack.c.l.b16 %v81
  %v305 = vunpack.c.h.b16 %v81
  %v306 = vpack.c.b16 %v180, %v178
  %v307 = vpack.c.b16 %v181, %v179
  %v308 = vpack.c.b16 %v184, %v182
  %v309 = vpack.c.b16 %v185, %v183
  %v310 = vpack.c.b16 %v188, %v186
  %v311 = vpack.c.b16 %v189, %v187
  %v312 = vpack.c.b16 %v192, %v190
  %v313 = vpack.c.b16 %v193, %v191
  %v314 = vpack.c.b16 %v196, %v194
  %v315 = vpack.c.b16 %v197, %v195
  %v316 = vpack.c.b16 %v200, %v198
  %v317 = vpack.c.b16 %v201, %v199
  %v318 = vpack.c.b16 %v204, %v202
  %v319 = vpack.c.b16 %v205, %v203
  %v320 = vpack.c.b16 %v208, %v206
  %v321 = vpack.c.b16 %v209, %v207
  %v322 = vpack.c.b16 %v212, %v210
  %v323 = vpack.c.b16 %v213, %v211
  %v324 = vpack.c.b16 %v216, %v214
  %v325 = vpack.c.b16 %v217, %v215
  %v326 = vpack.c.b16 %v220, %v218
  %v327 = vpack.c.b16 %v221, %v219
  %v328 = vpack.c.b16 %v224, %v222
  %v329 = vpack.c.b16 %v225, %v223
  %v330 = vpack.c.b16 %v228, %v226
  %v331 = vpack.c.b16 %v229, %v227
  %v332 = vpack.c.b16 %v232, %v230
  %v333 = vpack.c.b16 %v233, %v231
  %v334 = vpack.c.b16 %v236, %v234
  %v335 = vpack.c.b16 %v237, %v235
  %v336 = vpack.c.b16 %v240, %v238
  %v337 = vpack.c.b16 %v241, %v239
  %v338 = vpack.c.b16 %v244, %v242
  %v339 = vpack.c.b16 %v245, %v243
  %v340 = vpack.c.b16 %v248, %v246
  %v341 = vpack.c.b16 %v249, %v247
  %v342 = vpack.c.b16 %v252, %v250
  %v343 = vpack.c.b16 %v253, %v251
  %v344 = vpack.c.b16 %v256, %v254
  %v345 = vpack.c.b16 %v257, %v255
  %v346 = vpack.c.b16 %v260, %v258
  %v347 = vpack.c.b16 %v261, %v259
  %v348 = vpack.c.b16 %v264, %v262
  %v349 = vpack.c.b16 %v265, %v263
  %v350 = vpack.c.b16 %v268, %v266
  %v351 = vpack.c.b16 %v269, %v267
  %v352 = vpack.c.b16 %v272, %v270
  %v353 = vpack.c.b16 %v273, %v271
  %v354 = vpack.c.b16 %v276, %v274
  %v355 = vpack.c.b16 %v277, %v275
  %v356 = vpack.c.b16 %v280, %v278
  %v357 = vpack.c.b16 %v281, %v279
  %v358 = vpack.c.b16 %v284, %v282
  %v359 = vpack.c.b16 %v285, %v283
  %v360 = vpack.c.b16 %v288, %v286
  %v361 = vpack.c.b16 %v289, %v287
  %v362 = vpack.c.b16 %v292, %v290
  %v363 = vpack.c.b16 %v293, %v291
  %v364 = vpack.c.b16 %v296, %v294
  %v365 = vpack.c.b16 %v297, %v295
  %v366 = vpack.c.b16 %v300, %v298
  %v367 = vpack.c.b16 %v301, %v299
  %v368 = vpack.c.b16 %v304, %v302
  %v369 = vpack.c.b16 %v305, %v303
  %434 = vmatprep.subr.bf16.mxu0 %v307
  %435 = vmatpush1.bf16.msra.mxu0 %v306
  %436 = vmatprep.subr.bf16.mxu0 %v309
  %437 = vmatpush1.bf16.msra.mxu0 %v308
  %438 = vmatprep.subr.bf16.mxu0 %v311
  %439 = vmatpush1.bf16.msra.mxu0 %v310
  %440 = vmatprep.subr.bf16.mxu0 %v313
  %441 = vmatpush1.bf16.msra.mxu0 %v312
  %442 = vmatprep.subr.bf16.mxu0 %v315
  %443 = vmatpush1.bf16.msra.mxu0 %v314
  %444 = vmatprep.subr.bf16.mxu0 %v317
  %445 = vmatpush1.bf16.msra.mxu0 %v316
  %446 = vmatprep.subr.bf16.mxu0 %v319
  %447 = vmatpush1.bf16.msra.mxu0 %v318
  %448 = vmatprep.subr.bf16.mxu0 %v321
  %449 = vmatpush1.bf16.msra.mxu0 %v320
  %450 = vmatprep.subr.bf16.mxu0 %v323
  %451 = vmatpush1.bf16.msra.mxu0 %v322
  %452 = vmatprep.subr.bf16.mxu0 %v325
  %453 = vmatpush1.bf16.msra.mxu0 %v324
  %454 = vmatprep.subr.bf16.mxu0 %v327
  %455 = vmatpush1.bf16.msra.mxu0 %v326
  %456 = vmatprep.subr.bf16.mxu0 %v329
  %457 = vmatpush1.bf16.msra.mxu0 %v328
  %458 = vmatprep.subr.bf16.mxu0 %v331
  %459 = vmatpush1.bf16.msra.mxu0 %v330
  %460 = vmatprep.subr.bf16.mxu0 %v333
  %461 = vmatpush1.bf16.msra.mxu0 %v332
  %462 = vmatprep.subr.bf16.mxu0 %v335
  %463 = vmatpush1.bf16.msra.mxu0 %v334
  %464 = vmatprep.subr.bf16.mxu0 %v337
  %465 = vmatpush1.bf16.msra.mxu0 %v336
  %466 = vmatprep.mubr.bf16.mxu0 %v107
  %467 = vmatmul.mubr.bf16.gmra.mrb[0].mxu0 %v106
  %v468 = vpop.f32.mrb[0].mxu0
  %v469 = vadd.f32 %v87, %v468
  %v470 = vpop.f32.mrb[0].mxu0
  %v471 = vadd.f32 %v91, %v470
  %v472 = vpop.f32.mrb[0].mxu0
  %v473 = vadd.f32 %v87, %v472
  %v474 = vpop.f32.mrb[0].mxu0
  %v475 = vadd.f32 %v91, %v474
  %476 = vdwg.mxu0
  %477 = vmatprep.subr.bf16.mxu0 %v339
  %478 = vmatpush1.bf16.msra.mxu0 %v338
  %479 = vmatprep.subr.bf16.mxu0 %v341
  %480 = vmatpush1.bf16.msra.mxu0 %v340
  %481 = vmatprep.subr.bf16.mxu0 %v343
  %482 = vmatpush1.bf16.msra.mxu0 %v342
  %483 = vmatprep.subr.bf16.mxu0 %v345
  %484 = vmatpush1.bf16.msra.mxu0 %v344
  %485 = vmatprep.subr.bf16.mxu0 %v347
  %486 = vmatpush1.bf16.msra.mxu0 %v346
  %487 = vmatprep.subr.bf16.mxu0 %v349
  %488 = vmatpush1.bf16.msra.mxu0 %v348
  %489 = vmatprep.subr.bf16.mxu0 %v351
  %490 = vmatpush1.bf16.msra.mxu0 %v350
  %491 = vmatprep.subr.bf16.mxu0 %v353
  %492 = vmatpush1.bf16.msra.mxu0 %v352
  %493 = vmatprep.subr.bf16.mxu0 %v355
  %494 = vmatpush1.bf16.msra.mxu0 %v354
  %495 = vmatprep.subr.bf16.mxu0 %v357
  %496 = vmatpush1.bf16.msra.mxu0 %v356
  %497 = vmatprep.subr.bf16.mxu0 %v359
  %498 = vmatpush1.bf16.msra.mxu0 %v358
  %499 = vmatprep.subr.bf16.mxu0 %v361
  %500 = vmatpush1.bf16.msra.mxu0 %v360
  %501 = vmatprep.subr.bf16.mxu0 %v363
  %502 = vmatpush1.bf16.msra.mxu0 %v362
  %503 = vmatprep.subr.bf16.mxu0 %v365
  %504 = vmatpush1.bf16.msra.mxu0 %v364
  %505 = vmatprep.subr.bf16.mxu0 %v367
  %506 = vmatpush1.bf16.msra.mxu0 %v366
  %507 = vmatprep.subr.bf16.mxu0 %v369
  %508 = vmatpush1.bf16.msra.mxu0 %v368
  %509 = vmatprep.mubr.bf16.mxu0 %v109
  %510 = vmatmul.mubr.bf16.gmra.mrb[0].mxu0 %v108
  %v511 = vpop.f32.mrb[0].mxu0
  %v512 = vadd.f32 %v469, %v511
  %v513 = vpop.f32.mrb[0].mxu0
  %v514 = vadd.f32 %v471, %v513
  %v515 = vpop.f32.mrb[0].mxu0
  %v516 = vadd.f32 %v473, %v515
  %v517 = vpop.f32.mrb[0].mxu0
  %v518 = vadd.f32 %v475, %v517
  %519 = vdwg.mxu0
  %v520 = vmax.f32 %v512, 0.0
  %v521 = vmax.f32 %v514, 0.0
  %v522 = vmax.f32 %v516, 0.0
  %v523 = vmax.f32 %v518, 0.0
  %v524 = vpack.c.bf16 %v522, %v520
  %v525 = vpack.c.bf16 %v523, %v521
  %v528 = vunpack.c.l.b16 %v524
  %v529 = vunpack.c.l.b16 %v525
  %v530 = vunpack.c.h.b16 %v524
  %v531 = vunpack.c.h.b16 %v525
  %v532 = vpack.c.b16 %v529, %v528
  %v533 = vpack.c.b16 %v531, %v530
  %536 = vst [vmem:[%s3] sm:$0xff] %v532
  %537 = vst [vmem:[%s3 + $0x8] sm:$0xff] %v533
  // Predicated region
  $region14: #{_lambda_.16} parent=0 // pred_check
    _
  $region15: #{_lambda_.16} parent=0 // pred_check_branch
    %539 = sbr.rel (0) target = $region17
  $region16: #{_lambda_.16} parent=0 // pred_region
    _
  $region17: #{_lambda_.16} parent=0 // pred_fallthru
    _
  // Predicated region
  $region18: #{_lambda_.16} parent=0 // pred_check
    _
  $region19: #{_lambda_.16} parent=0 // pred_check_branch
    %541 = sbr.rel (0) target = $region21
  $region20: #{_lambda_.16} parent=0 // pred_region
    _
  $region21: #{_lambda_.16} parent=0 // pred_fallthru
    _

// kernel: _lambda_.15
$region0: #{_lambda_.15}
  #allocation0 [shape = 'u32[]', space=smem, size = 0x4, offset = 0x4, fixed_abs, tag = 'smem constant byte address 0x4 - core index']
  #allocation1 [shape = 'u32[144,128]{1,0:T(1,128)}', space=vmem, size = 0x12000, scoped, tag = 'internal scratch']
  %s0 = inlined_call_operand.vmem [shape: bf16[16,1024], index: 0, kind: input, shape index: {}]
  %s1 = inlined_call_operand.vmem [shape: bf16[1024,512], index: 1, kind: input, shape index: {}]
  %s2 = inlined_call_operand.vmem [shape: f32[1,512], index: 2, kind: input, shape index: {}]
  %s3 = inlined_call_operand.vmem [shape: bf16[16,512], index: 3, kind: output, shape index: {}]
  %s4 = sld [smem:[#allocation0]]
  $region22: #{_lambda_.15} parent=0
    _
  %s6 = ssub.s32 1, %s4
  %s7 = scalar_select 0, %s6, %s4
  // Predicated region
  $region2: #{_lambda_.15} parent=0 // pred_check
    _
  $region3: #{_lambda_.15} parent=0 // pred_check_branch
    %9 = sbr.rel (0) target = $region5
  $region4: #{_lambda_.15} parent=0 // pred_region
    _
  $region5: #{_lambda_.15} parent=0 // pred_fallthru
    _
  // Predicated region
  $region6: #{_lambda_.15} parent=0 // pred_check
    _
  $region7: #{_lambda_.15} parent=0 // pred_check_branch
    %11 = sbr.rel (0) target = $region9
  $region8: #{_lambda_.15} parent=0 // pred_region
    _
  $region9: #{_lambda_.15} parent=0 // pred_fallthru
    _
  // Predicated region
  $region10: #{_lambda_.15} parent=0 // pred_check
    _
  $region11: #{_lambda_.15} parent=0 // pred_check_branch
    %13 = sbr.rel (0) target = $region13
  $region12: #{_lambda_.15} parent=0 // pred_region
    _
  $region13: #{_lambda_.15} parent=0 // pred_fallthru
    _
  %v14 = vld [vmem:[%s0] sm:$0xff]
  %v15 = vld [vmem:[%s0 + $0x8] sm:$0xff]
  %v16 = vld [vmem:[%s0 + $0x10] sm:$0xff]
  %v17 = vld [vmem:[%s0 + $0x18] sm:$0xff]
  %v18 = vld [vmem:[%s0 + $0x20] sm:$0xff]
  %v19 = vld [vmem:[%s0 + $0x28] sm:$0xff]
  %v20 = vld [vmem:[%s0 + $0x30] sm:$0xff]
  %v21 = vld [vmem:[%s0 + $0x38] sm:$0xff]
  %v22 = vld [vmem:[%s1] sm:$0xff]
  %v23 = vld [vmem:[%s1 + $0x8] sm:$0xff]
  %v24 = vld [vmem:[%s1 + $0x10] sm:$0xff]
  %v25 = vld [vmem:[%s1 + $0x18] sm:$0xff]
  %v26 = vld [vmem:[%s1 + $0x20] sm:$0xff]
  %v27 = vld [vmem:[%s1 + $0x28] sm:$0xff]
  %v28 = vld [vmem:[%s1 + $0x30] sm:$0xff]
  %v29 = vld [vmem:[%s1 + $0x38] sm:$0xff]
  %v30 = vld [vmem:[%s1 + $0x40] sm:$0xff]
  %v31 = vld [vmem:[%s1 + $0x48] sm:$0xff]
  %v32 = vld [vmem:[%s1 + $0x50] sm:$0xff]
  %v33 = vld [vmem:[%s1 + $0x58] sm:$0xff]
  %v34 = vld [vmem:[%s1 + $0x60] sm:$0xff]
  %v35 = vld [vmem:[%s1 + $0x68] sm:$0xff]
  %v36 = vld [vmem:[%s1 + $0x70] sm:$0xff]
  %v37 = vld [vmem:[%s1 + $0x78] sm:$0xff]
  %v38 = vld [vmem:[%s1 + $0x80] sm:$0xff]
  %v39 = vld [vmem:[%s1 + $0x88] sm:$0xff]
  %v40 = vld [vmem:[%s1 + $0x90] sm:$0xff]
  %v41 = vld [vmem:[%s1 + $0x98] sm:$0xff]
  %v42 = vld [vmem:[%s1 + $0xa0] sm:$0xff]
  %v43 = vld [vmem:[%s1 + $0xa8] sm:$0xff]
  %v44 = vld [vmem:[%s1 + $0xb0] sm:$0xff]
  %v45 = vld [vmem:[%s1 + $0xb8] sm:$0xff]
  %v46 = vld [vmem:[%s1 + $0xc0] sm:$0xff]
  %v47 = vld [vmem:[%s1 + $0xc8] sm:$0xff]
  %v48 = vld [vmem:[%s1 + $0xd0] sm:$0xff]
  %v49 = vld [vmem:[%s1 + $0xd8] sm:$0xff]
  %v50 = vld [vmem:[%s1 + $0xe0] sm:$0xff]
  %v51 = vld [vmem:[%s1 + $0xe8] sm:$0xff]
  %v52 = vld [vmem:[%s1 + $0xf0] sm:$0xff]
  %v53 = vld [vmem:[%s1 + $0xf8] sm:$0xff]
  %v54 = vld [vmem:[%s1 + $0x100] sm:$0xff]
  %v55 = vld [vmem:[%s1 + $0x108] sm:$0xff]
  %v56 = vld [vmem:[%s1 + $0x110] sm:$0xff]
  %v57 = vld [vmem:[%s1 + $0x118] sm:$0xff]
  %v58 = vld [vmem:[%s1 + $0x120] sm:$0xff]
  %v59 = vld [vmem:[%s1 + $0x128] sm:$0xff]
  %v60 = vld [vmem:[%s1 + $0x130] sm:$0xff]
  %v61 = vld [vmem:[%s1 + $0x138] sm:$0xff]
  %v62 = vld [vmem:[%s1 + $0x140] sm:$0xff]
  %v63 = vld [vmem:[%s1 + $0x148] sm:$0xff]
  %v64 = vld [vmem:[%s1 + $0x150] sm:$0xff]
  %v65 = vld [vmem:[%s1 + $0x158] sm:$0xff]
  %v66 = vld [vmem:[%s1 + $0x160] sm:$0xff]
  %v67 = vld [vmem:[%s1 + $0x168] sm:$0xff]
  %v68 = vld [vmem:[%s1 + $0x170] sm:$0xff]
  %v69 = vld [vmem:[%s1 + $0x178] sm:$0xff]
  %v70 = vld [vmem:[%s1 + $0x180] sm:$0xff]
  %v71 = vld [vmem:[%s1 + $0x188] sm:$0xff]
  %v72 = vld [vmem:[%s1 + $0x190] sm:$0xff]
  %v73 = vld [vmem:[%s1 + $0x198] sm:$0xff]
  %v74 = vld [vmem:[%s1 + $0x1a0] sm:$0xff]
  %v75 = vld [vmem:[%s1 + $0x1a8] sm:$0xff]
  %v76 = vld [vmem:[%s1 + $0x1b0] sm:$0xff]
  %v77 = vld [vmem:[%s1 + $0x1b8] sm:$0xff]
  %v78 = vld [vmem:[%s1 + $0x1c0] sm:$0xff]
  %v79 = vld [vmem:[%s1 + $0x1c8] sm:$0xff]
  %v80 = vld [vmem:[%s1 + $0x1d0] sm:$0xff]
  %v81 = vld [vmem:[%s1 + $0x1d8] sm:$0xff]
  %v82 = vld [vmem:[%s1 + $0x1e0] sm:$0xff]
  %v83 = vld [vmem:[%s1 + $0x1e8] sm:$0xff]
  %v84 = vld [vmem:[%s1 + $0x1f0] sm:$0xff]
  %v85 = vld [vmem:[%s1 + $0x1f8] sm:$0xff]
  %v86 = vld [vmem:[%s1 + $0x200] sm:$0xff]
  %v87 = vld [vmem:[%s1 + $0x208] sm:$0xff]
  %v88 = vld [vmem:[%s1 + $0x210] sm:$0xff]
  %v89 = vld [vmem:[%s1 + $0x218] sm:$0xff]
  %v90 = vld [vmem:[%s1 + $0x220] sm:$0xff]
  %v91 = vld [vmem:[%s1 + $0x228] sm:$0xff]
  %v92 = vld [vmem:[%s1 + $0x230] sm:$0xff]
  %v93 = vld [vmem:[%s1 + $0x238] sm:$0xff]
  %v94 = vld [vmem:[%s1 + $0x240] sm:$0xff]
  %v95 = vld [vmem:[%s1 + $0x248] sm:$0xff]
  %v96 = vld [vmem:[%s1 + $0x250] sm:$0xff]
  %v97 = vld [vmem:[%s1 + $0x258] sm:$0xff]
  %v98 = vld [vmem:[%s1 + $0x260] sm:$0xff]
  %v99 = vld [vmem:[%s1 + $0x268] sm:$0xff]
  %v100 = vld [vmem:[%s1 + $0x270] sm:$0xff]
  %v101 = vld [vmem:[%s1 + $0x278] sm:$0xff]
  %v102 = vld [vmem:[%s1 + $0x280] sm:$0xff]
  %v103 = vld [vmem:[%s1 + $0x288] sm:$0xff]
  %v104 = vld [vmem:[%s1 + $0x290] sm:$0xff]
  %v105 = vld [vmem:[%s1 + $0x298] sm:$0xff]
  %v106 = vld [vmem:[%s1 + $0x2a0] sm:$0xff]
  %v107 = vld [vmem:[%s1 + $0x2a8] sm:$0xff]
  %v108 = vld [vmem:[%s1 + $0x2b0] sm:$0xff]
  %v109 = vld [vmem:[%s1 + $0x2b8] sm:$0xff]
  %v110 = vld [vmem:[%s1 + $0x2c0] sm:$0xff]
  %v111 = vld [vmem:[%s1 + $0x2c8] sm:$0xff]
  %v112 = vld [vmem:[%s1 + $0x2d0] sm:$0xff]
  %v113 = vld [vmem:[%s1 + $0x2d8] sm:$0xff]
  %v114 = vld [vmem:[%s1 + $0x2e0] sm:$0xff]
  %v115 = vld [vmem:[%s1 + $0x2e8] sm:$0xff]
  %v116 = vld [vmem:[%s1 + $0x2f0] sm:$0xff]
  %v117 = vld [vmem:[%s1 + $0x2f8] sm:$0xff]
  %v118 = vld [vmem:[%s1 + $0x300] sm:$0xff]
  %v119 = vld [vmem:[%s1 + $0x308] sm:$0xff]
  %v120 = vld [vmem:[%s1 + $0x310] sm:$0xff]
  %v121 = vld [vmem:[%s1 + $0x318] sm:$0xff]
  %v122 = vld [vmem:[%s1 + $0x320] sm:$0xff]
  %v123 = vld [vmem:[%s1 + $0x328] sm:$0xff]
  %v124 = vld [vmem:[%s1 + $0x330] sm:$0xff]
  %v125 = vld [vmem:[%s1 + $0x338] sm:$0xff]
  %v126 = vld [vmem:[%s1 + $0x340] sm:$0xff]
  %v127 = vld [vmem:[%s1 + $0x348] sm:$0xff]
  %v128 = vld [vmem:[%s1 + $0x350] sm:$0xff]
  %v129 = vld [vmem:[%s1 + $0x358] sm:$0xff]
  %v130 = vld [vmem:[%s1 + $0x360] sm:$0xff]
  %v131 = vld [vmem:[%s1 + $0x368] sm:$0xff]
  %v132 = vld [vmem:[%s1 + $0x370] sm:$0xff]
  %v133 = vld [vmem:[%s1 + $0x378] sm:$0xff]
  %v134 = vld [vmem:[%s1 + $0x380] sm:$0xff]
  %v135 = vld [vmem:[%s1 + $0x388] sm:$0xff]
  %v136 = vld [vmem:[%s1 + $0x390] sm:$0xff]
  %v137 = vld [vmem:[%s1 + $0x398] sm:$0xff]
  %v138 = vld [vmem:[%s1 + $0x3a0] sm:$0xff]
  %v139 = vld [vmem:[%s1 + $0x3a8] sm:$0xff]
  %v140 = vld [vmem:[%s1 + $0x3b0] sm:$0xff]
  %v141 = vld [vmem:[%s1 + $0x3b8] sm:$0xff]
  %v142 = vld [vmem:[%s1 + $0x3c0] sm:$0xff]
  %v143 = vld [vmem:[%s1 + $0x3c8] sm:$0xff]
  %v144 = vld [vmem:[%s1 + $0x3d0] sm:$0xff]
  %v145 = vld [vmem:[%s1 + $0x3d8] sm:$0xff]
  %v146 = vld [vmem:[%s1 + $0x3e0] sm:$0xff]
  %v147 = vld [vmem:[%s1 + $0x3e8] sm:$0xff]
  %v148 = vld [vmem:[%s1 + $0x3f0] sm:$0xff]
  %v149 = vld [vmem:[%s1 + $0x3f8] sm:$0xff]
  %v150 = vld [vmem:[%s1 + $0x400] sm:$0xff]
  %v151 = vld [vmem:[%s1 + $0x408] sm:$0xff]
  %v152 = vld [vmem:[%s1 + $0x410] sm:$0xff]
  %v153 = vld [vmem:[%s1 + $0x418] sm:$0xff]
  %v154 = vld [vmem:[%s1 + $0x420] sm:$0xff]
  %v155 = vld [vmem:[%s1 + $0x428] sm:$0xff]
  %v156 = vld [vmem:[%s1 + $0x430] sm:$0xff]
  %v157 = vld [vmem:[%s1 + $0x438] sm:$0xff]
  %v158 = vld [vmem:[%s1 + $0x440] sm:$0xff]
  %v159 = vld [vmem:[%s1 + $0x448] sm:$0xff]
  %v160 = vld [vmem:[%s1 + $0x450] sm:$0xff]
  %v161 = vld [vmem:[%s1 + $0x458] sm:$0xff]
  %v162 = vld [vmem:[%s1 + $0x460] sm:$0xff]
  %v163 = vld [vmem:[%s1 + $0x468] sm:$0xff]
  %v164 = vld [vmem:[%s1 + $0x470] sm:$0xff]
  %v165 = vld [vmem:[%s1 + $0x478] sm:$0xff]
  %v166 = vld [vmem:[%s1 + $0x480] sm:$0xff]
  %v167 = vld [vmem:[%s1 + $0x488] sm:$0xff]
  %v168 = vld [vmem:[%s1 + $0x490] sm:$0xff]
  %v169 = vld [vmem:[%s1 + $0x498] sm:$0xff]
  %v170 = vld [vmem:[%s1 + $0x4a0] sm:$0xff]
  %v171 = vld [vmem:[%s1 + $0x4a8] sm:$0xff]
  %v172 = vld [vmem:[%s1 + $0x4b0] sm:$0xff]
  %v173 = vld [vmem:[%s1 + $0x4b8] sm:$0xff]
  %v174 = vld [vmem:[%s1 + $0x4c0] sm:$0xff]
  %v175 = vld [vmem:[%s1 + $0x4c8] sm:$0xff]
  %v176 = vld [vmem:[%s1 + $0x4d0] sm:$0xff]
  %v177 = vld [vmem:[%s1 + $0x4d8] sm:$0xff]
  %v178 = vld [vmem:[%s1 + $0x4e0] sm:$0xff]
  %v179 = vld [vmem:[%s1 + $0x4e8] sm:$0xff]
  %v180 = vld [vmem:[%s1 + $0x4f0] sm:$0xff]
  %v181 = vld [vmem:[%s1 + $0x4f8] sm:$0xff]
  %v182 = vld [vmem:[%s1 + $0x500] sm:$0xff]
  %v183 = vld [vmem:[%s1 + $0x508] sm:$0xff]
  %v184 = vld [vmem:[%s1 + $0x510] sm:$0xff]
  %v185 = vld [vmem:[%s1 + $0x518] sm:$0xff]
  %v186 = vld [vmem:[%s1 + $0x520] sm:$0xff]
  %v187 = vld [vmem:[%s1 + $0x528] sm:$0xff]
  %v188 = vld [vmem:[%s1 + $0x530] sm:$0xff]
  %v189 = vld [vmem:[%s1 + $0x538] sm:$0xff]
  %v190 = vld [vmem:[%s1 + $0x540] sm:$0xff]
  %v191 = vld [vmem:[%s1 + $0x548] sm:$0xff]
  %v192 = vld [vmem:[%s1 + $0x550] sm:$0xff]
  %v193 = vld [vmem:[%s1 + $0x558] sm:$0xff]
  %v194 = vld [vmem:[%s1 + $0x560] sm:$0xff]
  %v195 = vld [vmem:[%s1 + $0x568] sm:$0xff]
  %v196 = vld [vmem:[%s1 + $0x570] sm:$0xff]
  %v197 = vld [vmem:[%s1 + $0x578] sm:$0xff]
  %v198 = vld [vmem:[%s1 + $0x580] sm:$0xff]
  %v199 = vld [vmem:[%s1 + $0x588] sm:$0xff]
  %v200 = vld [vmem:[%s1 + $0x590] sm:$0xff]
  %v201 = vld [vmem:[%s1 + $0x598] sm:$0xff]
  %v202 = vld [vmem:[%s1 + $0x5a0] sm:$0xff]
  %v203 = vld [vmem:[%s1 + $0x5a8] sm:$0xff]
  %v204 = vld [vmem:[%s1 + $0x5b0] sm:$0xff]
  %v205 = vld [vmem:[%s1 + $0x5b8] sm:$0xff]
  %v206 = vld [vmem:[%s1 + $0x5c0] sm:$0xff]
  %v207 = vld [vmem:[%s1 + $0x5c8] sm:$0xff]
  %v208 = vld [vmem:[%s1 + $0x5d0] sm:$0xff]
  %v209 = vld [vmem:[%s1 + $0x5d8] sm:$0xff]
  %v210 = vld [vmem:[%s1 + $0x5e0] sm:$0xff]
  %v211 = vld [vmem:[%s1 + $0x5e8] sm:$0xff]
  %v212 = vld [vmem:[%s1 + $0x5f0] sm:$0xff]
  %v213 = vld [vmem:[%s1 + $0x5f8] sm:$0xff]
  %v214 = vld [vmem:[%s1 + $0x600] sm:$0xff]
  %v215 = vld [vmem:[%s1 + $0x608] sm:$0xff]
  %v216 = vld [vmem:[%s1 + $0x610] sm:$0xff]
  %v217 = vld [vmem:[%s1 + $0x618] sm:$0xff]
  %v218 = vld [vmem:[%s1 + $0x620] sm:$0xff]
  %v219 = vld [vmem:[%s1 + $0x628] sm:$0xff]
  %v220 = vld [vmem:[%s1 + $0x630] sm:$0xff]
  %v221 = vld [vmem:[%s1 + $0x638] sm:$0xff]
  %v222 = vld [vmem:[%s1 + $0x640] sm:$0xff]
  %v223 = vld [vmem:[%s1 + $0x648] sm:$0xff]
  %v224 = vld [vmem:[%s1 + $0x650] sm:$0xff]
  %v225 = vld [vmem:[%s1 + $0x658] sm:$0xff]
  %v226 = vld [vmem:[%s1 + $0x660] sm:$0xff]
  %v227 = vld [vmem:[%s1 + $0x668] sm:$0xff]
  %v228 = vld [vmem:[%s1 + $0x670] sm:$0xff]
  %v229 = vld [vmem:[%s1 + $0x678] sm:$0xff]
  %v230 = vld [vmem:[%s1 + $0x680] sm:$0xff]
  %v231 = vld [vmem:[%s1 + $0x688] sm:$0xff]
  %v232 = vld [vmem:[%s1 + $0x690] sm:$0xff]
  %v233 = vld [vmem:[%s1 + $0x698] sm:$0xff]
  %v234 = vld [vmem:[%s1 + $0x6a0] sm:$0xff]
  %v235 = vld [vmem:[%s1 + $0x6a8] sm:$0xff]
  %v236 = vld [vmem:[%s1 + $0x6b0] sm:$0xff]
  %v237 = vld [vmem:[%s1 + $0x6b8] sm:$0xff]
  %v238 = vld [vmem:[%s1 + $0x6c0] sm:$0xff]
  %v239 = vld [vmem:[%s1 + $0x6c8] sm:$0xff]
  %v240 = vld [vmem:[%s1 + $0x6d0] sm:$0xff]
  %v241 = vld [vmem:[%s1 + $0x6d8] sm:$0xff]
  %v242 = vld [vmem:[%s1 + $0x6e0] sm:$0xff]
  %v243 = vld [vmem:[%s1 + $0x6e8] sm:$0xff]
  %v244 = vld [vmem:[%s1 + $0x6f0] sm:$0xff]
  %v245 = vld [vmem:[%s1 + $0x6f8] sm:$0xff]
  %v246 = vld [vmem:[%s1 + $0x700] sm:$0xff]
  %v247 = vld [vmem:[%s1 + $0x708] sm:$0xff]
  %v248 = vld [vmem:[%s1 + $0x710] sm:$0xff]
  %v249 = vld [vmem:[%s1 + $0x718] sm:$0xff]
  %v250 = vld [vmem:[%s1 + $0x720] sm:$0xff]
  %v251 = vld [vmem:[%s1 + $0x728] sm:$0xff]
  %v252 = vld [vmem:[%s1 + $0x730] sm:$0xff]
  %v253 = vld [vmem:[%s1 + $0x738] sm:$0xff]
  %v254 = vld [vmem:[%s1 + $0x740] sm:$0xff]
  %v255 = vld [vmem:[%s1 + $0x748] sm:$0xff]
  %v256 = vld [vmem:[%s1 + $0x750] sm:$0xff]
  %v257 = vld [vmem:[%s1 + $0x758] sm:$0xff]
  %v258 = vld [vmem:[%s1 + $0x760] sm:$0xff]
  %v259 = vld [vmem:[%s1 + $0x768] sm:$0xff]
  %v260 = vld [vmem:[%s1 + $0x770] sm:$0xff]
  %v261 = vld [vmem:[%s1 + $0x778] sm:$0xff]
  %v262 = vld [vmem:[%s1 + $0x780] sm:$0xff]
  %v263 = vld [vmem:[%s1 + $0x788] sm:$0xff]
  %v264 = vld [vmem:[%s1 + $0x790] sm:$0xff]
  %v265 = vld [vmem:[%s1 + $0x798] sm:$0xff]
  %v266 = vld [vmem:[%s1 + $0x7a0] sm:$0xff]
  %v267 = vld [vmem:[%s1 + $0x7a8] sm:$0xff]
  %v268 = vld [vmem:[%s1 + $0x7b0] sm:$0xff]
  %v269 = vld [vmem:[%s1 + $0x7b8] sm:$0xff]
  %v270 = vld [vmem:[%s1 + $0x7c0] sm:$0xff]
  %v271 = vld [vmem:[%s1 + $0x7c8] sm:$0xff]
  %v272 = vld [vmem:[%s1 + $0x7d0] sm:$0xff]
  %v273 = vld [vmem:[%s1 + $0x7d8] sm:$0xff]
  %v274 = vld [vmem:[%s1 + $0x7e0] sm:$0xff]
  %v275 = vld [vmem:[%s1 + $0x7e8] sm:$0xff]
  %v276 = vld [vmem:[%s1 + $0x7f0] sm:$0xff]
  %v277 = vld [vmem:[%s1 + $0x7f8] sm:$0xff]
  %v278 = vld [vmem:[%s2] sm:$0xf]
  %v280 = vlaneseq
  %v281 = vshrl.u32 %v280, 7
  %v282 = vsub.s32 0, %v281
  %v283 = vrot.slane %v278, %v282
  %v284 = vlaneseq
  %v285 = vshrl.u32 %v284, 7
  %v286 = vsub.s32 1, %v285
  %v287 = vrot.slane %v278, %v286
  %v288 = vlaneseq
  %v289 = vshrl.u32 %v288, 7
  %v290 = vsub.s32 2, %v289
  %v291 = vrot.slane %v278, %v290
  %v292 = vlaneseq
  %v293 = vshrl.u32 %v292, 7
  %v294 = vsub.s32 3, %v293
  %v295 = vrot.slane %v278, %v294
  %v308 = vunpack.c.l.b16 %v14
  %v309 = vunpack.c.h.b16 %v14
  %v310 = vunpack.c.l.b16 %v15
  %v311 = vunpack.c.h.b16 %v15
  %v312 = vunpack.c.l.b16 %v16
  %v313 = vunpack.c.h.b16 %v16
  %v314 = vunpack.c.l.b16 %v17
  %v315 = vunpack.c.h.b16 %v17
  %v316 = vunpack.c.l.b16 %v18
  %v317 = vunpack.c.h.b16 %v18
  %v318 = vunpack.c.l.b16 %v19
  %v319 = vunpack.c.h.b16 %v19
  %v320 = vunpack.c.l.b16 %v20
  %v321 = vunpack.c.h.b16 %v20
  %v322 = vunpack.c.l.b16 %v21
  %v323 = vunpack.c.h.b16 %v21
  %v324 = vpack.c.b16 %v316, %v308
  %v325 = vpack.c.b16 %v317, %v309
  %v326 = vpack.c.b16 %v318, %v310
  %v327 = vpack.c.b16 %v319, %v311
  %v328 = vpack.c.b16 %v320, %v312
  %v329 = vpack.c.b16 %v321, %v313
  %v330 = vpack.c.b16 %v322, %v314
  %v331 = vpack.c.b16 %v323, %v315
  %v596 = vunpack.c.l.b16 %v22
  %v597 = vunpack.c.h.b16 %v22
  %v598 = vunpack.c.l.b16 %v23
  %v599 = vunpack.c.h.b16 %v23
  %v600 = vunpack.c.l.b16 %v24
  %v601 = vunpack.c.h.b16 %v24
  %v602 = vunpack.c.l.b16 %v25
  %v603 = vunpack.c.h.b16 %v25
  %v604 = vunpack.c.l.b16 %v26
  %v605 = vunpack.c.h.b16 %v26
  %v606 = vunpack.c.l.b16 %v27
  %v607 = vunpack.c.h.b16 %v27
  %v608 = vunpack.c.l.b16 %v28
  %v609 = vunpack.c.h.b16 %v28
  %v610 = vunpack.c.l.b16 %v29
  %v611 = vunpack.c.h.b16 %v29
  %v612 = vunpack.c.l.b16 %v30
  %v613 = vunpack.c.h.b16 %v30
  %v614 = vunpack.c.l.b16 %v31
  %v615 = vunpack.c.h.b16 %v31
  %v616 = vunpack.c.l.b16 %v32
  %v617 = vunpack.c.h.b16 %v32
  %v618 = vunpack.c.l.b16 %v33
  %v619 = vunpack.c.h.b16 %v33
  %v620 = vunpack.c.l.b16 %v34
  %v621 = vunpack.c.h.b16 %v34
  %v622 = vunpack.c.l.b16 %v35
  %v623 = vunpack.c.h.b16 %v35
  %v624 = vunpack.c.l.b16 %v36
  %v625 = vunpack.c.h.b16 %v36
  %v626 = vunpack.c.l.b16 %v37
  %v627 = vunpack.c.h.b16 %v37
  %v628 = vunpack.c.l.b16 %v38
  %v629 = vunpack.c.h.b16 %v38
  %v630 = vunpack.c.l.b16 %v39
  %v631 = vunpack.c.h.b16 %v39
  %v632 = vunpack.c.l.b16 %v40
  %v633 = vunpack.c.h.b16 %v40
  %v634 = vunpack.c.l.b16 %v41
  %v635 = vunpack.c.h.b16 %v41
  %v636 = vunpack.c.l.b16 %v42
  %v637 = vunpack.c.h.b16 %v42
  %v638 = vunpack.c.l.b16 %v43
  %v639 = vunpack.c.h.b16 %v43
  %v640 = vunpack.c.l.b16 %v44
  %v641 = vunpack.c.h.b16 %v44
  %v642 = vunpack.c.l.b16 %v45
  %v643 = vunpack.c.h.b16 %v45
  %v644 = vunpack.c.l.b16 %v46
  %v645 = vunpack.c.h.b16 %v46
  %v646 = vunpack.c.l.b16 %v47
  %v647 = vunpack.c.h.b16 %v47
  %v648 = vunpack.c.l.b16 %v48
  %v649 = vunpack.c.h.b16 %v48
  %v650 = vunpack.c.l.b16 %v49
  %v651 = vunpack.c.h.b16 %v49
  %v652 = vunpack.c.l.b16 %v50
  %v653 = vunpack.c.h.b16 %v50
  %v654 = vunpack.c.l.b16 %v51
  %v655 = vunpack.c.h.b16 %v51
  %v656 = vunpack.c.l.b16 %v52
  %v657 = vunpack.c.h.b16 %v52
  %v658 = vunpack.c.l.b16 %v53
  %v659 = vunpack.c.h.b16 %v53
  %v660 = vunpack.c.l.b16 %v54
  %v661 = vunpack.c.h.b16 %v54
  %v662 = vunpack.c.l.b16 %v55
  %v663 = vunpack.c.h.b16 %v55
  %v664 = vunpack.c.l.b16 %v56
  %v665 = vunpack.c.h.b16 %v56
  %v666 = vunpack.c.l.b16 %v57
  %v667 = vunpack.c.h.b16 %v57
  %v668 = vunpack.c.l.b16 %v58
  %v669 = vunpack.c.h.b16 %v58
  %v670 = vunpack.c.l.b16 %v59
  %v671 = vunpack.c.h.b16 %v59
  %v672 = vunpack.c.l.b16 %v60
  %v673 = vunpack.c.h.b16 %v60
  %v674 = vunpack.c.l.b16 %v61
  %v675 = vunpack.c.h.b16 %v61
  %v676 = vunpack.c.l.b16 %v62
  %v677 = vunpack.c.h.b16 %v62
  %v678 = vunpack.c.l.b16 %v63
  %v679 = vunpack.c.h.b16 %v63
  %v680 = vunpack.c.l.b16 %v64
  %v681 = vunpack.c.h.b16 %v64
  %v682 = vunpack.c.l.b16 %v65
  %v683 = vunpack.c.h.b16 %v65
  %v684 = vunpack.c.l.b16 %v66
  %v685 = vunpack.c.h.b16 %v66
  %v686 = vunpack.c.l.b16 %v67
  %v687 = vunpack.c.h.b16 %v67
  %v688 = vunpack.c.l.b16 %v68
  %v689 = vunpack.c.h.b16 %v68
  %v690 = vunpack.c.l.b16 %v69
  %v691 = vunpack.c.h.b16 %v69
  %v692 = vunpack.c.l.b16 %v70
  %v693 = vunpack.c.h.b16 %v70
  %v694 = vunpack.c.l.b16 %v71
  %v695 = vunpack.c.h.b16 %v71
  %v696 = vunpack.c.l.b16 %v72
  %v697 = vunpack.c.h.b16 %v72
  %v698 = vunpack.c.l.b16 %v73
  %v699 = vunpack.c.h.b16 %v73
  %v700 = vunpack.c.l.b16 %v74
  %v701 = vunpack.c.h.b16 %v74
  %v702 = vunpack.c.l.b16 %v75
  %v703 = vunpack.c.h.b16 %v75
  %v704 = vunpack.c.l.b16 %v76
  %v705 = vunpack.c.h.b16 %v76
  %v706 = vunpack.c.l.b16 %v77
  %v707 = vunpack.c.h.b16 %v77
  %v708 = vunpack.c.l.b16 %v78
  %v709 = vunpack.c.h.b16 %v78
  %v710 = vunpack.c.l.b16 %v79
  %v711 = vunpack.c.h.b16 %v79
  %v712 = vunpack.c.l.b16 %v80
  %v713 = vunpack.c.h.b16 %v80
  %v714 = vunpack.c.l.b16 %v81
  %v715 = vunpack.c.h.b16 %v81
  %v716 = vunpack.c.l.b16 %v82
  %v717 = vunpack.c.h.b16 %v82
  %v718 = vunpack.c.l.b16 %v83
  %v719 = vunpack.c.h.b16 %v83
  %v720 = vunpack.c.l.b16 %v84
  %v721 = vunpack.c.h.b16 %v84
  %v722 = vunpack.c.l.b16 %v85
  %v723 = vunpack.c.h.b16 %v85
  %v724 = vunpack.c.l.b16 %v86
  %v725 = vunpack.c.h.b16 %v86
  %v726 = vunpack.c.l.b16 %v87
  %v727 = vunpack.c.h.b16 %v87
  %v728 = vunpack.c.l.b16 %v88
  %v729 = vunpack.c.h.b16 %v88
  %v730 = vunpack.c.l.b16 %v89
  %v731 = vunpack.c.h.b16 %v89
  %v732 = vunpack.c.l.b16 %v90
  %v733 = vunpack.c.h.b16 %v90
  %v734 = vunpack.c.l.b16 %v91
  %v735 = vunpack.c.h.b16 %v91
  %v736 = vunpack.c.l.b16 %v92
  %v737 = vunpack.c.h.b16 %v92
  %v738 = vunpack.c.l.b16 %v93
  %v739 = vunpack.c.h.b16 %v93
  %v740 = vunpack.c.l.b16 %v94
  %v741 = vunpack.c.h.b16 %v94
  %v742 = vunpack.c.l.b16 %v95
  %v743 = vunpack.c.h.b16 %v95
  %v744 = vunpack.c.l.b16 %v96
  %v745 = vunpack.c.h.b16 %v96
  %v746 = vunpack.c.l.b16 %v97
  %v747 = vunpack.c.h.b16 %v97
  %v748 = vunpack.c.l.b16 %v98
  %v749 = vunpack.c.h.b16 %v98
  %v750 = vunpack.c.l.b16 %v99
  %v751 = vunpack.c.h.b16 %v99
  %v752 = vunpack.c.l.b16 %v100
  %v753 = vunpack.c.h.b16 %v100
  %v754 = vunpack.c.l.b16 %v101
  %v755 = vunpack.c.h.b16 %v101
  %v756 = vunpack.c.l.b16 %v102
  %v757 = vunpack.c.h.b16 %v102
  %v758 = vunpack.c.l.b16 %v103
  %v759 = vunpack.c.h.b16 %v103
  %v760 = vunpack.c.l.b16 %v104
  %v761 = vunpack.c.h.b16 %v104
  %v762 = vunpack.c.l.b16 %v105
  %v763 = vunpack.c.h.b16 %v105
  %v764 = vunpack.c.l.b16 %v106
  %v765 = vunpack.c.h.b16 %v106
  %v766 = vunpack.c.l.b16 %v107
  %v767 = vunpack.c.h.b16 %v107
  %v768 = vunpack.c.l.b16 %v108
  %v769 = vunpack.c.h.b16 %v108
  %v770 = vunpack.c.l.b16 %v109
  %v771 = vunpack.c.h.b16 %v109
  %v772 = vunpack.c.l.b16 %v110
  %v773 = vunpack.c.h.b16 %v110
  %v774 = vunpack.c.l.b16 %v111
  %v775 = vunpack.c.h.b16 %v111
  %v776 = vunpack.c.l.b16 %v112
  %v777 = vunpack.c.h.b16 %v112
  %v778 = vunpack.c.l.b16 %v113
  %v779 = vunpack.c.h.b16 %v113
  %v780 = vunpack.c.l.b16 %v114
  %v781 = vunpack.c.h.b16 %v114
  %v782 = vunpack.c.l.b16 %v115
  %v783 = vunpack.c.h.b16 %v115
  %v784 = vunpack.c.l.b16 %v116
  %v785 = vunpack.c.h.b16 %v116
  %v786 = vunpack.c.l.b16 %v117
  %v787 = vunpack.c.h.b16 %v117
  %v788 = vunpack.c.l.b16 %v118
  %v789 = vunpack.c.h.b16 %v118
  %v790 = vunpack.c.l.b16 %v119
  %v791 = vunpack.c.h.b16 %v119
  %v792 = vunpack.c.l.b16 %v120
  %v793 = vunpack.c.h.b16 %v120
  %v794 = vunpack.c.l.b16 %v121
  %v795 = vunpack.c.h.b16 %v121
  %v796 = vunpack.c.l.b16 %v122
  %v797 = vunpack.c.h.b16 %v122
  %v798 = vunpack.c.l.b16 %v123
  %v799 = vunpack.c.h.b16 %v123
  %v800 = vunpack.c.l.b16 %v124
  %v801 = vunpack.c.h.b16 %v124
  %v802 = vunpack.c.l.b16 %v125
  %v803 = vunpack.c.h.b16 %v125
  %v804 = vunpack.c.l.b16 %v126
  %v805 = vunpack.c.h.b16 %v126
  %v806 = vunpack.c.l.b16 %v127
  %v807 = vunpack.c.h.b16 %v127
  %v808 = vunpack.c.l.b16 %v128
  %v809 = vunpack.c.h.b16 %v128
  %v810 = vunpack.c.l.b16 %v129
  %v811 = vunpack.c.h.b16 %v129
  %v812 = vunpack.c.l.b16 %v130
  %v813 = vunpack.c.h.b16 %v130
  %v814 = vunpack.c.l.b16 %v131
  %v815 = vunpack.c.h.b16 %v131
  %v816 = vunpack.c.l.b16 %v132
  %v817 = vunpack.c.h.b16 %v132
  %v818 = vunpack.c.l.b16 %v133
  %v819 = vunpack.c.h.b16 %v133
  %v820 = vunpack.c.l.b16 %v134
  %v821 = vunpack.c.h.b16 %v134
  %v822 = vunpack.c.l.b16 %v135
  %v823 = vunpack.c.h.b16 %v135
  %v824 = vunpack.c.l.b16 %v136
  %v825 = vunpack.c.h.b16 %v136
  %v826 = vunpack.c.l.b16 %v137
  %v827 = vunpack.c.h.b16 %v137
  %v828 = vunpack.c.l.b16 %v138
  %v829 = vunpack.c.h.b16 %v138
  %v830 = vunpack.c.l.b16 %v139
  %v831 = vunpack.c.h.b16 %v139
  %v832 = vunpack.c.l.b16 %v140
  %v833 = vunpack.c.h.b16 %v140
  %v834 = vunpack.c.l.b16 %v141
  %v835 = vunpack.c.h.b16 %v141
  %v836 = vunpack.c.l.b16 %v142
  %v837 = vunpack.c.h.b16 %v142
  %v838 = vunpack.c.l.b16 %v143
  %v839 = vunpack.c.h.b16 %v143
  %v840 = vunpack.c.l.b16 %v144
  %v841 = vunpack.c.h.b16 %v144
  %v842 = vunpack.c.l.b16 %v145
  %v843 = vunpack.c.h.b16 %v145
  %v844 = vunpack.c.l.b16 %v146
  %v845 = vunpack.c.h.b16 %v146
  %v846 = vunpack.c.l.b16 %v147
  %v847 = vunpack.c.h.b16 %v147
  %v848 = vunpack.c.l.b16 %v148
  %v849 = vunpack.c.h.b16 %v148
  %v850 = vunpack.c.l.b16 %v149
  %v851 = vunpack.c.h.b16 %v149
  %v852 = vunpack.c.l.b16 %v150
  %v853 = vunpack.c.h.b16 %v150
  %v854 = vunpack.c.l.b16 %v151
  %v855 = vunpack.c.h.b16 %v151
  %v856 = vunpack.c.l.b16 %v152
  %v857 = vunpack.c.h.b16 %v152
  %v858 = vunpack.c.l.b16 %v153
  %v859 = vunpack.c.h.b16 %v153
  %v860 = vunpack.c.l.b16 %v154
  %v861 = vunpack.c.h.b16 %v154
  %v862 = vunpack.c.l.b16 %v155
  %v863 = vunpack.c.h.b16 %v155
  %v864 = vunpack.c.l.b16 %v156
  %v865 = vunpack.c.h.b16 %v156
  %v866 = vunpack.c.l.b16 %v157
  %v867 = vunpack.c.h.b16 %v157
  %v868 = vunpack.c.l.b16 %v158
  %v869 = vunpack.c.h.b16 %v158
  %v870 = vunpack.c.l.b16 %v159
  %v871 = vunpack.c.h.b16 %v159
  %v872 = vunpack.c.l.b16 %v160
  %v873 = vunpack.c.h.b16 %v160
  %v874 = vunpack.c.l.b16 %v161
  %v875 = vunpack.c.h.b16 %v161
  %v876 = vunpack.c.l.b16 %v162
  %v877 = vunpack.c.h.b16 %v162
  %v878 = vunpack.c.l.b16 %v163
  %v879 = vunpack.c.h.b16 %v163
  %v880 = vunpack.c.l.b16 %v164
  %v881 = vunpack.c.h.b16 %v164
  %v882 = vunpack.c.l.b16 %v165
  %v883 = vunpack.c.h.b16 %v165
  %v884 = vunpack.c.l.b16 %v166
  %v885 = vunpack.c.h.b16 %v166
  %v886 = vunpack.c.l.b16 %v167
  %v887 = vunpack.c.h.b16 %v167
  %v888 = vunpack.c.l.b16 %v168
  %v889 = vunpack.c.h.b16 %v168
  %v890 = vunpack.c.l.b16 %v169
  %v891 = vunpack.c.h.b16 %v169
  %v892 = vunpack.c.l.b16 %v170
  %v893 = vunpack.c.h.b16 %v170
  %v894 = vunpack.c.l.b16 %v171
  %v895 = vunpack.c.h.b16 %v171
  %v896 = vunpack.c.l.b16 %v172
  %v897 = vunpack.c.h.b16 %v172
  %v898 = vunpack.c.l.b16 %v173
  %v899 = vunpack.c.h.b16 %v173
  %v900 = vunpack.c.l.b16 %v174
  %v901 = vunpack.c.h.b16 %v174
  %v902 = vunpack.c.l.b16 %v175
  %v903 = vunpack.c.h.b16 %v175
  %v904 = vunpack.c.l.b16 %v176
  %v905 = vunpack.c.h.b16 %v176
  %v906 = vunpack.c.l.b16 %v177
  %v907 = vunpack.c.h.b16 %v177
  %v908 = vunpack.c.l.b16 %v178
  %v909 = vunpack.c.h.b16 %v178
  %v910 = vunpack.c.l.b16 %v179
  %v911 = vunpack.c.h.b16 %v179
  %v912 = vunpack.c.l.b16 %v180
  %v913 = vunpack.c.h.b16 %v180
  %v914 = vunpack.c.l.b16 %v181
  %v915 = vunpack.c.h.b16 %v181
  %v916 = vunpack.c.l.b16 %v182
  %v917 = vunpack.c.h.b16 %v182
  %v918 = vunpack.c.l.b16 %v183
  %v919 = vunpack.c.h.b16 %v183
  %v920 = vunpack.c.l.b16 %v184
  %v921 = vunpack.c.h.b16 %v184
  %v922 = vunpack.c.l.b16 %v185
  %v923 = vunpack.c.h.b16 %v185
  %v924 = vunpack.c.l.b16 %v186
  %v925 = vunpack.c.h.b16 %v186
  %v926 = vunpack.c.l.b16 %v187
  %v927 = vunpack.c.h.b16 %v187
  %v928 = vunpack.c.l.b16 %v188
  %v929 = vunpack.c.h.b16 %v188
  %v930 = vunpack.c.l.b16 %v189
  %v931 = vunpack.c.h.b16 %v189
  %v932 = vunpack.c.l.b16 %v190
  %v933 = vunpack.c.h.b16 %v190
  %v934 = vunpack.c.l.b16 %v191
  %v935 = vunpack.c.h.b16 %v191
  %v936 = vunpack.c.l.b16 %v192
  %v937 = vunpack.c.h.b16 %v192
  %v938 = vunpack.c.l.b16 %v193
  %v939 = vunpack.c.h.b16 %v193
  %v940 = vunpack.c.l.b16 %v194
  %v941 = vunpack.c.h.b16 %v194
  %v942 = vunpack.c.l.b16 %v195
  %v943 = vunpack.c.h.b16 %v195
  %v944 = vunpack.c.l.b16 %v196
  %v945 = vunpack.c.h.b16 %v196
  %v946 = vunpack.c.l.b16 %v197
  %v947 = vunpack.c.h.b16 %v197
  %v948 = vunpack.c.l.b16 %v198
  %v949 = vunpack.c.h.b16 %v198
  %v950 = vunpack.c.l.b16 %v199
  %v951 = vunpack.c.h.b16 %v199
  %v952 = vunpack.c.l.b16 %v200
  %v953 = vunpack.c.h.b16 %v200
  %v954 = vunpack.c.l.b16 %v201
  %v955 = vunpack.c.h.b16 %v201
  %v956 = vunpack.c.l.b16 %v202
  %v957 = vunpack.c.h.b16 %v202
  %v958 = vunpack.c.l.b16 %v203
  %v959 = vunpack.c.h.b16 %v203
  %v960 = vunpack.c.l.b16 %v204
  %v961 = vunpack.c.h.b16 %v204
  %v962 = vunpack.c.l.b16 %v205
  %v963 = vunpack.c.h.b16 %v205
  %v964 = vunpack.c.l.b16 %v206
  %v965 = vunpack.c.h.b16 %v206
  %v966 = vunpack.c.l.b16 %v207
  %v967 = vunpack.c.h.b16 %v207
  %v968 = vunpack.c.l.b16 %v208
  %v969 = vunpack.c.h.b16 %v208
  %v970 = vunpack.c.l.b16 %v209
  %v971 = vunpack.c.h.b16 %v209
  %v972 = vunpack.c.l.b16 %v210
  %v973 = vunpack.c.h.b16 %v210
  %v974 = vunpack.c.l.b16 %v211
  %v975 = vunpack.c.h.b16 %v211
  %v976 = vunpack.c.l.b16 %v212
  %v977 = vunpack.c.h.b16 %v212
  %v978 = vunpack.c.l.b16 %v213
  %v979 = vunpack.c.h.b16 %v213
  %v980 = vunpack.c.l.b16 %v214
  %v981 = vunpack.c.h.b16 %v214
  %v982 = vunpack.c.l.b16 %v215
  %v983 = vunpack.c.h.b16 %v215
  %v984 = vunpack.c.l.b16 %v216
  %v985 = vunpack.c.h.b16 %v216
  %v986 = vunpack.c.l.b16 %v217
  %v987 = vunpack.c.h.b16 %v217
  %v988 = vunpack.c.l.b16 %v218
  %v989 = vunpack.c.h.b16 %v218
  %v990 = vunpack.c.l.b16 %v219
  %v991 = vunpack.c.h.b16 %v219
  %v992 = vunpack.c.l.b16 %v220
  %v993 = vunpack.c.h.b16 %v220
  %v994 = vunpack.c.l.b16 %v221
  %v995 = vunpack.c.h.b16 %v221
  %v996 = vunpack.c.l.b16 %v222
  %v997 = vunpack.c.h.b16 %v222
  %v998 = vunpack.c.l.b16 %v223
  %v999 = vunpack.c.h.b16 %v223
  %v1000 = vunpack.c.l.b16 %v224
  %v1001 = vunpack.c.h.b16 %v224
  %v1002 = vunpack.c.l.b16 %v225
  %v1003 = vunpack.c.h.b16 %v225
  %v1004 = vunpack.c.l.b16 %v226
  %v1005 = vunpack.c.h.b16 %v226
  %v1006 = vunpack.c.l.b16 %v227
  %v1007 = vunpack.c.h.b16 %v227
  %v1008 = vunpack.c.l.b16 %v228
  %v1009 = vunpack.c.h.b16 %v228
  %v1010 = vunpack.c.l.b16 %v229
  %v1011 = vunpack.c.h.b16 %v229
  %v1012 = vunpack.c.l.b16 %v230
  %v1013 = vunpack.c.h.b16 %v230
  %v1014 = vunpack.c.l.b16 %v231
  %v1015 = vunpack.c.h.b16 %v231
  %v1016 = vunpack.c.l.b16 %v232
  %v1017 = vunpack.c.h.b16 %v232
  %v1018 = vunpack.c.l.b16 %v233
  %v1019 = vunpack.c.h.b16 %v233
  %v1020 = vunpack.c.l.b16 %v234
  %v1021 = vunpack.c.h.b16 %v234
  %v1022 = vunpack.c.l.b16 %v235
  %v1023 = vunpack.c.h.b16 %v235
  %v1024 = vunpack.c.l.b16 %v236
  %v1025 = vunpack.c.h.b16 %v236
  %v1026 = vunpack.c.l.b16 %v237
  %v1027 = vunpack.c.h.b16 %v237
  %v1028 = vunpack.c.l.b16 %v238
  %v1029 = vunpack.c.h.b16 %v238
  %v1030 = vunpack.c.l.b16 %v239
  %v1031 = vunpack.c.h.b16 %v239
  %v1032 = vunpack.c.l.b16 %v240
  %v1033 = vunpack.c.h.b16 %v240
  %v1034 = vunpack.c.l.b16 %v241
  %v1035 = vunpack.c.h.b16 %v241
  %v1036 = vunpack.c.l.b16 %v242
  %v1037 = vunpack.c.h.b16 %v242
  %v1038 = vunpack.c.l.b16 %v243
  %v1039 = vunpack.c.h.b16 %v243
  %v1040 = vunpack.c.l.b16 %v244
  %v1041 = vunpack.c.h.b16 %v244
  %v1042 = vunpack.c.l.b16 %v245
  %v1043 = vunpack.c.h.b16 %v245
  %v1044 = vunpack.c.l.b16 %v246
  %v1045 = vunpack.c.h.b16 %v246
  %v1046 = vunpack.c.l.b16 %v247
  %v1047 = vunpack.c.h.b16 %v247
  %v1048 = vunpack.c.l.b16 %v248
  %v1049 = vunpack.c.h.b16 %v248
  %v1050 = vunpack.c.l.b16 %v249
  %v1051 = vunpack.c.h.b16 %v249
  %v1052 = vunpack.c.l.b16 %v250
  %v1053 = vunpack.c.h.b16 %v250
  %v1054 = vunpack.c.l.b16 %v251
  %v1055 = vunpack.c.h.b16 %v251
  %v1056 = vunpack.c.l.b16 %v252
  %v1057 = vunpack.c.h.b16 %v252
  %v1058 = vunpack.c.l.b16 %v253
  %v1059 = vunpack.c.h.b16 %v253
  %v1060 = vunpack.c.l.b16 %v254
  %v1061 = vunpack.c.h.b16 %v254
  %v1062 = vunpack.c.l.b16 %v255
  %v1063 = vunpack.c.h.b16 %v255
  %v1064 = vunpack.c.l.b16 %v256
  %v1065 = vunpack.c.h.b16 %v256
  %v1066 = vunpack.c.l.b16 %v257
  %v1067 = vunpack.c.h.b16 %v257
  %v1068 = vunpack.c.l.b16 %v258
  %v1069 = vunpack.c.h.b16 %v258
  %v1070 = vunpack.c.l.b16 %v259
  %v1071 = vunpack.c.h.b16 %v259
  %v1072 = vunpack.c.l.b16 %v260
  %v1073 = vunpack.c.h.b16 %v260
  %v1074 = vunpack.c.l.b16 %v261
  %v1075 = vunpack.c.h.b16 %v261
  %v1076 = vunpack.c.l.b16 %v262
  %v1077 = vunpack.c.h.b16 %v262
  %v1078 = vunpack.c.l.b16 %v263
  %v1079 = vunpack.c.h.b16 %v263
  %v1080 = vunpack.c.l.b16 %v264
  %v1081 = vunpack.c.h.b16 %v264
  %v1082 = vunpack.c.l.b16 %v265
  %v1083 = vunpack.c.h.b16 %v265
  %v1084 = vunpack.c.l.b16 %v266
  %v1085 = vunpack.c.h.b16 %v266
  %v1086 = vunpack.c.l.b16 %v267
  %v1087 = vunpack.c.h.b16 %v267
  %v1088 = vunpack.c.l.b16 %v268
  %v1089 = vunpack.c.h.b16 %v268
  %v1090 = vunpack.c.l.b16 %v269
  %v1091 = vunpack.c.h.b16 %v269
  %v1092 = vunpack.c.l.b16 %v270
  %v1093 = vunpack.c.h.b16 %v270
  %v1094 = vunpack.c.l.b16 %v271
  %v1095 = vunpack.c.h.b16 %v271
  %v1096 = vunpack.c.l.b16 %v272
  %v1097 = vunpack.c.h.b16 %v272
  %v1098 = vunpack.c.l.b16 %v273
  %v1099 = vunpack.c.h.b16 %v273
  %v1100 = vunpack.c.l.b16 %v274
  %v1101 = vunpack.c.h.b16 %v274
  %v1102 = vunpack.c.l.b16 %v275
  %v1103 = vunpack.c.h.b16 %v275
  %v1104 = vunpack.c.l.b16 %v276
  %v1105 = vunpack.c.h.b16 %v276
  %v1106 = vunpack.c.l.b16 %v277
  %v1107 = vunpack.c.h.b16 %v277
  %v1108 = vpack.c.b16 %v600, %v596
  %v1109 = vpack.c.b16 %v601, %v597
  %v1110 = vpack.c.b16 %v602, %v598
  %v1111 = vpack.c.b16 %v603, %v599
  %v1112 = vpack.c.b16 %v608, %v604
  %v1113 = vpack.c.b16 %v609, %v605
  %v1114 = vpack.c.b16 %v610, %v606
  %v1115 = vpack.c.b16 %v611, %v607
  %v1116 = vpack.c.b16 %v616, %v612
  %v1117 = vpack.c.b16 %v617, %v613
  %v1118 = vpack.c.b16 %v618, %v614
  %v1119 = vpack.c.b16 %v619, %v615
  %v1120 = vpack.c.b16 %v624, %v620
  %v1121 = vpack.c.b16 %v625, %v621
  %v1122 = vpack.c.b16 %v626, %v622
  %v1123 = vpack.c.b16 %v627, %v623
  %v1124 = vpack.c.b16 %v632, %v628
  %v1125 = vpack.c.b16 %v633, %v629
  %v1126 = vpack.c.b16 %v634, %v630
  %v1127 = vpack.c.b16 %v635, %v631
  %v1128 = vpack.c.b16 %v640, %v636
  %v1129 = vpack.c.b16 %v641, %v637
  %v1130 = vpack.c.b16 %v642, %v638
  %v1131 = vpack.c.b16 %v643, %v639
  %v1132 = vpack.c.b16 %v648, %v644
  %v1133 = vpack.c.b16 %v649, %v645
  %v1134 = vpack.c.b16 %v650, %v646
  %v1135 = vpack.c.b16 %v651, %v647
  %v1136 = vpack.c.b16 %v656, %v652
  %v1137 = vpack.c.b16 %v657, %v653
  %v1138 = vpack.c.b16 %v658, %v654
  %v1139 = vpack.c.b16 %v659, %v655
  %v1140 = vpack.c.b16 %v664, %v660
  %v1141 = vpack.c.b16 %v665, %v661
  %v1142 = vpack.c.b16 %v666, %v662
  %v1143 = vpack.c.b16 %v667, %v663
  %v1144 = vpack.c.b16 %v672, %v668
  %v1145 = vpack.c.b16 %v673, %v669
  %v1146 = vpack.c.b16 %v674, %v670
  %v1147 = vpack.c.b16 %v675, %v671
  %v1148 = vpack.c.b16 %v680, %v676
  %v1149 = vpack.c.b16 %v681, %v677
  %v1150 = vpack.c.b16 %v682, %v678
  %v1151 = vpack.c.b16 %v683, %v679
  %v1152 = vpack.c.b16 %v688, %v684
  %v1153 = vpack.c.b16 %v689, %v685
  %v1154 = vpack.c.b16 %v690, %v686
  %v1155 = vpack.c.b16 %v691, %v687
  %v1156 = vpack.c.b16 %v696, %v692
  %v1157 = vpack.c.b16 %v697, %v693
  %v1158 = vpack.c.b16 %v698, %v694
  %v1159 = vpack.c.b16 %v699, %v695
  %v1160 = vpack.c.b16 %v704, %v700
  %v1161 = vpack.c.b16 %v705, %v701
  %v1162 = vpack.c.b16 %v706, %v702
  %v1163 = vpack.c.b16 %v707, %v703
  %v1164 = vpack.c.b16 %v712, %v708
  %v1165 = vpack.c.b16 %v713, %v709
  %v1166 = vpack.c.b16 %v714, %v710
  %v1167 = vpack.c.b16 %v715, %v711
  %v1168 = vpack.c.b16 %v720, %v716
  %v1169 = vpack.c.b16 %v721, %v717
  %v1170 = vpack.c.b16 %v722, %v718
  %v1171 = vpack.c.b16 %v723, %v719
  %v1172 = vpack.c.b16 %v728, %v724
  %v1173 = vpack.c.b16 %v729, %v725
  %v1174 = vpack.c.b16 %v730, %v726
  %v1175 = vpack.c.b16 %v731, %v727
  %v1176 = vpack.c.b16 %v736, %v732
  %v1177 = vpack.c.b16 %v737, %v733
  %v1178 = vpack.c.b16 %v738, %v734
  %v1179 = vpack.c.b16 %v739, %v735
  %v1180 = vpack.c.b16 %v744, %v740
  %v1181 = vpack.c.b16 %v745, %v741
  %v1182 = vpack.c.b16 %v746, %v742
  %v1183 = vpack.c.b16 %v747, %v743
  %v1184 = vpack.c.b16 %v752, %v748
  %v1185 = vpack.c.b16 %v753, %v749
  %v1186 = vpack.c.b16 %v754, %v750
  %v1187 = vpack.c.b16 %v755, %v751
  %v1188 = vpack.c.b16 %v760, %v756
  %v1189 = vpack.c.b16 %v761, %v757
  %v1190 = vpack.c.b16 %v762, %v758
  %v1191 = vpack.c.b16 %v763, %v759
  %v1192 = vpack.c.b16 %v768, %v764
  %v1193 = vpack.c.b16 %v769, %v765
  %v1194 = vpack.c.b16 %v770, %v766
  %v1195 = vpack.c.b16 %v771, %v767
  %v1196 = vpack.c.b16 %v776, %v772
  %v1197 = vpack.c.b16 %v777, %v773
  %v1198 = vpack.c.b16 %v778, %v774
  %v1199 = vpack.c.b16 %v779, %v775
  %v1200 = vpack.c.b16 %v784, %v780
  %v1201 = vpack.c.b16 %v785, %v781
  %v1202 = vpack.c.b16 %v786, %v782
  %v1203 = vpack.c.b16 %v787, %v783
  %v1204 = vpack.c.b16 %v792, %v788
  %v1205 = vpack.c.b16 %v793, %v789
  %v1206 = vpack.c.b16 %v794, %v790
  %v1207 = vpack.c.b16 %v795, %v791
  %v1208 = vpack.c.b16 %v800, %v796
  %v1209 = vpack.c.b16 %v801, %v797
  %v1210 = vpack.c.b16 %v802, %v798
  %v1211 = vpack.c.b16 %v803, %v799
  %v1212 = vpack.c.b16 %v808, %v804
  %v1213 = vpack.c.b16 %v809, %v805
  %v1214 = vpack.c.b16 %v810, %v806
  %v1215 = vpack.c.b16 %v811, %v807
  %v1216 = vpack.c.b16 %v816, %v812
  %v1217 = vpack.c.b16 %v817, %v813
  %v1218 = vpack.c.b16 %v818, %v814
  %v1219 = vpack.c.b16 %v819, %v815
  %v1220 = vpack.c.b16 %v824, %v820
  %v1221 = vpack.c.b16 %v825, %v821
  %v1222 = vpack.c.b16 %v826, %v822
  %v1223 = vpack.c.b16 %v827, %v823
  %v1224 = vpack.c.b16 %v832, %v828
  %v1225 = vpack.c.b16 %v833, %v829
  %v1226 = vpack.c.b16 %v834, %v830
  %v1227 = vpack.c.b16 %v835, %v831
  %v1228 = vpack.c.b16 %v840, %v836
  %v1229 = vpack.c.b16 %v841, %v837
  %v1230 = vpack.c.b16 %v842, %v838
  %v1231 = vpack.c.b16 %v843, %v839
  %v1232 = vpack.c.b16 %v848, %v844
  %v1233 = vpack.c.b16 %v849, %v845
  %v1234 = vpack.c.b16 %v850, %v846
  %v1235 = vpack.c.b16 %v851, %v847
  %v1236 = vpack.c.b16 %v856, %v852
  %v1237 = vpack.c.b16 %v857, %v853
  %v1238 = vpack.c.b16 %v858, %v854
  %v1239 = vpack.c.b16 %v859, %v855
  %v1240 = vpack.c.b16 %v864, %v860
  %v1241 = vpack.c.b16 %v865, %v861
  %v1242 = vpack.c.b16 %v866, %v862
  %v1243 = vpack.c.b16 %v867, %v863
  %v1244 = vpack.c.b16 %v872, %v868
  %v1245 = vpack.c.b16 %v873, %v869
  %v1246 = vpack.c.b16 %v874, %v870
  %v1247 = vpack.c.b16 %v875, %v871
  %v1248 = vpack.c.b16 %v880, %v876
  %v1249 = vpack.c.b16 %v881, %v877
  %v1250 = vpack.c.b16 %v882, %v878
  %v1251 = vpack.c.b16 %v883, %v879
  %v1252 = vpack.c.b16 %v888, %v884
  %v1253 = vpack.c.b16 %v889, %v885
  %v1254 = vpack.c.b16 %v890, %v886
  %v1255 = vpack.c.b16 %v891, %v887
  %v1256 = vpack.c.b16 %v896, %v892
  %v1257 = vpack.c.b16 %v897, %v893
  %v1258 = vpack.c.b16 %v898, %v894
  %v1259 = vpack.c.b16 %v899, %v895
  %v1260 = vpack.c.b16 %v904, %v900
  %v1261 = vpack.c.b16 %v905, %v901
  %v1262 = vpack.c.b16 %v906, %v902
  %v1263 = vpack.c.b16 %v907, %v903
  %v1264 = vpack.c.b16 %v912, %v908
  %v1265 = vpack.c.b16 %v913, %v909
  %v1266 = vpack.c.b16 %v914, %v910
  %v1267 = vpack.c.b16 %v915, %v911
  %v1268 = vpack.c.b16 %v920, %v916
  %v1269 = vpack.c.b16 %v921, %v917
  %v1270 = vpack.c.b16 %v922, %v918
  %v1271 = vpack.c.b16 %v923, %v919
  %v1272 = vpack.c.b16 %v928, %v924
  %v1273 = vpack.c.b16 %v929, %v925
  %v1274 = vpack.c.b16 %v930, %v926
  %v1275 = vpack.c.b16 %v931, %v927
  %v1276 = vpack.c.b16 %v936, %v932
  %v1277 = vpack.c.b16 %v937, %v933
  %v1278 = vpack.c.b16 %v938, %v934
  %v1279 = vpack.c.b16 %v939, %v935
  %v1280 = vpack.c.b16 %v944, %v940
  %v1281 = vpack.c.b16 %v945, %v941
  %v1282 = vpack.c.b16 %v946, %v942
  %v1283 = vpack.c.b16 %v947, %v943
  %v1284 = vpack.c.b16 %v952, %v948
  %v1285 = vpack.c.b16 %v953, %v949
  %v1286 = vpack.c.b16 %v954, %v950
  %v1287 = vpack.c.b16 %v955, %v951
  %v1288 = vpack.c.b16 %v960, %v956
  %v1289 = vpack.c.b16 %v961, %v957
  %v1290 = vpack.c.b16 %v962, %v958
  %v1291 = vpack.c.b16 %v963, %v959
  %v1292 = vpack.c.b16 %v968, %v964
  %v1293 = vpack.c.b16 %v969, %v965
  %v1294 = vpack.c.b16 %v970, %v966
  %v1295 = vpack.c.b16 %v971, %v967
  %v1296 = vpack.c.b16 %v976, %v972
  %v1297 = vpack.c.b16 %v977, %v973
  %v1298 = vpack.c.b16 %v978, %v974
  %v1299 = vpack.c.b16 %v979, %v975
  %v1300 = vpack.c.b16 %v984, %v980
  %v1301 = vpack.c.b16 %v985, %v981
  %v1302 = vpack.c.b16 %v986, %v982
  %v1303 = vpack.c.b16 %v987, %v983
  %v1304 = vpack.c.b16 %v992, %v988
  %v1305 = vpack.c.b16 %v993, %v989
  %v1306 = vpack.c.b16 %v994, %v990
  %v1307 = vpack.c.b16 %v995, %v991
  %v1308 = vpack.c.b16 %v1000, %v996
  %v1309 = vpack.c.b16 %v1001, %v997
  %v1310 = vpack.c.b16 %v1002, %v998
  %v1311 = vpack.c.b16 %v1003, %v999
  %v1312 = vpack.c.b16 %v1008, %v1004
  %v1313 = vpack.c.b16 %v1009, %v1005
  %v1314 = vpack.c.b16 %v1010, %v1006
  %v1315 = vpack.c.b16 %v1011, %v1007
  %v1316 = vpack.c.b16 %v1016, %v1012
  %v1317 = vpack.c.b16 %v1017, %v1013
  %v1318 = vpack.c.b16 %v1018, %v1014
  %v1319 = vpack.c.b16 %v1019, %v1015
  %v1320 = vpack.c.b16 %v1024, %v1020
  %v1321 = vpack.c.b16 %v1025, %v1021
  %v1322 = vpack.c.b16 %v1026, %v1022
  %v1323 = vpack.c.b16 %v1027, %v1023
  %v1324 = vpack.c.b16 %v1032, %v1028
  %v1325 = vpack.c.b16 %v1033, %v1029
  %v1326 = vpack.c.b16 %v1034, %v1030
  %v1327 = vpack.c.b16 %v1035, %v1031
  %v1328 = vpack.c.b16 %v1040, %v1036
  %v1329 = vpack.c.b16 %v1041, %v1037
  %v1330 = vpack.c.b16 %v1042, %v1038
  %v1331 = vpack.c.b16 %v1043, %v1039
  %v1332 = vpack.c.b16 %v1048, %v1044
  %v1333 = vpack.c.b16 %v1049, %v1045
  %v1334 = vpack.c.b16 %v1050, %v1046
  %v1335 = vpack.c.b16 %v1051, %v1047
  %v1336 = vpack.c.b16 %v1056, %v1052
  %v1337 = vpack.c.b16 %v1057, %v1053
  %v1338 = vpack.c.b16 %v1058, %v1054
  %v1339 = vpack.c.b16 %v1059, %v1055
  %v1340 = vpack.c.b16 %v1064, %v1060
  %v1341 = vpack.c.b16 %v1065, %v1061
  %v1342 = vpack.c.b16 %v1066, %v1062
  %v1343 = vpack.c.b16 %v1067, %v1063
  %v1344 = vpack.c.b16 %v1072, %v1068
  %v1345 = vpack.c.b16 %v1073, %v1069
  %v1346 = vpack.c.b16 %v1074, %v1070
  %v1347 = vpack.c.b16 %v1075, %v1071
  %v1348 = vpack.c.b16 %v1080, %v1076
  %v1349 = vpack.c.b16 %v1081, %v1077
  %v1350 = vpack.c.b16 %v1082, %v1078
  %v1351 = vpack.c.b16 %v1083, %v1079
  %v1352 = vpack.c.b16 %v1088, %v1084
  %v1353 = vpack.c.b16 %v1089, %v1085
  %v1354 = vpack.c.b16 %v1090, %v1086
  %v1355 = vpack.c.b16 %v1091, %v1087
  %v1356 = vpack.c.b16 %v1096, %v1092
  %v1357 = vpack.c.b16 %v1097, %v1093
  %v1358 = vpack.c.b16 %v1098, %v1094
  %v1359 = vpack.c.b16 %v1099, %v1095
  %v1360 = vpack.c.b16 %v1104, %v1100
  %v1361 = vpack.c.b16 %v1105, %v1101
  %v1362 = vpack.c.b16 %v1106, %v1102
  %v1363 = vpack.c.b16 %v1107, %v1103
  %1620 = vmatprep.subr.bf16.mxu0 %v1109
  %1621 = vmatpush1.bf16.msra.mxu0 %v1108
  %1622 = vmatprep.subr.bf16.mxu0 %v1113
  %1623 = vmatpush1.bf16.msra.mxu0 %v1112
  %1624 = vmatprep.subr.bf16.mxu0 %v1117
  %1625 = vmatpush1.bf16.msra.mxu0 %v1116
  %1626 = vmatprep.subr.bf16.mxu0 %v1121
  %1627 = vmatpush1.bf16.msra.mxu0 %v1120
  %1628 = vmatprep.subr.bf16.mxu0 %v1125
  %1629 = vmatpush1.bf16.msra.mxu0 %v1124
  %1630 = vmatprep.subr.bf16.mxu0 %v1129
  %1631 = vmatpush1.bf16.msra.mxu0 %v1128
  %1632 = vmatprep.subr.bf16.mxu0 %v1133
  %1633 = vmatpush1.bf16.msra.mxu0 %v1132
  %1634 = vmatprep.subr.bf16.mxu0 %v1137
  %1635 = vmatpush1.bf16.msra.mxu0 %v1136
  %1636 = vmatprep.subr.bf16.mxu0 %v1141
  %1637 = vmatpush1.bf16.msra.mxu0 %v1140
  %1638 = vmatprep.subr.bf16.mxu0 %v1145
  %1639 = vmatpush1.bf16.msra.mxu0 %v1144
  %1640 = vmatprep.subr.bf16.mxu0 %v1149
  %1641 = vmatpush1.bf16.msra.mxu0 %v1148
  %1642 = vmatprep.subr.bf16.mxu0 %v1153
  %1643 = vmatpush1.bf16.msra.mxu0 %v1152
  %1644 = vmatprep.subr.bf16.mxu0 %v1157
  %1645 = vmatpush1.bf16.msra.mxu0 %v1156
  %1646 = vmatprep.subr.bf16.mxu0 %v1161
  %1647 = vmatpush1.bf16.msra.mxu0 %v1160
  %1648 = vmatprep.subr.bf16.mxu0 %v1165
  %1649 = vmatpush1.bf16.msra.mxu0 %v1164
  %1650 = vmatprep.subr.bf16.mxu0 %v1169
  %1651 = vmatpush1.bf16.msra.mxu0 %v1168
  %1652 = vmatprep.mubr.bf16.mxu0 %v325
  %1653 = vmatmul.mubr.bf16.gmra.mrb[0].mxu0 %v324
  %v1654 = vpop.f32.mrb[0].mxu0
  %v1655 = vadd.f32 %v283, %v1654
  %v1656 = vpop.f32.mrb[0].mxu0
  %v1657 = vadd.f32 %v287, %v1656
  %v1658 = vpop.f32.mrb[0].mxu0
  %v1659 = vadd.f32 %v283, %v1658
  %v1660 = vpop.f32.mrb[0].mxu0
  %v1661 = vadd.f32 %v287, %v1660
  %1662 = vdwg.mxu0
  %1663 = vmatprep.subr.bf16.mxu0 %v1173
  %1664 = vmatpush1.bf16.msra.mxu0 %v1172
  %1665 = vmatprep.subr.bf16.mxu0 %v1177
  %1666 = vmatpush1.bf16.msra.mxu0 %v1176
  %1667 = vmatprep.subr.bf16.mxu0 %v1181
  %1668 = vmatpush1.bf16.msra.mxu0 %v1180
  %1669 = vmatprep.subr.bf16.mxu0 %v1185
  %1670 = vmatpush1.bf16.msra.mxu0 %v1184
  %1671 = vmatprep.subr.bf16.mxu0 %v1189
  %1672 = vmatpush1.bf16.msra.mxu0 %v1188
  %1673 = vmatprep.subr.bf16.mxu0 %v1193
  %1674 = vmatpush1.bf16.msra.mxu0 %v1192
  %1675 = vmatprep.subr.bf16.mxu0 %v1197
  %1676 = vmatpush1.bf16.msra.mxu0 %v1196
  %1677 = vmatprep.subr.bf16.mxu0 %v1201
  %1678 = vmatpush1.bf16.msra.mxu0 %v1200
  %1679 = vmatprep.subr.bf16.mxu0 %v1205
  %1680 = vmatpush1.bf16.msra.mxu0 %v1204
  %1681 = vmatprep.subr.bf16.mxu0 %v1209
  %1682 = vmatpush1.bf16.msra.mxu0 %v1208
  %1683 = vmatprep.subr.bf16.mxu0 %v1213
  %1684 = vmatpush1.bf16.msra.mxu0 %v1212
  %1685 = vmatprep.subr.bf16.mxu0 %v1217
  %1686 = vmatpush1.bf16.msra.mxu0 %v1216
  %1687 = vmatprep.subr.bf16.mxu0 %v1221
  %1688 = vmatpush1.bf16.msra.mxu0 %v1220
  %1689 = vmatprep.subr.bf16.mxu0 %v1225
  %1690 = vmatpush1.bf16.msra.mxu0 %v1224
  %1691 = vmatprep.subr.bf16.mxu0 %v1229
  %1692 = vmatpush1.bf16.msra.mxu0 %v1228
  %1693 = vmatprep.subr.bf16.mxu0 %v1233
  %1694 = vmatpush1.bf16.msra.mxu0 %v1232
  %1695 = vmatprep.mubr.bf16.mxu0 %v327
  %1696 = vmatmul.mubr.bf16.gmra.mrb[0].mxu0 %v326
  %v1697 = vpop.f32.mrb[0].mxu0
  %v1698 = vadd.f32 %v1655, %v1697
  %v1699 = vpop.f32.mrb[0].mxu0
  %v1700 = vadd.f32 %v1657, %v1699
  %v1701 = vpop.f32.mrb[0].mxu0
  %v1702 = vadd.f32 %v1659, %v1701
  %v1703 = vpop.f32.mrb[0].mxu0
  %v1704 = vadd.f32 %v1661, %v1703
  %1705 = vdwg.mxu0
  %1706 = vmatprep.subr.bf16.mxu0 %v1237
  %1707 = vmatpush1.bf16.msra.mxu0 %v1236
  %1708 = vmatprep.subr.bf16.mxu0 %v1241
  %1709 = vmatpush1.bf16.msra.mxu0 %v1240
  %1710 = vmatprep.subr.bf16.mxu0 %v1245
  %1711 = vmatpush1.bf16.msra.mxu0 %v1244
  %1712 = vmatprep.subr.bf16.mxu0 %v1249
  %1713 = vmatpush1.bf16.msra.mxu0 %v1248
  %1714 = vmatprep.subr.bf16.mxu0 %v1253
  %1715 = vmatpush1.bf16.msra.mxu0 %v1252
  %1716 = vmatprep.subr.bf16.mxu0 %v1257
  %1717 = vmatpush1.bf16.msra.mxu0 %v1256
  %1718 = vmatprep.subr.bf16.mxu0 %v1261
  %1719 = vmatpush1.bf16.msra.mxu0 %v1260
  %1720 = vmatprep.subr.bf16.mxu0 %v1265
  %1721 = vmatpush1.bf16.msra.mxu0 %v1264
  %1722 = vmatprep.subr.bf16.mxu0 %v1269
  %1723 = vmatpush1.bf16.msra.mxu0 %v1268
  %1724 = vmatprep.subr.bf16.mxu0 %v1273
  %1725 = vmatpush1.bf16.msra.mxu0 %v1272
  %1726 = vmatprep.subr.bf16.mxu0 %v1277
  %1727 = vmatpush1.bf16.msra.mxu0 %v1276
  %1728 = vmatprep.subr.bf16.mxu0 %v1281
  %1729 = vmatpush1.bf16.msra.mxu0 %v1280
  %1730 = vmatprep.subr.bf16.mxu0 %v1285
  %1731 = vmatpush1.bf16.msra.mxu0 %v1284
  %1732 = vmatprep.subr.bf16.mxu0 %v1289
  %1733 = vmatpush1.bf16.msra.mxu0 %v1288
  %1734 = vmatprep.subr.bf16.mxu0 %v1293
  %1735 = vmatpush1.bf16.msra.mxu0 %v1292
  %1736 = vmatprep.subr.bf16.mxu0 %v1297
  %1737 = vmatpush1.bf16.msra.mxu0 %v1296
  %1738 = vmatprep.mubr.bf16.mxu0 %v329
  %1739 = vmatmul.mubr.bf16.gmra.mrb[0].mxu0 %v328
  %v1740 = vpop.f32.mrb[0].mxu0
  %v1741 = vadd.f32 %v1698, %v1740
  %v1742 = vpop.f32.mrb[0].mxu0
  %v1743 = vadd.f32 %v1700, %v1742
  %v1744 = vpop.f32.mrb[0].mxu0
  %v1745 = vadd.f32 %v1702, %v1744
  %v1746 = vpop.f32.mrb[0].mxu0
  %v1747 = vadd.f32 %v1704, %v1746
  %1748 = vdwg.mxu0
  %1749 = vmatprep.subr.bf16.mxu0 %v1301
  %1750 = vmatpush1.bf16.msra.mxu0 %v1300
  %1751 = vmatprep.subr.bf16.mxu0 %v1305
  %1752 = vmatpush1.bf16.msra.mxu0 %v1304
  %1753 = vmatprep.subr.bf16.mxu0 %v1309
  %1754 = vmatpush1.bf16.msra.mxu0 %v1308
  %1755 = vmatprep.subr.bf16.mxu0 %v1313
  %1756 = vmatpush1.bf16.msra.mxu0 %v1312
  %1757 = vmatprep.subr.bf16.mxu0 %v1317
  %1758 = vmatpush1.bf16.msra.mxu0 %v1316
  %1759 = vmatprep.subr.bf16.mxu0 %v1321
  %1760 = vmatpush1.bf16.msra.mxu0 %v1320
  %1761 = vmatprep.subr.bf16.mxu0 %v1325
  %1762 = vmatpush1.bf16.msra.mxu0 %v1324
  %1763 = vmatprep.subr.bf16.mxu0 %v1329
  %1764 = vmatpush1.bf16.msra.mxu0 %v1328
  %1765 = vmatprep.subr.bf16.mxu0 %v1333
  %1766 = vmatpush1.bf16.msra.mxu0 %v1332
  %1767 = vmatprep.subr.bf16.mxu0 %v1337
  %1768 = vmatpush1.bf16.msra.mxu0 %v1336
  %1769 = vmatprep.subr.bf16.mxu0 %v1341
  %1770 = vmatpush1.bf16.msra.mxu0 %v1340
  %1771 = vmatprep.subr.bf16.mxu0 %v1345
  %1772 = vmatpush1.bf16.msra.mxu0 %v1344
  %1773 = vmatprep.subr.bf16.mxu0 %v1349
  %1774 = vmatpush1.bf16.msra.mxu0 %v1348
  %1775 = vmatprep.subr.bf16.mxu0 %v1353
  %1776 = vmatpush1.bf16.msra.mxu0 %v1352
  %1777 = vmatprep.subr.bf16.mxu0 %v1357
  %1778 = vmatpush1.bf16.msra.mxu0 %v1356
  %1779 = vmatprep.subr.bf16.mxu0 %v1361
  %1780 = vmatpush1.bf16.msra.mxu0 %v1360
  %1781 = vmatprep.mubr.bf16.mxu0 %v331
  %1782 = vmatmul.mubr.bf16.gmra.mrb[0].mxu0 %v330
  %v1783 = vpop.f32.mrb[0].mxu0
  %v1784 = vadd.f32 %v1741, %v1783
  %v1785 = vpop.f32.mrb[0].mxu0
  %v1786 = vadd.f32 %v1743, %v1785
  %v1787 = vpop.f32.mrb[0].mxu0
  %v1788 = vadd.f32 %v1745, %v1787
  %v1789 = vpop.f32.mrb[0].mxu0
  %v1790 = vadd.f32 %v1747, %v1789
  %1791 = vdwg.mxu0
  %1792 = vmatprep.subr.bf16.mxu0 %v1111
  %1793 = vmatpush1.bf16.msra.mxu0 %v1110
  %1794 = vmatprep.subr.bf16.mxu0 %v1115
  %1795 = vmatpush1.bf16.msra.mxu0 %v1114
  %1796 = vmatprep.subr.bf16.mxu0 %v1119
  %1797 = vmatpush1.bf16.msra.mxu0 %v1118
  %1798 = vmatprep.subr.bf16.mxu0 %v1123
  %1799 = vmatpush1.bf16.msra.mxu0 %v1122
  %1800 = vmatprep.subr.bf16.mxu0 %v1127
  %1801 = vmatpush1.bf16.msra.mxu0 %v1126
  %1802 = vmatprep.subr.bf16.mxu0 %v1131
  %1803 = vmatpush1.bf16.msra.mxu0 %v1130
  %1804 = vmatprep.subr.bf16.mxu0 %v1135
  %1805 = vmatpush1.bf16.msra.mxu0 %v1134
  %1806 = vmatprep.subr.bf16.mxu0 %v1139
  %1807 = vmatpush1.bf16.msra.mxu0 %v1138
  %1808 = vmatprep.subr.bf16.mxu0 %v1143
  %1809 = vmatpush1.bf16.msra.mxu0 %v1142
  %1810 = vmatprep.subr.bf16.mxu0 %v1147
  %1811 = vmatpush1.bf16.msra.mxu0 %v1146
  %1812 = vmatprep.subr.bf16.mxu0 %v1151
  %1813 = vmatpush1.bf16.msra.mxu0 %v1150
  %1814 = vmatprep.subr.bf16.mxu0 %v1155
  %1815 = vmatpush1.bf16.msra.mxu0 %v1154
  %1816 = vmatprep.subr.bf16.mxu0 %v1159
  %1817 = vmatpush1.bf16.msra.mxu0 %v1158
  %1818 = vmatprep.subr.bf16.mxu0 %v1163
  %1819 = vmatpush1.bf16.msra.mxu0 %v1162
  %1820 = vmatprep.subr.bf16.mxu0 %v1167
  %1821 = vmatpush1.bf16.msra.mxu0 %v1166
  %1822 = vmatprep.subr.bf16.mxu0 %v1171
  %1823 = vmatpush1.bf16.msra.mxu0 %v1170
  %1824 = vmatprep.mubr.bf16.mxu0 %v325
  %1825 = vmatmul.mubr.bf16.gmra.mrb[0].mxu0 %v324
  %v1826 = vpop.f32.mrb[0].mxu0
  %v1827 = vadd.f32 %v291, %v1826
  %v1828 = vpop.f32.mrb[0].mxu0
  %v1829 = vadd.f32 %v295, %v1828
  %v1830 = vpop.f32.mrb[0].mxu0
  %v1831 = vadd.f32 %v291, %v1830
  %v1832 = vpop.f32.mrb[0].mxu0
  %v1833 = vadd.f32 %v295, %v1832
  %1834 = vdwg.mxu0
  %1835 = vmatprep.subr.bf16.mxu0 %v1175
  %1836 = vmatpush1.bf16.msra.mxu0 %v1174
  %1837 = vmatprep.subr.bf16.mxu0 %v1179
  %1838 = vmatpush1.bf16.msra.mxu0 %v1178
  %1839 = vmatprep.subr.bf16.mxu0 %v1183
  %1840 = vmatpush1.bf16.msra.mxu0 %v1182
  %1841 = vmatprep.subr.bf16.mxu0 %v1187
  %1842 = vmatpush1.bf16.msra.mxu0 %v1186
  %1843 = vmatprep.subr.bf16.mxu0 %v1191
  %1844 = vmatpush1.bf16.msra.mxu0 %v1190
  %1845 = vmatprep.subr.bf16.mxu0 %v1195
  %1846 = vmatpush1.bf16.msra.mxu0 %v1194
  %1847 = vmatprep.subr.bf16.mxu0 %v1199
  %1848 = vmatpush1.bf16.msra.mxu0 %v1198
  %1849 = vmatprep.subr.bf16.mxu0 %v1203
  %1850 = vmatpush1.bf16.msra.mxu0 %v1202
  %1851 = vmatprep.subr.bf16.mxu0 %v1207
  %1852 = vmatpush1.bf16.msra.mxu0 %v1206
  %1853 = vmatprep.subr.bf16.mxu0 %v1211
  %1854 = vmatpush1.bf16.msra.mxu0 %v1210
  %1855 = vmatprep.subr.bf16.mxu0 %v1215
  %1856 = vmatpush1.bf16.msra.mxu0 %v1214
  %1857 = vmatprep.subr.bf16.mxu0 %v1219
  %1858 = vmatpush1.bf16.msra.mxu0 %v1218
  %1859 = vmatprep.subr.bf16.mxu0 %v1223
  %1860 = vmatpush1.bf16.msra.mxu0 %v1222
  %1861 = vmatprep.subr.bf16.mxu0 %v1227
  %1862 = vmatpush1.bf16.msra.mxu0 %v1226
  %1863 = vmatprep.subr.bf16.mxu0 %v1231
  %1864 = vmatpush1.bf16.msra.mxu0 %v1230
  %1865 = vmatprep.subr.bf16.mxu0 %v1235
  %1866 = vmatpush1.bf16.msra.mxu0 %v1234
  %1867 = vmatprep.mubr.bf16.mxu0 %v327
  %1868 = vmatmul.mubr.bf16.gmra.mrb[0].mxu0 %v326
  %v1869 = vpop.f32.mrb[0].mxu0
  %v1870 = vadd.f32 %v1827, %v1869
  %v1871 = vpop.f32.mrb[0].mxu0
  %v1872 = vadd.f32 %v1829, %v1871
  %v1873 = vpop.f32.mrb[0].mxu0
  %v1874 = vadd.f32 %v1831, %v1873
  %v1875 = vpop.f32.mrb[0].mxu0
  %v1876 = vadd.f32 %v1833, %v1875
  %1877 = vdwg.mxu0
  %1878 = vmatprep.subr.bf16.mxu0 %v1239
  %1879 = vmatpush1.bf16.msra.mxu0 %v1238
  %1880 = vmatprep.subr.bf16.mxu0 %v1243
  %1881 = vmatpush1.bf16.msra.mxu0 %v1242
  %1882 = vmatprep.subr.bf16.mxu0 %v1247
  %1883 = vmatpush1.bf16.msra.mxu0 %v1246
  %1884 = vmatprep.subr.bf16.mxu0 %v1251
  %1885 = vmatpush1.bf16.msra.mxu0 %v1250
  %1886 = vmatprep.subr.bf16.mxu0 %v1255
  %1887 = vmatpush1.bf16.msra.mxu0 %v1254
  %1888 = vmatprep.subr.bf16.mxu0 %v1259
  %1889 = vmatpush1.bf16.msra.mxu0 %v1258
  %1890 = vmatprep.subr.bf16.mxu0 %v1263
  %1891 = vmatpush1.bf16.msra.mxu0 %v1262
  %1892 = vmatprep.subr.bf16.mxu0 %v1267
  %1893 = vmatpush1.bf16.msra.mxu0 %v1266
  %1894 = vmatprep.subr.bf16.mxu0 %v1271
  %1895 = vmatpush1.bf16.msra.mxu0 %v1270
  %1896 = vmatprep.subr.bf16.mxu0 %v1275
  %1897 = vmatpush1.bf16.msra.mxu0 %v1274
  %1898 = vmatprep.subr.bf16.mxu0 %v1279
  %1899 = vmatpush1.bf16.msra.mxu0 %v1278
  %1900 = vmatprep.subr.bf16.mxu0 %v1283
  %1901 = vmatpush1.bf16.msra.mxu0 %v1282
  %1902 = vmatprep.subr.bf16.mxu0 %v1287
  %1903 = vmatpush1.bf16.msra.mxu0 %v1286
  %1904 = vmatprep.subr.bf16.mxu0 %v1291
  %1905 = vmatpush1.bf16.msra.mxu0 %v1290
  %1906 = vmatprep.subr.bf16.mxu0 %v1295
  %1907 = vmatpush1.bf16.msra.mxu0 %v1294
  %1908 = vmatprep.subr.bf16.mxu0 %v1299
  %1909 = vmatpush1.bf16.msra.mxu0 %v1298
  %1910 = vmatprep.mubr.bf16.mxu0 %v329
  %1911 = vmatmul.mubr.bf16.gmra.mrb[0].mxu0 %v328
  %v1912 = vpop.f32.mrb[0].mxu0
  %v1913 = vadd.f32 %v1870, %v1912
  %v1914 = vpop.f32.mrb[0].mxu0
  %v1915 = vadd.f32 %v1872, %v1914
  %v1916 = vpop.f32.mrb[0].mxu0
  %v1917 = vadd.f32 %v1874, %v1916
  %v1918 = vpop.f32.mrb[0].mxu0
  %v1919 = vadd.f32 %v1876, %v1918
  %1920 = vdwg.mxu0
  %1921 = vmatprep.subr.bf16.mxu0 %v1303
  %1922 = vmatpush1.bf16.msra.mxu0 %v1302
  %1923 = vmatprep.subr.bf16.mxu0 %v1307
  %1924 = vmatpush1.bf16.msra.mxu0 %v1306
  %1925 = vmatprep.subr.bf16.mxu0 %v1311
  %1926 = vmatpush1.bf16.msra.mxu0 %v1310
  %1927 = vmatprep.subr.bf16.mxu0 %v1315
  %1928 = vmatpush1.bf16.msra.mxu0 %v1314
  %1929 = vmatprep.subr.bf16.mxu0 %v1319
  %1930 = vmatpush1.bf16.msra.mxu0 %v1318
  %1931 = vmatprep.subr.bf16.mxu0 %v1323
  %1932 = vmatpush1.bf16.msra.mxu0 %v1322
  %1933 = vmatprep.subr.bf16.mxu0 %v1327
  %1934 = vmatpush1.bf16.msra.mxu0 %v1326
  %1935 = vmatprep.subr.bf16.mxu0 %v1331
  %1936 = vmatpush1.bf16.msra.mxu0 %v1330
  %1937 = vmatprep.subr.bf16.mxu0 %v1335
  %1938 = vmatpush1.bf16.msra.mxu0 %v1334
  %1939 = vmatprep.subr.bf16.mxu0 %v1339
  %1940 = vmatpush1.bf16.msra.mxu0 %v1338
  %1941 = vmatprep.subr.bf16.mxu0 %v1343
  %1942 = vmatpush1.bf16.msra.mxu0 %v1342
  %1943 = vmatprep.subr.bf16.mxu0 %v1347
  %1944 = vmatpush1.bf16.msra.mxu0 %v1346
  %1945 = vmatprep.subr.bf16.mxu0 %v1351
  %1946 = vmatpush1.bf16.msra.mxu0 %v1350
  %1947 = vmatprep.subr.bf16.mxu0 %v1355
  %1948 = vmatpush1.bf16.msra.mxu0 %v1354
  %1949 = vmatprep.subr.bf16.mxu0 %v1359
  %1950 = vmatpush1.bf16.msra.mxu0 %v1358
  %1951 = vmatprep.subr.bf16.mxu0 %v1363
  %1952 = vmatpush1.bf16.msra.mxu0 %v1362
  %1953 = vmatprep.mubr.bf16.mxu0 %v331
  %1954 = vmatmul.mubr.bf16.gmra.mrb[0].mxu0 %v330
  %v1955 = vpop.f32.mrb[0].mxu0
  %v1956 = vadd.f32 %v1913, %v1955
  %v1957 = vpop.f32.mrb[0].mxu0
  %v1958 = vadd.f32 %v1915, %v1957
  %v1959 = vpop.f32.mrb[0].mxu0
  %v1960 = vadd.f32 %v1917, %v1959
  %v1961 = vpop.f32.mrb[0].mxu0
  %v1962 = vadd.f32 %v1919, %v1961
  %1963 = vdwg.mxu0
  %v1964 = vmax.f32 %v1784, 0.0
  %v1965 = vmax.f32 %v1786, 0.0
  %v1966 = vmax.f32 %v1956, 0.0
  %v1967 = vmax.f32 %v1958, 0.0
  %v1968 = vmax.f32 %v1788, 0.0
  %v1969 = vmax.f32 %v1790, 0.0
  %v1970 = vmax.f32 %v1960, 0.0
  %v1971 = vmax.f32 %v1962, 0.0
  %v1972 = vpack.c.bf16 %v1968, %v1964
  %v1973 = vpack.c.bf16 %v1969, %v1965
  %v1974 = vpack.c.bf16 %v1970, %v1966
  %v1975 = vpack.c.bf16 %v1971, %v1967
  %v1980 = vunpack.c.l.b16 %v1972
  %v1981 = vunpack.c.l.b16 %v1973
  %v1982 = vunpack.c.l.b16 %v1974
  %v1983 = vunpack.c.l.b16 %v1975
  %v1984 = vunpack.c.h.b16 %v1972
  %v1985 = vunpack.c.h.b16 %v1973
  %v1986 = vunpack.c.h.b16 %v1974
  %v1987 = vunpack.c.h.b16 %v1975
  %v1988 = vpack.c.b16 %v1981, %v1980
  %v1989 = vpack.c.b16 %v1983, %v1982
  %v1990 = vpack.c.b16 %v1985, %v1984
  %v1991 = vpack.c.b16 %v1987, %v1986
  %1996 = vst [vmem:[%s3] sm:$0xff] %v1988
  %1997 = vst [vmem:[%s3 + $0x8] sm:$0xff] %v1989
  %1998 = vst [vmem:[%s3 + $0x10] sm:$0xff] %v1990
  %1999 = vst [vmem:[%s3 + $0x18] sm:$0xff] %v1991
  // Predicated region
  $region14: #{_lambda_.15} parent=0 // pred_check
    _
  $region15: #{_lambda_.15} parent=0 // pred_check_branch
    %2001 = sbr.rel (0) target = $region17
  $region16: #{_lambda_.15} parent=0 // pred_region
    _
  $region17: #{_lambda_.15} parent=0 // pred_fallthru
    _
  // Predicated region
  $region18: #{_lambda_.15} parent=0 // pred_check
    _
  $region19: #{_lambda_.15} parent=0 // pred_check_branch
    %2003 = sbr.rel (0) target = $region21
  $region20: #{_lambda_.15} parent=0 // pred_region
    _
  $region21: #{_lambda_.15} parent=0 // pred_fallthru
    _

// kernel: _lambda_.17
$region0: #{_lambda_.17}
  #allocation0 [shape = 'u32[]', space=smem, size = 0x4, offset = 0x4, fixed_abs, tag = 'smem constant byte address 0x4 - core index']
  #allocation1 [shape = 'u32[144,128]{1,0:T(1,128)}', space=vmem, size = 0x12000, scoped, tag = 'internal scratch']
  %s0 = inlined_call_operand.vmem [shape: bf16[32,256], index: 0, kind: input, shape index: {}]
  %s1 = inlined_call_operand.vmem [shape: bf16[256,128], index: 1, kind: input, shape index: {}]
  %s2 = inlined_call_operand.vmem [shape: f32[1,128], index: 2, kind: input, shape index: {}]
  %s3 = inlined_call_operand.vmem [shape: bf16[32,128], index: 3, kind: output, shape index: {}]
  %s4 = sld [smem:[#allocation0]]
  $region22: #{_lambda_.17} parent=0
    _
  %s6 = ssub.s32 1, %s4
  %s7 = scalar_select 0, %s6, %s4
  // Predicated region
  $region2: #{_lambda_.17} parent=0 // pred_check
    _
  $region3: #{_lambda_.17} parent=0 // pred_check_branch
    %9 = sbr.rel (0) target = $region5
  $region4: #{_lambda_.17} parent=0 // pred_region
    _
  $region5: #{_lambda_.17} parent=0 // pred_fallthru
    _
  // Predicated region
  $region6: #{_lambda_.17} parent=0 // pred_check
    _
  $region7: #{_lambda_.17} parent=0 // pred_check_branch
    %11 = sbr.rel (0) target = $region9
  $region8: #{_lambda_.17} parent=0 // pred_region
    _
  $region9: #{_lambda_.17} parent=0 // pred_fallthru
    _
  // Predicated region
  $region10: #{_lambda_.17} parent=0 // pred_check
    _
  $region11: #{_lambda_.17} parent=0 // pred_check_branch
    %13 = sbr.rel (0) target = $region13
  $region12: #{_lambda_.17} parent=0 // pred_region
    _
  $region13: #{_lambda_.17} parent=0 // pred_fallthru
    _
  %v15 = vld [vmem:[%s0] sm:$0xff]
  %v16 = vld [vmem:[%s0 + $0x8] sm:$0xff]
  %v17 = vld [vmem:[%s0 + $0x10] sm:$0xff]
  %v18 = vld [vmem:[%s0 + $0x18] sm:$0xff]
  %v19 = vld [vmem:[%s1] sm:$0xf]
  %v20 = vld [vmem:[%s1 + $0x4] sm:$0xf]
  %v21 = vld [vmem:[%s1 + $0x8] sm:$0xf]
  %v22 = vld [vmem:[%s1 + $0xc] sm:$0xf]
  %v23 = vld [vmem:[%s1 + $0x10] sm:$0xf]
  %v24 = vld [vmem:[%s1 + $0x14] sm:$0xf]
  %v25 = vld [vmem:[%s1 + $0x18] sm:$0xf]
  %v26 = vld [vmem:[%s1 + $0x1c] sm:$0xf]
  %v27 = vld [vmem:[%s1 + $0x20] sm:$0xf]
  %v28 = vld [vmem:[%s1 + $0x24] sm:$0xf]
  %v29 = vld [vmem:[%s1 + $0x28] sm:$0xf]
  %v30 = vld [vmem:[%s1 + $0x2c] sm:$0xf]
  %v31 = vld [vmem:[%s1 + $0x30] sm:$0xf]
  %v32 = vld [vmem:[%s1 + $0x34] sm:$0xf]
  %v33 = vld [vmem:[%s1 + $0x38] sm:$0xf]
  %v34 = vld [vmem:[%s1 + $0x3c] sm:$0xf]
  %v35 = vld [vmem:[%s1 + $0x40] sm:$0xf]
  %v36 = vld [vmem:[%s1 + $0x44] sm:$0xf]
  %v37 = vld [vmem:[%s1 + $0x48] sm:$0xf]
  %v38 = vld [vmem:[%s1 + $0x4c] sm:$0xf]
  %v39 = vld [vmem:[%s1 + $0x50] sm:$0xf]
  %v40 = vld [vmem:[%s1 + $0x54] sm:$0xf]
  %v41 = vld [vmem:[%s1 + $0x58] sm:$0xf]
  %v42 = vld [vmem:[%s1 + $0x5c] sm:$0xf]
  %v43 = vld [vmem:[%s1 + $0x60] sm:$0xf]
  %v44 = vld [vmem:[%s1 + $0x64] sm:$0xf]
  %v45 = vld [vmem:[%s1 + $0x68] sm:$0xf]
  %v46 = vld [vmem:[%s1 + $0x6c] sm:$0xf]
  %v47 = vld [vmem:[%s1 + $0x70] sm:$0xf]
  %v48 = vld [vmem:[%s1 + $0x74] sm:$0xf]
  %v49 = vld [vmem:[%s1 + $0x78] sm:$0xf]
  %v50 = vld [vmem:[%s1 + $0x7c] sm:$0xf]
  %v51 = vld [vmem:[%s2] sm:$0x1]
  %v53 = vlaneseq
  %v54 = vshrl.u32 %v53, 7
  %v55 = vsub.s32 0, %v54
  %v56 = vrot.slane %v51, %v55
  %v62 = vunpack.c.l.b16 %v15
  %v63 = vunpack.c.h.b16 %v15
  %v64 = vunpack.c.l.b16 %v16
  %v65 = vunpack.c.h.b16 %v16
  %v66 = vunpack.c.l.b16 %v17
  %v67 = vunpack.c.h.b16 %v17
  %v68 = vunpack.c.l.b16 %v18
  %v69 = vunpack.c.h.b16 %v18
  %v70 = vpack.c.b16 %v64, %v62
  %v71 = vpack.c.b16 %v65, %v63
  %v72 = vpack.c.b16 %v68, %v66
  %v73 = vpack.c.b16 %v69, %v67
  %v110 = vunpack.c.l.b16 %v19
  %v111 = vunpack.c.l.b16 %v20
  %v112 = vunpack.c.l.b16 %v21
  %v113 = vunpack.c.l.b16 %v22
  %v114 = vunpack.c.l.b16 %v23
  %v115 = vunpack.c.l.b16 %v24
  %v116 = vunpack.c.l.b16 %v25
  %v117 = vunpack.c.l.b16 %v26
  %v118 = vunpack.c.l.b16 %v27
  %v119 = vunpack.c.l.b16 %v28
  %v120 = vunpack.c.l.b16 %v29
  %v121 = vunpack.c.l.b16 %v30
  %v122 = vunpack.c.l.b16 %v31
  %v123 = vunpack.c.l.b16 %v32
  %v124 = vunpack.c.l.b16 %v33
  %v125 = vunpack.c.l.b16 %v34
  %v126 = vunpack.c.l.b16 %v35
  %v127 = vunpack.c.l.b16 %v36
  %v128 = vunpack.c.l.b16 %v37
  %v129 = vunpack.c.l.b16 %v38
  %v130 = vunpack.c.l.b16 %v39
  %v131 = vunpack.c.l.b16 %v40
  %v132 = vunpack.c.l.b16 %v41
  %v133 = vunpack.c.l.b16 %v42
  %v134 = vunpack.c.l.b16 %v43
  %v135 = vunpack.c.l.b16 %v44
  %v136 = vunpack.c.l.b16 %v45
  %v137 = vunpack.c.l.b16 %v46
  %v138 = vunpack.c.l.b16 %v47
  %v139 = vunpack.c.l.b16 %v48
  %v140 = vunpack.c.l.b16 %v49
  %v141 = vunpack.c.l.b16 %v50
  %v142 = vpack.c.b16 %v111, %v110
  %v143 = vpack.c.b16 %v113, %v112
  %v144 = vpack.c.b16 %v115, %v114
  %v145 = vpack.c.b16 %v117, %v116
  %v146 = vpack.c.b16 %v119, %v118
  %v147 = vpack.c.b16 %v121, %v120
  %v148 = vpack.c.b16 %v123, %v122
  %v149 = vpack.c.b16 %v125, %v124
  %v150 = vpack.c.b16 %v127, %v126
  %v151 = vpack.c.b16 %v129, %v128
  %v152 = vpack.c.b16 %v131, %v130
  %v153 = vpack.c.b16 %v133, %v132
  %v154 = vpack.c.b16 %v135, %v134
  %v155 = vpack.c.b16 %v137, %v136
  %v156 = vpack.c.b16 %v139, %v138
  %v157 = vpack.c.b16 %v141, %v140
  %174 = vmatprep.subr.bf16.mxu0 0
  %175 = vmatpush1.bf16.msra.mxu0 %v142
  %176 = vmatprep.subr.bf16.mxu0 0
  %177 = vmatpush1.bf16.msra.mxu0 %v143
  %178 = vmatprep.subr.bf16.mxu0 0
  %179 = vmatpush1.bf16.msra.mxu0 %v144
  %180 = vmatprep.subr.bf16.mxu0 0
  %181 = vmatpush1.bf16.msra.mxu0 %v145
  %182 = vmatprep.subr.bf16.mxu0 0
  %183 = vmatpush1.bf16.msra.mxu0 %v146
  %184 = vmatprep.subr.bf16.mxu0 0
  %185 = vmatpush1.bf16.msra.mxu0 %v147
  %186 = vmatprep.subr.bf16.mxu0 0
  %187 = vmatpush1.bf16.msra.mxu0 %v148
  %188 = vmatprep.subr.bf16.mxu0 0
  %189 = vmatpush1.bf16.msra.mxu0 %v149
  %190 = vmatprep.subr.bf16.mxu0 0
  %191 = vmatpush1.bf16.msra.mxu0 %v150
  %192 = vmatprep.subr.bf16.mxu0 0
  %193 = vmatpush1.bf16.msra.mxu0 %v151
  %194 = vmatprep.subr.bf16.mxu0 0
  %195 = vmatpush1.bf16.msra.mxu0 %v152
  %196 = vmatprep.subr.bf16.mxu0 0
  %197 = vmatpush1.bf16.msra.mxu0 %v153
  %198 = vmatprep.subr.bf16.mxu0 0
  %199 = vmatpush1.bf16.msra.mxu0 %v154
  %200 = vmatprep.subr.bf16.mxu0 0
  %201 = vmatpush1.bf16.msra.mxu0 %v155
  %202 = vmatprep.subr.bf16.mxu0 0
  %203 = vmatpush1.bf16.msra.mxu0 %v156
  %204 = vmatprep.subr.bf16.mxu0 0
  %205 = vmatpush1.bf16.msra.mxu0 %v157
  %206 = vmatprep.mubr.bf16.mxu0 %v71
  %207 = vmatmul.mubr.bf16.gmra.mrb[0].mxu0 %v70
  %v208 = vpop.f32.mrb[0].mxu0
  %v209 = vadd.f32 %v56, %v208
  %v210 = vpop.f32.mrb[0].mxu0
  %v211 = vpop.f32.mrb[0].mxu0
  %v212 = vadd.f32 %v56, %v211
  %v213 = vpop.f32.mrb[0].mxu0
  %214 = vmatprep.mubr.bf16.mxu0 %v73
  %215 = vmatmul.mubr.bf16.gmra.mrb[0].mxu0 %v72
  %v216 = vpop.f32.mrb[0].mxu0
  %v217 = vadd.f32 %v56, %v216
  %v218 = vpop.f32.mrb[0].mxu0
  %v219 = vpop.f32.mrb[0].mxu0
  %v220 = vadd.f32 %v56, %v219
  %v221 = vpop.f32.mrb[0].mxu0
  %222 = vdwg.mxu0
  %v223 = vmax.f32 %v209, 0.0
  %v224 = vmax.f32 %v212, 0.0
  %v225 = vmax.f32 %v217, 0.0
  %v226 = vmax.f32 %v220, 0.0
  %v227 = vpack.c.bf16 %v224, %v223
  %v228 = vpack.c.bf16 %v226, %v225
  %v231 = vunpack.c.l.b16 %v227
  %v232 = vunpack.c.h.b16 %v227
  %v233 = vunpack.c.l.b16 %v228
  %v234 = vunpack.c.h.b16 %v228
  %v235 = vpack.c.b16 %v231, %v231
  %v236 = vpack.c.b16 %v232, %v232
  %v237 = vpack.c.b16 %v233, %v233
  %v238 = vpack.c.b16 %v234, %v234
  %243 = vst [vmem:[%s3] sm:$0xf] %v235
  %244 = vst [vmem:[%s3 + $0x4] sm:$0xf] %v236
  %245 = vst [vmem:[%s3 + $0x8] sm:$0xf] %v237
  %246 = vst [vmem:[%s3 + $0xc] sm:$0xf] %v238
  // Predicated region
  $region14: #{_lambda_.17} parent=0 // pred_check
    _
  $region15: #{_lambda_.17} parent=0 // pred_check_branch
    %248 = sbr.rel (0) target = $region17
  $region16: #{_lambda_.17} parent=0 // pred_region
    _
  $region17: #{_lambda_.17} parent=0 // pred_fallthru
    _
  // Predicated region
  $region18: #{_lambda_.17} parent=0 // pred_check
    _
  $region19: #{_lambda_.17} parent=0 // pred_check_branch
    %250 = sbr.rel (0) target = $region21
  $region20: #{_lambda_.17} parent=0 // pred_region
    _
  $region21: #{_lambda_.17} parent=0 // pred_fallthru
    _

// kernel: _lambda_.18
$region0: #{_lambda_.18}
  #allocation0 [shape = 'u32[]', space=smem, size = 0x4, offset = 0x4, fixed_abs, tag = 'smem constant byte address 0x4 - core index']
  #allocation1 [shape = 'u32[144,128]{1,0:T(1,128)}', space=vmem, size = 0x12000, scoped, tag = 'internal scratch']
  %s0 = inlined_call_operand.vmem [shape: bf16[128,128], index: 0, kind: input, shape index: {}]
  %s1 = inlined_call_operand.vmem [shape: bf16[128,128], index: 1, kind: input, shape index: {}]
  %s2 = inlined_call_operand.vmem [shape: f32[1,128], index: 2, kind: input, shape index: {}]
  %s3 = inlined_call_operand.vmem [shape: bf16[128,128], index: 3, kind: output, shape index: {}]
  %s4 = sld [smem:[#allocation0]]
  $region22: #{_lambda_.18} parent=0
    _
  %s6 = ssub.s32 1, %s4
  %s7 = scalar_select 0, %s6, %s4
  // Predicated region
  $region2: #{_lambda_.18} parent=0 // pred_check
    _
  $region3: #{_lambda_.18} parent=0 // pred_check_branch
    %9 = sbr.rel (0) target = $region5
  $region4: #{_lambda_.18} parent=0 // pred_region
    _
  $region5: #{_lambda_.18} parent=0 // pred_fallthru
    _
  // Predicated region
  $region6: #{_lambda_.18} parent=0 // pred_check
    _
  $region7: #{_lambda_.18} parent=0 // pred_check_branch
    %11 = sbr.rel (0) target = $region9
  $region8: #{_lambda_.18} parent=0 // pred_region
    _
  $region9: #{_lambda_.18} parent=0 // pred_fallthru
    _
  // Predicated region
  $region10: #{_lambda_.18} parent=0 // pred_check
    _
  $region11: #{_lambda_.18} parent=0 // pred_check_branch
    %13 = sbr.rel (0) target = $region13
  $region12: #{_lambda_.18} parent=0 // pred_region
    _
  $region13: #{_lambda_.18} parent=0 // pred_fallthru
    _
  %v15 = vld [vmem:[%s0] sm:$0xf]
  %v16 = vld [vmem:[%s0 + $0x4] sm:$0xf]
  %v17 = vld [vmem:[%s0 + $0x8] sm:$0xf]
  %v18 = vld [vmem:[%s0 + $0xc] sm:$0xf]
  %v19 = vld [vmem:[%s0 + $0x10] sm:$0xf]
  %v20 = vld [vmem:[%s0 + $0x14] sm:$0xf]
  %v21 = vld [vmem:[%s0 + $0x18] sm:$0xf]
  %v22 = vld [vmem:[%s0 + $0x1c] sm:$0xf]
  %v23 = vld [vmem:[%s0 + $0x20] sm:$0xf]
  %v24 = vld [vmem:[%s0 + $0x24] sm:$0xf]
  %v25 = vld [vmem:[%s0 + $0x28] sm:$0xf]
  %v26 = vld [vmem:[%s0 + $0x2c] sm:$0xf]
  %v27 = vld [vmem:[%s0 + $0x30] sm:$0xf]
  %v28 = vld [vmem:[%s0 + $0x34] sm:$0xf]
  %v29 = vld [vmem:[%s0 + $0x38] sm:$0xf]
  %v30 = vld [vmem:[%s0 + $0x3c] sm:$0xf]
  %v31 = vld [vmem:[%s1] sm:$0xf]
  %v32 = vld [vmem:[%s1 + $0x4] sm:$0xf]
  %v33 = vld [vmem:[%s1 + $0x8] sm:$0xf]
  %v34 = vld [vmem:[%s1 + $0xc] sm:$0xf]
  %v35 = vld [vmem:[%s1 + $0x10] sm:$0xf]
  %v36 = vld [vmem:[%s1 + $0x14] sm:$0xf]
  %v37 = vld [vmem:[%s1 + $0x18] sm:$0xf]
  %v38 = vld [vmem:[%s1 + $0x1c] sm:$0xf]
  %v39 = vld [vmem:[%s1 + $0x20] sm:$0xf]
  %v40 = vld [vmem:[%s1 + $0x24] sm:$0xf]
  %v41 = vld [vmem:[%s1 + $0x28] sm:$0xf]
  %v42 = vld [vmem:[%s1 + $0x2c] sm:$0xf]
  %v43 = vld [vmem:[%s1 + $0x30] sm:$0xf]
  %v44 = vld [vmem:[%s1 + $0x34] sm:$0xf]
  %v45 = vld [vmem:[%s1 + $0x38] sm:$0xf]
  %v46 = vld [vmem:[%s1 + $0x3c] sm:$0xf]
  %v47 = vld [vmem:[%s2] sm:$0x1]
  %v49 = vlaneseq
  %v50 = vshrl.u32 %v49, 7
  %v51 = vsub.s32 0, %v50
  %v52 = vrot.slane %v47, %v51
  %v70 = vunpack.c.l.b16 %v15
  %v71 = vunpack.c.l.b16 %v16
  %v72 = vunpack.c.l.b16 %v17
  %v73 = vunpack.c.l.b16 %v18
  %v74 = vunpack.c.l.b16 %v19
  %v75 = vunpack.c.l.b16 %v20
  %v76 = vunpack.c.l.b16 %v21
  %v77 = vunpack.c.l.b16 %v22
  %v78 = vunpack.c.l.b16 %v23
  %v79 = vunpack.c.l.b16 %v24
  %v80 = vunpack.c.l.b16 %v25
  %v81 = vunpack.c.l.b16 %v26
  %v82 = vunpack.c.l.b16 %v27
  %v83 = vunpack.c.l.b16 %v28
  %v84 = vunpack.c.l.b16 %v29
  %v85 = vunpack.c.l.b16 %v30
  %v86 = vpack.c.b16 %v71, %v70
  %v87 = vpack.c.b16 %v73, %v72
  %v88 = vpack.c.b16 %v75, %v74
  %v89 = vpack.c.b16 %v77, %v76
  %v90 = vpack.c.b16 %v79, %v78
  %v91 = vpack.c.b16 %v81, %v80
  %v92 = vpack.c.b16 %v83, %v82
  %v93 = vpack.c.b16 %v85, %v84
  %v118 = vunpack.c.l.b16 %v31
  %v119 = vunpack.c.l.b16 %v32
  %v120 = vunpack.c.l.b16 %v33
  %v121 = vunpack.c.l.b16 %v34
  %v122 = vunpack.c.l.b16 %v35
  %v123 = vunpack.c.l.b16 %v36
  %v124 = vunpack.c.l.b16 %v37
  %v125 = vunpack.c.l.b16 %v38
  %v126 = vunpack.c.l.b16 %v39
  %v127 = vunpack.c.l.b16 %v40
  %v128 = vunpack.c.l.b16 %v41
  %v129 = vunpack.c.l.b16 %v42
  %v130 = vunpack.c.l.b16 %v43
  %v131 = vunpack.c.l.b16 %v44
  %v132 = vunpack.c.l.b16 %v45
  %v133 = vunpack.c.l.b16 %v46
  %v134 = vpack.c.b16 %v119, %v118
  %v135 = vpack.c.b16 %v121, %v120
  %v136 = vpack.c.b16 %v123, %v122
  %v137 = vpack.c.b16 %v125, %v124
  %v138 = vpack.c.b16 %v127, %v126
  %v139 = vpack.c.b16 %v129, %v128
  %v140 = vpack.c.b16 %v131, %v130
  %v141 = vpack.c.b16 %v133, %v132
  %150 = vmatprep.subr.bf16.mxu0 0
  %151 = vmatpush1.bf16.msra.mxu0 %v134
  %152 = vmatprep.subr.bf16.mxu0 0
  %153 = vmatpush1.bf16.msra.mxu0 %v135
  %154 = vmatprep.subr.bf16.mxu0 0
  %155 = vmatpush1.bf16.msra.mxu0 %v136
  %156 = vmatprep.subr.bf16.mxu0 0
  %157 = vmatpush1.bf16.msra.mxu0 %v137
  %158 = vmatprep.subr.bf16.mxu0 0
  %159 = vmatpush1.bf16.msra.mxu0 %v138
  %160 = vmatprep.subr.bf16.mxu0 0
  %161 = vmatpush1.bf16.msra.mxu0 %v139
  %162 = vmatprep.subr.bf16.mxu0 0
  %163 = vmatpush1.bf16.msra.mxu0 %v140
  %164 = vmatprep.subr.bf16.mxu0 0
  %165 = vmatpush1.bf16.msra.mxu0 %v141
  %166 = vmatprep.subr.bf16.mxu0 0
  %167 = vmatpush1.bf16.msra.mxu0 0
  %168 = vmatprep.subr.bf16.mxu0 0
  %169 = vmatpush1.bf16.msra.mxu0 0
  %170 = vmatprep.subr.bf16.mxu0 0
  %171 = vmatpush1.bf16.msra.mxu0 0
  %172 = vmatprep.subr.bf16.mxu0 0
  %173 = vmatpush1.bf16.msra.mxu0 0
  %174 = vmatprep.subr.bf16.mxu0 0
  %175 = vmatpush1.bf16.msra.mxu0 0
  %176 = vmatprep.subr.bf16.mxu0 0
  %177 = vmatpush1.bf16.msra.mxu0 0
  %178 = vmatprep.subr.bf16.mxu0 0
  %179 = vmatpush1.bf16.msra.mxu0 0
  %180 = vmatprep.subr.bf16.mxu0 0
  %181 = vmatpush1.bf16.msra.mxu0 0
  %182 = vmatprep.mubr.bf16.mxu0 0
  %183 = vmatmul.mubr.bf16.gmra.mrb[0].mxu0 %v86
  %v184 = vpop.f32.mrb[0].mxu0
  %v185 = vadd.f32 %v52, %v184
  %v186 = vpop.f32.mrb[0].mxu0
  %v187 = vpop.f32.mrb[0].mxu0
  %v188 = vadd.f32 %v52, %v187
  %v189 = vpop.f32.mrb[0].mxu0
  %190 = vmatprep.mubr.bf16.mxu0 0
  %191 = vmatmul.mubr.bf16.gmra.mrb[0].mxu0 %v87
  %v192 = vpop.f32.mrb[0].mxu0
  %v193 = vadd.f32 %v52, %v192
  %v194 = vpop.f32.mrb[0].mxu0
  %v195 = vpop.f32.mrb[0].mxu0
  %v196 = vadd.f32 %v52, %v195
  %v197 = vpop.f32.mrb[0].mxu0
  %198 = vmatprep.mubr.bf16.mxu0 0
  %199 = vmatmul.mubr.bf16.gmra.mrb[0].mxu0 %v88
  %v200 = vpop.f32.mrb[0].mxu0
  %v201 = vadd.f32 %v52, %v200
  %v202 = vpop.f32.mrb[0].mxu0
  %v203 = vpop.f32.mrb[0].mxu0
  %v204 = vadd.f32 %v52, %v203
  %v205 = vpop.f32.mrb[0].mxu0
  %206 = vmatprep.mubr.bf16.mxu0 0
  %207 = vmatmul.mubr.bf16.gmra.mrb[0].mxu0 %v89
  %v208 = vpop.f32.mrb[0].mxu0
  %v209 = vadd.f32 %v52, %v208
  %v210 = vpop.f32.mrb[0].mxu0
  %v211 = vpop.f32.mrb[0].mxu0
  %v212 = vadd.f32 %v52, %v211
  %v213 = vpop.f32.mrb[0].mxu0
  %214 = vmatprep.mubr.bf16.mxu0 0
  %215 = vmatmul.mubr.bf16.gmra.mrb[0].mxu0 %v90
  %v216 = vpop.f32.mrb[0].mxu0
  %v217 = vadd.f32 %v52, %v216
  %v218 = vpop.f32.mrb[0].mxu0
  %v219 = vpop.f32.mrb[0].mxu0
  %v220 = vadd.f32 %v52, %v219
  %v221 = vpop.f32.mrb[0].mxu0
  %222 = vmatprep.mubr.bf16.mxu0 0
  %223 = vmatmul.mubr.bf16.gmra.mrb[0].mxu0 %v91
  %v224 = vpop.f32.mrb[0].mxu0
  %v225 = vadd.f32 %v52, %v224
  %v226 = vpop.f32.mrb[0].mxu0
  %v227 = vpop.f32.mrb[0].mxu0
  %v228 = vadd.f32 %v52, %v227
  %v229 = vpop.f32.mrb[0].mxu0
  %230 = vmatprep.mubr.bf16.mxu0 0
  %231 = vmatmul.mubr.bf16.gmra.mrb[0].mxu0 %v92
  %v232 = vpop.f32.mrb[0].mxu0
  %v233 = vadd.f32 %v52, %v232
  %v234 = vpop.f32.mrb[0].mxu0
  %v235 = vpop.f32.mrb[0].mxu0
  %v236 = vadd.f32 %v52, %v235
  %v237 = vpop.f32.mrb[0].mxu0
  %238 = vmatprep.mubr.bf16.mxu0 0
  %239 = vmatmul.mubr.bf16.gmra.mrb[0].mxu0 %v93
  %v240 = vpop.f32.mrb[0].mxu0
  %v241 = vadd.f32 %v52, %v240
  %v242 = vpop.f32.mrb[0].mxu0
  %v243 = vpop.f32.mrb[0].mxu0
  %v244 = vadd.f32 %v52, %v243
  %v245 = vpop.f32.mrb[0].mxu0
  %246 = vdwg.mxu0
  %v247 = vmax.f32 %v185, 0.0
  %v248 = vmax.f32 %v188, 0.0
  %v249 = vmax.f32 %v193, 0.0
  %v250 = vmax.f32 %v196, 0.0
  %v251 = vmax.f32 %v201, 0.0
  %v252 = vmax.f32 %v204, 0.0
  %v253 = vmax.f32 %v209, 0.0
  %v254 = vmax.f32 %v212, 0.0
  %v255 = vmax.f32 %v217, 0.0
  %v256 = vmax.f32 %v220, 0.0
  %v257 = vmax.f32 %v225, 0.0
  %v258 = vmax.f32 %v228, 0.0
  %v259 = vmax.f32 %v233, 0.0
  %v260 = vmax.f32 %v236, 0.0
  %v261 = vmax.f32 %v241, 0.0
  %v262 = vmax.f32 %v244, 0.0
  %v263 = vpack.c.bf16 %v248, %v247
  %v264 = vpack.c.bf16 %v250, %v249
  %v265 = vpack.c.bf16 %v252, %v251
  %v266 = vpack.c.bf16 %v254, %v253
  %v267 = vpack.c.bf16 %v256, %v255
  %v268 = vpack.c.bf16 %v258, %v257
  %v269 = vpack.c.bf16 %v260, %v259
  %v270 = vpack.c.bf16 %v262, %v261
  %v279 = vunpack.c.l.b16 %v263
  %v280 = vunpack.c.h.b16 %v263
  %v281 = vunpack.c.l.b16 %v264
  %v282 = vunpack.c.h.b16 %v264
  %v283 = vunpack.c.l.b16 %v265
  %v284 = vunpack.c.h.b16 %v265
  %v285 = vunpack.c.l.b16 %v266
  %v286 = vunpack.c.h.b16 %v266
  %v287 = vunpack.c.l.b16 %v267
  %v288 = vunpack.c.h.b16 %v267
  %v289 = vunpack.c.l.b16 %v268
  %v290 = vunpack.c.h.b16 %v268
  %v291 = vunpack.c.l.b16 %v269
  %v292 = vunpack.c.h.b16 %v269
  %v293 = vunpack.c.l.b16 %v270
  %v294 = vunpack.c.h.b16 %v270
  %v295 = vpack.c.b16 %v279, %v279
  %v296 = vpack.c.b16 %v280, %v280
  %v297 = vpack.c.b16 %v281, %v281
  %v298 = vpack.c.b16 %v282, %v282
  %v299 = vpack.c.b16 %v283, %v283
  %v300 = vpack.c.b16 %v284, %v284
  %v301 = vpack.c.b16 %v285, %v285
  %v302 = vpack.c.b16 %v286, %v286
  %v303 = vpack.c.b16 %v287, %v287
  %v304 = vpack.c.b16 %v288, %v288
  %v305 = vpack.c.b16 %v289, %v289
  %v306 = vpack.c.b16 %v290, %v290
  %v307 = vpack.c.b16 %v291, %v291
  %v308 = vpack.c.b16 %v292, %v292
  %v309 = vpack.c.b16 %v293, %v293
  %v310 = vpack.c.b16 %v294, %v294
  %327 = vst [vmem:[%s3] sm:$0xf] %v295
  %328 = vst [vmem:[%s3 + $0x4] sm:$0xf] %v296
  %329 = vst [vmem:[%s3 + $0x8] sm:$0xf] %v297
  %330 = vst [vmem:[%s3 + $0xc] sm:$0xf] %v298
  %331 = vst [vmem:[%s3 + $0x10] sm:$0xf] %v299
  %332 = vst [vmem:[%s3 + $0x14] sm:$0xf] %v300
  %333 = vst [vmem:[%s3 + $0x18] sm:$0xf] %v301
  %334 = vst [vmem:[%s3 + $0x1c] sm:$0xf] %v302
  %335 = vst [vmem:[%s3 + $0x20] sm:$0xf] %v303
  %336 = vst [vmem:[%s3 + $0x24] sm:$0xf] %v304
  %337 = vst [vmem:[%s3 + $0x28] sm:$0xf] %v305
  %338 = vst [vmem:[%s3 + $0x2c] sm:$0xf] %v306
  %339 = vst [vmem:[%s3 + $0x30] sm:$0xf] %v307
  %340 = vst [vmem:[%s3 + $0x34] sm:$0xf] %v308
  %341 = vst [vmem:[%s3 + $0x38] sm:$0xf] %v309
  %342 = vst [vmem:[%s3 + $0x3c] sm:$0xf] %v310
  // Predicated region
  $region14: #{_lambda_.18} parent=0 // pred_check
    _
  $region15: #{_lambda_.18} parent=0 // pred_check_branch
    %344 = sbr.rel (0) target = $region17
  $region16: #{_lambda_.18} parent=0 // pred_region
    _
  $region17: #{_lambda_.18} parent=0 // pred_fallthru
    _
  // Predicated region
  $region18: #{_lambda_.18} parent=0 // pred_check
    _
  $region19: #{_lambda_.18} parent=0 // pred_check_branch
    %346 = sbr.rel (0) target = $region21
  $region20: #{_lambda_.18} parent=0 // pred_region
    _
  $region21: #{_lambda_.18} parent=0 // pred_fallthru
    _

// kernel: _lambda_.19
$region0: #{_lambda_.19}
  #allocation0 [shape = 'u32[]', space=smem, size = 0x4, offset = 0x4, fixed_abs, tag = 'smem constant byte address 0x4 - core index']
  #allocation1 [shape = 'u32[144,128]{1,0:T(1,128)}', space=vmem, size = 0x12000, scoped, tag = 'internal scratch']
  %s0 = inlined_call_operand.vmem [shape: bf16[512,64], index: 0, kind: input, shape index: {}]
  %s1 = inlined_call_operand.vmem [shape: bf16[64,128], index: 1, kind: input, shape index: {}]
  %s2 = inlined_call_operand.vmem [shape: f32[1,128], index: 2, kind: input, shape index: {}]
  %s3 = inlined_call_operand.vmem [shape: f32[512,128], index: 3, kind: output, shape index: {}]
  %s4 = sld [smem:[#allocation0]]
  $region22: #{_lambda_.19} parent=0
    _
  %s6 = ssub.s32 1, %s4
  %s7 = scalar_select 0, %s6, %s4
  // Predicated region
  $region2: #{_lambda_.19} parent=0 // pred_check
    _
  $region3: #{_lambda_.19} parent=0 // pred_check_branch
    %9 = sbr.rel (0) target = $region5
  $region4: #{_lambda_.19} parent=0 // pred_region
    _
  $region5: #{_lambda_.19} parent=0 // pred_fallthru
    _
  // Predicated region
  $region6: #{_lambda_.19} parent=0 // pred_check
    _
  $region7: #{_lambda_.19} parent=0 // pred_check_branch
    %11 = sbr.rel (0) target = $region9
  $region8: #{_lambda_.19} parent=0 // pred_region
    _
  $region9: #{_lambda_.19} parent=0 // pred_fallthru
    _
  // Predicated region
  $region10: #{_lambda_.19} parent=0 // pred_check
    _
  $region11: #{_lambda_.19} parent=0 // pred_check_branch
    %13 = sbr.rel (0) target = $region13
  $region12: #{_lambda_.19} parent=0 // pred_region
    _
  $region13: #{_lambda_.19} parent=0 // pred_fallthru
    _
  %v15 = vld [vmem:[%s0] sm:$0xf]
  %v16 = vld [vmem:[%s0 + $0x4] sm:$0xf]
  %v17 = vld [vmem:[%s0 + $0x8] sm:$0xf]
  %v18 = vld [vmem:[%s0 + $0xc] sm:$0xf]
  %v19 = vld [vmem:[%s0 + $0x10] sm:$0xf]
  %v20 = vld [vmem:[%s0 + $0x14] sm:$0xf]
  %v21 = vld [vmem:[%s0 + $0x18] sm:$0xf]
  %v22 = vld [vmem:[%s0 + $0x1c] sm:$0xf]
  %v23 = vld [vmem:[%s0 + $0x20] sm:$0xf]
  %v24 = vld [vmem:[%s0 + $0x24] sm:$0xf]
  %v25 = vld [vmem:[%s0 + $0x28] sm:$0xf]
  %v26 = vld [vmem:[%s0 + $0x2c] sm:$0xf]
  %v27 = vld [vmem:[%s0 + $0x30] sm:$0xf]
  %v28 = vld [vmem:[%s0 + $0x34] sm:$0xf]
  %v29 = vld [vmem:[%s0 + $0x38] sm:$0xf]
  %v30 = vld [vmem:[%s0 + $0x3c] sm:$0xf]
  %v31 = vld [vmem:[%s0 + $0x40] sm:$0xf]
  %v32 = vld [vmem:[%s0 + $0x44] sm:$0xf]
  %v33 = vld [vmem:[%s0 + $0x48] sm:$0xf]
  %v34 = vld [vmem:[%s0 + $0x4c] sm:$0xf]
  %v35 = vld [vmem:[%s0 + $0x50] sm:$0xf]
  %v36 = vld [vmem:[%s0 + $0x54] sm:$0xf]
  %v37 = vld [vmem:[%s0 + $0x58] sm:$0xf]
  %v38 = vld [vmem:[%s0 + $0x5c] sm:$0xf]
  %v39 = vld [vmem:[%s0 + $0x60] sm:$0xf]
  %v40 = vld [vmem:[%s0 + $0x64] sm:$0xf]
  %v41 = vld [vmem:[%s0 + $0x68] sm:$0xf]
  %v42 = vld [vmem:[%s0 + $0x6c] sm:$0xf]
  %v43 = vld [vmem:[%s0 + $0x70] sm:$0xf]
  %v44 = vld [vmem:[%s0 + $0x74] sm:$0xf]
  %v45 = vld [vmem:[%s0 + $0x78] sm:$0xf]
  %v46 = vld [vmem:[%s0 + $0x7c] sm:$0xf]
  %v47 = vld [vmem:[%s0 + $0x80] sm:$0xf]
  %v48 = vld [vmem:[%s0 + $0x84] sm:$0xf]
  %v49 = vld [vmem:[%s0 + $0x88] sm:$0xf]
  %v50 = vld [vmem:[%s0 + $0x8c] sm:$0xf]
  %v51 = vld [vmem:[%s0 + $0x90] sm:$0xf]
  %v52 = vld [vmem:[%s0 + $0x94] sm:$0xf]
  %v53 = vld [vmem:[%s0 + $0x98] sm:$0xf]
  %v54 = vld [vmem:[%s0 + $0x9c] sm:$0xf]
  %v55 = vld [vmem:[%s0 + $0xa0] sm:$0xf]
  %v56 = vld [vmem:[%s0 + $0xa4] sm:$0xf]
  %v57 = vld [vmem:[%s0 + $0xa8] sm:$0xf]
  %v58 = vld [vmem:[%s0 + $0xac] sm:$0xf]
  %v59 = vld [vmem:[%s0 + $0xb0] sm:$0xf]
  %v60 = vld [vmem:[%s0 + $0xb4] sm:$0xf]
  %v61 = vld [vmem:[%s0 + $0xb8] sm:$0xf]
  %v62 = vld [vmem:[%s0 + $0xbc] sm:$0xf]
  %v63 = vld [vmem:[%s0 + $0xc0] sm:$0xf]
  %v64 = vld [vmem:[%s0 + $0xc4] sm:$0xf]
  %v65 = vld [vmem:[%s0 + $0xc8] sm:$0xf]
  %v66 = vld [vmem:[%s0 + $0xcc] sm:$0xf]
  %v67 = vld [vmem:[%s0 + $0xd0] sm:$0xf]
  %v68 = vld [vmem:[%s0 + $0xd4] sm:$0xf]
  %v69 = vld [vmem:[%s0 + $0xd8] sm:$0xf]
  %v70 = vld [vmem:[%s0 + $0xdc] sm:$0xf]
  %v71 = vld [vmem:[%s0 + $0xe0] sm:$0xf]
  %v72 = vld [vmem:[%s0 + $0xe4] sm:$0xf]
  %v73 = vld [vmem:[%s0 + $0xe8] sm:$0xf]
  %v74 = vld [vmem:[%s0 + $0xec] sm:$0xf]
  %v75 = vld [vmem:[%s0 + $0xf0] sm:$0xf]
  %v76 = vld [vmem:[%s0 + $0xf4] sm:$0xf]
  %v77 = vld [vmem:[%s0 + $0xf8] sm:$0xf]
  %v78 = vld [vmem:[%s0 + $0xfc] sm:$0xf]
  %v79 = vld [vmem:[%s1] sm:$0xf]
  %v80 = vld [vmem:[%s1 + $0x4] sm:$0xf]
  %v81 = vld [vmem:[%s1 + $0x8] sm:$0xf]
  %v82 = vld [vmem:[%s1 + $0xc] sm:$0xf]
  %v83 = vld [vmem:[%s1 + $0x10] sm:$0xf]
  %v84 = vld [vmem:[%s1 + $0x14] sm:$0xf]
  %v85 = vld [vmem:[%s1 + $0x18] sm:$0xf]
  %v86 = vld [vmem:[%s1 + $0x1c] sm:$0xf]
  %v87 = vld [vmem:[%s2] sm:$0x1]
  %v89 = vlaneseq
  %v90 = vshrl.u32 %v89, 7
  %v91 = vsub.s32 0, %v90
  %v92 = vrot.slane %v87, %v91
  %v158 = vunpack.c.l.b16 %v15
  %v159 = vunpack.c.l.b16 %v16
  %v160 = vunpack.c.l.b16 %v17
  %v161 = vunpack.c.l.b16 %v18
  %v162 = vunpack.c.l.b16 %v19
  %v163 = vunpack.c.l.b16 %v20
  %v164 = vunpack.c.l.b16 %v21
  %v165 = vunpack.c.l.b16 %v22
  %v166 = vunpack.c.l.b16 %v23
  %v167 = vunpack.c.l.b16 %v24
  %v168 = vunpack.c.l.b16 %v25
  %v169 = vunpack.c.l.b16 %v26
  %v170 = vunpack.c.l.b16 %v27
  %v171 = vunpack.c.l.b16 %v28
  %v172 = vunpack.c.l.b16 %v29
  %v173 = vunpack.c.l.b16 %v30
  %v174 = vunpack.c.l.b16 %v31
  %v175 = vunpack.c.l.b16 %v32
  %v176 = vunpack.c.l.b16 %v33
  %v177 = vunpack.c.l.b16 %v34
  %v178 = vunpack.c.l.b16 %v35
  %v179 = vunpack.c.l.b16 %v36
  %v180 = vunpack.c.l.b16 %v37
  %v181 = vunpack.c.l.b16 %v38
  %v182 = vunpack.c.l.b16 %v39
  %v183 = vunpack.c.l.b16 %v40
  %v184 = vunpack.c.l.b16 %v41
  %v185 = vunpack.c.l.b16 %v42
  %v186 = vunpack.c.l.b16 %v43
  %v187 = vunpack.c.l.b16 %v44
  %v188 = vunpack.c.l.b16 %v45
  %v189 = vunpack.c.l.b16 %v46
  %v190 = vunpack.c.l.b16 %v47
  %v191 = vunpack.c.l.b16 %v48
  %v192 = vunpack.c.l.b16 %v49
  %v193 = vunpack.c.l.b16 %v50
  %v194 = vunpack.c.l.b16 %v51
  %v195 = vunpack.c.l.b16 %v52
  %v196 = vunpack.c.l.b16 %v53
  %v197 = vunpack.c.l.b16 %v54
  %v198 = vunpack.c.l.b16 %v55
  %v199 = vunpack.c.l.b16 %v56
  %v200 = vunpack.c.l.b16 %v57
  %v201 = vunpack.c.l.b16 %v58
  %v202 = vunpack.c.l.b16 %v59
  %v203 = vunpack.c.l.b16 %v60
  %v204 = vunpack.c.l.b16 %v61
  %v205 = vunpack.c.l.b16 %v62
  %v206 = vunpack.c.l.b16 %v63
  %v207 = vunpack.c.l.b16 %v64
  %v208 = vunpack.c.l.b16 %v65
  %v209 = vunpack.c.l.b16 %v66
  %v210 = vunpack.c.l.b16 %v67
  %v211 = vunpack.c.l.b16 %v68
  %v212 = vunpack.c.l.b16 %v69
  %v213 = vunpack.c.l.b16 %v70
  %v214 = vunpack.c.l.b16 %v71
  %v215 = vunpack.c.l.b16 %v72
  %v216 = vunpack.c.l.b16 %v73
  %v217 = vunpack.c.l.b16 %v74
  %v218 = vunpack.c.l.b16 %v75
  %v219 = vunpack.c.l.b16 %v76
  %v220 = vunpack.c.l.b16 %v77
  %v221 = vunpack.c.l.b16 %v78
  %v222 = vpack.c.b16 %v159, %v158
  %v223 = vpack.c.b16 %v161, %v160
  %v224 = vpack.c.b16 %v163, %v162
  %v225 = vpack.c.b16 %v165, %v164
  %v226 = vpack.c.b16 %v167, %v166
  %v227 = vpack.c.b16 %v169, %v168
  %v228 = vpack.c.b16 %v171, %v170
  %v229 = vpack.c.b16 %v173, %v172
  %v230 = vpack.c.b16 %v175, %v174
  %v231 = vpack.c.b16 %v177, %v176
  %v232 = vpack.c.b16 %v179, %v178
  %v233 = vpack.c.b16 %v181, %v180
  %v234 = vpack.c.b16 %v183, %v182
  %v235 = vpack.c.b16 %v185, %v184
  %v236 = vpack.c.b16 %v187, %v186
  %v237 = vpack.c.b16 %v189, %v188
  %v238 = vpack.c.b16 %v191, %v190
  %v239 = vpack.c.b16 %v193, %v192
  %v240 = vpack.c.b16 %v195, %v194
  %v241 = vpack.c.b16 %v197, %v196
  %v242 = vpack.c.b16 %v199, %v198
  %v243 = vpack.c.b16 %v201, %v200
  %v244 = vpack.c.b16 %v203, %v202
  %v245 = vpack.c.b16 %v205, %v204
  %v246 = vpack.c.b16 %v207, %v206
  %v247 = vpack.c.b16 %v209, %v208
  %v248 = vpack.c.b16 %v211, %v210
  %v249 = vpack.c.b16 %v213, %v212
  %v250 = vpack.c.b16 %v215, %v214
  %v251 = vpack.c.b16 %v217, %v216
  %v252 = vpack.c.b16 %v219, %v218
  %v253 = vpack.c.b16 %v221, %v220
  %v262 = vunpack.c.l.b16 %v79
  %v263 = vunpack.c.l.b16 %v80
  %v264 = vunpack.c.l.b16 %v81
  %v265 = vunpack.c.l.b16 %v82
  %v266 = vunpack.c.l.b16 %v83
  %v267 = vunpack.c.l.b16 %v84
  %v268 = vunpack.c.l.b16 %v85
  %v269 = vunpack.c.l.b16 %v86
  %v270 = vpack.c.b16 %v263, %v262
  %v271 = vpack.c.b16 %v265, %v264
  %v272 = vpack.c.b16 %v267, %v266
  %v273 = vpack.c.b16 %v269, %v268
  %vm278 = vcmask 523264
  %v280 = vsel %vm278, %v222, 0
  %v283 = vsel %vm278, %v223, 0
  %v286 = vsel %vm278, %v224, 0
  %v289 = vsel %vm278, %v225, 0
  %v292 = vsel %vm278, %v226, 0
  %v295 = vsel %vm278, %v227, 0
  %v298 = vsel %vm278, %v228, 0
  %v301 = vsel %vm278, %v229, 0
  %v304 = vsel %vm278, %v230, 0
  %v307 = vsel %vm278, %v231, 0
  %v310 = vsel %vm278, %v232, 0
  %v313 = vsel %vm278, %v233, 0
  %v316 = vsel %vm278, %v234, 0
  %v319 = vsel %vm278, %v235, 0
  %v322 = vsel %vm278, %v236, 0
  %v325 = vsel %vm278, %v237, 0
  %v328 = vsel %vm278, %v238, 0
  %v331 = vsel %vm278, %v239, 0
  %v334 = vsel %vm278, %v240, 0
  %v337 = vsel %vm278, %v241, 0
  %v340 = vsel %vm278, %v242, 0
  %v343 = vsel %vm278, %v243, 0
  %v346 = vsel %vm278, %v244, 0
  %v349 = vsel %vm278, %v245, 0
  %v352 = vsel %vm278, %v246, 0
  %v355 = vsel %vm278, %v247, 0
  %v358 = vsel %vm278, %v248, 0
  %v361 = vsel %vm278, %v249, 0
  %v364 = vsel %vm278, %v250, 0
  %v367 = vsel %vm278, %v251, 0
  %v370 = vsel %vm278, %v252, 0
  %v373 = vsel %vm278, %v253, 0
  %375 = vmatprep.subr.bf16.mxu0 0
  %376 = vmatpush1.bf16.msra.mxu0 %v270
  %377 = vmatprep.subr.bf16.mxu0 0
  %378 = vmatpush1.bf16.msra.mxu0 %v271
  %379 = vmatprep.subr.bf16.mxu0 0
  %380 = vmatpush1.bf16.msra.mxu0 %v272
  %381 = vmatprep.subr.bf16.mxu0 0
  %382 = vmatpush1.bf16.msra.mxu0 %v273
  %383 = vmatprep.subr.bf16.mxu0 0
  %384 = vmatpush1.bf16.msra.mxu0 0
  %385 = vmatprep.subr.bf16.mxu0 0
  %386 = vmatpush1.bf16.msra.mxu0 0
  %387 = vmatprep.subr.bf16.mxu0 0
  %388 = vmatpush1.bf16.msra.mxu0 0
  %389 = vmatprep.subr.bf16.mxu0 0
  %390 = vmatpush1.bf16.msra.mxu0 0
  %391 = vmatprep.subr.bf16.mxu0 0
  %392 = vmatpush1.bf16.msra.mxu0 0
  %393 = vmatprep.subr.bf16.mxu0 0
  %394 = vmatpush1.bf16.msra.mxu0 0
  %395 = vmatprep.subr.bf16.mxu0 0
  %396 = vmatpush1.bf16.msra.mxu0 0
  %397 = vmatprep.subr.bf16.mxu0 0
  %398 = vmatpush1.bf16.msra.mxu0 0
  %399 = vmatprep.subr.bf16.mxu0 0
  %400 = vmatpush1.bf16.msra.mxu0 0
  %401 = vmatprep.subr.bf16.mxu0 0
  %402 = vmatpush1.bf16.msra.mxu0 0
  %403 = vmatprep.subr.bf16.mxu0 0
  %404 = vmatpush1.bf16.msra.mxu0 0
  %405 = vmatprep.subr.bf16.mxu0 0
  %406 = vmatpush1.bf16.msra.mxu0 0
  %407 = vmatprep.mubr.bf16.mxu0 0
  %408 = vmatmul.mubr.bf16.gmra.mrb[0].mxu0 %v280
  %v409 = vpop.f32.mrb[0].mxu0
  %v410 = vadd.f32 %v92, %v409
  %v411 = vpop.f32.mrb[0].mxu0
  %v412 = vpop.f32.mrb[0].mxu0
  %v413 = vadd.f32 %v92, %v412
  %v414 = vpop.f32.mrb[0].mxu0
  %415 = vmatprep.mubr.bf16.mxu0 0
  %416 = vmatmul.mubr.bf16.gmra.mrb[0].mxu0 %v283
  %v417 = vpop.f32.mrb[0].mxu0
  %v418 = vadd.f32 %v92, %v417
  %v419 = vpop.f32.mrb[0].mxu0
  %v420 = vpop.f32.mrb[0].mxu0
  %v421 = vadd.f32 %v92, %v420
  %v422 = vpop.f32.mrb[0].mxu0
  %423 = vmatprep.mubr.bf16.mxu0 0
  %424 = vmatmul.mubr.bf16.gmra.mrb[0].mxu0 %v286
  %v425 = vpop.f32.mrb[0].mxu0
  %v426 = vadd.f32 %v92, %v425
  %v427 = vpop.f32.mrb[0].mxu0
  %v428 = vpop.f32.mrb[0].mxu0
  %v429 = vadd.f32 %v92, %v428
  %v430 = vpop.f32.mrb[0].mxu0
  %431 = vmatprep.mubr.bf16.mxu0 0
  %432 = vmatmul.mubr.bf16.gmra.mrb[0].mxu0 %v289
  %v433 = vpop.f32.mrb[0].mxu0
  %v434 = vadd.f32 %v92, %v433
  %v435 = vpop.f32.mrb[0].mxu0
  %v436 = vpop.f32.mrb[0].mxu0
  %v437 = vadd.f32 %v92, %v436
  %v438 = vpop.f32.mrb[0].mxu0
  %439 = vmatprep.mubr.bf16.mxu0 0
  %440 = vmatmul.mubr.bf16.gmra.mrb[0].mxu0 %v292
  %v441 = vpop.f32.mrb[0].mxu0
  %v442 = vadd.f32 %v92, %v441
  %v443 = vpop.f32.mrb[0].mxu0
  %v444 = vpop.f32.mrb[0].mxu0
  %v445 = vadd.f32 %v92, %v444
  %v446 = vpop.f32.mrb[0].mxu0
  %447 = vmatprep.mubr.bf16.mxu0 0
  %448 = vmatmul.mubr.bf16.gmra.mrb[0].mxu0 %v295
  %v449 = vpop.f32.mrb[0].mxu0
  %v450 = vadd.f32 %v92, %v449
  %v451 = vpop.f32.mrb[0].mxu0
  %v452 = vpop.f32.mrb[0].mxu0
  %v453 = vadd.f32 %v92, %v452
  %v454 = vpop.f32.mrb[0].mxu0
  %455 = vmatprep.mubr.bf16.mxu0 0
  %456 = vmatmul.mubr.bf16.gmra.mrb[0].mxu0 %v298
  %v457 = vpop.f32.mrb[0].mxu0
  %v458 = vadd.f32 %v92, %v457
  %v459 = vpop.f32.mrb[0].mxu0
  %v460 = vpop.f32.mrb[0].mxu0
  %v461 = vadd.f32 %v92, %v460
  %v462 = vpop.f32.mrb[0].mxu0
  %463 = vmatprep.mubr.bf16.mxu0 0
  %464 = vmatmul.mubr.bf16.gmra.mrb[0].mxu0 %v301
  %v465 = vpop.f32.mrb[0].mxu0
  %v466 = vadd.f32 %v92, %v465
  %v467 = vpop.f32.mrb[0].mxu0
  %v468 = vpop.f32.mrb[0].mxu0
  %v469 = vadd.f32 %v92, %v468
  %v470 = vpop.f32.mrb[0].mxu0
  %471 = vmatprep.mubr.bf16.mxu0 0
  %472 = vmatmul.mubr.bf16.gmra.mrb[0].mxu0 %v304
  %v473 = vpop.f32.mrb[0].mxu0
  %v474 = vadd.f32 %v92, %v473
  %v475 = vpop.f32.mrb[0].mxu0
  %v476 = vpop.f32.mrb[0].mxu0
  %v477 = vadd.f32 %v92, %v476
  %v478 = vpop.f32.mrb[0].mxu0
  %479 = vmatprep.mubr.bf16.mxu0 0
  %480 = vmatmul.mubr.bf16.gmra.mrb[0].mxu0 %v307
  %v481 = vpop.f32.mrb[0].mxu0
  %v482 = vadd.f32 %v92, %v481
  %v483 = vpop.f32.mrb[0].mxu0
  %v484 = vpop.f32.mrb[0].mxu0
  %v485 = vadd.f32 %v92, %v484
  %v486 = vpop.f32.mrb[0].mxu0
  %487 = vmatprep.mubr.bf16.mxu0 0
  %488 = vmatmul.mubr.bf16.gmra.mrb[0].mxu0 %v310
  %v489 = vpop.f32.mrb[0].mxu0
  %v490 = vadd.f32 %v92, %v489
  %v491 = vpop.f32.mrb[0].mxu0
  %v492 = vpop.f32.mrb[0].mxu0
  %v493 = vadd.f32 %v92, %v492
  %v494 = vpop.f32.mrb[0].mxu0
  %495 = vmatprep.mubr.bf16.mxu0 0
  %496 = vmatmul.mubr.bf16.gmra.mrb[0].mxu0 %v313
  %v497 = vpop.f32.mrb[0].mxu0
  %v498 = vadd.f32 %v92, %v497
  %v499 = vpop.f32.mrb[0].mxu0
  %v500 = vpop.f32.mrb[0].mxu0
  %v501 = vadd.f32 %v92, %v500
  %v502 = vpop.f32.mrb[0].mxu0
  %503 = vmatprep.mubr.bf16.mxu0 0
  %504 = vmatmul.mubr.bf16.gmra.mrb[0].mxu0 %v316
  %v505 = vpop.f32.mrb[0].mxu0
  %v506 = vadd.f32 %v92, %v505
  %v507 = vpop.f32.mrb[0].mxu0
  %v508 = vpop.f32.mrb[0].mxu0
  %v509 = vadd.f32 %v92, %v508
  %v510 = vpop.f32.mrb[0].mxu0
  %511 = vmatprep.mubr.bf16.mxu0 0
  %512 = vmatmul.mubr.bf16.gmra.mrb[0].mxu0 %v319
  %v513 = vpop.f32.mrb[0].mxu0
  %v514 = vadd.f32 %v92, %v513
  %v515 = vpop.f32.mrb[0].mxu0
  %v516 = vpop.f32.mrb[0].mxu0
  %v517 = vadd.f32 %v92, %v516
  %v518 = vpop.f32.mrb[0].mxu0
  %519 = vmatprep.mubr.bf16.mxu0 0
  %520 = vmatmul.mubr.bf16.gmra.mrb[0].mxu0 %v322
  %v521 = vpop.f32.mrb[0].mxu0
  %v522 = vadd.f32 %v92, %v521
  %v523 = vpop.f32.mrb[0].mxu0
  %v524 = vpop.f32.mrb[0].mxu0
  %v525 = vadd.f32 %v92, %v524
  %v526 = vpop.f32.mrb[0].mxu0
  %527 = vmatprep.mubr.bf16.mxu0 0
  %528 = vmatmul.mubr.bf16.gmra.mrb[0].mxu0 %v325
  %v529 = vpop.f32.mrb[0].mxu0
  %v530 = vadd.f32 %v92, %v529
  %v531 = vpop.f32.mrb[0].mxu0
  %v532 = vpop.f32.mrb[0].mxu0
  %v533 = vadd.f32 %v92, %v532
  %v534 = vpop.f32.mrb[0].mxu0
  %535 = vmatprep.mubr.bf16.mxu0 0
  %536 = vmatmul.mubr.bf16.gmra.mrb[0].mxu0 %v328
  %v537 = vpop.f32.mrb[0].mxu0
  %v538 = vadd.f32 %v92, %v537
  %v539 = vpop.f32.mrb[0].mxu0
  %v540 = vpop.f32.mrb[0].mxu0
  %v541 = vadd.f32 %v92, %v540
  %v542 = vpop.f32.mrb[0].mxu0
  %543 = vmatprep.mubr.bf16.mxu0 0
  %544 = vmatmul.mubr.bf16.gmra.mrb[0].mxu0 %v331
  %v545 = vpop.f32.mrb[0].mxu0
  %v546 = vadd.f32 %v92, %v545
  %v547 = vpop.f32.mrb[0].mxu0
  %v548 = vpop.f32.mrb[0].mxu0
  %v549 = vadd.f32 %v92, %v548
  %v550 = vpop.f32.mrb[0].mxu0
  %551 = vmatprep.mubr.bf16.mxu0 0
  %552 = vmatmul.mubr.bf16.gmra.mrb[0].mxu0 %v334
  %v553 = vpop.f32.mrb[0].mxu0
  %v554 = vadd.f32 %v92, %v553
  %v555 = vpop.f32.mrb[0].mxu0
  %v556 = vpop.f32.mrb[0].mxu0
  %v557 = vadd.f32 %v92, %v556
  %v558 = vpop.f32.mrb[0].mxu0
  %559 = vmatprep.mubr.bf16.mxu0 0
  %560 = vmatmul.mubr.bf16.gmra.mrb[0].mxu0 %v337
  %v561 = vpop.f32.mrb[0].mxu0
  %v562 = vadd.f32 %v92, %v561
  %v563 = vpop.f32.mrb[0].mxu0
  %v564 = vpop.f32.mrb[0].mxu0
  %v565 = vadd.f32 %v92, %v564
  %v566 = vpop.f32.mrb[0].mxu0
  %567 = vmatprep.mubr.bf16.mxu0 0
  %568 = vmatmul.mubr.bf16.gmra.mrb[0].mxu0 %v340
  %v569 = vpop.f32.mrb[0].mxu0
  %v570 = vadd.f32 %v92, %v569
  %v571 = vpop.f32.mrb[0].mxu0
  %v572 = vpop.f32.mrb[0].mxu0
  %v573 = vadd.f32 %v92, %v572
  %v574 = vpop.f32.mrb[0].mxu0
  %575 = vmatprep.mubr.bf16.mxu0 0
  %576 = vmatmul.mubr.bf16.gmra.mrb[0].mxu0 %v343
  %v577 = vpop.f32.mrb[0].mxu0
  %v578 = vadd.f32 %v92, %v577
  %v579 = vpop.f32.mrb[0].mxu0
  %v580 = vpop.f32.mrb[0].mxu0
  %v581 = vadd.f32 %v92, %v580
  %v582 = vpop.f32.mrb[0].mxu0
  %583 = vmatprep.mubr.bf16.mxu0 0
  %584 = vmatmul.mubr.bf16.gmra.mrb[0].mxu0 %v346
  %v585 = vpop.f32.mrb[0].mxu0
  %v586 = vadd.f32 %v92, %v585
  %v587 = vpop.f32.mrb[0].mxu0
  %v588 = vpop.f32.mrb[0].mxu0
  %v589 = vadd.f32 %v92, %v588
  %v590 = vpop.f32.mrb[0].mxu0
  %591 = vmatprep.mubr.bf16.mxu0 0
  %592 = vmatmul.mubr.bf16.gmra.mrb[0].mxu0 %v349
  %v593 = vpop.f32.mrb[0].mxu0
  %v594 = vadd.f32 %v92, %v593
  %v595 = vpop.f32.mrb[0].mxu0
  %v596 = vpop.f32.mrb[0].mxu0
  %v597 = vadd.f32 %v92, %v596
  %v598 = vpop.f32.mrb[0].mxu0
  %599 = vmatprep.mubr.bf16.mxu0 0
  %600 = vmatmul.mubr.bf16.gmra.mrb[0].mxu0 %v352
  %v601 = vpop.f32.mrb[0].mxu0
  %v602 = vadd.f32 %v92, %v601
  %v603 = vpop.f32.mrb[0].mxu0
  %v604 = vpop.f32.mrb[0].mxu0
  %v605 = vadd.f32 %v92, %v604
  %v606 = vpop.f32.mrb[0].mxu0
  %607 = vmatprep.mubr.bf16.mxu0 0
  %608 = vmatmul.mubr.bf16.gmra.mrb[0].mxu0 %v355
  %v609 = vpop.f32.mrb[0].mxu0
  %v610 = vadd.f32 %v92, %v609
  %v611 = vpop.f32.mrb[0].mxu0
  %v612 = vpop.f32.mrb[0].mxu0
  %v613 = vadd.f32 %v92, %v612
  %v614 = vpop.f32.mrb[0].mxu0
  %615 = vmatprep.mubr.bf16.mxu0 0
  %616 = vmatmul.mubr.bf16.gmra.mrb[0].mxu0 %v358
  %v617 = vpop.f32.mrb[0].mxu0
  %v618 = vadd.f32 %v92, %v617
  %v619 = vpop.f32.mrb[0].mxu0
  %v620 = vpop.f32.mrb[0].mxu0
  %v621 = vadd.f32 %v92, %v620
  %v622 = vpop.f32.mrb[0].mxu0
  %623 = vmatprep.mubr.bf16.mxu0 0
  %624 = vmatmul.mubr.bf16.gmra.mrb[0].mxu0 %v361
  %v625 = vpop.f32.mrb[0].mxu0
  %v626 = vadd.f32 %v92, %v625
  %v627 = vpop.f32.mrb[0].mxu0
  %v628 = vpop.f32.mrb[0].mxu0
  %v629 = vadd.f32 %v92, %v628
  %v630 = vpop.f32.mrb[0].mxu0
  %631 = vmatprep.mubr.bf16.mxu0 0
  %632 = vmatmul.mubr.bf16.gmra.mrb[0].mxu0 %v364
  %v633 = vpop.f32.mrb[0].mxu0
  %v634 = vadd.f32 %v92, %v633
  %v635 = vpop.f32.mrb[0].mxu0
  %v636 = vpop.f32.mrb[0].mxu0
  %v637 = vadd.f32 %v92, %v636
  %v638 = vpop.f32.mrb[0].mxu0
  %639 = vmatprep.mubr.bf16.mxu0 0
  %640 = vmatmul.mubr.bf16.gmra.mrb[0].mxu0 %v367
  %v641 = vpop.f32.mrb[0].mxu0
  %v642 = vadd.f32 %v92, %v641
  %v643 = vpop.f32.mrb[0].mxu0
  %v644 = vpop.f32.mrb[0].mxu0
  %v645 = vadd.f32 %v92, %v644
  %v646 = vpop.f32.mrb[0].mxu0
  %647 = vmatprep.mubr.bf16.mxu0 0
  %648 = vmatmul.mubr.bf16.gmra.mrb[0].mxu0 %v370
  %v649 = vpop.f32.mrb[0].mxu0
  %v650 = vadd.f32 %v92, %v649
  %v651 = vpop.f32.mrb[0].mxu0
  %v652 = vpop.f32.mrb[0].mxu0
  %v653 = vadd.f32 %v92, %v652
  %v654 = vpop.f32.mrb[0].mxu0
  %655 = vmatprep.mubr.bf16.mxu0 0
  %656 = vmatmul.mubr.bf16.gmra.mrb[0].mxu0 %v373
  %v657 = vpop.f32.mrb[0].mxu0
  %v658 = vadd.f32 %v92, %v657
  %v659 = vpop.f32.mrb[0].mxu0
  %v660 = vpop.f32.mrb[0].mxu0
  %v661 = vadd.f32 %v92, %v660
  %v662 = vpop.f32.mrb[0].mxu0
  %663 = vdwg.mxu0
  %v664 = vmul.f32 %v410, 0.5
  %v665 = vmul.f32 %v413, 0.5
  %v666 = vmul.f32 %v418, 0.5
  %v667 = vmul.f32 %v421, 0.5
  %v668 = vmul.f32 %v426, 0.5
  %v669 = vmul.f32 %v429, 0.5
  %v670 = vmul.f32 %v434, 0.5
  %v671 = vmul.f32 %v437, 0.5
  %v672 = vmul.f32 %v442, 0.5
  %v673 = vmul.f32 %v445, 0.5
  %v674 = vmul.f32 %v450, 0.5
  %v675 = vmul.f32 %v453, 0.5
  %v676 = vmul.f32 %v458, 0.5
  %v677 = vmul.f32 %v461, 0.5
  %v678 = vmul.f32 %v466, 0.5
  %v679 = vmul.f32 %v469, 0.5
  %v680 = vmul.f32 %v474, 0.5
  %v681 = vmul.f32 %v477, 0.5
  %v682 = vmul.f32 %v482, 0.5
  %v683 = vmul.f32 %v485, 0.5
  %v684 = vmul.f32 %v490, 0.5
  %v685 = vmul.f32 %v493, 0.5
  %v686 = vmul.f32 %v498, 0.5
  %v687 = vmul.f32 %v501, 0.5
  %v688 = vmul.f32 %v506, 0.5
  %v689 = vmul.f32 %v509, 0.5
  %v690 = vmul.f32 %v514, 0.5
  %v691 = vmul.f32 %v517, 0.5
  %v692 = vmul.f32 %v522, 0.5
  %v693 = vmul.f32 %v525, 0.5
  %v694 = vmul.f32 %v530, 0.5
  %v695 = vmul.f32 %v533, 0.5
  %v696 = vmul.f32 %v538, 0.5
  %v697 = vmul.f32 %v541, 0.5
  %v698 = vmul.f32 %v546, 0.5
  %v699 = vmul.f32 %v549, 0.5
  %v700 = vmul.f32 %v554, 0.5
  %v701 = vmul.f32 %v557, 0.5
  %v702 = vmul.f32 %v562, 0.5
  %v703 = vmul.f32 %v565, 0.5
  %v704 = vmul.f32 %v570, 0.5
  %v705 = vmul.f32 %v573, 0.5
  %v706 = vmul.f32 %v578, 0.5
  %v707 = vmul.f32 %v581, 0.5
  %v708 = vmul.f32 %v586, 0.5
  %v709 = vmul.f32 %v589, 0.5
  %v710 = vmul.f32 %v594, 0.5
  %v711 = vmul.f32 %v597, 0.5
  %v712 = vmul.f32 %v602, 0.5
  %v713 = vmul.f32 %v605, 0.5
  %v714 = vmul.f32 %v610, 0.5
  %v715 = vmul.f32 %v613, 0.5
  %v716 = vmul.f32 %v618, 0.5
  %v717 = vmul.f32 %v621, 0.5
  %v718 = vmul.f32 %v626, 0.5
  %v719 = vmul.f32 %v629, 0.5
  %v720 = vmul.f32 %v634, 0.5
  %v721 = vmul.f32 %v637, 0.5
  %v722 = vmul.f32 %v642, 0.5
  %v723 = vmul.f32 %v645, 0.5
  %v724 = vmul.f32 %v650, 0.5
  %v725 = vmul.f32 %v653, 0.5
  %v726 = vmul.f32 %v658, 0.5
  %v727 = vmul.f32 %v661, 0.5
  %v728 = vtanh.pop %v664
  %v729 = vtanh.pop %v665
  %v730 = vtanh.pop %v666
  %v731 = vtanh.pop %v667
  %v732 = vtanh.pop %v668
  %v733 = vtanh.pop %v669
  %v734 = vtanh.pop %v670
  %v735 = vtanh.pop %v671
  %v736 = vtanh.pop %v672
  %v737 = vtanh.pop %v673
  %v738 = vtanh.pop %v674
  %v739 = vtanh.pop %v675
  %v740 = vtanh.pop %v676
  %v741 = vtanh.pop %v677
  %v742 = vtanh.pop %v678
  %v743 = vtanh.pop %v679
  %v744 = vtanh.pop %v680
  %v745 = vtanh.pop %v681
  %v746 = vtanh.pop %v682
  %v747 = vtanh.pop %v683
  %v748 = vtanh.pop %v684
  %v749 = vtanh.pop %v685
  %v750 = vtanh.pop %v686
  %v751 = vtanh.pop %v687
  %v752 = vtanh.pop %v688
  %v753 = vtanh.pop %v689
  %v754 = vtanh.pop %v690
  %v755 = vtanh.pop %v691
  %v756 = vtanh.pop %v692
  %v757 = vtanh.pop %v693
  %v758 = vtanh.pop %v694
  %v759 = vtanh.pop %v695
  %v760 = vtanh.pop %v696
  %v761 = vtanh.pop %v697
  %v762 = vtanh.pop %v698
  %v763 = vtanh.pop %v699
  %v764 = vtanh.pop %v700
  %v765 = vtanh.pop %v701
  %v766 = vtanh.pop %v702
  %v767 = vtanh.pop %v703
  %v768 = vtanh.pop %v704
  %v769 = vtanh.pop %v705
  %v770 = vtanh.pop %v706
  %v771 = vtanh.pop %v707
  %v772 = vtanh.pop %v708
  %v773 = vtanh.pop %v709
  %v774 = vtanh.pop %v710
  %v775 = vtanh.pop %v711
  %v776 = vtanh.pop %v712
  %v777 = vtanh.pop %v713
  %v778 = vtanh.pop %v714
  %v779 = vtanh.pop %v715
  %v780 = vtanh.pop %v716
  %v781 = vtanh.pop %v717
  %v782 = vtanh.pop %v718
  %v783 = vtanh.pop %v719
  %v784 = vtanh.pop %v720
  %v785 = vtanh.pop %v721
  %v786 = vtanh.pop %v722
  %v787 = vtanh.pop %v723
  %v788 = vtanh.pop %v724
  %v789 = vtanh.pop %v725
  %v790 = vtanh.pop %v726
  %v791 = vtanh.pop %v727
  %v792 = vadd.f32 %v728, 1.0
  %v793 = vadd.f32 %v729, 1.0
  %v794 = vadd.f32 %v730, 1.0
  %v795 = vadd.f32 %v731, 1.0
  %v796 = vadd.f32 %v732, 1.0
  %v797 = vadd.f32 %v733, 1.0
  %v798 = vadd.f32 %v734, 1.0
  %v799 = vadd.f32 %v735, 1.0
  %v800 = vadd.f32 %v736, 1.0
  %v801 = vadd.f32 %v737, 1.0
  %v802 = vadd.f32 %v738, 1.0
  %v803 = vadd.f32 %v739, 1.0
  %v804 = vadd.f32 %v740, 1.0
  %v805 = vadd.f32 %v741, 1.0
  %v806 = vadd.f32 %v742, 1.0
  %v807 = vadd.f32 %v743, 1.0
  %v808 = vadd.f32 %v744, 1.0
  %v809 = vadd.f32 %v745, 1.0
  %v810 = vadd.f32 %v746, 1.0
  %v811 = vadd.f32 %v747, 1.0
  %v812 = vadd.f32 %v748, 1.0
  %v813 = vadd.f32 %v749, 1.0
  %v814 = vadd.f32 %v750, 1.0
  %v815 = vadd.f32 %v751, 1.0
  %v816 = vadd.f32 %v752, 1.0
  %v817 = vadd.f32 %v753, 1.0
  %v818 = vadd.f32 %v754, 1.0
  %v819 = vadd.f32 %v755, 1.0
  %v820 = vadd.f32 %v756, 1.0
  %v821 = vadd.f32 %v757, 1.0
  %v822 = vadd.f32 %v758, 1.0
  %v823 = vadd.f32 %v759, 1.0
  %v824 = vadd.f32 %v760, 1.0
  %v825 = vadd.f32 %v761, 1.0
  %v826 = vadd.f32 %v762, 1.0
  %v827 = vadd.f32 %v763, 1.0
  %v828 = vadd.f32 %v764, 1.0
  %v829 = vadd.f32 %v765, 1.0
  %v830 = vadd.f32 %v766, 1.0
  %v831 = vadd.f32 %v767, 1.0
  %v832 = vadd.f32 %v768, 1.0
  %v833 = vadd.f32 %v769, 1.0
  %v834 = vadd.f32 %v770, 1.0
  %v835 = vadd.f32 %v771, 1.0
  %v836 = vadd.f32 %v772, 1.0
  %v837 = vadd.f32 %v773, 1.0
  %v838 = vadd.f32 %v774, 1.0
  %v839 = vadd.f32 %v775, 1.0
  %v840 = vadd.f32 %v776, 1.0
  %v841 = vadd.f32 %v777, 1.0
  %v842 = vadd.f32 %v778, 1.0
  %v843 = vadd.f32 %v779, 1.0
  %v844 = vadd.f32 %v780, 1.0
  %v845 = vadd.f32 %v781, 1.0
  %v846 = vadd.f32 %v782, 1.0
  %v847 = vadd.f32 %v783, 1.0
  %v848 = vadd.f32 %v784, 1.0
  %v849 = vadd.f32 %v785, 1.0
  %v850 = vadd.f32 %v786, 1.0
  %v851 = vadd.f32 %v787, 1.0
  %v852 = vadd.f32 %v788, 1.0
  %v853 = vadd.f32 %v789, 1.0
  %v854 = vadd.f32 %v790, 1.0
  %v855 = vadd.f32 %v791, 1.0
  %v856 = vmul.f32 %v792, 0.5
  %v857 = vmul.f32 %v793, 0.5
  %v858 = vmul.f32 %v794, 0.5
  %v859 = vmul.f32 %v795, 0.5
  %v860 = vmul.f32 %v796, 0.5
  %v861 = vmul.f32 %v797, 0.5
  %v862 = vmul.f32 %v798, 0.5
  %v863 = vmul.f32 %v799, 0.5
  %v864 = vmul.f32 %v800, 0.5
  %v865 = vmul.f32 %v801, 0.5
  %v866 = vmul.f32 %v802, 0.5
  %v867 = vmul.f32 %v803, 0.5
  %v868 = vmul.f32 %v804, 0.5
  %v869 = vmul.f32 %v805, 0.5
  %v870 = vmul.f32 %v806, 0.5
  %v871 = vmul.f32 %v807, 0.5
  %v872 = vmul.f32 %v808, 0.5
  %v873 = vmul.f32 %v809, 0.5
  %v874 = vmul.f32 %v810, 0.5
  %v875 = vmul.f32 %v811, 0.5
  %v876 = vmul.f32 %v812, 0.5
  %v877 = vmul.f32 %v813, 0.5
  %v878 = vmul.f32 %v814, 0.5
  %v879 = vmul.f32 %v815, 0.5
  %v880 = vmul.f32 %v816, 0.5
  %v881 = vmul.f32 %v817, 0.5
  %v882 = vmul.f32 %v818, 0.5
  %v883 = vmul.f32 %v819, 0.5
  %v884 = vmul.f32 %v820, 0.5
  %v885 = vmul.f32 %v821, 0.5
  %v886 = vmul.f32 %v822, 0.5
  %v887 = vmul.f32 %v823, 0.5
  %v888 = vmul.f32 %v824, 0.5
  %v889 = vmul.f32 %v825, 0.5
  %v890 = vmul.f32 %v826, 0.5
  %v891 = vmul.f32 %v827, 0.5
  %v892 = vmul.f32 %v828, 0.5
  %v893 = vmul.f32 %v829, 0.5
  %v894 = vmul.f32 %v830, 0.5
  %v895 = vmul.f32 %v831, 0.5
  %v896 = vmul.f32 %v832, 0.5
  %v897 = vmul.f32 %v833, 0.5
  %v898 = vmul.f32 %v834, 0.5
  %v899 = vmul.f32 %v835, 0.5
  %v900 = vmul.f32 %v836, 0.5
  %v901 = vmul.f32 %v837, 0.5
  %v902 = vmul.f32 %v838, 0.5
  %v903 = vmul.f32 %v839, 0.5
  %v904 = vmul.f32 %v840, 0.5
  %v905 = vmul.f32 %v841, 0.5
  %v906 = vmul.f32 %v842, 0.5
  %v907 = vmul.f32 %v843, 0.5
  %v908 = vmul.f32 %v844, 0.5
  %v909 = vmul.f32 %v845, 0.5
  %v910 = vmul.f32 %v846, 0.5
  %v911 = vmul.f32 %v847, 0.5
  %v912 = vmul.f32 %v848, 0.5
  %v913 = vmul.f32 %v849, 0.5
  %v914 = vmul.f32 %v850, 0.5
  %v915 = vmul.f32 %v851, 0.5
  %v916 = vmul.f32 %v852, 0.5
  %v917 = vmul.f32 %v853, 0.5
  %v918 = vmul.f32 %v854, 0.5
  %v919 = vmul.f32 %v855, 0.5
  %920 = vst [vmem:[%s3] sm:$0xff] %v856
  %921 = vst [vmem:[%s3 + $0x8] sm:$0xff] %v857
  %922 = vst [vmem:[%s3 + $0x10] sm:$0xff] %v858
  %923 = vst [vmem:[%s3 + $0x18] sm:$0xff] %v859
  %924 = vst [vmem:[%s3 + $0x20] sm:$0xff] %v860
  %925 = vst [vmem:[%s3 + $0x28] sm:$0xff] %v861
  %926 = vst [vmem:[%s3 + $0x30] sm:$0xff] %v862
  %927 = vst [vmem:[%s3 + $0x38] sm:$0xff] %v863
  %928 = vst [vmem:[%s3 + $0x40] sm:$0xff] %v864
  %929 = vst [vmem:[%s3 + $0x48] sm:$0xff] %v865
  %930 = vst [vmem:[%s3 + $0x50] sm:$0xff] %v866
  %931 = vst [vmem:[%s3 + $0x58] sm:$0xff] %v867
  %932 = vst [vmem:[%s3 + $0x60] sm:$0xff] %v868
  %933 = vst [vmem:[%s3 + $0x68] sm:$0xff] %v869
  %934 = vst [vmem:[%s3 + $0x70] sm:$0xff] %v870
  %935 = vst [vmem:[%s3 + $0x78] sm:$0xff] %v871
  %936 = vst [vmem:[%s3 + $0x80] sm:$0xff] %v872
  %937 = vst [vmem:[%s3 + $0x88] sm:$0xff] %v873
  %938 = vst [vmem:[%s3 + $0x90] sm:$0xff] %v874
  %939 = vst [vmem:[%s3 + $0x98] sm:$0xff] %v875
  %940 = vst [vmem:[%s3 + $0xa0] sm:$0xff] %v876
  %941 = vst [vmem:[%s3 + $0xa8] sm:$0xff] %v877
  %942 = vst [vmem:[%s3 + $0xb0] sm:$0xff] %v878
  %943 = vst [vmem:[%s3 + $0xb8] sm:$0xff] %v879
  %944 = vst [vmem:[%s3 + $0xc0] sm:$0xff] %v880
  %945 = vst [vmem:[%s3 + $0xc8] sm:$0xff] %v881
  %946 = vst [vmem:[%s3 + $0xd0] sm:$0xff] %v882
  %947 = vst [vmem:[%s3 + $0xd8] sm:$0xff] %v883
  %948 = vst [vmem:[%s3 + $0xe0] sm:$0xff] %v884
  %949 = vst [vmem:[%s3 + $0xe8] sm:$0xff] %v885
  %950 = vst [vmem:[%s3 + $0xf0] sm:$0xff] %v886
  %951 = vst [vmem:[%s3 + $0xf8] sm:$0xff] %v887
  %952 = vst [vmem:[%s3 + $0x100] sm:$0xff] %v888
  %953 = vst [vmem:[%s3 + $0x108] sm:$0xff] %v889
  %954 = vst [vmem:[%s3 + $0x110] sm:$0xff] %v890
  %955 = vst [vmem:[%s3 + $0x118] sm:$0xff] %v891
  %956 = vst [vmem:[%s3 + $0x120] sm:$0xff] %v892
  %957 = vst [vmem:[%s3 + $0x128] sm:$0xff] %v893
  %958 = vst [vmem:[%s3 + $0x130] sm:$0xff] %v894
  %959 = vst [vmem:[%s3 + $0x138] sm:$0xff] %v895
  %960 = vst [vmem:[%s3 + $0x140] sm:$0xff] %v896
  %961 = vst [vmem:[%s3 + $0x148] sm:$0xff] %v897
  %962 = vst [vmem:[%s3 + $0x150] sm:$0xff] %v898
  %963 = vst [vmem:[%s3 + $0x158] sm:$0xff] %v899
  %964 = vst [vmem:[%s3 + $0x160] sm:$0xff] %v900
  %965 = vst [vmem:[%s3 + $0x168] sm:$0xff] %v901
  %966 = vst [vmem:[%s3 + $0x170] sm:$0xff] %v902
  %967 = vst [vmem:[%s3 + $0x178] sm:$0xff] %v903
  %968 = vst [vmem:[%s3 + $0x180] sm:$0xff] %v904
  %969 = vst [vmem:[%s3 + $0x188] sm:$0xff] %v905
  %970 = vst [vmem:[%s3 + $0x190] sm:$0xff] %v906
  %971 = vst [vmem:[%s3 + $0x198] sm:$0xff] %v907
  %972 = vst [vmem:[%s3 + $0x1a0] sm:$0xff] %v908
  %973 = vst [vmem:[%s3 + $0x1a8] sm:$0xff] %v909
  %974 = vst [vmem:[%s3 + $0x1b0] sm:$0xff] %v910
  %975 = vst [vmem:[%s3 + $0x1b8] sm:$0xff] %v911
  %976 = vst [vmem:[%s3 + $0x1c0] sm:$0xff] %v912
  %977 = vst [vmem:[%s3 + $0x1c8] sm:$0xff] %v913
  %978 = vst [vmem:[%s3 + $0x1d0] sm:$0xff] %v914
  %979 = vst [vmem:[%s3 + $0x1d8] sm:$0xff] %v915
  %980 = vst [vmem:[%s3 + $0x1e0] sm:$0xff] %v916
  %981 = vst [vmem:[%s3 + $0x1e8] sm:$0xff] %v917
  %982 = vst [vmem:[%s3 + $0x1f0] sm:$0xff] %v918
  %983 = vst [vmem:[%s3 + $0x1f8] sm:$0xff] %v919
  // Predicated region
  $region14: #{_lambda_.19} parent=0 // pred_check
    _
  $region15: #{_lambda_.19} parent=0 // pred_check_branch
    %985 = sbr.rel (0) target = $region17
  $region16: #{_lambda_.19} parent=0 // pred_region
    _
  $region17: #{_lambda_.19} parent=0 // pred_fallthru
    _
  // Predicated region
  $region18: #{_lambda_.19} parent=0 // pred_check
    _
  $region19: #{_lambda_.19} parent=0 // pred_check_branch
    %987 = sbr.rel (0) target = $region21
  $region20: #{_lambda_.19} parent=0 // pred_region
    _
  $region21: #{_lambda_.19} parent=0 // pred_fallthru
    _

</llo_original>
